<compile_context>
chip_gen: v6e
topology: v6e:2x2x1
jax: 0.10.0
libtpu: 0.0.40
codegen_flags: <defaults>
</compile_context>

<pallas_src>
import functools

import jax
import jax.numpy as jnp
import numpy as np
from jax import lax
from jax.experimental import pallas as pl
from jax.experimental.pallas import tpu as pltpu


# --------------------------------------------------------------------------
# Pallas ResBlock kernel:  out = x + conv3x3(relu(conv3x3(x)))
# --------------------------------------------------------------------------
def _resblock_kernel(x_ref, w_ref, b_ref, m_ref, o_ref,
                     xbuf_ref, hbuf_ref, patch_ref, *, C, W, HW):
    """One batch element per grid step.

    x_ref   : (1, C, HW)    input, flattened spatial on lanes
    w_ref   : (2, C, 9*C)   [conv1, conv2] weights as im2col matrices
    b_ref   : (2, C, 1)     biases
    m_ref   : (2, 1, HW)    [left, right] image-column masks (fix W-border wrap)
    o_ref   : (1, C, HW)    output
    xbuf_ref, hbuf_ref : (C, HW + 2*(W+1))  H-padded flat scratch, data at [W+1, W+1+HW)
    patch_ref          : (9*C, HW)          im2col scratch shared by both convs
    """
    B = W + 1                                   # pad-strip length / data offset
    deltas = [(dh - 1) * W + (dw - 1) for dh in range(3) for dw in range(3)]
    zero_strip = jnp.zeros((C, B), jnp.float32)

    def conv3x3(buf_ref, idx):
        # im2col: 9 lane-shifted views of the H-padded buffer stacked along K,
        # then ONE (C, 9C) @ (9C, HW) MXU matmul with f32 accumulation.
        for t, d in enumerate(deltas):
            src = buf_ref[:, B + d: B + d + HW]
            dw = t % 3
            if dw == 0:                         # left taps wrap at image col 0
                src = src * m_ref[0]
            elif dw == 2:                       # right taps wrap at image col W-1
                src = src * m_ref[1]
            patch_ref[t * C:(t + 1) * C, :] = src
        acc = jnp.dot(w_ref[idx], patch_ref[...],
                      preferred_element_type=jnp.float32)
        return acc + b_ref[idx]                 # bias folded into the epilogue

    # Stage the input into the H-padded flat scratch (2 tiny strips + 1 store).
    xbuf_ref[:, :B] = zero_strip
    xbuf_ref[:, B + HW:] = zero_strip
    xbuf_ref[:, B:B + HW] = x_ref[0]

    h1 = jnp.maximum(conv3x3(xbuf_ref, 0), 0.0)          # conv1 + bias + ReLU

    hbuf_ref[:, :B] = zero_strip
    hbuf_ref[:, B + HW:] = zero_strip
    hbuf_ref[:, B:B + HW] = h1

    o_ref[0] = x_ref[0] + conv3x3(hbuf_ref, 1)           # conv2 + bias + residual


def resblock_pallas(x, w1, b1, w2, b2):
    """ResBlock forward.  x: (N, C, H, W) f32, weights in PyTorch OIHW layout."""
    N, C, H, W = x.shape
    HW = H * W
    Q = HW + 2 * (W + 1)

    xf = x.astype(jnp.float32).reshape(N, C, HW)          # free bitcast reshape

    def to_mat(w):  # OIHW -> (C_out, (dh, dw, C_in)) im2col matrix
        return jnp.transpose(w.astype(jnp.float32), (0, 2, 3, 1)).reshape(C, 9 * C)

    wmat = jnp.stack([to_mat(w1), to_mat(w2)])             # (2, C, 9C)
    bias = jnp.stack([b1, b2]).astype(jnp.float32).reshape(2, C, 1)

    col = np.arange(HW) % W
    masks = jnp.asarray(
        np.stack([(col != 0), (col != W - 1)]).astype(np.float32).reshape(2, 1, HW))

    kernel = functools.partial(_resblock_kernel, C=C, W=W, HW=HW)

    out = pl.pallas_call(
        kernel,
        out_shape=jax.ShapeDtypeStruct((N, C, HW), jnp.float32),
        grid_spec=pltpu.PrefetchScalarGridSpec(
            num_scalar_prefetch=0,
            grid=(N,),
            in_specs=[
                pl.BlockSpec((1, C, HW), lambda n: (n, 0, 0)),       # activation
                pl.BlockSpec((2, C, 9 * C), lambda n: (0, 0, 0)),    # both weights
                pl.BlockSpec((2, C, 1), lambda n: (0, 0, 0)),        # both biases
                pl.BlockSpec((2, 1, HW), lambda n: (0, 0, 0)),       # border masks
            ],
            out_specs=pl.BlockSpec((1, C, HW), lambda n: (n, 0, 0)),
            scratch_shapes=[
                pltpu.VMEM((C, Q), jnp.float32),        # H-padded input
                pltpu.VMEM((C, Q), jnp.float32),        # H-padded intermediate
                pltpu.VMEM((9 * C, HW), jnp.float32),   # im2col patches
            ],
        ),
        compiler_params=pltpu.CompilerParams(
            dimension_semantics=("parallel",),
            vmem_limit_bytes=32 * 1024 * 1024,
        ),
    )(xf, wmat, bias, masks)

    return out.reshape(N, C, H, W)                          # free bitcast reshape


# --------------------------------------------------------------------------
# The rest of the Model as JAX glue.
# TODO(synk): non-ResBlock layers (stem/dilated convs, max/avg pool, transposed
# convs, 1x1 attention conv, tanh/clip) stay as XLA ops; only the three
# ResBlocks run through the Pallas kernel.
# --------------------------------------------------------------------------
_DN = ("NCHW", "OIHW", "NCHW")


def _conv2d(x, wb, padding, dilation=1):
    w, b = wb
    y = lax.conv_general_dilated(
        x, w, (1, 1), [(padding, padding)] * 2,
        rhs_dilation=(dilation, dilation), dimension_numbers=_DN,
        precision=lax.Precision.HIGHEST)
    return y + b[None, :, None, None]


def _conv_transpose2d(x, wb, stride):
    # PyTorch ConvTranspose2d (padding=0) == lhs-dilated conv with flipped kernel.
    w, b = wb
    k = w.shape[-1]
    wt = jnp.flip(w, (2, 3)).transpose(1, 0, 2, 3)
    y = lax.conv_general_dilated(
        x, wt, (1, 1), [(k - 1, k - 1)] * 2,
        lhs_dilation=(stride, stride), dimension_numbers=_DN,
        precision=lax.Precision.HIGHEST)
    return y + b[None, :, None, None]


def _maxpool2(x):
    return lax.reduce_window(x, -jnp.inf, lax.max, (1, 1, 2, 2), (1, 1, 2, 2), "VALID")


def _avgpool2(x):
    return lax.reduce_window(x, 0.0, lax.add, (1, 1, 2, 2), (1, 1, 2, 2), "VALID") * 0.25


def resblock_ref(x, p):
    h = jnp.maximum(_conv2d(x, (p["w1"], p["b1"]), 1), 0.0)
    return x + _conv2d(h, (p["w2"], p["b2"]), 1)


def resblock_kernelized(x, p):
    return resblock_pallas(x, p["w1"], p["b1"], p["w2"], p["b2"])


def model_forward(params, x, resblock):
    relu = lambda v: jnp.maximum(v, 0.0)
    t = _conv2d(x, params["c1"], 1)
    t = resblock(t, params["rb1"])
    f1 = _maxpool2(t)
    t = _conv2d(f1, params["c2"], 1)
    t = resblock(t, params["rb2"])
    f2 = _maxpool2(t)
    t = relu(_conv2d(f2, params["c3a"], 1))
    t = _conv2d(t, params["c3b"], 2, dilation=2)
    f3 = _maxpool2(t)
    d2 = relu(_conv_transpose2d(f3, params["up2"], 2))
    d2 = jnp.concatenate([d2, f2], axis=1)
    d1 = relu(_conv_transpose2d(d2, params["up1"], 2))
    e0_down = _avgpool2(x)
    attn = jax.nn.sigmoid(
        _conv2d(jnp.concatenate([d1, f1, e0_down], axis=1), params["att"], 0))
    d1 = d1 * attn
    r = _conv2d(d1, params["df1"], 1)
    r = resblock(r, params["rb3"])
    r = jnp.tanh(_conv2d(r, params["df2"], 1))
    r = r[:, :, 3:11, 3:11]
    center = x[:, :, 10:18, 10:18]
    return jnp.clip(center + r, 0.0, 1.0)


def init_params(key):
    ks = jax.random.split(key, 12)

    def conv_p(k, co, ci, ksz):
        s = 1.0 / np.sqrt(ci * ksz * ksz)
        kw, kb = jax.random.split(k)
        return (jax.random.uniform(kw, (co, ci, ksz, ksz), jnp.float32, -s, s),
                jax.random.uniform(kb, (co,), jnp.float32, -s, s))

    def convT_p(k, ci, co, ksz):
        s = 1.0 / np.sqrt(co * ksz * ksz)
        kw, kb = jax.random.split(k)
        return (jax.random.uniform(kw, (ci, co, ksz, ksz), jnp.float32, -s, s),
                jax.random.uniform(kb, (co,), jnp.float32, -s, s))

    def resblock_p(k, c):
        k1, k2 = jax.random.split(k)
        w1, b1 = conv_p(k1, c, c, 3)
        w2, b2 = conv_p(k2, c, c, 3)
        return dict(w1=w1, b1=b1, w2=w2, b2=b2)

    return {
        "c1": conv_p(ks[0], 32, 1, 3),
        "rb1": resblock_p(ks[1], 32),
        "c2": conv_p(ks[2], 64, 32, 3),
        "rb2": resblock_p(ks[3], 64),
        "c3a": conv_p(ks[4], 128, 64, 3),
        "c3b": conv_p(ks[5], 128, 128, 3),
        "up2": convT_p(ks[6], 128, 64, 3),
        "up1": convT_p(ks[7], 128, 32, 2),
        "att": conv_p(ks[8], 32, 65, 1),
        "df1": conv_p(ks[9], 32, 32, 3),
        "rb3": resblock_p(ks[10], 32),
        "df2": conv_p(ks[11], 1, 32, 3),
    }


if __name__ == "__main__":
    root = jax.random.PRNGKey(0)
    k_x, k_params, k_rb = jax.random.split(root, 3)

    params = init_params(k_params)
    x = jax.random.uniform(k_x, (2, 1, 28, 28), jnp.float32)     # MNIST-like input

    # 1) standalone check of the Pallas ResBlock against a lax-conv reference.
    xr = jax.random.normal(k_rb, (2, 32, 28, 28), jnp.float32)
    rb = params["rb1"]
    out_pl = jax.block_until_ready(resblock_kernelized(xr, rb))
    out_rf = jax.block_until_ready(resblock_ref(xr, rb))
    np.testing.assert_allclose(np.asarray(out_pl), np.asarray(out_rf),
                               rtol=1e-4, atol=1e-4)

    # 2) full Model forward with all three ResBlocks on the Pallas kernel.
    fwd_pl = jax.jit(functools.partial(model_forward, resblock=resblock_kernelized))
    fwd_rf = jax.jit(functools.partial(model_forward, resblock=resblock_ref))
    y_pl = jax.block_until_ready(fwd_pl(params, x))
    y_rf = jax.block_until_ready(fwd_rf(params, x))
    assert y_pl.shape == (2, 1, 8, 8)
    np.testing.assert_allclose(np.asarray(y_pl), np.asarray(y_rf),
                               rtol=1e-3, atol=1e-3)

    print("KERNEL_OK")
</pallas_src>

<mosaic_0001>
module attributes {stable_mosaic.version = 11 : i64} {
  func.func @_resblock_kernel(%arg0: i32, %arg1: memref<1x32x784xf32, #tpu.memory_space<vmem>>, %arg2: memref<2x32x288xf32, #tpu.memory_space<vmem>>, %arg3: memref<2x32x1xf32, #tpu.memory_space<vmem>>, %arg4: memref<2x1x784xf32, #tpu.memory_space<vmem>>, %arg5: memref<1x32x784xf32, #tpu.memory_space<vmem>>, %arg6: memref<32x842xf32, #tpu.memory_space<vmem>>, %arg7: memref<32x842xf32, #tpu.memory_space<vmem>>, %arg8: memref<288x784xf32, #tpu.memory_space<vmem>>) attributes {dimension_semantics = [#tpu.dimension_semantics<parallel>], iteration_bounds = array<i64: 2>, scalar_prefetch = 0 : i64, scratch_operands = 3 : i64, tpu.core_type = #tpu.core_type<tc>, window_params = [{transform_indices = @transform_0, window_bounds = array<i64: 1, 32, 784>}, {pipeline_mode = #tpu.pipeline_mode<synchronous>, transform_indices = @transform_1, window_bounds = array<i64: 2, 32, 288>}, {pipeline_mode = #tpu.pipeline_mode<synchronous>, transform_indices = @transform_2, window_bounds = array<i64: 2, 32, 1>}, {pipeline_mode = #tpu.pipeline_mode<synchronous>, transform_indices = @transform_3, window_bounds = array<i64: 2, 1, 784>}, {transform_indices = @transform_4, window_bounds = array<i64: 1, 32, 784>}]} {
    %cst = arith.constant 0.000000e+00 : f32
    %0 = vector.broadcast %cst : f32 to vector<32x29xf32>
    %c0 = arith.constant 0 : index
    %c0_0 = arith.constant 0 : index
    %1 = vector.load %arg6[%c0, %c0_0] : memref<32x842xf32, #tpu.memory_space<vmem>>, vector<32x29xf32>
    tpu.vector_store %arg6[%c0, %c0_0], %0 {strides = array<i32>} : memref<32x842xf32, #tpu.memory_space<vmem>>, vector<32x29xf32>,
    %c0_1 = arith.constant 0 : index
    %c813 = arith.constant 813 : index
    %2 = vector.load %arg6[%c0_1, %c813] : memref<32x842xf32, #tpu.memory_space<vmem>>, vector<32x29xf32>
    tpu.vector_store %arg6[%c0_1, %c813], %0 {strides = array<i32>} : memref<32x842xf32, #tpu.memory_space<vmem>>, vector<32x29xf32>,
    %c0_2 = arith.constant 0 : index
    %c0_3 = arith.constant 0 : index
    %c0_4 = arith.constant 0 : index
    %3 = vector.load %arg1[%c0_2, %c0_3, %c0_4] : memref<1x32x784xf32, #tpu.memory_space<vmem>>, vector<1x32x784xf32>
    %4 = vector.shape_cast %3 : vector<1x32x784xf32> to vector<32x784xf32>
    %c0_5 = arith.constant 0 : index
    %c29 = arith.constant 29 : index
    %5 = vector.load %arg6[%c0_5, %c29] : memref<32x842xf32, #tpu.memory_space<vmem>>, vector<32x784xf32>
    tpu.vector_store %arg6[%c0_5, %c29], %4 {strides = array<i32>} : memref<32x842xf32, #tpu.memory_space<vmem>>, vector<32x784xf32>,
    %c0_6 = arith.constant 0 : index
    %c0_7 = arith.constant 0 : index
    %6 = vector.load %arg6[%c0_6, %c0_7] : memref<32x842xf32, #tpu.memory_space<vmem>>, vector<32x784xf32>
    %c0_8 = arith.constant 0 : index
    %c0_9 = arith.constant 0 : index
    %c0_10 = arith.constant 0 : index
    %7 = vector.load %arg4[%c0_8, %c0_9, %c0_10] : memref<2x1x784xf32, #tpu.memory_space<vmem>>, vector<1x1x784xf32>
    %8 = vector.shape_cast %7 : vector<1x1x784xf32> to vector<1x784xf32>
    %9 = vector.broadcast %8 : vector<1x784xf32> to vector<32x784xf32>
    %10 = arith.mulf %6, %9 : vector<32x784xf32>
    %c0_11 = arith.constant 0 : index
    %c0_12 = arith.constant 0 : index
    %11 = vector.load %arg8[%c0_11, %c0_12] : memref<288x784xf32, #tpu.memory_space<vmem>>, vector<32x784xf32>
    tpu.vector_store %arg8[%c0_11, %c0_12], %10 {strides = array<i32>} : memref<288x784xf32, #tpu.memory_space<vmem>>, vector<32x784xf32>,
    %c0_13 = arith.constant 0 : index
    %c1 = arith.constant 1 : index
    %12 = vector.load %arg6[%c0_13, %c1] : memref<32x842xf32, #tpu.memory_space<vmem>>, vector<32x784xf32>
    %c32 = arith.constant 32 : index
    %c0_14 = arith.constant 0 : index
    %13 = vector.load %arg8[%c32, %c0_14] : memref<288x784xf32, #tpu.memory_space<vmem>>, vector<32x784xf32>
    tpu.vector_store %arg8[%c32, %c0_14], %12 {strides = array<i32>} : memref<288x784xf32, #tpu.memory_space<vmem>>, vector<32x784xf32>,
    %c0_15 = arith.constant 0 : index
    %c2 = arith.constant 2 : index
    %14 = vector.load %arg6[%c0_15, %c2] : memref<32x842xf32, #tpu.memory_space<vmem>>, vector<32x784xf32>
    %c1_16 = arith.constant 1 : index
    %c0_17 = arith.constant 0 : index
    %c0_18 = arith.constant 0 : index
    %15 = vector.load %arg4[%c1_16, %c0_17, %c0_18] : memref<2x1x784xf32, #tpu.memory_space<vmem>>, vector<1x1x784xf32>
    %16 = vector.shape_cast %15 : vector<1x1x784xf32> to vector<1x784xf32>
    %17 = vector.broadcast %16 : vector<1x784xf32> to vector<32x784xf32>
    %18 = arith.mulf %14, %17 : vector<32x784xf32>
    %c64 = arith.constant 64 : index
    %c0_19 = arith.constant 0 : index
    %19 = vector.load %arg8[%c64, %c0_19] : memref<288x784xf32, #tpu.memory_space<vmem>>, vector<32x784xf32>
    tpu.vector_store %arg8[%c64, %c0_19], %18 {strides = array<i32>} : memref<288x784xf32, #tpu.memory_space<vmem>>, vector<32x784xf32>,
    %c0_20 = arith.constant 0 : index
    %c28 = arith.constant 28 : index
    %20 = vector.load %arg6[%c0_20, %c28] : memref<32x842xf32, #tpu.memory_space<vmem>>, vector<32x784xf32>
    %c0_21 = arith.constant 0 : index
    %c0_22 = arith.constant 0 : index
    %c0_23 = arith.constant 0 : index
    %21 = vector.load %arg4[%c0_21, %c0_22, %c0_23] : memref<2x1x784xf32, #tpu.memory_space<vmem>>, vector<1x1x784xf32>
    %22 = vector.shape_cast %21 : vector<1x1x784xf32> to vector<1x784xf32>
    %23 = vector.broadcast %22 : vector<1x784xf32> to vector<32x784xf32>
    %24 = arith.mulf %20, %23 : vector<32x784xf32>
    %c96 = arith.constant 96 : index
    %c0_24 = arith.constant 0 : index
    %25 = vector.load %arg8[%c96, %c0_24] : memref<288x784xf32, #tpu.memory_space<vmem>>, vector<32x784xf32>
    tpu.vector_store %arg8[%c96, %c0_24], %24 {strides = array<i32>} : memref<288x784xf32, #tpu.memory_space<vmem>>, vector<32x784xf32>,
    %c0_25 = arith.constant 0 : index
    %c29_26 = arith.constant 29 : index
    %26 = vector.load %arg6[%c0_25, %c29_26] : memref<32x842xf32, #tpu.memory_space<vmem>>, vector<32x784xf32>
    %c128 = arith.constant 128 : index
    %c0_27 = arith.constant 0 : index
    %27 = vector.load %arg8[%c128, %c0_27] : memref<288x784xf32, #tpu.memory_space<vmem>>, vector<32x784xf32>
    tpu.vector_store %arg8[%c128, %c0_27], %26 {strides = array<i32>} : memref<288x784xf32, #tpu.memory_space<vmem>>, vector<32x784xf32>,
    %c0_28 = arith.constant 0 : index
    %c30 = arith.constant 30 : index
    %28 = vector.load %arg6[%c0_28, %c30] : memref<32x842xf32, #tpu.memory_space<vmem>>, vector<32x784xf32>
    %c1_29 = arith.constant 1 : index
    %c0_30 = arith.constant 0 : index
    %c0_31 = arith.constant 0 : index
    %29 = vector.load %arg4[%c1_29, %c0_30, %c0_31] : memref<2x1x784xf32, #tpu.memory_space<vmem>>, vector<1x1x784xf32>
    %30 = vector.shape_cast %29 : vector<1x1x784xf32> to vector<1x784xf32>
    %31 = vector.broadcast %30 : vector<1x784xf32> to vector<32x784xf32>
    %32 = arith.mulf %28, %31 : vector<32x784xf32>
    %c160 = arith.constant 160 : index
    %c0_32 = arith.constant 0 : index
    %33 = vector.load %arg8[%c160, %c0_32] : memref<288x784xf32, #tpu.memory_space<vmem>>, vector<32x784xf32>
    tpu.vector_store %arg8[%c160, %c0_32], %32 {strides = array<i32>} : memref<288x784xf32, #tpu.memory_space<vmem>>, vector<32x784xf32>,
    %c0_33 = arith.constant 0 : index
    %c56 = arith.constant 56 : index
    %34 = vector.load %arg6[%c0_33, %c56] : memref<32x842xf32, #tpu.memory_space<vmem>>, vector<32x784xf32>
    %c0_34 = arith.constant 0 : index
    %c0_35 = arith.constant 0 : index
    %c0_36 = arith.constant 0 : index
    %35 = vector.load %arg4[%c0_34, %c0_35, %c0_36] : memref<2x1x784xf32, #tpu.memory_space<vmem>>, vector<1x1x784xf32>
    %36 = vector.shape_cast %35 : vector<1x1x784xf32> to vector<1x784xf32>
    %37 = vector.broadcast %36 : vector<1x784xf32> to vector<32x784xf32>
    %38 = arith.mulf %34, %37 : vector<32x784xf32>
    %c192 = arith.constant 192 : index
    %c0_37 = arith.constant 0 : index
    %39 = vector.load %arg8[%c192, %c0_37] : memref<288x784xf32, #tpu.memory_space<vmem>>, vector<32x784xf32>
    tpu.vector_store %arg8[%c192, %c0_37], %38 {strides = array<i32>} : memref<288x784xf32, #tpu.memory_space<vmem>>, vector<32x784xf32>,
    %c0_38 = arith.constant 0 : index
    %c57 = arith.constant 57 : index
    %40 = vector.load %arg6[%c0_38, %c57] : memref<32x842xf32, #tpu.memory_space<vmem>>, vector<32x784xf32>
    %c224 = arith.constant 224 : index
    %c0_39 = arith.constant 0 : index
    %41 = vector.load %arg8[%c224, %c0_39] : memref<288x784xf32, #tpu.memory_space<vmem>>, vector<32x784xf32>
    tpu.vector_store %arg8[%c224, %c0_39], %40 {strides = array<i32>} : memref<288x784xf32, #tpu.memory_space<vmem>>, vector<32x784xf32>,
    %c0_40 = arith.constant 0 : index
    %c58 = arith.constant 58 : index
    %42 = vector.load %arg6[%c0_40, %c58] : memref<32x842xf32, #tpu.memory_space<vmem>>, vector<32x784xf32>
    %c1_41 = arith.constant 1 : index
    %c0_42 = arith.constant 0 : index
    %c0_43 = arith.constant 0 : index
    %43 = vector.load %arg4[%c1_41, %c0_42, %c0_43] : memref<2x1x784xf32, #tpu.memory_space<vmem>>, vector<1x1x784xf32>
    %44 = vector.shape_cast %43 : vector<1x1x784xf32> to vector<1x784xf32>
    %45 = vector.broadcast %44 : vector<1x784xf32> to vector<32x784xf32>
    %46 = arith.mulf %42, %45 : vector<32x784xf32>
    %c256 = arith.constant 256 : index
    %c0_44 = arith.constant 0 : index
    %47 = vector.load %arg8[%c256, %c0_44] : memref<288x784xf32, #tpu.memory_space<vmem>>, vector<32x784xf32>
    tpu.vector_store %arg8[%c256, %c0_44], %46 {strides = array<i32>} : memref<288x784xf32, #tpu.memory_space<vmem>>, vector<32x784xf32>,
    %c0_45 = arith.constant 0 : index
    %c0_46 = arith.constant 0 : index
    %c0_47 = arith.constant 0 : index
    %48 = vector.load %arg2[%c0_45, %c0_46, %c0_47] : memref<2x32x288xf32, #tpu.memory_space<vmem>>, vector<1x32x288xf32>
    %49 = vector.shape_cast %48 : vector<1x32x288xf32> to vector<32x288xf32>
    %c0_48 = arith.constant 0 : index
    %c0_49 = arith.constant 0 : index
    %50 = vector.load %arg8[%c0_48, %c0_49] : memref<288x784xf32, #tpu.memory_space<vmem>>, vector<288x784xf32>
    %cst_50 = arith.constant dense<0.000000e+00> : vector<32x784xf32>
    %51 = tpu.matmul %49, %50, %cst_50 {dimension_numbers = #tpu.dot_dimension_numbers<[1], [0], [0], [1], [0, 0, 1, 1], [], []>} : vector<32x288xf32>, vector<288x784xf32>, vector<32x784xf32> -> vector<32x784xf32>
    %c0_51 = arith.constant 0 : index
    %c0_52 = arith.constant 0 : index
    %c0_53 = arith.constant 0 : index
    %52 = vector.load %arg3[%c0_51, %c0_52, %c0_53] : memref<2x32x1xf32, #tpu.memory_space<vmem>>, vector<1x32x1xf32>
    %53 = vector.shape_cast %52 : vector<1x32x1xf32> to vector<32x1xf32>
    %54 = vector.broadcast %53 : vector<32x1xf32> to vector<32x784xf32>
    %55 = arith.addf %51, %54 : vector<32x784xf32>
    %cst_54 = arith.constant 0.000000e+00 : f32
    %56 = vector.broadcast %cst_54 : f32 to vector<32x784xf32>
    %57 = arith.maximumf %55, %56 : vector<32x784xf32>
    %c0_55 = arith.constant 0 : index
    %c0_56 = arith.constant 0 : index
    %58 = vector.load %arg7[%c0_55, %c0_56] : memref<32x842xf32, #tpu.memory_space<vmem>>, vector<32x29xf32>
    tpu.vector_store %arg7[%c0_55, %c0_56], %0 {strides = array<i32>} : memref<32x842xf32, #tpu.memory_space<vmem>>, vector<32x29xf32>,
    %c0_57 = arith.constant 0 : index
    %c813_58 = arith.constant 813 : index
    %59 = vector.load %arg7[%c0_57, %c813_58] : memref<32x842xf32, #tpu.memory_space<vmem>>, vector<32x29xf32>
    tpu.vector_store %arg7[%c0_57, %c813_58], %0 {strides = array<i32>} : memref<32x842xf32, #tpu.memory_space<vmem>>, vector<32x29xf32>,
    %c0_59 = arith.constant 0 : index
    %c29_60 = arith.constant 29 : index
    %60 = vector.load %arg7[%c0_59, %c29_60] : memref<32x842xf32, #tpu.memory_space<vmem>>, vector<32x784xf32>
    tpu.vector_store %arg7[%c0_59, %c29_60], %57 {strides = array<i32>} : memref<32x842xf32, #tpu.memory_space<vmem>>, vector<32x784xf32>,
    %c0_61 = arith.constant 0 : index
    %c0_62 = arith.constant 0 : index
    %c0_63 = arith.constant 0 : index
    %61 = vector.load %arg1[%c0_61, %c0_62, %c0_63] : memref<1x32x784xf32, #tpu.memory_space<vmem>>, vector<1x32x784xf32>
    %62 = vector.shape_cast %61 : vector<1x32x784xf32> to vector<32x784xf32>
    %c0_64 = arith.constant 0 : index
    %c0_65 = arith.constant 0 : index
    %63 = vector.load %arg7[%c0_64, %c0_65] : memref<32x842xf32, #tpu.memory_space<vmem>>, vector<32x784xf32>
    %c0_66 = arith.constant 0 : index
    %c0_67 = arith.constant 0 : index
    %c0_68 = arith.constant 0 : index
    %64 = vector.load %arg4[%c0_66, %c0_67, %c0_68] : memref<2x1x784xf32, #tpu.memory_space<vmem>>, vector<1x1x784xf32>
    %65 = vector.shape_cast %64 : vector<1x1x784xf32> to vector<1x784xf32>
    %66 = vector.broadcast %65 : vector<1x784xf32> to vector<32x784xf32>
    %67 = arith.mulf %63, %66 : vector<32x784xf32>
    %c0_69 = arith.constant 0 : index
    %c0_70 = arith.constant 0 : index
    %68 = vector.load %arg8[%c0_69, %c0_70] : memref<288x784xf32, #tpu.memory_space<vmem>>, vector<32x784xf32>
    tpu.vector_store %arg8[%c0_69, %c0_70], %67 {strides = array<i32>} : memref<288x784xf32, #tpu.memory_space<vmem>>, vector<32x784xf32>,
    %c0_71 = arith.constant 0 : index
    %c1_72 = arith.constant 1 : index
    %69 = vector.load %arg7[%c0_71, %c1_72] : memref<32x842xf32, #tpu.memory_space<vmem>>, vector<32x784xf32>
    %c32_73 = arith.constant 32 : index
    %c0_74 = arith.constant 0 : index
    %70 = vector.load %arg8[%c32_73, %c0_74] : memref<288x784xf32, #tpu.memory_space<vmem>>, vector<32x784xf32>
    tpu.vector_store %arg8[%c32_73, %c0_74], %69 {strides = array<i32>} : memref<288x784xf32, #tpu.memory_space<vmem>>, vector<32x784xf32>,
    %c0_75 = arith.constant 0 : index
    %c2_76 = arith.constant 2 : index
    %71 = vector.load %arg7[%c0_75, %c2_76] : memref<32x842xf32, #tpu.memory_space<vmem>>, vector<32x784xf32>
    %c1_77 = arith.constant 1 : index
    %c0_78 = arith.constant 0 : index
    %c0_79 = arith.constant 0 : index
    %72 = vector.load %arg4[%c1_77, %c0_78, %c0_79] : memref<2x1x784xf32, #tpu.memory_space<vmem>>, vector<1x1x784xf32>
    %73 = vector.shape_cast %72 : vector<1x1x784xf32> to vector<1x784xf32>
    %74 = vector.broadcast %73 : vector<1x784xf32> to vector<32x784xf32>
    %75 = arith.mulf %71, %74 : vector<32x784xf32>
    %c64_80 = arith.constant 64 : index
    %c0_81 = arith.constant 0 : index
    %76 = vector.load %arg8[%c64_80, %c0_81] : memref<288x784xf32, #tpu.memory_space<vmem>>, vector<32x784xf32>
    tpu.vector_store %arg8[%c64_80, %c0_81], %75 {strides = array<i32>} : memref<288x784xf32, #tpu.memory_space<vmem>>, vector<32x784xf32>,
    %c0_82 = arith.constant 0 : index
    %c28_83 = arith.constant 28 : index
    %77 = vector.load %arg7[%c0_82, %c28_83] : memref<32x842xf32, #tpu.memory_space<vmem>>, vector<32x784xf32>
    %c0_84 = arith.constant 0 : index
    %c0_85 = arith.constant 0 : index
    %c0_86 = arith.constant 0 : index
    %78 = vector.load %arg4[%c0_84, %c0_85, %c0_86] : memref<2x1x784xf32, #tpu.memory_space<vmem>>, vector<1x1x784xf32>
    %79 = vector.shape_cast %78 : vector<1x1x784xf32> to vector<1x784xf32>
    %80 = vector.broadcast %79 : vector<1x784xf32> to vector<32x784xf32>
    %81 = arith.mulf %77, %80 : vector<32x784xf32>
    %c96_87 = arith.constant 96 : index
    %c0_88 = arith.constant 0 : index
    %82 = vector.load %arg8[%c96_87, %c0_88] : memref<288x784xf32, #tpu.memory_space<vmem>>, vector<32x784xf32>
    tpu.vector_store %arg8[%c96_87, %c0_88], %81 {strides = array<i32>} : memref<288x784xf32, #tpu.memory_space<vmem>>, vector<32x784xf32>,
    %c0_89 = arith.constant 0 : index
    %c29_90 = arith.constant 29 : index
    %83 = vector.load %arg7[%c0_89, %c29_90] : memref<32x842xf32, #tpu.memory_space<vmem>>, vector<32x784xf32>
    %c128_91 = arith.constant 128 : index
    %c0_92 = arith.constant 0 : index
    %84 = vector.load %arg8[%c128_91, %c0_92] : memref<288x784xf32, #tpu.memory_space<vmem>>, vector<32x784xf32>
    tpu.vector_store %arg8[%c128_91, %c0_92], %83 {strides = array<i32>} : memref<288x784xf32, #tpu.memory_space<vmem>>, vector<32x784xf32>,
    %c0_93 = arith.constant 0 : index
    %c30_94 = arith.constant 30 : index
    %85 = vector.load %arg7[%c0_93, %c30_94] : memref<32x842xf32, #tpu.memory_space<vmem>>, vector<32x784xf32>
    %c1_95 = arith.constant 1 : index
    %c0_96 = arith.constant 0 : index
    %c0_97 = arith.constant 0 : index
    %86 = vector.load %arg4[%c1_95, %c0_96, %c0_97] : memref<2x1x784xf32, #tpu.memory_space<vmem>>, vector<1x1x784xf32>
    %87 = vector.shape_cast %86 : vector<1x1x784xf32> to vector<1x784xf32>
    %88 = vector.broadcast %87 : vector<1x784xf32> to vector<32x784xf32>
    %89 = arith.mulf %85, %88 : vector<32x784xf32>
    %c160_98 = arith.constant 160 : index
    %c0_99 = arith.constant 0 : index
    %90 = vector.load %arg8[%c160_98, %c0_99] : memref<288x784xf32, #tpu.memory_space<vmem>>, vector<32x784xf32>
    tpu.vector_store %arg8[%c160_98, %c0_99], %89 {strides = array<i32>} : memref<288x784xf32, #tpu.memory_space<vmem>>, vector<32x784xf32>,
    %c0_100 = arith.constant 0 : index
    %c56_101 = arith.constant 56 : index
    %91 = vector.load %arg7[%c0_100, %c56_101] : memref<32x842xf32, #tpu.memory_space<vmem>>, vector<32x784xf32>
    %c0_102 = arith.constant 0 : index
    %c0_103 = arith.constant 0 : index
    %c0_104 = arith.constant 0 : index
    %92 = vector.load %arg4[%c0_102, %c0_103, %c0_104] : memref<2x1x784xf32, #tpu.memory_space<vmem>>, vector<1x1x784xf32>
    %93 = vector.shape_cast %92 : vector<1x1x784xf32> to vector<1x784xf32>
    %94 = vector.broadcast %93 : vector<1x784xf32> to vector<32x784xf32>
    %95 = arith.mulf %91, %94 : vector<32x784xf32>
    %c192_105 = arith.constant 192 : index
    %c0_106 = arith.constant 0 : index
    %96 = vector.load %arg8[%c192_105, %c0_106] : memref<288x784xf32, #tpu.memory_space<vmem>>, vector<32x784xf32>
    tpu.vector_store %arg8[%c192_105, %c0_106], %95 {strides = array<i32>} : memref<288x784xf32, #tpu.memory_space<vmem>>, vector<32x784xf32>,
    %c0_107 = arith.constant 0 : index
    %c57_108 = arith.constant 57 : index
    %97 = vector.load %arg7[%c0_107, %c57_108] : memref<32x842xf32, #tpu.memory_space<vmem>>, vector<32x784xf32>
    %c224_109 = arith.constant 224 : index
    %c0_110 = arith.constant 0 : index
    %98 = vector.load %arg8[%c224_109, %c0_110] : memref<288x784xf32, #tpu.memory_space<vmem>>, vector<32x784xf32>
    tpu.vector_store %arg8[%c224_109, %c0_110], %97 {strides = array<i32>} : memref<288x784xf32, #tpu.memory_space<vmem>>, vector<32x784xf32>,
    %c0_111 = arith.constant 0 : index
    %c58_112 = arith.constant 58 : index
    %99 = vector.load %arg7[%c0_111, %c58_112] : memref<32x842xf32, #tpu.memory_space<vmem>>, vector<32x784xf32>
    %c1_113 = arith.constant 1 : index
    %c0_114 = arith.constant 0 : index
    %c0_115 = arith.constant 0 : index
    %100 = vector.load %arg4[%c1_113, %c0_114, %c0_115] : memref<2x1x784xf32, #tpu.memory_space<vmem>>, vector<1x1x784xf32>
    %101 = vector.shape_cast %100 : vector<1x1x784xf32> to vector<1x784xf32>
    %102 = vector.broadcast %101 : vector<1x784xf32> to vector<32x784xf32>
    %103 = arith.mulf %99, %102 : vector<32x784xf32>
    %c256_116 = arith.constant 256 : index
    %c0_117 = arith.constant 0 : index
    %104 = vector.load %arg8[%c256_116, %c0_117] : memref<288x784xf32, #tpu.memory_space<vmem>>, vector<32x784xf32>
    tpu.vector_store %arg8[%c256_116, %c0_117], %103 {strides = array<i32>} : memref<288x784xf32, #tpu.memory_space<vmem>>, vector<32x784xf32>,
    %c1_118 = arith.constant 1 : index
    %c0_119 = arith.constant 0 : index
    %c0_120 = arith.constant 0 : index
    %105 = vector.load %arg2[%c1_118, %c0_119, %c0_120] : memref<2x32x288xf32, #tpu.memory_space<vmem>>, vector<1x32x288xf32>
    %106 = vector.shape_cast %105 : vector<1x32x288xf32> to vector<32x288xf32>
    %c0_121 = arith.constant 0 : index
    %c0_122 = arith.constant 0 : index
    %107 = vector.load %arg8[%c0_121, %c0_122] : memref<288x784xf32, #tpu.memory_space<vmem>>, vector<288x784xf32>
    %cst_123 = arith.constant dense<0.000000e+00> : vector<32x784xf32>
    %108 = tpu.matmul %106, %107, %cst_123 {dimension_numbers = #tpu.dot_dimension_numbers<[1], [0], [0], [1], [0, 0, 1, 1], [], []>} : vector<32x288xf32>, vector<288x784xf32>, vector<32x784xf32> -> vector<32x784xf32>
    %c1_124 = arith.constant 1 : index
    %c0_125 = arith.constant 0 : index
    %c0_126 = arith.constant 0 : index
    %109 = vector.load %arg3[%c1_124, %c0_125, %c0_126] : memref<2x32x1xf32, #tpu.memory_space<vmem>>, vector<1x32x1xf32>
    %110 = vector.shape_cast %109 : vector<1x32x1xf32> to vector<32x1xf32>
    %111 = vector.broadcast %110 : vector<32x1xf32> to vector<32x784xf32>
    %112 = arith.addf %108, %111 : vector<32x784xf32>
    %113 = arith.addf %62, %112 : vector<32x784xf32>
    %c0_127 = arith.constant 0 : index
    %c0_128 = arith.constant 0 : index
    %c0_129 = arith.constant 0 : index
    %114 = vector.load %arg5[%c0_127, %c0_128, %c0_129] : memref<1x32x784xf32, #tpu.memory_space<vmem>>, vector<1x32x784xf32>
    %115 = vector.shape_cast %114 : vector<1x32x784xf32> to vector<32x784xf32>
    %116 = vector.shape_cast %113 : vector<32x784xf32> to vector<1x32x784xf32>
    tpu.vector_store %arg5[%c0_127, %c0_128, %c0_129], %116 {strides = array<i32>} : memref<1x32x784xf32, #tpu.memory_space<vmem>>, vector<1x32x784xf32>,
    return
  }
  func.func @transform_0(%arg0: i32) -> (i32, i32, i32) {
    %c0_i32 = arith.constant 0 : i32
    %c0_i32_0 = arith.constant 0 : i32
    %c0_i32_1 = arith.constant 0 : i32
    return %arg0, %c0_i32, %c0_i32_0 : i32, i32, i32
  }
  func.func @transform_1(%arg0: i32) -> (i32, i32, i32) {
    %c0_i32 = arith.constant 0 : i32
    %c0_i32_0 = arith.constant 0 : i32
    %c0_i32_1 = arith.constant 0 : i32
    %c0_i32_2 = arith.constant 0 : i32
    return %c0_i32, %c0_i32_0, %c0_i32_1 : i32, i32, i32
  }
  func.func @transform_2(%arg0: i32) -> (i32, i32, i32) {
    %c0_i32 = arith.constant 0 : i32
    %c0_i32_0 = arith.constant 0 : i32
    %c0_i32_1 = arith.constant 0 : i32
    %c0_i32_2 = arith.constant 0 : i32
    return %c0_i32, %c0_i32_0, %c0_i32_1 : i32, i32, i32
  }
  func.func @transform_3(%arg0: i32) -> (i32, i32, i32) {
    %c0_i32 = arith.constant 0 : i32
    %c0_i32_0 = arith.constant 0 : i32
    %c0_i32_1 = arith.constant 0 : i32
    %c0_i32_2 = arith.constant 0 : i32
    return %c0_i32, %c0_i32_0, %c0_i32_1 : i32, i32, i32
  }
  func.func @transform_4(%arg0: i32) -> (i32, i32, i32) {
    %c0_i32 = arith.constant 0 : i32
    %c0_i32_0 = arith.constant 0 : i32
    %c0_i32_1 = arith.constant 0 : i32
    return %arg0, %c0_i32, %c0_i32_0 : i32, i32, i32
  }
}

</mosaic_0001>

<llo_original>
// kernel: tpu_custom_call.1
$region0: #{tpu_custom_call.1}
  #allocation0 [shape = 'u32[]', space=smem, size = 0x4, offset = 0x4, fixed_abs, tag = 'smem constant byte address 0x4 - core index']
  #allocation1 [shape = 'u32[144,128]{1,0:T(1,128)}', space=vmem, size = 0x12000, scoped, tag = 'internal scratch']
  #allocation2 [shape = 'f32[32,842]{1,0:T(8,128)}', space=vmem, size = 0x1c000, scoped, tag = 'scratch operand']
  #allocation3 [shape = 'f32[32,842]{1,0:T(8,128)}', space=vmem, size = 0x1c000, scoped, tag = 'scratch operand']
  #allocation4 [shape = 'f32[288,784]{1,0:T(8,128)}', space=vmem, size = 0xfc000, scoped, tag = 'scratch operand']
  %s0 = inlined_call_operand.hbm [shape: f32[2,32,784], index: 0, kind: input, shape index: {}]
  %s1 = inlined_call_operand.hbm [shape: f32[2,32,288], index: 1, kind: input, shape index: {}]
  %s2 = inlined_call_operand.vmem [shape: f32[2,32,1], index: 2, kind: input, shape index: {}]
  %s3 = inlined_call_operand.vmem [shape: f32[2,1,784], index: 3, kind: input, shape index: {}]
  %s4 = inlined_call_operand.hbm [shape: f32[2,32,784], index: 4, kind: output, shape index: {}]
  %s5 = sld [smem:[#allocation0]]
  $region57: #{tpu_custom_call.1} parent=0
    _
  %s7 = ssub.s32 1, %s5
  %s8 = scalar_select 0, %s7, %s5
  $region1: #{tpu_custom_call.1} parent=0
    #allocation5 [shape = 'u8[229376]{0}', space=vmem, size = 0x38000, scoped, tag = 'input window, operand 0']
    #allocation6 [shape = 's32[2]{0}', space=sflag, size = 0x8, scoped, tag = 'scoped memory for tpu_custom_call.1']
    #allocation7 [shape = 's32[2]{0}', space=sflag, size = 0x8, scoped, tag = 'scoped memory for tpu_custom_call.1']
    #allocation8 [shape = 'u8[98304]{0}', space=vmem, size = 0x18000, scoped, tag = 'input window, operand 1, single buffered']
    #allocation9 [shape = 's32[1]{0}', space=sflag, size = 0x4, scoped, tag = 'scoped memory for tpu_custom_call.1']
    #allocation10 [shape = 'u8[229376]{0}', space=vmem, size = 0x38000, scoped, tag = 'output window, operand 0']
    %9 = vsyncpa [#allocation6], 0
    %s10 = scalar_lea.sflag [#allocation6], 1
    %11 = vsyncpa %s10, 0
    %12 = vsyncpa [#allocation9], 0
    %13 = vsyncpa [#allocation7], 0
    %s14 = scalar_lea.sflag [#allocation7], 1
    %15 = vsyncpa %s14, 0
    loop: start=0, step=1, limit=4
    $region2: #{tpu_custom_call.1} parent=1 // loop_pre_header
      _
    $region3: #{tpu_custom_call.1} parent=1 // loop_header
      %s17 = sphi 0, %s21
      %p18 = scmp.ge.s32.totalorder %s17, 4
      %s27 = sphi 0, %s29
      %s30 = sphi 0, %s27
      %s31 = sphi 0, %s30
      %s47 = sphi 0, %s31
      %s51 = sphi 0, %s51
      %s53 = sphi 0, %s51
      %s54 = sphi 0, %s53
      %s68 = sphi 0, %s54
      %s72 = sphi 0, %s72
      %s74 = sphi 0, %s72
      %s75 = sphi 0, %s74
      %s89 = sphi 0, %s75
      %s93 = sphi 0, %s93
      %s95 = sphi 0, %s93
      %s96 = sphi 0, %s95
      %s110 = sphi 0, %s96
      %s116 = sphi 0, %s118
      %s119 = sphi 0, %s116
      %s120 = sphi 0, %s119
      %s136 = sphi 0, %s120
    $region4: #{tpu_custom_call.1} parent=1 // loop_header_branch
      %20 = sbr.rel (%p18) target = $region8
    $region5: #{tpu_custom_call.1} parent=1 // loop_body
      %s22 = ssub.s32 %s17, 1
      %s23 = ssub.s32 %s17, 2
      %s24 = sadd.s32 %s17, 1
      %s25 = ssub.s32 %s17, %s24
      %p26 = scmp.eq.s32.totalorder %s25, 0
      %s28 = sadd.s32 %s27, 1
      %s29 = scalar_select %p26, %s27, %s28
      %p32 = pneg %p26
      %p33 = scmp.eq.s32.totalorder %s17, 1
      %p34 = por %p32, %p33
      %p35 = scmp.ne.s32.totalorder %s27, %s30
      %p36 = scmp.eq.s32.totalorder %s17, 0
      %p37 = por %p35, %p36
      %p38 = scmp.ne.s32.totalorder %s27, %s30
      %p39 = scmp.eq.s32.totalorder %s22, 1
      %p40 = por %p38, %p39
      %p41 = scmp.ne.s32.totalorder %s30, %s31
      %p42 = scmp.eq.s32.totalorder %s22, 0
      %p43 = por %p41, %p42
      %p44 = scmp.ne.s32.totalorder %s30, %s31
      %p45 = scmp.eq.s32.totalorder %s23, 1
      %p46 = por %p44, %p45
      %p48 = scmp.ne.s32.totalorder %s31, %s47
      %p49 = scmp.eq.s32.totalorder %s23, 0
      %p50 = por %p48, %p49
      %s52 = sadd.s32 %s51, 1
      %p55 = scmp.eq.s32.totalorder %s17, 1
      %p56 = scmp.ne.s32.totalorder %s51, %s53
      %p57 = scmp.eq.s32.totalorder %s17, 0
      %p58 = por %p56, %p57
      %p59 = scmp.ne.s32.totalorder %s51, %s53
      %p60 = scmp.eq.s32.totalorder %s22, 1
      %p61 = por %p59, %p60
      %p62 = scmp.ne.s32.totalorder %s53, %s54
      %p63 = scmp.eq.s32.totalorder %s22, 0
      %p64 = por %p62, %p63
      %p65 = scmp.ne.s32.totalorder %s53, %s54
      %p66 = scmp.eq.s32.totalorder %s23, 1
      %p67 = por %p65, %p66
      %p69 = scmp.ne.s32.totalorder %s54, %s68
      %p70 = scmp.eq.s32.totalorder %s23, 0
      %p71 = por %p69, %p70
      %s73 = sadd.s32 %s72, 1
      %p76 = scmp.eq.s32.totalorder %s17, 1
      %p77 = scmp.ne.s32.totalorder %s72, %s74
      %p78 = scmp.eq.s32.totalorder %s17, 0
      %p79 = por %p77, %p78
      %p80 = scmp.ne.s32.totalorder %s72, %s74
      %p81 = scmp.eq.s32.totalorder %s22, 1
      %p82 = por %p80, %p81
      %p83 = scmp.ne.s32.totalorder %s74, %s75
      %p84 = scmp.eq.s32.totalorder %s22, 0
      %p85 = por %p83, %p84
      %p86 = scmp.ne.s32.totalorder %s74, %s75
      %p87 = scmp.eq.s32.totalorder %s23, 1
      %p88 = por %p86, %p87
      %p90 = scmp.ne.s32.totalorder %s75, %s89
      %p91 = scmp.eq.s32.totalorder %s23, 0
      %p92 = por %p90, %p91
      %s94 = sadd.s32 %s93, 1
      %p97 = scmp.eq.s32.totalorder %s17, 1
      %p98 = scmp.ne.s32.totalorder %s93, %s95
      %p99 = scmp.eq.s32.totalorder %s17, 0
      %p100 = por %p98, %p99
      %p101 = scmp.ne.s32.totalorder %s93, %s95
      %p102 = scmp.eq.s32.totalorder %s22, 1
      %p103 = por %p101, %p102
      %p104 = scmp.ne.s32.totalorder %s95, %s96
      %p105 = scmp.eq.s32.totalorder %s22, 0
      %p106 = por %p104, %p105
      %p107 = scmp.ne.s32.totalorder %s95, %s96
      %p108 = scmp.eq.s32.totalorder %s23, 1
      %p109 = por %p107, %p108
      %p111 = scmp.ne.s32.totalorder %s96, %s110
      %p112 = scmp.eq.s32.totalorder %s23, 0
      %p113 = por %p111, %p112
      %s114 = ssub.s32 %s17, %s24
      %p115 = scmp.eq.s32.totalorder %s114, 0
      %s117 = sadd.s32 %s116, 1
      %s118 = scalar_select %p115, %s116, %s117
      %p121 = pneg %p115
      %p122 = scmp.eq.s32.totalorder %s17, 1
      %p123 = por %p121, %p122
      %p124 = scmp.ne.s32.totalorder %s116, %s119
      %p125 = scmp.eq.s32.totalorder %s17, 0
      %p126 = por %p124, %p125
      %p127 = scmp.ne.s32.totalorder %s116, %s119
      %p128 = scmp.eq.s32.totalorder %s22, 1
      %p129 = por %p127, %p128
      %p130 = scmp.ne.s32.totalorder %s119, %s120
      %p131 = scmp.eq.s32.totalorder %s22, 0
      %p132 = por %p130, %p131
      %p133 = scmp.ne.s32.totalorder %s119, %s120
      %p134 = scmp.eq.s32.totalorder %s23, 1
      %p135 = por %p133, %p134
      %p137 = scmp.ne.s32.totalorder %s120, %s136
      %p138 = scmp.eq.s32.totalorder %s23, 0
      %p139 = por %p137, %p138
      %p140 = scmp.le.s32.totalorder 1, %s17
      %p141 = scmp.lt.s32.totalorder %s17, 3
      %p142 = pnand %p140, %p141
      %p143 = pneg %p142
      // Predicated region
      $region9: #{tpu_custom_call.1} parent=5 // pred_check
        _
      $region10: #{tpu_custom_call.1} parent=5 // pred_check_branch
        %145 = sbr.rel (%p142) target = $region12
      $region11: #{tpu_custom_call.1} parent=5 // pred_region
        %s146 = ssub.s32 %s17, 1
        // Predicated region
        $region13: #{tpu_custom_call.1} parent=11 // pred_check
          %p147 = pneg %p64
        $region14: #{tpu_custom_call.1} parent=11 // pred_check_branch
          %149 = sbr.rel (%p147) target = $region16
        $region15: #{tpu_custom_call.1} parent=11 // pred_region
          %s151 = ssub.s32 3072, 3072
          %152 = vsyncadd [#allocation9], %s151
          %s153 = sshll.u32 [#allocation8], 4
          %s154 = int_to_ptr.vmem [resolvable:$true] %s153
          %159 = dma.hbm_to_vmem [thread:$0]  %s1, 3072, %s154, [#allocation9], 384, 384, 24
        $region16: #{tpu_custom_call.1} parent=11 // pred_fallthru
          _
        // Predicated region
        $region17: #{tpu_custom_call.1} parent=11 // pred_check
          %p160 = pneg %p85
        $region18: #{tpu_custom_call.1} parent=11 // pred_check_branch
          %162 = sbr.rel (%p160) target = $region20
        $region19: #{tpu_custom_call.1} parent=11 // pred_region
          _
        $region20: #{tpu_custom_call.1} parent=11 // pred_fallthru
          _
        // Predicated region
        $region21: #{tpu_custom_call.1} parent=11 // pred_check
          %p163 = pneg %p106
        $region22: #{tpu_custom_call.1} parent=11 // pred_check_branch
          %165 = sbr.rel (%p163) target = $region24
        $region23: #{tpu_custom_call.1} parent=11 // pred_region
          _
        $region24: #{tpu_custom_call.1} parent=11 // pred_fallthru
          _
      $region12: #{tpu_custom_call.1} parent=5 // pred_fallthru
        _
      %p166 = scmp.lt.s32.totalorder %s17, 2
      // Predicated region
      $region25: #{tpu_custom_call.1} parent=5 // pred_check
        %p167 = pneg %p166
      $region26: #{tpu_custom_call.1} parent=5 // pred_check_branch
        %169 = sbr.rel (%p167) target = $region28
      $region27: #{tpu_custom_call.1} parent=5 // pred_region
        // Predicated region
        $region29: #{tpu_custom_call.1} parent=27 // pred_check
          %p170 = pneg %p37
        $region30: #{tpu_custom_call.1} parent=27 // pred_check_branch
          %172 = sbr.rel (%p170) target = $region32
        $region31: #{tpu_custom_call.1} parent=27 // pred_region
          %s173 = sand.u32 %s27, 1
          %s174 = scalar_lea.sflag [#allocation6], %s173
          %s175 = sand.u32 %s27, 1
          %s176 = smul.addr %s175, 224
          %s177 = scalar_lea.vmem [#allocation5], %s176
          %s179 = ssub.s32 3584, 3584
          %180 = vsyncadd %s174, %s179
          %s181 = smul.addr %s17, 28
          %s182 = smul.addr %s181, 128
          %s183 = scalar_lea.hbm %s0, %s182
          %s184 = sshll.u32 %s177, 4
          %s185 = int_to_ptr.vmem [resolvable:$true] %s184
          %190 = dma.hbm_to_vmem [thread:$0]  %s183, 3584, %s185, %s174, 896, 896, 56
        $region32: #{tpu_custom_call.1} parent=27 // pred_fallthru
          _
      $region28: #{tpu_custom_call.1} parent=5 // pred_fallthru
        _
      %p191 = scmp.le.s32.totalorder 1, %s17
      %p192 = scmp.lt.s32.totalorder %s17, 3
      %p193 = pnand %p191, %p192
      %p194 = pneg %p193
      // Predicated region
      $region33: #{tpu_custom_call.1} parent=5 // pred_check
        _
      $region34: #{tpu_custom_call.1} parent=5 // pred_check_branch
        %196 = sbr.rel (%p193) target = $region36
      $region35: #{tpu_custom_call.1} parent=5 // pred_region
        %s197 = ssub.s32 %s17, 1
        %s198 = sand.u32 %s30, 1
        %s199 = scalar_lea.sflag [#allocation6], %s198
        %s200 = sand.u32 %s30, 1
        %s201 = smul.addr %s200, 224
        %s202 = scalar_lea.vmem [#allocation5], %s201
        // Predicated region
        $region37: #{tpu_custom_call.1} parent=35 // pred_check
          %p203 = pneg %p43
        $region38: #{tpu_custom_call.1} parent=35 // pred_check_branch
          %205 = sbr.rel (%p203) target = $region40
        $region39: #{tpu_custom_call.1} parent=35 // pred_region
          %206 = dma.done %s199, 3584
        $region40: #{tpu_custom_call.1} parent=35 // pred_fallthru
          _
        // Predicated region
        $region41: #{tpu_custom_call.1} parent=35 // pred_check
          %p207 = pneg %p64
        $region42: #{tpu_custom_call.1} parent=35 // pred_check_branch
          %209 = sbr.rel (%p207) target = $region44
        $region43: #{tpu_custom_call.1} parent=35 // pred_region
          %210 = dma.done [#allocation9], 3072
        $region44: #{tpu_custom_call.1} parent=35 // pred_fallthru
          _
        %s211 = sand.u32 %s30, 1
        %s212 = scalar_lea.sflag [#allocation6], %s211
        %s213 = sand.u32 %s30, 1
        %s214 = smul.addr %s213, 224
        %s215 = scalar_lea.vmem [#allocation5], %s214
        %p216 = pneg %p43
        %p217 = pneg %p40
        %p218 = pneg %p64
        %p219 = pneg %p61
        %p220 = pneg %p85
        %p221 = pneg %p82
        %p222 = pneg %p106
        %p223 = pneg %p103
        %p224 = pneg %p132
        %p225 = pneg %p129
        %s226 = sand.u32 %s119, 1
        %s227 = scalar_lea.sflag [#allocation7], %s226
        %s228 = sand.u32 %s119, 1
        %s229 = smul.addr %s228, 224
        %s230 = scalar_lea.vmem [#allocation10], %s229
        %vm231 = vcmask 236544
        %232 = vst.msk [vmem:[#allocation2] sm:$0xff] %vm231, 0.0
        %233 = vst.msk [vmem:[#allocation2 + $0x38] sm:$0xff] %vm231, 0.0
        %234 = vst.msk [vmem:[#allocation2 + $0x70] sm:$0xff] %vm231, 0.0
        %235 = vst.msk [vmem:[#allocation2 + $0xa8] sm:$0xff] %vm231, 0.0
        %vm236 = vcmask 605544
        %237 = vst.msk [vmem:[#allocation2 + $0x30] sm:$0xff] %vm236, 0.0
        %238 = vst.msk [vmem:[#allocation2 + $0x68] sm:$0xff] %vm236, 0.0
        %239 = vst.msk [vmem:[#allocation2 + $0xa0] sm:$0xff] %vm236, 0.0
        %240 = vst.msk [vmem:[#allocation2 + $0xd8] sm:$0xff] %vm236, 0.0
        %v241 = vld [vmem:[%s202] sm:$0xff]
        %v242 = vld [vmem:[%s202 + $0x8] sm:$0xff]
        %v243 = vld [vmem:[%s202 + $0x10] sm:$0xff]
        %v244 = vld [vmem:[%s202 + $0x18] sm:$0xff]
        %v245 = vld [vmem:[%s202 + $0x20] sm:$0xff]
        %v246 = vld [vmem:[%s202 + $0x28] sm:$0xff]
        %v247 = vld [vmem:[%s202 + $0x30] sm:$0xff]
        %v248 = vld [vmem:[%s202 + $0x38] sm:$0xff]
        %v249 = vld [vmem:[%s202 + $0x40] sm:$0xff]
        %v250 = vld [vmem:[%s202 + $0x48] sm:$0xff]
        %v251 = vld [vmem:[%s202 + $0x50] sm:$0xff]
        %v252 = vld [vmem:[%s202 + $0x58] sm:$0xff]
        %v253 = vld [vmem:[%s202 + $0x60] sm:$0xff]
        %v254 = vld [vmem:[%s202 + $0x68] sm:$0xff]
        %v255 = vld [vmem:[%s202 + $0x70] sm:$0xff]
        %v256 = vld [vmem:[%s202 + $0x78] sm:$0xff]
        %v257 = vld [vmem:[%s202 + $0x80] sm:$0xff]
        %v258 = vld [vmem:[%s202 + $0x88] sm:$0xff]
        %v259 = vld [vmem:[%s202 + $0x90] sm:$0xff]
        %v260 = vld [vmem:[%s202 + $0x98] sm:$0xff]
        %v261 = vld [vmem:[%s202 + $0xa0] sm:$0xff]
        %v262 = vld [vmem:[%s202 + $0xa8] sm:$0xff]
        %v263 = vld [vmem:[%s202 + $0xb0] sm:$0xff]
        %v264 = vld [vmem:[%s202 + $0xb8] sm:$0xff]
        %v265 = vld [vmem:[%s202 + $0xc0] sm:$0xff]
        %v266 = vld [vmem:[%s202 + $0xc8] sm:$0xff]
        %v267 = vld [vmem:[%s202 + $0xd0] sm:$0xff]
        %v268 = vld [vmem:[%s202 + $0xd8] sm:$0xff]
        %297 = vrot.lane.b32.xlu0 %v241, 29
        %v298 = vpop.permute.xlu0 %297
        %299 = vrot.lane.b32.xlu0 %v242, 29
        %v300 = vpop.permute.xlu0 %299
        %301 = vrot.lane.b32.xlu0 %v243, 29
        %v302 = vpop.permute.xlu0 %301
        %303 = vrot.lane.b32.xlu0 %v244, 29
        %v304 = vpop.permute.xlu0 %303
        %305 = vrot.lane.b32.xlu0 %v245, 29
        %v306 = vpop.permute.xlu0 %305
        %307 = vrot.lane.b32.xlu0 %v246, 29
        %v308 = vpop.permute.xlu0 %307
        %309 = vrot.lane.b32.xlu0 %v247, 29
        %v310 = vpop.permute.xlu0 %309
        %311 = vrot.lane.b32.xlu0 %v248, 29
        %v312 = vpop.permute.xlu0 %311
        %313 = vrot.lane.b32.xlu0 %v249, 29
        %v314 = vpop.permute.xlu0 %313
        %315 = vrot.lane.b32.xlu0 %v250, 29
        %v316 = vpop.permute.xlu0 %315
        %317 = vrot.lane.b32.xlu0 %v251, 29
        %v318 = vpop.permute.xlu0 %317
        %319 = vrot.lane.b32.xlu0 %v252, 29
        %v320 = vpop.permute.xlu0 %319
        %321 = vrot.lane.b32.xlu0 %v253, 29
        %v322 = vpop.permute.xlu0 %321
        %323 = vrot.lane.b32.xlu0 %v254, 29
        %v324 = vpop.permute.xlu0 %323
        %325 = vrot.lane.b32.xlu0 %v255, 29
        %v326 = vpop.permute.xlu0 %325
        %327 = vrot.lane.b32.xlu0 %v256, 29
        %v328 = vpop.permute.xlu0 %327
        %329 = vrot.lane.b32.xlu0 %v257, 29
        %v330 = vpop.permute.xlu0 %329
        %331 = vrot.lane.b32.xlu0 %v258, 29
        %v332 = vpop.permute.xlu0 %331
        %333 = vrot.lane.b32.xlu0 %v259, 29
        %v334 = vpop.permute.xlu0 %333
        %335 = vrot.lane.b32.xlu0 %v260, 29
        %v336 = vpop.permute.xlu0 %335
        %337 = vrot.lane.b32.xlu0 %v261, 29
        %v338 = vpop.permute.xlu0 %337
        %339 = vrot.lane.b32.xlu0 %v262, 29
        %v340 = vpop.permute.xlu0 %339
        %341 = vrot.lane.b32.xlu0 %v263, 29
        %v342 = vpop.permute.xlu0 %341
        %343 = vrot.lane.b32.xlu0 %v264, 29
        %v344 = vpop.permute.xlu0 %343
        %345 = vrot.lane.b32.xlu0 %v265, 29
        %v346 = vpop.permute.xlu0 %345
        %347 = vrot.lane.b32.xlu0 %v266, 29
        %v348 = vpop.permute.xlu0 %347
        %349 = vrot.lane.b32.xlu0 %v267, 29
        %v350 = vpop.permute.xlu0 %349
        %351 = vrot.lane.b32.xlu0 %v268, 29
        %v352 = vpop.permute.xlu0 %351
        %v353 = vsel %vm231, %v298, %v300
        %v354 = vsel %vm231, %v300, %v302
        %v355 = vsel %vm231, %v302, %v304
        %v356 = vsel %vm231, %v304, %v306
        %v357 = vsel %vm231, %v306, %v308
        %v358 = vsel %vm231, %v308, %v310
        %v359 = vsel %vm231, %v312, %v314
        %v360 = vsel %vm231, %v314, %v316
        %v361 = vsel %vm231, %v316, %v318
        %v362 = vsel %vm231, %v318, %v320
        %v363 = vsel %vm231, %v320, %v322
        %v364 = vsel %vm231, %v322, %v324
        %v365 = vsel %vm231, %v326, %v328
        %v366 = vsel %vm231, %v328, %v330
        %v367 = vsel %vm231, %v330, %v332
        %v368 = vsel %vm231, %v332, %v334
        %v369 = vsel %vm231, %v334, %v336
        %v370 = vsel %vm231, %v336, %v338
        %v371 = vsel %vm231, %v340, %v342
        %v372 = vsel %vm231, %v342, %v344
        %v373 = vsel %vm231, %v344, %v346
        %v374 = vsel %vm231, %v346, %v348
        %v375 = vsel %vm231, %v348, %v350
        %v376 = vsel %vm231, %v350, %v352
        %vm405 = vcmask 1047784
        %406 = vst.msk [vmem:[#allocation2] sm:$0xff] %vm405, %v298
        %407 = vst [vmem:[#allocation2 + $0x8] sm:$0xff] %v353
        %408 = vst [vmem:[#allocation2 + $0x10] sm:$0xff] %v354
        %409 = vst [vmem:[#allocation2 + $0x18] sm:$0xff] %v355
        %410 = vst [vmem:[#allocation2 + $0x20] sm:$0xff] %v356
        %411 = vst [vmem:[#allocation2 + $0x28] sm:$0xff] %v357
        %vm412 = vcmask 367616
        %413 = vst.msk [vmem:[#allocation2 + $0x30] sm:$0xff] %vm412, %v358
        %414 = vst.msk [vmem:[#allocation2 + $0x38] sm:$0xff] %vm405, %v312
        %415 = vst [vmem:[#allocation2 + $0x40] sm:$0xff] %v359
        %416 = vst [vmem:[#allocation2 + $0x48] sm:$0xff] %v360
        %417 = vst [vmem:[#allocation2 + $0x50] sm:$0xff] %v361
        %418 = vst [vmem:[#allocation2 + $0x58] sm:$0xff] %v362
        %419 = vst [vmem:[#allocation2 + $0x60] sm:$0xff] %v363
        %420 = vst.msk [vmem:[#allocation2 + $0x68] sm:$0xff] %vm412, %v364
        %421 = vst.msk [vmem:[#allocation2 + $0x70] sm:$0xff] %vm405, %v326
        %422 = vst [vmem:[#allocation2 + $0x78] sm:$0xff] %v365
        %423 = vst [vmem:[#allocation2 + $0x80] sm:$0xff] %v366
        %424 = vst [vmem:[#allocation2 + $0x88] sm:$0xff] %v367
        %425 = vst [vmem:[#allocation2 + $0x90] sm:$0xff] %v368
        %426 = vst [vmem:[#allocation2 + $0x98] sm:$0xff] %v369
        %427 = vst.msk [vmem:[#allocation2 + $0xa0] sm:$0xff] %vm412, %v370
        %428 = vst.msk [vmem:[#allocation2 + $0xa8] sm:$0xff] %vm405, %v340
        %429 = vst [vmem:[#allocation2 + $0xb0] sm:$0xff] %v371
        %430 = vst [vmem:[#allocation2 + $0xb8] sm:$0xff] %v372
        %431 = vst [vmem:[#allocation2 + $0xc0] sm:$0xff] %v373
        %432 = vst [vmem:[#allocation2 + $0xc8] sm:$0xff] %v374
        %433 = vst [vmem:[#allocation2 + $0xd0] sm:$0xff] %v375
        %434 = vst.msk [vmem:[#allocation2 + $0xd8] sm:$0xff] %vm412, %v376
        %v435 = vld [vmem:[#allocation2] sm:$0xff]
        %v436 = vld [vmem:[#allocation2 + $0x8] sm:$0xff]
        %v437 = vld [vmem:[#allocation2 + $0x10] sm:$0xff]
        %v438 = vld [vmem:[#allocation2 + $0x18] sm:$0xff]
        %v439 = vld [vmem:[#allocation2 + $0x20] sm:$0xff]
        %v440 = vld [vmem:[#allocation2 + $0x28] sm:$0xff]
        %v441 = vld [vmem:[#allocation2 + $0x30] sm:$0xff]
        %v442 = vld [vmem:[#allocation2 + $0x38] sm:$0xff]
        %v443 = vld [vmem:[#allocation2 + $0x40] sm:$0xff]
        %v444 = vld [vmem:[#allocation2 + $0x48] sm:$0xff]
        %v445 = vld [vmem:[#allocation2 + $0x50] sm:$0xff]
        %v446 = vld [vmem:[#allocation2 + $0x58] sm:$0xff]
        %v447 = vld [vmem:[#allocation2 + $0x60] sm:$0xff]
        %v448 = vld [vmem:[#allocation2 + $0x68] sm:$0xff]
        %v449 = vld [vmem:[#allocation2 + $0x70] sm:$0xff]
        %v450 = vld [vmem:[#allocation2 + $0x78] sm:$0xff]
        %v451 = vld [vmem:[#allocation2 + $0x80] sm:$0xff]
        %v452 = vld [vmem:[#allocation2 + $0x88] sm:$0xff]
        %v453 = vld [vmem:[#allocation2 + $0x90] sm:$0xff]
        %v454 = vld [vmem:[#allocation2 + $0x98] sm:$0xff]
        %v455 = vld [vmem:[#allocation2 + $0xa0] sm:$0xff]
        %v456 = vld [vmem:[#allocation2 + $0xa8] sm:$0xff]
        %v457 = vld [vmem:[#allocation2 + $0xb0] sm:$0xff]
        %v458 = vld [vmem:[#allocation2 + $0xb8] sm:$0xff]
        %v459 = vld [vmem:[#allocation2 + $0xc0] sm:$0xff]
        %v460 = vld [vmem:[#allocation2 + $0xc8] sm:$0xff]
        %v461 = vld [vmem:[#allocation2 + $0xd0] sm:$0xff]
        %v462 = vld [vmem:[#allocation2 + $0xd8] sm:$0xff]
        %v463 = vld [vmem:[%s3] sm:$0x7f]
        %v465 = vlaneseq
        %v466 = vshrl.u32 %v465, 7
        %v467 = vsub.s32 0, %v466
        %v468 = vrot.slane %v463, %v467
        %v469 = vlaneseq
        %v470 = vshrl.u32 %v469, 7
        %v471 = vsub.s32 1, %v470
        %v472 = vrot.slane %v463, %v471
        %v473 = vlaneseq
        %v474 = vshrl.u32 %v473, 7
        %v475 = vsub.s32 2, %v474
        %v476 = vrot.slane %v463, %v475
        %v477 = vlaneseq
        %v478 = vshrl.u32 %v477, 7
        %v479 = vsub.s32 3, %v478
        %v480 = vrot.slane %v463, %v479
        %v481 = vlaneseq
        %v482 = vshrl.u32 %v481, 7
        %v483 = vsub.s32 4, %v482
        %v484 = vrot.slane %v463, %v483
        %v485 = vlaneseq
        %v486 = vshrl.u32 %v485, 7
        %v487 = vsub.s32 5, %v486
        %v488 = vrot.slane %v463, %v487
        %v489 = vlaneseq
        %v490 = vshrl.u32 %v489, 7
        %v491 = vsub.s32 6, %v490
        %v492 = vrot.slane %v463, %v491
        %v500 = vmul.f32 %v435, %v468
        %v501 = vmul.f32 %v436, %v472
        %v502 = vmul.f32 %v437, %v476
        %v503 = vmul.f32 %v438, %v480
        %v504 = vmul.f32 %v439, %v484
        %v505 = vmul.f32 %v440, %v488
        %v506 = vmul.f32 %v441, %v492
        %v507 = vmul.f32 %v442, %v468
        %v508 = vmul.f32 %v443, %v472
        %v509 = vmul.f32 %v444, %v476
        %v510 = vmul.f32 %v445, %v480
        %v511 = vmul.f32 %v446, %v484
        %v512 = vmul.f32 %v447, %v488
        %v513 = vmul.f32 %v448, %v492
        %v514 = vmul.f32 %v449, %v468
        %v515 = vmul.f32 %v450, %v472
        %v516 = vmul.f32 %v451, %v476
        %v517 = vmul.f32 %v452, %v480
        %v518 = vmul.f32 %v453, %v484
        %v519 = vmul.f32 %v454, %v488
        %v520 = vmul.f32 %v455, %v492
        %v521 = vmul.f32 %v456, %v468
        %v522 = vmul.f32 %v457, %v472
        %v523 = vmul.f32 %v458, %v476
        %v524 = vmul.f32 %v459, %v480
        %v525 = vmul.f32 %v460, %v484
        %v526 = vmul.f32 %v461, %v488
        %v527 = vmul.f32 %v462, %v492
        %528 = vst [vmem:[#allocation4] sm:$0xff] %v500
        %529 = vst [vmem:[#allocation4 + $0x8] sm:$0xff] %v501
        %530 = vst [vmem:[#allocation4 + $0x10] sm:$0xff] %v502
        %531 = vst [vmem:[#allocation4 + $0x18] sm:$0xff] %v503
        %532 = vst [vmem:[#allocation4 + $0x20] sm:$0xff] %v504
        %533 = vst [vmem:[#allocation4 + $0x28] sm:$0xff] %v505
        %vm534 = vcmask 130048
        %535 = vst.msk [vmem:[#allocation4 + $0x30] sm:$0xff] %vm534, %v506
        %536 = vst [vmem:[#allocation4 + $0x38] sm:$0xff] %v507
        %537 = vst [vmem:[#allocation4 + $0x40] sm:$0xff] %v508
        %538 = vst [vmem:[#allocation4 + $0x48] sm:$0xff] %v509
        %539 = vst [vmem:[#allocation4 + $0x50] sm:$0xff] %v510
        %540 = vst [vmem:[#allocation4 + $0x58] sm:$0xff] %v511
        %541 = vst [vmem:[#allocation4 + $0x60] sm:$0xff] %v512
        %542 = vst.msk [vmem:[#allocation4 + $0x68] sm:$0xff] %vm534, %v513
        %543 = vst [vmem:[#allocation4 + $0x70] sm:$0xff] %v514
        %544 = vst [vmem:[#allocation4 + $0x78] sm:$0xff] %v515
        %545 = vst [vmem:[#allocation4 + $0x80] sm:$0xff] %v516
        %546 = vst [vmem:[#allocation4 + $0x88] sm:$0xff] %v517
        %547 = vst [vmem:[#allocation4 + $0x90] sm:$0xff] %v518
        %548 = vst [vmem:[#allocation4 + $0x98] sm:$0xff] %v519
        %549 = vst.msk [vmem:[#allocation4 + $0xa0] sm:$0xff] %vm534, %v520
        %550 = vst [vmem:[#allocation4 + $0xa8] sm:$0xff] %v521
        %551 = vst [vmem:[#allocation4 + $0xb0] sm:$0xff] %v522
        %552 = vst [vmem:[#allocation4 + $0xb8] sm:$0xff] %v523
        %553 = vst [vmem:[#allocation4 + $0xc0] sm:$0xff] %v524
        %554 = vst [vmem:[#allocation4 + $0xc8] sm:$0xff] %v525
        %555 = vst [vmem:[#allocation4 + $0xd0] sm:$0xff] %v526
        %556 = vst.msk [vmem:[#allocation4 + $0xd8] sm:$0xff] %vm534, %v527
        %v557 = vld [vmem:[#allocation2] sm:$0xff]
        %v558 = vld [vmem:[#allocation2 + $0x8] sm:$0xff]
        %v559 = vld [vmem:[#allocation2 + $0x10] sm:$0xff]
        %v560 = vld [vmem:[#allocation2 + $0x18] sm:$0xff]
        %v561 = vld [vmem:[#allocation2 + $0x20] sm:$0xff]
        %v562 = vld [vmem:[#allocation2 + $0x28] sm:$0xff]
        %v563 = vld [vmem:[#allocation2 + $0x30] sm:$0xff]
        %v564 = vld [vmem:[#allocation2 + $0x38] sm:$0xff]
        %v565 = vld [vmem:[#allocation2 + $0x40] sm:$0xff]
        %v566 = vld [vmem:[#allocation2 + $0x48] sm:$0xff]
        %v567 = vld [vmem:[#allocation2 + $0x50] sm:$0xff]
        %v568 = vld [vmem:[#allocation2 + $0x58] sm:$0xff]
        %v569 = vld [vmem:[#allocation2 + $0x60] sm:$0xff]
        %v570 = vld [vmem:[#allocation2 + $0x68] sm:$0xff]
        %v571 = vld [vmem:[#allocation2 + $0x70] sm:$0xff]
        %v572 = vld [vmem:[#allocation2 + $0x78] sm:$0xff]
        %v573 = vld [vmem:[#allocation2 + $0x80] sm:$0xff]
        %v574 = vld [vmem:[#allocation2 + $0x88] sm:$0xff]
        %v575 = vld [vmem:[#allocation2 + $0x90] sm:$0xff]
        %v576 = vld [vmem:[#allocation2 + $0x98] sm:$0xff]
        %v577 = vld [vmem:[#allocation2 + $0xa0] sm:$0xff]
        %v578 = vld [vmem:[#allocation2 + $0xa8] sm:$0xff]
        %v579 = vld [vmem:[#allocation2 + $0xb0] sm:$0xff]
        %v580 = vld [vmem:[#allocation2 + $0xb8] sm:$0xff]
        %v581 = vld [vmem:[#allocation2 + $0xc0] sm:$0xff]
        %v582 = vld [vmem:[#allocation2 + $0xc8] sm:$0xff]
        %v583 = vld [vmem:[#allocation2 + $0xd0] sm:$0xff]
        %v584 = vld [vmem:[#allocation2 + $0xd8] sm:$0xff]
        %613 = vrot.lane.b32.xlu0 %v557, 127
        %v614 = vpop.permute.xlu0 %613
        %615 = vrot.lane.b32.xlu0 %v558, 127
        %v616 = vpop.permute.xlu0 %615
        %617 = vrot.lane.b32.xlu0 %v559, 127
        %v618 = vpop.permute.xlu0 %617
        %619 = vrot.lane.b32.xlu0 %v560, 127
        %v620 = vpop.permute.xlu0 %619
        %621 = vrot.lane.b32.xlu0 %v561, 127
        %v622 = vpop.permute.xlu0 %621
        %623 = vrot.lane.b32.xlu0 %v562, 127
        %v624 = vpop.permute.xlu0 %623
        %625 = vrot.lane.b32.xlu0 %v563, 127
        %v626 = vpop.permute.xlu0 %625
        %627 = vrot.lane.b32.xlu0 %v564, 127
        %v628 = vpop.permute.xlu0 %627
        %629 = vrot.lane.b32.xlu0 %v565, 127
        %v630 = vpop.permute.xlu0 %629
        %631 = vrot.lane.b32.xlu0 %v566, 127
        %v632 = vpop.permute.xlu0 %631
        %633 = vrot.lane.b32.xlu0 %v567, 127
        %v634 = vpop.permute.xlu0 %633
        %635 = vrot.lane.b32.xlu0 %v568, 127
        %v636 = vpop.permute.xlu0 %635
        %637 = vrot.lane.b32.xlu0 %v569, 127
        %v638 = vpop.permute.xlu0 %637
        %639 = vrot.lane.b32.xlu0 %v570, 127
        %v640 = vpop.permute.xlu0 %639
        %641 = vrot.lane.b32.xlu0 %v571, 127
        %v642 = vpop.permute.xlu0 %641
        %643 = vrot.lane.b32.xlu0 %v572, 127
        %v644 = vpop.permute.xlu0 %643
        %645 = vrot.lane.b32.xlu0 %v573, 127
        %v646 = vpop.permute.xlu0 %645
        %647 = vrot.lane.b32.xlu0 %v574, 127
        %v648 = vpop.permute.xlu0 %647
        %649 = vrot.lane.b32.xlu0 %v575, 127
        %v650 = vpop.permute.xlu0 %649
        %651 = vrot.lane.b32.xlu0 %v576, 127
        %v652 = vpop.permute.xlu0 %651
        %653 = vrot.lane.b32.xlu0 %v577, 127
        %v654 = vpop.permute.xlu0 %653
        %655 = vrot.lane.b32.xlu0 %v578, 127
        %v656 = vpop.permute.xlu0 %655
        %657 = vrot.lane.b32.xlu0 %v579, 127
        %v658 = vpop.permute.xlu0 %657
        %659 = vrot.lane.b32.xlu0 %v580, 127
        %v660 = vpop.permute.xlu0 %659
        %661 = vrot.lane.b32.xlu0 %v581, 127
        %v662 = vpop.permute.xlu0 %661
        %663 = vrot.lane.b32.xlu0 %v582, 127
        %v664 = vpop.permute.xlu0 %663
        %665 = vrot.lane.b32.xlu0 %v583, 127
        %v666 = vpop.permute.xlu0 %665
        %667 = vrot.lane.b32.xlu0 %v584, 127
        %v668 = vpop.permute.xlu0 %667
        %vm669 = vcmask 1039360
        %v670 = vsel %vm669, %v614, %v616
        %v671 = vsel %vm669, %v616, %v618
        %v672 = vsel %vm669, %v618, %v620
        %v673 = vsel %vm669, %v620, %v622
        %v674 = vsel %vm669, %v622, %v624
        %v675 = vsel %vm669, %v624, %v626
        %v676 = vsel %vm669, %v628, %v630
        %v677 = vsel %vm669, %v630, %v632
        %v678 = vsel %vm669, %v632, %v634
        %v679 = vsel %vm669, %v634, %v636
        %v680 = vsel %vm669, %v636, %v638
        %v681 = vsel %vm669, %v638, %v640
        %v682 = vsel %vm669, %v642, %v644
        %v683 = vsel %vm669, %v644, %v646
        %v684 = vsel %vm669, %v646, %v648
        %v685 = vsel %vm669, %v648, %v650
        %v686 = vsel %vm669, %v650, %v652
        %v687 = vsel %vm669, %v652, %v654
        %v688 = vsel %vm669, %v656, %v658
        %v689 = vsel %vm669, %v658, %v660
        %v690 = vsel %vm669, %v660, %v662
        %v691 = vsel %vm669, %v662, %v664
        %v692 = vsel %vm669, %v664, %v666
        %v693 = vsel %vm669, %v666, %v668
        %722 = vst [vmem:[#allocation4 + $0xe0] sm:$0xff] %v670
        %723 = vst [vmem:[#allocation4 + $0xe8] sm:$0xff] %v671
        %724 = vst [vmem:[#allocation4 + $0xf0] sm:$0xff] %v672
        %725 = vst [vmem:[#allocation4 + $0xf8] sm:$0xff] %v673
        %726 = vst [vmem:[#allocation4 + $0x100] sm:$0xff] %v674
        %727 = vst [vmem:[#allocation4 + $0x108] sm:$0xff] %v675
        %728 = vst.msk [vmem:[#allocation4 + $0x110] sm:$0xff] %vm534, %v626
        %729 = vst [vmem:[#allocation4 + $0x118] sm:$0xff] %v676
        %730 = vst [vmem:[#allocation4 + $0x120] sm:$0xff] %v677
        %731 = vst [vmem:[#allocation4 + $0x128] sm:$0xff] %v678
        %732 = vst [vmem:[#allocation4 + $0x130] sm:$0xff] %v679
        %733 = vst [vmem:[#allocation4 + $0x138] sm:$0xff] %v680
        %734 = vst [vmem:[#allocation4 + $0x140] sm:$0xff] %v681
        %735 = vst.msk [vmem:[#allocation4 + $0x148] sm:$0xff] %vm534, %v640
        %736 = vst [vmem:[#allocation4 + $0x150] sm:$0xff] %v682
        %737 = vst [vmem:[#allocation4 + $0x158] sm:$0xff] %v683
        %738 = vst [vmem:[#allocation4 + $0x160] sm:$0xff] %v684
        %739 = vst [vmem:[#allocation4 + $0x168] sm:$0xff] %v685
        %740 = vst [vmem:[#allocation4 + $0x170] sm:$0xff] %v686
        %741 = vst [vmem:[#allocation4 + $0x178] sm:$0xff] %v687
        %742 = vst.msk [vmem:[#allocation4 + $0x180] sm:$0xff] %vm534, %v654
        %743 = vst [vmem:[#allocation4 + $0x188] sm:$0xff] %v688
        %744 = vst [vmem:[#allocation4 + $0x190] sm:$0xff] %v689
        %745 = vst [vmem:[#allocation4 + $0x198] sm:$0xff] %v690
        %746 = vst [vmem:[#allocation4 + $0x1a0] sm:$0xff] %v691
        %747 = vst [vmem:[#allocation4 + $0x1a8] sm:$0xff] %v692
        %748 = vst [vmem:[#allocation4 + $0x1b0] sm:$0xff] %v693
        %749 = vst.msk [vmem:[#allocation4 + $0x1b8] sm:$0xff] %vm534, %v668
        %v750 = vld [vmem:[#allocation2] sm:$0xff]
        %v751 = vld [vmem:[#allocation2 + $0x8] sm:$0xff]
        %v752 = vld [vmem:[#allocation2 + $0x10] sm:$0xff]
        %v753 = vld [vmem:[#allocation2 + $0x18] sm:$0xff]
        %v754 = vld [vmem:[#allocation2 + $0x20] sm:$0xff]
        %v755 = vld [vmem:[#allocation2 + $0x28] sm:$0xff]
        %v756 = vld [vmem:[#allocation2 + $0x30] sm:$0xff]
        %v757 = vld [vmem:[#allocation2 + $0x38] sm:$0xff]
        %v758 = vld [vmem:[#allocation2 + $0x40] sm:$0xff]
        %v759 = vld [vmem:[#allocation2 + $0x48] sm:$0xff]
        %v760 = vld [vmem:[#allocation2 + $0x50] sm:$0xff]
        %v761 = vld [vmem:[#allocation2 + $0x58] sm:$0xff]
        %v762 = vld [vmem:[#allocation2 + $0x60] sm:$0xff]
        %v763 = vld [vmem:[#allocation2 + $0x68] sm:$0xff]
        %v764 = vld [vmem:[#allocation2 + $0x70] sm:$0xff]
        %v765 = vld [vmem:[#allocation2 + $0x78] sm:$0xff]
        %v766 = vld [vmem:[#allocation2 + $0x80] sm:$0xff]
        %v767 = vld [vmem:[#allocation2 + $0x88] sm:$0xff]
        %v768 = vld [vmem:[#allocation2 + $0x90] sm:$0xff]
        %v769 = vld [vmem:[#allocation2 + $0x98] sm:$0xff]
        %v770 = vld [vmem:[#allocation2 + $0xa0] sm:$0xff]
        %v771 = vld [vmem:[#allocation2 + $0xa8] sm:$0xff]
        %v772 = vld [vmem:[#allocation2 + $0xb0] sm:$0xff]
        %v773 = vld [vmem:[#allocation2 + $0xb8] sm:$0xff]
        %v774 = vld [vmem:[#allocation2 + $0xc0] sm:$0xff]
        %v775 = vld [vmem:[#allocation2 + $0xc8] sm:$0xff]
        %v776 = vld [vmem:[#allocation2 + $0xd0] sm:$0xff]
        %v777 = vld [vmem:[#allocation2 + $0xd8] sm:$0xff]
        %s778 = scalar_lea.vmem %s3, 7
        %v779 = vld [vmem:[%s778] sm:$0x7f]
        %v781 = vlaneseq
        %v782 = vshrl.u32 %v781, 7
        %v783 = vsub.s32 0, %v782
        %v784 = vrot.slane %v779, %v783
        %v785 = vlaneseq
        %v786 = vshrl.u32 %v785, 7
        %v787 = vsub.s32 1, %v786
        %v788 = vrot.slane %v779, %v787
        %v789 = vlaneseq
        %v790 = vshrl.u32 %v789, 7
        %v791 = vsub.s32 2, %v790
        %v792 = vrot.slane %v779, %v791
        %v793 = vlaneseq
        %v794 = vshrl.u32 %v793, 7
        %v795 = vsub.s32 3, %v794
        %v796 = vrot.slane %v779, %v795
        %v797 = vlaneseq
        %v798 = vshrl.u32 %v797, 7
        %v799 = vsub.s32 4, %v798
        %v800 = vrot.slane %v779, %v799
        %v801 = vlaneseq
        %v802 = vshrl.u32 %v801, 7
        %v803 = vsub.s32 5, %v802
        %v804 = vrot.slane %v779, %v803
        %v805 = vlaneseq
        %v806 = vshrl.u32 %v805, 7
        %v807 = vsub.s32 6, %v806
        %v808 = vrot.slane %v779, %v807
        %809 = vrot.lane.b32.xlu0 %v784, 2
        %v810 = vpop.permute.xlu0 %809
        %811 = vrot.lane.b32.xlu0 %v788, 2
        %v812 = vpop.permute.xlu0 %811
        %813 = vrot.lane.b32.xlu0 %v792, 2
        %v814 = vpop.permute.xlu0 %813
        %815 = vrot.lane.b32.xlu0 %v796, 2
        %v816 = vpop.permute.xlu0 %815
        %817 = vrot.lane.b32.xlu0 %v800, 2
        %v818 = vpop.permute.xlu0 %817
        %819 = vrot.lane.b32.xlu0 %v804, 2
        %v820 = vpop.permute.xlu0 %819
        %821 = vrot.lane.b32.xlu0 %v808, 2
        %v822 = vpop.permute.xlu0 %821
        %vm823 = vcmask 15360
        %v824 = vsel %vm823, %v810, %v812
        %v825 = vsel %vm823, %v812, %v814
        %v826 = vsel %vm823, %v814, %v816
        %v827 = vsel %vm823, %v816, %v818
        %v828 = vsel %vm823, %v818, %v820
        %v829 = vsel %vm823, %v820, %v822
        %v837 = vmul.f32 %v750, %v810
        %v838 = vmul.f32 %v751, %v824
        %v839 = vmul.f32 %v752, %v825
        %v840 = vmul.f32 %v753, %v826
        %v841 = vmul.f32 %v754, %v827
        %v842 = vmul.f32 %v755, %v828
        %v843 = vmul.f32 %v756, %v829
        %v844 = vmul.f32 %v757, %v810
        %v845 = vmul.f32 %v758, %v824
        %v846 = vmul.f32 %v759, %v825
        %v847 = vmul.f32 %v760, %v826
        %v848 = vmul.f32 %v761, %v827
        %v849 = vmul.f32 %v762, %v828
        %v850 = vmul.f32 %v763, %v829
        %v851 = vmul.f32 %v764, %v810
        %v852 = vmul.f32 %v765, %v824
        %v853 = vmul.f32 %v766, %v825
        %v854 = vmul.f32 %v767, %v826
        %v855 = vmul.f32 %v768, %v827
        %v856 = vmul.f32 %v769, %v828
        %v857 = vmul.f32 %v770, %v829
        %v858 = vmul.f32 %v771, %v810
        %v859 = vmul.f32 %v772, %v824
        %v860 = vmul.f32 %v773, %v825
        %v861 = vmul.f32 %v774, %v826
        %v862 = vmul.f32 %v775, %v827
        %v863 = vmul.f32 %v776, %v828
        %v864 = vmul.f32 %v777, %v829
        %893 = vrot.lane.b32.xlu0 %v837, 126
        %v894 = vpop.permute.xlu0 %893
        %895 = vrot.lane.b32.xlu0 %v838, 126
        %v896 = vpop.permute.xlu0 %895
        %897 = vrot.lane.b32.xlu0 %v839, 126
        %v898 = vpop.permute.xlu0 %897
        %899 = vrot.lane.b32.xlu0 %v840, 126
        %v900 = vpop.permute.xlu0 %899
        %901 = vrot.lane.b32.xlu0 %v841, 126
        %v902 = vpop.permute.xlu0 %901
        %903 = vrot.lane.b32.xlu0 %v842, 126
        %v904 = vpop.permute.xlu0 %903
        %905 = vrot.lane.b32.xlu0 %v843, 126
        %v906 = vpop.permute.xlu0 %905
        %907 = vrot.lane.b32.xlu0 %v844, 126
        %v908 = vpop.permute.xlu0 %907
        %909 = vrot.lane.b32.xlu0 %v845, 126
        %v910 = vpop.permute.xlu0 %909
        %911 = vrot.lane.b32.xlu0 %v846, 126
        %v912 = vpop.permute.xlu0 %911
        %913 = vrot.lane.b32.xlu0 %v847, 126
        %v914 = vpop.permute.xlu0 %913
        %915 = vrot.lane.b32.xlu0 %v848, 126
        %v916 = vpop.permute.xlu0 %915
        %917 = vrot.lane.b32.xlu0 %v849, 126
        %v918 = vpop.permute.xlu0 %917
        %919 = vrot.lane.b32.xlu0 %v850, 126
        %v920 = vpop.permute.xlu0 %919
        %921 = vrot.lane.b32.xlu0 %v851, 126
        %v922 = vpop.permute.xlu0 %921
        %923 = vrot.lane.b32.xlu0 %v852, 126
        %v924 = vpop.permute.xlu0 %923
        %925 = vrot.lane.b32.xlu0 %v853, 126
        %v926 = vpop.permute.xlu0 %925
        %927 = vrot.lane.b32.xlu0 %v854, 126
        %v928 = vpop.permute.xlu0 %927
        %929 = vrot.lane.b32.xlu0 %v855, 126
        %v930 = vpop.permute.xlu0 %929
        %931 = vrot.lane.b32.xlu0 %v856, 126
        %v932 = vpop.permute.xlu0 %931
        %933 = vrot.lane.b32.xlu0 %v857, 126
        %v934 = vpop.permute.xlu0 %933
        %935 = vrot.lane.b32.xlu0 %v858, 126
        %v936 = vpop.permute.xlu0 %935
        %937 = vrot.lane.b32.xlu0 %v859, 126
        %v938 = vpop.permute.xlu0 %937
        %939 = vrot.lane.b32.xlu0 %v860, 126
        %v940 = vpop.permute.xlu0 %939
        %941 = vrot.lane.b32.xlu0 %v861, 126
        %v942 = vpop.permute.xlu0 %941
        %943 = vrot.lane.b32.xlu0 %v862, 126
        %v944 = vpop.permute.xlu0 %943
        %945 = vrot.lane.b32.xlu0 %v863, 126
        %v946 = vpop.permute.xlu0 %945
        %947 = vrot.lane.b32.xlu0 %v864, 126
        %v948 = vpop.permute.xlu0 %947
        %vm949 = vcmask 1031168
        %v950 = vsel %vm949, %v894, %v896
        %v951 = vsel %vm949, %v896, %v898
        %v952 = vsel %vm949, %v898, %v900
        %v953 = vsel %vm949, %v900, %v902
        %v954 = vsel %vm949, %v902, %v904
        %v955 = vsel %vm949, %v904, %v906
        %v956 = vsel %vm949, %v908, %v910
        %v957 = vsel %vm949, %v910, %v912
        %v958 = vsel %vm949, %v912, %v914
        %v959 = vsel %vm949, %v914, %v916
        %v960 = vsel %vm949, %v916, %v918
        %v961 = vsel %vm949, %v918, %v920
        %v962 = vsel %vm949, %v922, %v924
        %v963 = vsel %vm949, %v924, %v926
        %v964 = vsel %vm949, %v926, %v928
        %v965 = vsel %vm949, %v928, %v930
        %v966 = vsel %vm949, %v930, %v932
        %v967 = vsel %vm949, %v932, %v934
        %v968 = vsel %vm949, %v936, %v938
        %v969 = vsel %vm949, %v938, %v940
        %v970 = vsel %vm949, %v940, %v942
        %v971 = vsel %vm949, %v942, %v944
        %v972 = vsel %vm949, %v944, %v946
        %v973 = vsel %vm949, %v946, %v948
        %1002 = vst [vmem:[#allocation4 + $0x1c0] sm:$0xff] %v950
        %1003 = vst [vmem:[#allocation4 + $0x1c8] sm:$0xff] %v951
        %1004 = vst [vmem:[#allocation4 + $0x1d0] sm:$0xff] %v952
        %1005 = vst [vmem:[#allocation4 + $0x1d8] sm:$0xff] %v953
        %1006 = vst [vmem:[#allocation4 + $0x1e0] sm:$0xff] %v954
        %1007 = vst [vmem:[#allocation4 + $0x1e8] sm:$0xff] %v955
        %1008 = vst.msk [vmem:[#allocation4 + $0x1f0] sm:$0xff] %vm534, %v906
        %1009 = vst [vmem:[#allocation4 + $0x1f8] sm:$0xff] %v956
        %1010 = vst [vmem:[#allocation4 + $0x200] sm:$0xff] %v957
        %1011 = vst [vmem:[#allocation4 + $0x208] sm:$0xff] %v958
        %1012 = vst [vmem:[#allocation4 + $0x210] sm:$0xff] %v959
        %1013 = vst [vmem:[#allocation4 + $0x218] sm:$0xff] %v960
        %1014 = vst [vmem:[#allocation4 + $0x220] sm:$0xff] %v961
        %1015 = vst.msk [vmem:[#allocation4 + $0x228] sm:$0xff] %vm534, %v920
        %1016 = vst [vmem:[#allocation4 + $0x230] sm:$0xff] %v962
        %1017 = vst [vmem:[#allocation4 + $0x238] sm:$0xff] %v963
        %1018 = vst [vmem:[#allocation4 + $0x240] sm:$0xff] %v964
        %1019 = vst [vmem:[#allocation4 + $0x248] sm:$0xff] %v965
        %1020 = vst [vmem:[#allocation4 + $0x250] sm:$0xff] %v966
        %1021 = vst [vmem:[#allocation4 + $0x258] sm:$0xff] %v967
        %1022 = vst.msk [vmem:[#allocation4 + $0x260] sm:$0xff] %vm534, %v934
        %1023 = vst [vmem:[#allocation4 + $0x268] sm:$0xff] %v968
        %1024 = vst [vmem:[#allocation4 + $0x270] sm:$0xff] %v969
        %1025 = vst [vmem:[#allocation4 + $0x278] sm:$0xff] %v970
        %1026 = vst [vmem:[#allocation4 + $0x280] sm:$0xff] %v971
        %1027 = vst [vmem:[#allocation4 + $0x288] sm:$0xff] %v972
        %1028 = vst [vmem:[#allocation4 + $0x290] sm:$0xff] %v973
        %1029 = vst.msk [vmem:[#allocation4 + $0x298] sm:$0xff] %vm534, %v948
        %v1030 = vld [vmem:[#allocation2] sm:$0xff]
        %v1031 = vld [vmem:[#allocation2 + $0x8] sm:$0xff]
        %v1032 = vld [vmem:[#allocation2 + $0x10] sm:$0xff]
        %v1033 = vld [vmem:[#allocation2 + $0x18] sm:$0xff]
        %v1034 = vld [vmem:[#allocation2 + $0x20] sm:$0xff]
        %v1035 = vld [vmem:[#allocation2 + $0x28] sm:$0xff]
        %v1036 = vld [vmem:[#allocation2 + $0x30] sm:$0xff]
        %v1037 = vld [vmem:[#allocation2 + $0x38] sm:$0xff]
        %v1038 = vld [vmem:[#allocation2 + $0x40] sm:$0xff]
        %v1039 = vld [vmem:[#allocation2 + $0x48] sm:$0xff]
        %v1040 = vld [vmem:[#allocation2 + $0x50] sm:$0xff]
        %v1041 = vld [vmem:[#allocation2 + $0x58] sm:$0xff]
        %v1042 = vld [vmem:[#allocation2 + $0x60] sm:$0xff]
        %v1043 = vld [vmem:[#allocation2 + $0x68] sm:$0xff]
        %v1044 = vld [vmem:[#allocation2 + $0x70] sm:$0xff]
        %v1045 = vld [vmem:[#allocation2 + $0x78] sm:$0xff]
        %v1046 = vld [vmem:[#allocation2 + $0x80] sm:$0xff]
        %v1047 = vld [vmem:[#allocation2 + $0x88] sm:$0xff]
        %v1048 = vld [vmem:[#allocation2 + $0x90] sm:$0xff]
        %v1049 = vld [vmem:[#allocation2 + $0x98] sm:$0xff]
        %v1050 = vld [vmem:[#allocation2 + $0xa0] sm:$0xff]
        %v1051 = vld [vmem:[#allocation2 + $0xa8] sm:$0xff]
        %v1052 = vld [vmem:[#allocation2 + $0xb0] sm:$0xff]
        %v1053 = vld [vmem:[#allocation2 + $0xb8] sm:$0xff]
        %v1054 = vld [vmem:[#allocation2 + $0xc0] sm:$0xff]
        %v1055 = vld [vmem:[#allocation2 + $0xc8] sm:$0xff]
        %v1056 = vld [vmem:[#allocation2 + $0xd0] sm:$0xff]
        %v1057 = vld [vmem:[#allocation2 + $0xd8] sm:$0xff]
        %v1058 = vld [vmem:[%s3] sm:$0x7f]
        %v1060 = vlaneseq
        %v1061 = vshrl.u32 %v1060, 7
        %v1062 = vsub.s32 0, %v1061
        %v1063 = vrot.slane %v1058, %v1062
        %v1064 = vlaneseq
        %v1065 = vshrl.u32 %v1064, 7
        %v1066 = vsub.s32 1, %v1065
        %v1067 = vrot.slane %v1058, %v1066
        %v1068 = vlaneseq
        %v1069 = vshrl.u32 %v1068, 7
        %v1070 = vsub.s32 2, %v1069
        %v1071 = vrot.slane %v1058, %v1070
        %v1072 = vlaneseq
        %v1073 = vshrl.u32 %v1072, 7
        %v1074 = vsub.s32 3, %v1073
        %v1075 = vrot.slane %v1058, %v1074
        %v1076 = vlaneseq
        %v1077 = vshrl.u32 %v1076, 7
        %v1078 = vsub.s32 4, %v1077
        %v1079 = vrot.slane %v1058, %v1078
        %v1080 = vlaneseq
        %v1081 = vshrl.u32 %v1080, 7
        %v1082 = vsub.s32 5, %v1081
        %v1083 = vrot.slane %v1058, %v1082
        %v1084 = vlaneseq
        %v1085 = vshrl.u32 %v1084, 7
        %v1086 = vsub.s32 6, %v1085
        %v1087 = vrot.slane %v1058, %v1086
        %1088 = vrot.lane.b32.xlu0 %v1063, 28
        %v1089 = vpop.permute.xlu0 %1088
        %1090 = vrot.lane.b32.xlu0 %v1067, 28
        %v1091 = vpop.permute.xlu0 %1090
        %1092 = vrot.lane.b32.xlu0 %v1071, 28
        %v1093 = vpop.permute.xlu0 %1092
        %1094 = vrot.lane.b32.xlu0 %v1075, 28
        %v1095 = vpop.permute.xlu0 %1094
        %1096 = vrot.lane.b32.xlu0 %v1079, 28
        %v1097 = vpop.permute.xlu0 %1096
        %1098 = vrot.lane.b32.xlu0 %v1083, 28
        %v1099 = vpop.permute.xlu0 %1098
        %1100 = vrot.lane.b32.xlu0 %v1087, 28
        %v1101 = vpop.permute.xlu0 %1100
        %vm1102 = vcmask 228352
        %v1103 = vsel %vm1102, %v1089, %v1091
        %v1104 = vsel %vm1102, %v1091, %v1093
        %v1105 = vsel %vm1102, %v1093, %v1095
        %v1106 = vsel %vm1102, %v1095, %v1097
        %v1107 = vsel %vm1102, %v1097, %v1099
        %v1108 = vsel %vm1102, %v1099, %v1101
        %v1116 = vmul.f32 %v1030, %v1089
        %v1117 = vmul.f32 %v1031, %v1103
        %v1118 = vmul.f32 %v1032, %v1104
        %v1119 = vmul.f32 %v1033, %v1105
        %v1120 = vmul.f32 %v1034, %v1106
        %v1121 = vmul.f32 %v1035, %v1107
        %v1122 = vmul.f32 %v1036, %v1108
        %v1123 = vmul.f32 %v1037, %v1089
        %v1124 = vmul.f32 %v1038, %v1103
        %v1125 = vmul.f32 %v1039, %v1104
        %v1126 = vmul.f32 %v1040, %v1105
        %v1127 = vmul.f32 %v1041, %v1106
        %v1128 = vmul.f32 %v1042, %v1107
        %v1129 = vmul.f32 %v1043, %v1108
        %v1130 = vmul.f32 %v1044, %v1089
        %v1131 = vmul.f32 %v1045, %v1103
        %v1132 = vmul.f32 %v1046, %v1104
        %v1133 = vmul.f32 %v1047, %v1105
        %v1134 = vmul.f32 %v1048, %v1106
        %v1135 = vmul.f32 %v1049, %v1107
        %v1136 = vmul.f32 %v1050, %v1108
        %v1137 = vmul.f32 %v1051, %v1089
        %v1138 = vmul.f32 %v1052, %v1103
        %v1139 = vmul.f32 %v1053, %v1104
        %v1140 = vmul.f32 %v1054, %v1105
        %v1141 = vmul.f32 %v1055, %v1106
        %v1142 = vmul.f32 %v1056, %v1107
        %v1143 = vmul.f32 %v1057, %v1108
        %1172 = vrot.lane.b32.xlu0 %v1116, 100
        %v1173 = vpop.permute.xlu0 %1172
        %1174 = vrot.lane.b32.xlu0 %v1117, 100
        %v1175 = vpop.permute.xlu0 %1174
        %1176 = vrot.lane.b32.xlu0 %v1118, 100
        %v1177 = vpop.permute.xlu0 %1176
        %1178 = vrot.lane.b32.xlu0 %v1119, 100
        %v1179 = vpop.permute.xlu0 %1178
        %1180 = vrot.lane.b32.xlu0 %v1120, 100
        %v1181 = vpop.permute.xlu0 %1180
        %1182 = vrot.lane.b32.xlu0 %v1121, 100
        %v1183 = vpop.permute.xlu0 %1182
        %1184 = vrot.lane.b32.xlu0 %v1122, 100
        %v1185 = vpop.permute.xlu0 %1184
        %1186 = vrot.lane.b32.xlu0 %v1123, 100
        %v1187 = vpop.permute.xlu0 %1186
        %1188 = vrot.lane.b32.xlu0 %v1124, 100
        %v1189 = vpop.permute.xlu0 %1188
        %1190 = vrot.lane.b32.xlu0 %v1125, 100
        %v1191 = vpop.permute.xlu0 %1190
        %1192 = vrot.lane.b32.xlu0 %v1126, 100
        %v1193 = vpop.permute.xlu0 %1192
        %1194 = vrot.lane.b32.xlu0 %v1127, 100
        %v1195 = vpop.permute.xlu0 %1194
        %1196 = vrot.lane.b32.xlu0 %v1128, 100
        %v1197 = vpop.permute.xlu0 %1196
        %1198 = vrot.lane.b32.xlu0 %v1129, 100
        %v1199 = vpop.permute.xlu0 %1198
        %1200 = vrot.lane.b32.xlu0 %v1130, 100
        %v1201 = vpop.permute.xlu0 %1200
        %1202 = vrot.lane.b32.xlu0 %v1131, 100
        %v1203 = vpop.permute.xlu0 %1202
        %1204 = vrot.lane.b32.xlu0 %v1132, 100
        %v1205 = vpop.permute.xlu0 %1204
        %1206 = vrot.lane.b32.xlu0 %v1133, 100
        %v1207 = vpop.permute.xlu0 %1206
        %1208 = vrot.lane.b32.xlu0 %v1134, 100
        %v1209 = vpop.permute.xlu0 %1208
        %1210 = vrot.lane.b32.xlu0 %v1135, 100
        %v1211 = vpop.permute.xlu0 %1210
        %1212 = vrot.lane.b32.xlu0 %v1136, 100
        %v1213 = vpop.permute.xlu0 %1212
        %1214 = vrot.lane.b32.xlu0 %v1137, 100
        %v1215 = vpop.permute.xlu0 %1214
        %1216 = vrot.lane.b32.xlu0 %v1138, 100
        %v1217 = vpop.permute.xlu0 %1216
        %1218 = vrot.lane.b32.xlu0 %v1139, 100
        %v1219 = vpop.permute.xlu0 %1218
        %1220 = vrot.lane.b32.xlu0 %v1140, 100
        %v1221 = vpop.permute.xlu0 %1220
        %1222 = vrot.lane.b32.xlu0 %v1141, 100
        %v1223 = vpop.permute.xlu0 %1222
        %1224 = vrot.lane.b32.xlu0 %v1142, 100
        %v1225 = vpop.permute.xlu0 %1224
        %1226 = vrot.lane.b32.xlu0 %v1143, 100
        %v1227 = vpop.permute.xlu0 %1226
        %vm1228 = vcmask 818176
        %v1229 = vsel %vm1228, %v1173, %v1175
        %v1230 = vsel %vm1228, %v1175, %v1177
        %v1231 = vsel %vm1228, %v1177, %v1179
        %v1232 = vsel %vm1228, %v1179, %v1181
        %v1233 = vsel %vm1228, %v1181, %v1183
        %v1234 = vsel %vm1228, %v1183, %v1185
        %v1235 = vsel %vm1228, %v1187, %v1189
        %v1236 = vsel %vm1228, %v1189, %v1191
        %v1237 = vsel %vm1228, %v1191, %v1193
        %v1238 = vsel %vm1228, %v1193, %v1195
        %v1239 = vsel %vm1228, %v1195, %v1197
        %v1240 = vsel %vm1228, %v1197, %v1199
        %v1241 = vsel %vm1228, %v1201, %v1203
        %v1242 = vsel %vm1228, %v1203, %v1205
        %v1243 = vsel %vm1228, %v1205, %v1207
        %v1244 = vsel %vm1228, %v1207, %v1209
        %v1245 = vsel %vm1228, %v1209, %v1211
        %v1246 = vsel %vm1228, %v1211, %v1213
        %v1247 = vsel %vm1228, %v1215, %v1217
        %v1248 = vsel %vm1228, %v1217, %v1219
        %v1249 = vsel %vm1228, %v1219, %v1221
        %v1250 = vsel %vm1228, %v1221, %v1223
        %v1251 = vsel %vm1228, %v1223, %v1225
        %v1252 = vsel %vm1228, %v1225, %v1227
        %1281 = vst [vmem:[#allocation4 + $0x2a0] sm:$0xff] %v1229
        %1282 = vst [vmem:[#allocation4 + $0x2a8] sm:$0xff] %v1230
        %1283 = vst [vmem:[#allocation4 + $0x2b0] sm:$0xff] %v1231
        %1284 = vst [vmem:[#allocation4 + $0x2b8] sm:$0xff] %v1232
        %1285 = vst [vmem:[#allocation4 + $0x2c0] sm:$0xff] %v1233
        %1286 = vst [vmem:[#allocation4 + $0x2c8] sm:$0xff] %v1234
        %1287 = vst.msk [vmem:[#allocation4 + $0x2d0] sm:$0xff] %vm534, %v1185
        %1288 = vst [vmem:[#allocation4 + $0x2d8] sm:$0xff] %v1235
        %1289 = vst [vmem:[#allocation4 + $0x2e0] sm:$0xff] %v1236
        %1290 = vst [vmem:[#allocation4 + $0x2e8] sm:$0xff] %v1237
        %1291 = vst [vmem:[#allocation4 + $0x2f0] sm:$0xff] %v1238
        %1292 = vst [vmem:[#allocation4 + $0x2f8] sm:$0xff] %v1239
        %1293 = vst [vmem:[#allocation4 + $0x300] sm:$0xff] %v1240
        %1294 = vst.msk [vmem:[#allocation4 + $0x308] sm:$0xff] %vm534, %v1199
        %1295 = vst [vmem:[#allocation4 + $0x310] sm:$0xff] %v1241
        %1296 = vst [vmem:[#allocation4 + $0x318] sm:$0xff] %v1242
        %1297 = vst [vmem:[#allocation4 + $0x320] sm:$0xff] %v1243
        %1298 = vst [vmem:[#allocation4 + $0x328] sm:$0xff] %v1244
        %1299 = vst [vmem:[#allocation4 + $0x330] sm:$0xff] %v1245
        %1300 = vst [vmem:[#allocation4 + $0x338] sm:$0xff] %v1246
        %1301 = vst.msk [vmem:[#allocation4 + $0x340] sm:$0xff] %vm534, %v1213
        %1302 = vst [vmem:[#allocation4 + $0x348] sm:$0xff] %v1247
        %1303 = vst [vmem:[#allocation4 + $0x350] sm:$0xff] %v1248
        %1304 = vst [vmem:[#allocation4 + $0x358] sm:$0xff] %v1249
        %1305 = vst [vmem:[#allocation4 + $0x360] sm:$0xff] %v1250
        %1306 = vst [vmem:[#allocation4 + $0x368] sm:$0xff] %v1251
        %1307 = vst [vmem:[#allocation4 + $0x370] sm:$0xff] %v1252
        %1308 = vst.msk [vmem:[#allocation4 + $0x378] sm:$0xff] %vm534, %v1227
        %v1309 = vld [vmem:[#allocation2] sm:$0xff]
        %v1310 = vld [vmem:[#allocation2 + $0x8] sm:$0xff]
        %v1311 = vld [vmem:[#allocation2 + $0x10] sm:$0xff]
        %v1312 = vld [vmem:[#allocation2 + $0x18] sm:$0xff]
        %v1313 = vld [vmem:[#allocation2 + $0x20] sm:$0xff]
        %v1314 = vld [vmem:[#allocation2 + $0x28] sm:$0xff]
        %v1315 = vld [vmem:[#allocation2 + $0x30] sm:$0xff]
        %v1316 = vld [vmem:[#allocation2 + $0x38] sm:$0xff]
        %v1317 = vld [vmem:[#allocation2 + $0x40] sm:$0xff]
        %v1318 = vld [vmem:[#allocation2 + $0x48] sm:$0xff]
        %v1319 = vld [vmem:[#allocation2 + $0x50] sm:$0xff]
        %v1320 = vld [vmem:[#allocation2 + $0x58] sm:$0xff]
        %v1321 = vld [vmem:[#allocation2 + $0x60] sm:$0xff]
        %v1322 = vld [vmem:[#allocation2 + $0x68] sm:$0xff]
        %v1323 = vld [vmem:[#allocation2 + $0x70] sm:$0xff]
        %v1324 = vld [vmem:[#allocation2 + $0x78] sm:$0xff]
        %v1325 = vld [vmem:[#allocation2 + $0x80] sm:$0xff]
        %v1326 = vld [vmem:[#allocation2 + $0x88] sm:$0xff]
        %v1327 = vld [vmem:[#allocation2 + $0x90] sm:$0xff]
        %v1328 = vld [vmem:[#allocation2 + $0x98] sm:$0xff]
        %v1329 = vld [vmem:[#allocation2 + $0xa0] sm:$0xff]
        %v1330 = vld [vmem:[#allocation2 + $0xa8] sm:$0xff]
        %v1331 = vld [vmem:[#allocation2 + $0xb0] sm:$0xff]
        %v1332 = vld [vmem:[#allocation2 + $0xb8] sm:$0xff]
        %v1333 = vld [vmem:[#allocation2 + $0xc0] sm:$0xff]
        %v1334 = vld [vmem:[#allocation2 + $0xc8] sm:$0xff]
        %v1335 = vld [vmem:[#allocation2 + $0xd0] sm:$0xff]
        %v1336 = vld [vmem:[#allocation2 + $0xd8] sm:$0xff]
        %1365 = vrot.lane.b32.xlu0 %v1309, 99
        %v1366 = vpop.permute.xlu0 %1365
        %1367 = vrot.lane.b32.xlu0 %v1310, 99
        %v1368 = vpop.permute.xlu0 %1367
        %1369 = vrot.lane.b32.xlu0 %v1311, 99
        %v1370 = vpop.permute.xlu0 %1369
        %1371 = vrot.lane.b32.xlu0 %v1312, 99
        %v1372 = vpop.permute.xlu0 %1371
        %1373 = vrot.lane.b32.xlu0 %v1313, 99
        %v1374 = vpop.permute.xlu0 %1373
        %1375 = vrot.lane.b32.xlu0 %v1314, 99
        %v1376 = vpop.permute.xlu0 %1375
        %1377 = vrot.lane.b32.xlu0 %v1315, 99
        %v1378 = vpop.permute.xlu0 %1377
        %1379 = vrot.lane.b32.xlu0 %v1316, 99
        %v1380 = vpop.permute.xlu0 %1379
        %1381 = vrot.lane.b32.xlu0 %v1317, 99
        %v1382 = vpop.permute.xlu0 %1381
        %1383 = vrot.lane.b32.xlu0 %v1318, 99
        %v1384 = vpop.permute.xlu0 %1383
        %1385 = vrot.lane.b32.xlu0 %v1319, 99
        %v1386 = vpop.permute.xlu0 %1385
        %1387 = vrot.lane.b32.xlu0 %v1320, 99
        %v1388 = vpop.permute.xlu0 %1387
        %1389 = vrot.lane.b32.xlu0 %v1321, 99
        %v1390 = vpop.permute.xlu0 %1389
        %1391 = vrot.lane.b32.xlu0 %v1322, 99
        %v1392 = vpop.permute.xlu0 %1391
        %1393 = vrot.lane.b32.xlu0 %v1323, 99
        %v1394 = vpop.permute.xlu0 %1393
        %1395 = vrot.lane.b32.xlu0 %v1324, 99
        %v1396 = vpop.permute.xlu0 %1395
        %1397 = vrot.lane.b32.xlu0 %v1325, 99
        %v1398 = vpop.permute.xlu0 %1397
        %1399 = vrot.lane.b32.xlu0 %v1326, 99
        %v1400 = vpop.permute.xlu0 %1399
        %1401 = vrot.lane.b32.xlu0 %v1327, 99
        %v1402 = vpop.permute.xlu0 %1401
        %1403 = vrot.lane.b32.xlu0 %v1328, 99
        %v1404 = vpop.permute.xlu0 %1403
        %1405 = vrot.lane.b32.xlu0 %v1329, 99
        %v1406 = vpop.permute.xlu0 %1405
        %1407 = vrot.lane.b32.xlu0 %v1330, 99
        %v1408 = vpop.permute.xlu0 %1407
        %1409 = vrot.lane.b32.xlu0 %v1331, 99
        %v1410 = vpop.permute.xlu0 %1409
        %1411 = vrot.lane.b32.xlu0 %v1332, 99
        %v1412 = vpop.permute.xlu0 %1411
        %1413 = vrot.lane.b32.xlu0 %v1333, 99
        %v1414 = vpop.permute.xlu0 %1413
        %1415 = vrot.lane.b32.xlu0 %v1334, 99
        %v1416 = vpop.permute.xlu0 %1415
        %1417 = vrot.lane.b32.xlu0 %v1335, 99
        %v1418 = vpop.permute.xlu0 %1417
        %1419 = vrot.lane.b32.xlu0 %v1336, 99
        %v1420 = vpop.permute.xlu0 %1419
        %vm1421 = vcmask 809984
        %v1422 = vsel %vm1421, %v1366, %v1368
        %v1423 = vsel %vm1421, %v1368, %v1370
        %v1424 = vsel %vm1421, %v1370, %v1372
        %v1425 = vsel %vm1421, %v1372, %v1374
        %v1426 = vsel %vm1421, %v1374, %v1376
        %v1427 = vsel %vm1421, %v1376, %v1378
        %v1428 = vsel %vm1421, %v1380, %v1382
        %v1429 = vsel %vm1421, %v1382, %v1384
        %v1430 = vsel %vm1421, %v1384, %v1386
        %v1431 = vsel %vm1421, %v1386, %v1388
        %v1432 = vsel %vm1421, %v1388, %v1390
        %v1433 = vsel %vm1421, %v1390, %v1392
        %v1434 = vsel %vm1421, %v1394, %v1396
        %v1435 = vsel %vm1421, %v1396, %v1398
        %v1436 = vsel %vm1421, %v1398, %v1400
        %v1437 = vsel %vm1421, %v1400, %v1402
        %v1438 = vsel %vm1421, %v1402, %v1404
        %v1439 = vsel %vm1421, %v1404, %v1406
        %v1440 = vsel %vm1421, %v1408, %v1410
        %v1441 = vsel %vm1421, %v1410, %v1412
        %v1442 = vsel %vm1421, %v1412, %v1414
        %v1443 = vsel %vm1421, %v1414, %v1416
        %v1444 = vsel %vm1421, %v1416, %v1418
        %v1445 = vsel %vm1421, %v1418, %v1420
        %1474 = vst [vmem:[#allocation4 + $0x380] sm:$0xff] %v1422
        %1475 = vst [vmem:[#allocation4 + $0x388] sm:$0xff] %v1423
        %1476 = vst [vmem:[#allocation4 + $0x390] sm:$0xff] %v1424
        %1477 = vst [vmem:[#allocation4 + $0x398] sm:$0xff] %v1425
        %1478 = vst [vmem:[#allocation4 + $0x3a0] sm:$0xff] %v1426
        %1479 = vst [vmem:[#allocation4 + $0x3a8] sm:$0xff] %v1427
        %1480 = vst.msk [vmem:[#allocation4 + $0x3b0] sm:$0xff] %vm534, %v1378
        %1481 = vst [vmem:[#allocation4 + $0x3b8] sm:$0xff] %v1428
        %1482 = vst [vmem:[#allocation4 + $0x3c0] sm:$0xff] %v1429
        %1483 = vst [vmem:[#allocation4 + $0x3c8] sm:$0xff] %v1430
        %1484 = vst [vmem:[#allocation4 + $0x3d0] sm:$0xff] %v1431
        %1485 = vst [vmem:[#allocation4 + $0x3d8] sm:$0xff] %v1432
        %1486 = vst [vmem:[#allocation4 + $0x3e0] sm:$0xff] %v1433
        %1487 = vst.msk [vmem:[#allocation4 + $0x3e8] sm:$0xff] %vm534, %v1392
        %1488 = vst [vmem:[#allocation4 + $0x3f0] sm:$0xff] %v1434
        %1489 = vst [vmem:[#allocation4 + $0x3f8] sm:$0xff] %v1435
        %1490 = vst [vmem:[#allocation4 + $0x400] sm:$0xff] %v1436
        %1491 = vst [vmem:[#allocation4 + $0x408] sm:$0xff] %v1437
        %1492 = vst [vmem:[#allocation4 + $0x410] sm:$0xff] %v1438
        %1493 = vst [vmem:[#allocation4 + $0x418] sm:$0xff] %v1439
        %1494 = vst.msk [vmem:[#allocation4 + $0x420] sm:$0xff] %vm534, %v1406
        %1495 = vst [vmem:[#allocation4 + $0x428] sm:$0xff] %v1440
        %1496 = vst [vmem:[#allocation4 + $0x430] sm:$0xff] %v1441
        %1497 = vst [vmem:[#allocation4 + $0x438] sm:$0xff] %v1442
        %1498 = vst [vmem:[#allocation4 + $0x440] sm:$0xff] %v1443
        %1499 = vst [vmem:[#allocation4 + $0x448] sm:$0xff] %v1444
        %1500 = vst [vmem:[#allocation4 + $0x450] sm:$0xff] %v1445
        %1501 = vst.msk [vmem:[#allocation4 + $0x458] sm:$0xff] %vm534, %v1420
        %v1502 = vld [vmem:[#allocation2] sm:$0xff]
        %v1503 = vld [vmem:[#allocation2 + $0x8] sm:$0xff]
        %v1504 = vld [vmem:[#allocation2 + $0x10] sm:$0xff]
        %v1505 = vld [vmem:[#allocation2 + $0x18] sm:$0xff]
        %v1506 = vld [vmem:[#allocation2 + $0x20] sm:$0xff]
        %v1507 = vld [vmem:[#allocation2 + $0x28] sm:$0xff]
        %v1508 = vld [vmem:[#allocation2 + $0x30] sm:$0xff]
        %v1509 = vld [vmem:[#allocation2 + $0x38] sm:$0xff]
        %v1510 = vld [vmem:[#allocation2 + $0x40] sm:$0xff]
        %v1511 = vld [vmem:[#allocation2 + $0x48] sm:$0xff]
        %v1512 = vld [vmem:[#allocation2 + $0x50] sm:$0xff]
        %v1513 = vld [vmem:[#allocation2 + $0x58] sm:$0xff]
        %v1514 = vld [vmem:[#allocation2 + $0x60] sm:$0xff]
        %v1515 = vld [vmem:[#allocation2 + $0x68] sm:$0xff]
        %v1516 = vld [vmem:[#allocation2 + $0x70] sm:$0xff]
        %v1517 = vld [vmem:[#allocation2 + $0x78] sm:$0xff]
        %v1518 = vld [vmem:[#allocation2 + $0x80] sm:$0xff]
        %v1519 = vld [vmem:[#allocation2 + $0x88] sm:$0xff]
        %v1520 = vld [vmem:[#allocation2 + $0x90] sm:$0xff]
        %v1521 = vld [vmem:[#allocation2 + $0x98] sm:$0xff]
        %v1522 = vld [vmem:[#allocation2 + $0xa0] sm:$0xff]
        %v1523 = vld [vmem:[#allocation2 + $0xa8] sm:$0xff]
        %v1524 = vld [vmem:[#allocation2 + $0xb0] sm:$0xff]
        %v1525 = vld [vmem:[#allocation2 + $0xb8] sm:$0xff]
        %v1526 = vld [vmem:[#allocation2 + $0xc0] sm:$0xff]
        %v1527 = vld [vmem:[#allocation2 + $0xc8] sm:$0xff]
        %v1528 = vld [vmem:[#allocation2 + $0xd0] sm:$0xff]
        %v1529 = vld [vmem:[#allocation2 + $0xd8] sm:$0xff]
        %v1530 = vld [vmem:[%s778] sm:$0x7f]
        %v1532 = vlaneseq
        %v1533 = vshrl.u32 %v1532, 7
        %v1534 = vsub.s32 0, %v1533
        %v1535 = vrot.slane %v1530, %v1534
        %v1536 = vlaneseq
        %v1537 = vshrl.u32 %v1536, 7
        %v1538 = vsub.s32 1, %v1537
        %v1539 = vrot.slane %v1530, %v1538
        %v1540 = vlaneseq
        %v1541 = vshrl.u32 %v1540, 7
        %v1542 = vsub.s32 2, %v1541
        %v1543 = vrot.slane %v1530, %v1542
        %v1544 = vlaneseq
        %v1545 = vshrl.u32 %v1544, 7
        %v1546 = vsub.s32 3, %v1545
        %v1547 = vrot.slane %v1530, %v1546
        %v1548 = vlaneseq
        %v1549 = vshrl.u32 %v1548, 7
        %v1550 = vsub.s32 4, %v1549
        %v1551 = vrot.slane %v1530, %v1550
        %v1552 = vlaneseq
        %v1553 = vshrl.u32 %v1552, 7
        %v1554 = vsub.s32 5, %v1553
        %v1555 = vrot.slane %v1530, %v1554
        %v1556 = vlaneseq
        %v1557 = vshrl.u32 %v1556, 7
        %v1558 = vsub.s32 6, %v1557
        %v1559 = vrot.slane %v1530, %v1558
        %1560 = vrot.lane.b32.xlu0 %v1535, 30
        %v1561 = vpop.permute.xlu0 %1560
        %1562 = vrot.lane.b32.xlu0 %v1539, 30
        %v1563 = vpop.permute.xlu0 %1562
        %1564 = vrot.lane.b32.xlu0 %v1543, 30
        %v1565 = vpop.permute.xlu0 %1564
        %1566 = vrot.lane.b32.xlu0 %v1547, 30
        %v1567 = vpop.permute.xlu0 %1566
        %1568 = vrot.lane.b32.xlu0 %v1551, 30
        %v1569 = vpop.permute.xlu0 %1568
        %1570 = vrot.lane.b32.xlu0 %v1555, 30
        %v1571 = vpop.permute.xlu0 %1570
        %1572 = vrot.lane.b32.xlu0 %v1559, 30
        %v1573 = vpop.permute.xlu0 %1572
        %vm1574 = vcmask 244736
        %v1575 = vsel %vm1574, %v1561, %v1563
        %v1576 = vsel %vm1574, %v1563, %v1565
        %v1577 = vsel %vm1574, %v1565, %v1567
        %v1578 = vsel %vm1574, %v1567, %v1569
        %v1579 = vsel %vm1574, %v1569, %v1571
        %v1580 = vsel %vm1574, %v1571, %v1573
        %v1588 = vmul.f32 %v1502, %v1561
        %v1589 = vmul.f32 %v1503, %v1575
        %v1590 = vmul.f32 %v1504, %v1576
        %v1591 = vmul.f32 %v1505, %v1577
        %v1592 = vmul.f32 %v1506, %v1578
        %v1593 = vmul.f32 %v1507, %v1579
        %v1594 = vmul.f32 %v1508, %v1580
        %v1595 = vmul.f32 %v1509, %v1561
        %v1596 = vmul.f32 %v1510, %v1575
        %v1597 = vmul.f32 %v1511, %v1576
        %v1598 = vmul.f32 %v1512, %v1577
        %v1599 = vmul.f32 %v1513, %v1578
        %v1600 = vmul.f32 %v1514, %v1579
        %v1601 = vmul.f32 %v1515, %v1580
        %v1602 = vmul.f32 %v1516, %v1561
        %v1603 = vmul.f32 %v1517, %v1575
        %v1604 = vmul.f32 %v1518, %v1576
        %v1605 = vmul.f32 %v1519, %v1577
        %v1606 = vmul.f32 %v1520, %v1578
        %v1607 = vmul.f32 %v1521, %v1579
        %v1608 = vmul.f32 %v1522, %v1580
        %v1609 = vmul.f32 %v1523, %v1561
        %v1610 = vmul.f32 %v1524, %v1575
        %v1611 = vmul.f32 %v1525, %v1576
        %v1612 = vmul.f32 %v1526, %v1577
        %v1613 = vmul.f32 %v1527, %v1578
        %v1614 = vmul.f32 %v1528, %v1579
        %v1615 = vmul.f32 %v1529, %v1580
        %1644 = vrot.lane.b32.xlu0 %v1588, 98
        %v1645 = vpop.permute.xlu0 %1644
        %1646 = vrot.lane.b32.xlu0 %v1589, 98
        %v1647 = vpop.permute.xlu0 %1646
        %1648 = vrot.lane.b32.xlu0 %v1590, 98
        %v1649 = vpop.permute.xlu0 %1648
        %1650 = vrot.lane.b32.xlu0 %v1591, 98
        %v1651 = vpop.permute.xlu0 %1650
        %1652 = vrot.lane.b32.xlu0 %v1592, 98
        %v1653 = vpop.permute.xlu0 %1652
        %1654 = vrot.lane.b32.xlu0 %v1593, 98
        %v1655 = vpop.permute.xlu0 %1654
        %1656 = vrot.lane.b32.xlu0 %v1594, 98
        %v1657 = vpop.permute.xlu0 %1656
        %1658 = vrot.lane.b32.xlu0 %v1595, 98
        %v1659 = vpop.permute.xlu0 %1658
        %1660 = vrot.lane.b32.xlu0 %v1596, 98
        %v1661 = vpop.permute.xlu0 %1660
        %1662 = vrot.lane.b32.xlu0 %v1597, 98
        %v1663 = vpop.permute.xlu0 %1662
        %1664 = vrot.lane.b32.xlu0 %v1598, 98
        %v1665 = vpop.permute.xlu0 %1664
        %1666 = vrot.lane.b32.xlu0 %v1599, 98
        %v1667 = vpop.permute.xlu0 %1666
        %1668 = vrot.lane.b32.xlu0 %v1600, 98
        %v1669 = vpop.permute.xlu0 %1668
        %1670 = vrot.lane.b32.xlu0 %v1601, 98
        %v1671 = vpop.permute.xlu0 %1670
        %1672 = vrot.lane.b32.xlu0 %v1602, 98
        %v1673 = vpop.permute.xlu0 %1672
        %1674 = vrot.lane.b32.xlu0 %v1603, 98
        %v1675 = vpop.permute.xlu0 %1674
        %1676 = vrot.lane.b32.xlu0 %v1604, 98
        %v1677 = vpop.permute.xlu0 %1676
        %1678 = vrot.lane.b32.xlu0 %v1605, 98
        %v1679 = vpop.permute.xlu0 %1678
        %1680 = vrot.lane.b32.xlu0 %v1606, 98
        %v1681 = vpop.permute.xlu0 %1680
        %1682 = vrot.lane.b32.xlu0 %v1607, 98
        %v1683 = vpop.permute.xlu0 %1682
        %1684 = vrot.lane.b32.xlu0 %v1608, 98
        %v1685 = vpop.permute.xlu0 %1684
        %1686 = vrot.lane.b32.xlu0 %v1609, 98
        %v1687 = vpop.permute.xlu0 %1686
        %1688 = vrot.lane.b32.xlu0 %v1610, 98
        %v1689 = vpop.permute.xlu0 %1688
        %1690 = vrot.lane.b32.xlu0 %v1611, 98
        %v1691 = vpop.permute.xlu0 %1690
        %1692 = vrot.lane.b32.xlu0 %v1612, 98
        %v1693 = vpop.permute.xlu0 %1692
        %1694 = vrot.lane.b32.xlu0 %v1613, 98
        %v1695 = vpop.permute.xlu0 %1694
        %1696 = vrot.lane.b32.xlu0 %v1614, 98
        %v1697 = vpop.permute.xlu0 %1696
        %1698 = vrot.lane.b32.xlu0 %v1615, 98
        %v1699 = vpop.permute.xlu0 %1698
        %vm1700 = vcmask 801792
        %v1701 = vsel %vm1700, %v1645, %v1647
        %v1702 = vsel %vm1700, %v1647, %v1649
        %v1703 = vsel %vm1700, %v1649, %v1651
        %v1704 = vsel %vm1700, %v1651, %v1653
        %v1705 = vsel %vm1700, %v1653, %v1655
        %v1706 = vsel %vm1700, %v1655, %v1657
        %v1707 = vsel %vm1700, %v1659, %v1661
        %v1708 = vsel %vm1700, %v1661, %v1663
        %v1709 = vsel %vm1700, %v1663, %v1665
        %v1710 = vsel %vm1700, %v1665, %v1667
        %v1711 = vsel %vm1700, %v1667, %v1669
        %v1712 = vsel %vm1700, %v1669, %v1671
        %v1713 = vsel %vm1700, %v1673, %v1675
        %v1714 = vsel %vm1700, %v1675, %v1677
        %v1715 = vsel %vm1700, %v1677, %v1679
        %v1716 = vsel %vm1700, %v1679, %v1681
        %v1717 = vsel %vm1700, %v1681, %v1683
        %v1718 = vsel %vm1700, %v1683, %v1685
        %v1719 = vsel %vm1700, %v1687, %v1689
        %v1720 = vsel %vm1700, %v1689, %v1691
        %v1721 = vsel %vm1700, %v1691, %v1693
        %v1722 = vsel %vm1700, %v1693, %v1695
        %v1723 = vsel %vm1700, %v1695, %v1697
        %v1724 = vsel %vm1700, %v1697, %v1699
        %1753 = vst [vmem:[#allocation4 + $0x460] sm:$0xff] %v1701
        %1754 = vst [vmem:[#allocation4 + $0x468] sm:$0xff] %v1702
        %1755 = vst [vmem:[#allocation4 + $0x470] sm:$0xff] %v1703
        %1756 = vst [vmem:[#allocation4 + $0x478] sm:$0xff] %v1704
        %1757 = vst [vmem:[#allocation4 + $0x480] sm:$0xff] %v1705
        %1758 = vst [vmem:[#allocation4 + $0x488] sm:$0xff] %v1706
        %1759 = vst.msk [vmem:[#allocation4 + $0x490] sm:$0xff] %vm534, %v1657
        %1760 = vst [vmem:[#allocation4 + $0x498] sm:$0xff] %v1707
        %1761 = vst [vmem:[#allocation4 + $0x4a0] sm:$0xff] %v1708
        %1762 = vst [vmem:[#allocation4 + $0x4a8] sm:$0xff] %v1709
        %1763 = vst [vmem:[#allocation4 + $0x4b0] sm:$0xff] %v1710
        %1764 = vst [vmem:[#allocation4 + $0x4b8] sm:$0xff] %v1711
        %1765 = vst [vmem:[#allocation4 + $0x4c0] sm:$0xff] %v1712
        %1766 = vst.msk [vmem:[#allocation4 + $0x4c8] sm:$0xff] %vm534, %v1671
        %1767 = vst [vmem:[#allocation4 + $0x4d0] sm:$0xff] %v1713
        %1768 = vst [vmem:[#allocation4 + $0x4d8] sm:$0xff] %v1714
        %1769 = vst [vmem:[#allocation4 + $0x4e0] sm:$0xff] %v1715
        %1770 = vst [vmem:[#allocation4 + $0x4e8] sm:$0xff] %v1716
        %1771 = vst [vmem:[#allocation4 + $0x4f0] sm:$0xff] %v1717
        %1772 = vst [vmem:[#allocation4 + $0x4f8] sm:$0xff] %v1718
        %1773 = vst.msk [vmem:[#allocation4 + $0x500] sm:$0xff] %vm534, %v1685
        %1774 = vst [vmem:[#allocation4 + $0x508] sm:$0xff] %v1719
        %1775 = vst [vmem:[#allocation4 + $0x510] sm:$0xff] %v1720
        %1776 = vst [vmem:[#allocation4 + $0x518] sm:$0xff] %v1721
        %1777 = vst [vmem:[#allocation4 + $0x520] sm:$0xff] %v1722
        %1778 = vst [vmem:[#allocation4 + $0x528] sm:$0xff] %v1723
        %1779 = vst [vmem:[#allocation4 + $0x530] sm:$0xff] %v1724
        %1780 = vst.msk [vmem:[#allocation4 + $0x538] sm:$0xff] %vm534, %v1699
        %v1781 = vld [vmem:[#allocation2] sm:$0xff]
        %v1782 = vld [vmem:[#allocation2 + $0x8] sm:$0xff]
        %v1783 = vld [vmem:[#allocation2 + $0x10] sm:$0xff]
        %v1784 = vld [vmem:[#allocation2 + $0x18] sm:$0xff]
        %v1785 = vld [vmem:[#allocation2 + $0x20] sm:$0xff]
        %v1786 = vld [vmem:[#allocation2 + $0x28] sm:$0xff]
        %v1787 = vld [vmem:[#allocation2 + $0x30] sm:$0xff]
        %v1788 = vld [vmem:[#allocation2 + $0x38] sm:$0xff]
        %v1789 = vld [vmem:[#allocation2 + $0x40] sm:$0xff]
        %v1790 = vld [vmem:[#allocation2 + $0x48] sm:$0xff]
        %v1791 = vld [vmem:[#allocation2 + $0x50] sm:$0xff]
        %v1792 = vld [vmem:[#allocation2 + $0x58] sm:$0xff]
        %v1793 = vld [vmem:[#allocation2 + $0x60] sm:$0xff]
        %v1794 = vld [vmem:[#allocation2 + $0x68] sm:$0xff]
        %v1795 = vld [vmem:[#allocation2 + $0x70] sm:$0xff]
        %v1796 = vld [vmem:[#allocation2 + $0x78] sm:$0xff]
        %v1797 = vld [vmem:[#allocation2 + $0x80] sm:$0xff]
        %v1798 = vld [vmem:[#allocation2 + $0x88] sm:$0xff]
        %v1799 = vld [vmem:[#allocation2 + $0x90] sm:$0xff]
        %v1800 = vld [vmem:[#allocation2 + $0x98] sm:$0xff]
        %v1801 = vld [vmem:[#allocation2 + $0xa0] sm:$0xff]
        %v1802 = vld [vmem:[#allocation2 + $0xa8] sm:$0xff]
        %v1803 = vld [vmem:[#allocation2 + $0xb0] sm:$0xff]
        %v1804 = vld [vmem:[#allocation2 + $0xb8] sm:$0xff]
        %v1805 = vld [vmem:[#allocation2 + $0xc0] sm:$0xff]
        %v1806 = vld [vmem:[#allocation2 + $0xc8] sm:$0xff]
        %v1807 = vld [vmem:[#allocation2 + $0xd0] sm:$0xff]
        %v1808 = vld [vmem:[#allocation2 + $0xd8] sm:$0xff]
        %v1809 = vld [vmem:[%s3] sm:$0x7f]
        %v1811 = vlaneseq
        %v1812 = vshrl.u32 %v1811, 7
        %v1813 = vsub.s32 0, %v1812
        %v1814 = vrot.slane %v1809, %v1813
        %v1815 = vlaneseq
        %v1816 = vshrl.u32 %v1815, 7
        %v1817 = vsub.s32 1, %v1816
        %v1818 = vrot.slane %v1809, %v1817
        %v1819 = vlaneseq
        %v1820 = vshrl.u32 %v1819, 7
        %v1821 = vsub.s32 2, %v1820
        %v1822 = vrot.slane %v1809, %v1821
        %v1823 = vlaneseq
        %v1824 = vshrl.u32 %v1823, 7
        %v1825 = vsub.s32 3, %v1824
        %v1826 = vrot.slane %v1809, %v1825
        %v1827 = vlaneseq
        %v1828 = vshrl.u32 %v1827, 7
        %v1829 = vsub.s32 4, %v1828
        %v1830 = vrot.slane %v1809, %v1829
        %v1831 = vlaneseq
        %v1832 = vshrl.u32 %v1831, 7
        %v1833 = vsub.s32 5, %v1832
        %v1834 = vrot.slane %v1809, %v1833
        %v1835 = vlaneseq
        %v1836 = vshrl.u32 %v1835, 7
        %v1837 = vsub.s32 6, %v1836
        %v1838 = vrot.slane %v1809, %v1837
        %1839 = vrot.lane.b32.xlu0 %v1814, 56
        %v1840 = vpop.permute.xlu0 %1839
        %1841 = vrot.lane.b32.xlu0 %v1818, 56
        %v1842 = vpop.permute.xlu0 %1841
        %1843 = vrot.lane.b32.xlu0 %v1822, 56
        %v1844 = vpop.permute.xlu0 %1843
        %1845 = vrot.lane.b32.xlu0 %v1826, 56
        %v1846 = vpop.permute.xlu0 %1845
        %1847 = vrot.lane.b32.xlu0 %v1830, 56
        %v1848 = vpop.permute.xlu0 %1847
        %1849 = vrot.lane.b32.xlu0 %v1834, 56
        %v1850 = vpop.permute.xlu0 %1849
        %1851 = vrot.lane.b32.xlu0 %v1838, 56
        %v1852 = vpop.permute.xlu0 %1851
        %vm1853 = vcmask 457728
        %v1854 = vsel %vm1853, %v1840, %v1842
        %v1855 = vsel %vm1853, %v1842, %v1844
        %v1856 = vsel %vm1853, %v1844, %v1846
        %v1857 = vsel %vm1853, %v1846, %v1848
        %v1858 = vsel %vm1853, %v1848, %v1850
        %v1859 = vsel %vm1853, %v1850, %v1852
        %v1867 = vmul.f32 %v1781, %v1840
        %v1868 = vmul.f32 %v1782, %v1854
        %v1869 = vmul.f32 %v1783, %v1855
        %v1870 = vmul.f32 %v1784, %v1856
        %v1871 = vmul.f32 %v1785, %v1857
        %v1872 = vmul.f32 %v1786, %v1858
        %v1873 = vmul.f32 %v1787, %v1859
        %v1874 = vmul.f32 %v1788, %v1840
        %v1875 = vmul.f32 %v1789, %v1854
        %v1876 = vmul.f32 %v1790, %v1855
        %v1877 = vmul.f32 %v1791, %v1856
        %v1878 = vmul.f32 %v1792, %v1857
        %v1879 = vmul.f32 %v1793, %v1858
        %v1880 = vmul.f32 %v1794, %v1859
        %v1881 = vmul.f32 %v1795, %v1840
        %v1882 = vmul.f32 %v1796, %v1854
        %v1883 = vmul.f32 %v1797, %v1855
        %v1884 = vmul.f32 %v1798, %v1856
        %v1885 = vmul.f32 %v1799, %v1857
        %v1886 = vmul.f32 %v1800, %v1858
        %v1887 = vmul.f32 %v1801, %v1859
        %v1888 = vmul.f32 %v1802, %v1840
        %v1889 = vmul.f32 %v1803, %v1854
        %v1890 = vmul.f32 %v1804, %v1855
        %v1891 = vmul.f32 %v1805, %v1856
        %v1892 = vmul.f32 %v1806, %v1857
        %v1893 = vmul.f32 %v1807, %v1858
        %v1894 = vmul.f32 %v1808, %v1859
        %1923 = vrot.lane.b32.xlu0 %v1867, 72
        %v1924 = vpop.permute.xlu0 %1923
        %1925 = vrot.lane.b32.xlu0 %v1868, 72
        %v1926 = vpop.permute.xlu0 %1925
        %1927 = vrot.lane.b32.xlu0 %v1869, 72
        %v1928 = vpop.permute.xlu0 %1927
        %1929 = vrot.lane.b32.xlu0 %v1870, 72
        %v1930 = vpop.permute.xlu0 %1929
        %1931 = vrot.lane.b32.xlu0 %v1871, 72
        %v1932 = vpop.permute.xlu0 %1931
        %1933 = vrot.lane.b32.xlu0 %v1872, 72
        %v1934 = vpop.permute.xlu0 %1933
        %1935 = vrot.lane.b32.xlu0 %v1873, 72
        %v1936 = vpop.permute.xlu0 %1935
        %1937 = vrot.lane.b32.xlu0 %v1874, 72
        %v1938 = vpop.permute.xlu0 %1937
        %1939 = vrot.lane.b32.xlu0 %v1875, 72
        %v1940 = vpop.permute.xlu0 %1939
        %1941 = vrot.lane.b32.xlu0 %v1876, 72
        %v1942 = vpop.permute.xlu0 %1941
        %1943 = vrot.lane.b32.xlu0 %v1877, 72
        %v1944 = vpop.permute.xlu0 %1943
        %1945 = vrot.lane.b32.xlu0 %v1878, 72
        %v1946 = vpop.permute.xlu0 %1945
        %1947 = vrot.lane.b32.xlu0 %v1879, 72
        %v1948 = vpop.permute.xlu0 %1947
        %1949 = vrot.lane.b32.xlu0 %v1880, 72
        %v1950 = vpop.permute.xlu0 %1949
        %1951 = vrot.lane.b32.xlu0 %v1881, 72
        %v1952 = vpop.permute.xlu0 %1951
        %1953 = vrot.lane.b32.xlu0 %v1882, 72
        %v1954 = vpop.permute.xlu0 %1953
        %1955 = vrot.lane.b32.xlu0 %v1883, 72
        %v1956 = vpop.permute.xlu0 %1955
        %1957 = vrot.lane.b32.xlu0 %v1884, 72
        %v1958 = vpop.permute.xlu0 %1957
        %1959 = vrot.lane.b32.xlu0 %v1885, 72
        %v1960 = vpop.permute.xlu0 %1959
        %1961 = vrot.lane.b32.xlu0 %v1886, 72
        %v1962 = vpop.permute.xlu0 %1961
        %1963 = vrot.lane.b32.xlu0 %v1887, 72
        %v1964 = vpop.permute.xlu0 %1963
        %1965 = vrot.lane.b32.xlu0 %v1888, 72
        %v1966 = vpop.permute.xlu0 %1965
        %1967 = vrot.lane.b32.xlu0 %v1889, 72
        %v1968 = vpop.permute.xlu0 %1967
        %1969 = vrot.lane.b32.xlu0 %v1890, 72
        %v1970 = vpop.permute.xlu0 %1969
        %1971 = vrot.lane.b32.xlu0 %v1891, 72
        %v1972 = vpop.permute.xlu0 %1971
        %1973 = vrot.lane.b32.xlu0 %v1892, 72
        %v1974 = vpop.permute.xlu0 %1973
        %1975 = vrot.lane.b32.xlu0 %v1893, 72
        %v1976 = vpop.permute.xlu0 %1975
        %1977 = vrot.lane.b32.xlu0 %v1894, 72
        %v1978 = vpop.permute.xlu0 %1977
        %vm1979 = vcmask 588800
        %v1980 = vsel %vm1979, %v1924, %v1926
        %v1981 = vsel %vm1979, %v1926, %v1928
        %v1982 = vsel %vm1979, %v1928, %v1930
        %v1983 = vsel %vm1979, %v1930, %v1932
        %v1984 = vsel %vm1979, %v1932, %v1934
        %v1985 = vsel %vm1979, %v1934, %v1936
        %v1986 = vsel %vm1979, %v1938, %v1940
        %v1987 = vsel %vm1979, %v1940, %v1942
        %v1988 = vsel %vm1979, %v1942, %v1944
        %v1989 = vsel %vm1979, %v1944, %v1946
        %v1990 = vsel %vm1979, %v1946, %v1948
        %v1991 = vsel %vm1979, %v1948, %v1950
        %v1992 = vsel %vm1979, %v1952, %v1954
        %v1993 = vsel %vm1979, %v1954, %v1956
        %v1994 = vsel %vm1979, %v1956, %v1958
        %v1995 = vsel %vm1979, %v1958, %v1960
        %v1996 = vsel %vm1979, %v1960, %v1962
        %v1997 = vsel %vm1979, %v1962, %v1964
        %v1998 = vsel %vm1979, %v1966, %v1968
        %v1999 = vsel %vm1979, %v1968, %v1970
        %v2000 = vsel %vm1979, %v1970, %v1972
        %v2001 = vsel %vm1979, %v1972, %v1974
        %v2002 = vsel %vm1979, %v1974, %v1976
        %v2003 = vsel %vm1979, %v1976, %v1978
        %2032 = vst [vmem:[#allocation4 + $0x540] sm:$0xff] %v1980
        %2033 = vst [vmem:[#allocation4 + $0x548] sm:$0xff] %v1981
        %2034 = vst [vmem:[#allocation4 + $0x550] sm:$0xff] %v1982
        %2035 = vst [vmem:[#allocation4 + $0x558] sm:$0xff] %v1983
        %2036 = vst [vmem:[#allocation4 + $0x560] sm:$0xff] %v1984
        %2037 = vst [vmem:[#allocation4 + $0x568] sm:$0xff] %v1985
        %2038 = vst.msk [vmem:[#allocation4 + $0x570] sm:$0xff] %vm534, %v1936
        %2039 = vst [vmem:[#allocation4 + $0x578] sm:$0xff] %v1986
        %2040 = vst [vmem:[#allocation4 + $0x580] sm:$0xff] %v1987
        %2041 = vst [vmem:[#allocation4 + $0x588] sm:$0xff] %v1988
        %2042 = vst [vmem:[#allocation4 + $0x590] sm:$0xff] %v1989
        %2043 = vst [vmem:[#allocation4 + $0x598] sm:$0xff] %v1990
        %2044 = vst [vmem:[#allocation4 + $0x5a0] sm:$0xff] %v1991
        %2045 = vst.msk [vmem:[#allocation4 + $0x5a8] sm:$0xff] %vm534, %v1950
        %2046 = vst [vmem:[#allocation4 + $0x5b0] sm:$0xff] %v1992
        %2047 = vst [vmem:[#allocation4 + $0x5b8] sm:$0xff] %v1993
        %2048 = vst [vmem:[#allocation4 + $0x5c0] sm:$0xff] %v1994
        %2049 = vst [vmem:[#allocation4 + $0x5c8] sm:$0xff] %v1995
        %2050 = vst [vmem:[#allocation4 + $0x5d0] sm:$0xff] %v1996
        %2051 = vst [vmem:[#allocation4 + $0x5d8] sm:$0xff] %v1997
        %2052 = vst.msk [vmem:[#allocation4 + $0x5e0] sm:$0xff] %vm534, %v1964
        %2053 = vst [vmem:[#allocation4 + $0x5e8] sm:$0xff] %v1998
        %2054 = vst [vmem:[#allocation4 + $0x5f0] sm:$0xff] %v1999
        %2055 = vst [vmem:[#allocation4 + $0x5f8] sm:$0xff] %v2000
        %2056 = vst [vmem:[#allocation4 + $0x600] sm:$0xff] %v2001
        %2057 = vst [vmem:[#allocation4 + $0x608] sm:$0xff] %v2002
        %2058 = vst [vmem:[#allocation4 + $0x610] sm:$0xff] %v2003
        %2059 = vst.msk [vmem:[#allocation4 + $0x618] sm:$0xff] %vm534, %v1978
        %v2060 = vld [vmem:[#allocation2] sm:$0xff]
        %v2061 = vld [vmem:[#allocation2 + $0x8] sm:$0xff]
        %v2062 = vld [vmem:[#allocation2 + $0x10] sm:$0xff]
        %v2063 = vld [vmem:[#allocation2 + $0x18] sm:$0xff]
        %v2064 = vld [vmem:[#allocation2 + $0x20] sm:$0xff]
        %v2065 = vld [vmem:[#allocation2 + $0x28] sm:$0xff]
        %v2066 = vld [vmem:[#allocation2 + $0x30] sm:$0xff]
        %v2067 = vld [vmem:[#allocation2 + $0x38] sm:$0xff]
        %v2068 = vld [vmem:[#allocation2 + $0x40] sm:$0xff]
        %v2069 = vld [vmem:[#allocation2 + $0x48] sm:$0xff]
        %v2070 = vld [vmem:[#allocation2 + $0x50] sm:$0xff]
        %v2071 = vld [vmem:[#allocation2 + $0x58] sm:$0xff]
        %v2072 = vld [vmem:[#allocation2 + $0x60] sm:$0xff]
        %v2073 = vld [vmem:[#allocation2 + $0x68] sm:$0xff]
        %v2074 = vld [vmem:[#allocation2 + $0x70] sm:$0xff]
        %v2075 = vld [vmem:[#allocation2 + $0x78] sm:$0xff]
        %v2076 = vld [vmem:[#allocation2 + $0x80] sm:$0xff]
        %v2077 = vld [vmem:[#allocation2 + $0x88] sm:$0xff]
        %v2078 = vld [vmem:[#allocation2 + $0x90] sm:$0xff]
        %v2079 = vld [vmem:[#allocation2 + $0x98] sm:$0xff]
        %v2080 = vld [vmem:[#allocation2 + $0xa0] sm:$0xff]
        %v2081 = vld [vmem:[#allocation2 + $0xa8] sm:$0xff]
        %v2082 = vld [vmem:[#allocation2 + $0xb0] sm:$0xff]
        %v2083 = vld [vmem:[#allocation2 + $0xb8] sm:$0xff]
        %v2084 = vld [vmem:[#allocation2 + $0xc0] sm:$0xff]
        %v2085 = vld [vmem:[#allocation2 + $0xc8] sm:$0xff]
        %v2086 = vld [vmem:[#allocation2 + $0xd0] sm:$0xff]
        %v2087 = vld [vmem:[#allocation2 + $0xd8] sm:$0xff]
        %2116 = vrot.lane.b32.xlu0 %v2060, 71
        %v2117 = vpop.permute.xlu0 %2116
        %2118 = vrot.lane.b32.xlu0 %v2061, 71
        %v2119 = vpop.permute.xlu0 %2118
        %2120 = vrot.lane.b32.xlu0 %v2062, 71
        %v2121 = vpop.permute.xlu0 %2120
        %2122 = vrot.lane.b32.xlu0 %v2063, 71
        %v2123 = vpop.permute.xlu0 %2122
        %2124 = vrot.lane.b32.xlu0 %v2064, 71
        %v2125 = vpop.permute.xlu0 %2124
        %2126 = vrot.lane.b32.xlu0 %v2065, 71
        %v2127 = vpop.permute.xlu0 %2126
        %2128 = vrot.lane.b32.xlu0 %v2066, 71
        %v2129 = vpop.permute.xlu0 %2128
        %2130 = vrot.lane.b32.xlu0 %v2067, 71
        %v2131 = vpop.permute.xlu0 %2130
        %2132 = vrot.lane.b32.xlu0 %v2068, 71
        %v2133 = vpop.permute.xlu0 %2132
        %2134 = vrot.lane.b32.xlu0 %v2069, 71
        %v2135 = vpop.permute.xlu0 %2134
        %2136 = vrot.lane.b32.xlu0 %v2070, 71
        %v2137 = vpop.permute.xlu0 %2136
        %2138 = vrot.lane.b32.xlu0 %v2071, 71
        %v2139 = vpop.permute.xlu0 %2138
        %2140 = vrot.lane.b32.xlu0 %v2072, 71
        %v2141 = vpop.permute.xlu0 %2140
        %2142 = vrot.lane.b32.xlu0 %v2073, 71
        %v2143 = vpop.permute.xlu0 %2142
        %2144 = vrot.lane.b32.xlu0 %v2074, 71
        %v2145 = vpop.permute.xlu0 %2144
        %2146 = vrot.lane.b32.xlu0 %v2075, 71
        %v2147 = vpop.permute.xlu0 %2146
        %2148 = vrot.lane.b32.xlu0 %v2076, 71
        %v2149 = vpop.permute.xlu0 %2148
        %2150 = vrot.lane.b32.xlu0 %v2077, 71
        %v2151 = vpop.permute.xlu0 %2150
        %2152 = vrot.lane.b32.xlu0 %v2078, 71
        %v2153 = vpop.permute.xlu0 %2152
        %2154 = vrot.lane.b32.xlu0 %v2079, 71
        %v2155 = vpop.permute.xlu0 %2154
        %2156 = vrot.lane.b32.xlu0 %v2080, 71
        %v2157 = vpop.permute.xlu0 %2156
        %2158 = vrot.lane.b32.xlu0 %v2081, 71
        %v2159 = vpop.permute.xlu0 %2158
        %2160 = vrot.lane.b32.xlu0 %v2082, 71
        %v2161 = vpop.permute.xlu0 %2160
        %2162 = vrot.lane.b32.xlu0 %v2083, 71
        %v2163 = vpop.permute.xlu0 %2162
        %2164 = vrot.lane.b32.xlu0 %v2084, 71
        %v2165 = vpop.permute.xlu0 %2164
        %2166 = vrot.lane.b32.xlu0 %v2085, 71
        %v2167 = vpop.permute.xlu0 %2166
        %2168 = vrot.lane.b32.xlu0 %v2086, 71
        %v2169 = vpop.permute.xlu0 %2168
        %2170 = vrot.lane.b32.xlu0 %v2087, 71
        %v2171 = vpop.permute.xlu0 %2170
        %vm2172 = vcmask 580608
        %v2173 = vsel %vm2172, %v2117, %v2119
        %v2174 = vsel %vm2172, %v2119, %v2121
        %v2175 = vsel %vm2172, %v2121, %v2123
        %v2176 = vsel %vm2172, %v2123, %v2125
        %v2177 = vsel %vm2172, %v2125, %v2127
        %v2178 = vsel %vm2172, %v2127, %v2129
        %v2179 = vsel %vm2172, %v2131, %v2133
        %v2180 = vsel %vm2172, %v2133, %v2135
        %v2181 = vsel %vm2172, %v2135, %v2137
        %v2182 = vsel %vm2172, %v2137, %v2139
        %v2183 = vsel %vm2172, %v2139, %v2141
        %v2184 = vsel %vm2172, %v2141, %v2143
        %v2185 = vsel %vm2172, %v2145, %v2147
        %v2186 = vsel %vm2172, %v2147, %v2149
        %v2187 = vsel %vm2172, %v2149, %v2151
        %v2188 = vsel %vm2172, %v2151, %v2153
        %v2189 = vsel %vm2172, %v2153, %v2155
        %v2190 = vsel %vm2172, %v2155, %v2157
        %v2191 = vsel %vm2172, %v2159, %v2161
        %v2192 = vsel %vm2172, %v2161, %v2163
        %v2193 = vsel %vm2172, %v2163, %v2165
        %v2194 = vsel %vm2172, %v2165, %v2167
        %v2195 = vsel %vm2172, %v2167, %v2169
        %v2196 = vsel %vm2172, %v2169, %v2171
        %2225 = vst [vmem:[#allocation4 + $0x620] sm:$0xff] %v2173
        %2226 = vst [vmem:[#allocation4 + $0x628] sm:$0xff] %v2174
        %2227 = vst [vmem:[#allocation4 + $0x630] sm:$0xff] %v2175
        %2228 = vst [vmem:[#allocation4 + $0x638] sm:$0xff] %v2176
        %2229 = vst [vmem:[#allocation4 + $0x640] sm:$0xff] %v2177
        %2230 = vst [vmem:[#allocation4 + $0x648] sm:$0xff] %v2178
        %2231 = vst.msk [vmem:[#allocation4 + $0x650] sm:$0xff] %vm534, %v2129
        %2232 = vst [vmem:[#allocation4 + $0x658] sm:$0xff] %v2179
        %2233 = vst [vmem:[#allocation4 + $0x660] sm:$0xff] %v2180
        %2234 = vst [vmem:[#allocation4 + $0x668] sm:$0xff] %v2181
        %2235 = vst [vmem:[#allocation4 + $0x670] sm:$0xff] %v2182
        %2236 = vst [vmem:[#allocation4 + $0x678] sm:$0xff] %v2183
        %2237 = vst [vmem:[#allocation4 + $0x680] sm:$0xff] %v2184
        %2238 = vst.msk [vmem:[#allocation4 + $0x688] sm:$0xff] %vm534, %v2143
        %2239 = vst [vmem:[#allocation4 + $0x690] sm:$0xff] %v2185
        %2240 = vst [vmem:[#allocation4 + $0x698] sm:$0xff] %v2186
        %2241 = vst [vmem:[#allocation4 + $0x6a0] sm:$0xff] %v2187
        %2242 = vst [vmem:[#allocation4 + $0x6a8] sm:$0xff] %v2188
        %2243 = vst [vmem:[#allocation4 + $0x6b0] sm:$0xff] %v2189
        %2244 = vst [vmem:[#allocation4 + $0x6b8] sm:$0xff] %v2190
        %2245 = vst.msk [vmem:[#allocation4 + $0x6c0] sm:$0xff] %vm534, %v2157
        %2246 = vst [vmem:[#allocation4 + $0x6c8] sm:$0xff] %v2191
        %2247 = vst [vmem:[#allocation4 + $0x6d0] sm:$0xff] %v2192
        %2248 = vst [vmem:[#allocation4 + $0x6d8] sm:$0xff] %v2193
        %2249 = vst [vmem:[#allocation4 + $0x6e0] sm:$0xff] %v2194
        %2250 = vst [vmem:[#allocation4 + $0x6e8] sm:$0xff] %v2195
        %2251 = vst [vmem:[#allocation4 + $0x6f0] sm:$0xff] %v2196
        %2252 = vst.msk [vmem:[#allocation4 + $0x6f8] sm:$0xff] %vm534, %v2171
        %v2253 = vld [vmem:[#allocation2] sm:$0xff]
        %v2254 = vld [vmem:[#allocation2 + $0x8] sm:$0xff]
        %v2255 = vld [vmem:[#allocation2 + $0x10] sm:$0xff]
        %v2256 = vld [vmem:[#allocation2 + $0x18] sm:$0xff]
        %v2257 = vld [vmem:[#allocation2 + $0x20] sm:$0xff]
        %v2258 = vld [vmem:[#allocation2 + $0x28] sm:$0xff]
        %v2259 = vld [vmem:[#allocation2 + $0x30] sm:$0xff]
        %v2260 = vld [vmem:[#allocation2 + $0x38] sm:$0xff]
        %v2261 = vld [vmem:[#allocation2 + $0x40] sm:$0xff]
        %v2262 = vld [vmem:[#allocation2 + $0x48] sm:$0xff]
        %v2263 = vld [vmem:[#allocation2 + $0x50] sm:$0xff]
        %v2264 = vld [vmem:[#allocation2 + $0x58] sm:$0xff]
        %v2265 = vld [vmem:[#allocation2 + $0x60] sm:$0xff]
        %v2266 = vld [vmem:[#allocation2 + $0x68] sm:$0xff]
        %v2267 = vld [vmem:[#allocation2 + $0x70] sm:$0xff]
        %v2268 = vld [vmem:[#allocation2 + $0x78] sm:$0xff]
        %v2269 = vld [vmem:[#allocation2 + $0x80] sm:$0xff]
        %v2270 = vld [vmem:[#allocation2 + $0x88] sm:$0xff]
        %v2271 = vld [vmem:[#allocation2 + $0x90] sm:$0xff]
        %v2272 = vld [vmem:[#allocation2 + $0x98] sm:$0xff]
        %v2273 = vld [vmem:[#allocation2 + $0xa0] sm:$0xff]
        %v2274 = vld [vmem:[#allocation2 + $0xa8] sm:$0xff]
        %v2275 = vld [vmem:[#allocation2 + $0xb0] sm:$0xff]
        %v2276 = vld [vmem:[#allocation2 + $0xb8] sm:$0xff]
        %v2277 = vld [vmem:[#allocation2 + $0xc0] sm:$0xff]
        %v2278 = vld [vmem:[#allocation2 + $0xc8] sm:$0xff]
        %v2279 = vld [vmem:[#allocation2 + $0xd0] sm:$0xff]
        %v2280 = vld [vmem:[#allocation2 + $0xd8] sm:$0xff]
        %v2281 = vld [vmem:[%s778] sm:$0x7f]
        %v2283 = vlaneseq
        %v2284 = vshrl.u32 %v2283, 7
        %v2285 = vsub.s32 0, %v2284
        %v2286 = vrot.slane %v2281, %v2285
        %v2287 = vlaneseq
        %v2288 = vshrl.u32 %v2287, 7
        %v2289 = vsub.s32 1, %v2288
        %v2290 = vrot.slane %v2281, %v2289
        %v2291 = vlaneseq
        %v2292 = vshrl.u32 %v2291, 7
        %v2293 = vsub.s32 2, %v2292
        %v2294 = vrot.slane %v2281, %v2293
        %v2295 = vlaneseq
        %v2296 = vshrl.u32 %v2295, 7
        %v2297 = vsub.s32 3, %v2296
        %v2298 = vrot.slane %v2281, %v2297
        %v2299 = vlaneseq
        %v2300 = vshrl.u32 %v2299, 7
        %v2301 = vsub.s32 4, %v2300
        %v2302 = vrot.slane %v2281, %v2301
        %v2303 = vlaneseq
        %v2304 = vshrl.u32 %v2303, 7
        %v2305 = vsub.s32 5, %v2304
        %v2306 = vrot.slane %v2281, %v2305
        %v2307 = vlaneseq
        %v2308 = vshrl.u32 %v2307, 7
        %v2309 = vsub.s32 6, %v2308
        %v2310 = vrot.slane %v2281, %v2309
        %2311 = vrot.lane.b32.xlu0 %v2286, 58
        %v2312 = vpop.permute.xlu0 %2311
        %2313 = vrot.lane.b32.xlu0 %v2290, 58
        %v2314 = vpop.permute.xlu0 %2313
        %2315 = vrot.lane.b32.xlu0 %v2294, 58
        %v2316 = vpop.permute.xlu0 %2315
        %2317 = vrot.lane.b32.xlu0 %v2298, 58
        %v2318 = vpop.permute.xlu0 %2317
        %2319 = vrot.lane.b32.xlu0 %v2302, 58
        %v2320 = vpop.permute.xlu0 %2319
        %2321 = vrot.lane.b32.xlu0 %v2306, 58
        %v2322 = vpop.permute.xlu0 %2321
        %2323 = vrot.lane.b32.xlu0 %v2310, 58
        %v2324 = vpop.permute.xlu0 %2323
        %vm2325 = vcmask 474112
        %v2326 = vsel %vm2325, %v2312, %v2314
        %v2327 = vsel %vm2325, %v2314, %v2316
        %v2328 = vsel %vm2325, %v2316, %v2318
        %v2329 = vsel %vm2325, %v2318, %v2320
        %v2330 = vsel %vm2325, %v2320, %v2322
        %v2331 = vsel %vm2325, %v2322, %v2324
        %v2339 = vmul.f32 %v2253, %v2312
        %v2340 = vmul.f32 %v2254, %v2326
        %v2341 = vmul.f32 %v2255, %v2327
        %v2342 = vmul.f32 %v2256, %v2328
        %v2343 = vmul.f32 %v2257, %v2329
        %v2344 = vmul.f32 %v2258, %v2330
        %v2345 = vmul.f32 %v2259, %v2331
        %v2346 = vmul.f32 %v2260, %v2312
        %v2347 = vmul.f32 %v2261, %v2326
        %v2348 = vmul.f32 %v2262, %v2327
        %v2349 = vmul.f32 %v2263, %v2328
        %v2350 = vmul.f32 %v2264, %v2329
        %v2351 = vmul.f32 %v2265, %v2330
        %v2352 = vmul.f32 %v2266, %v2331
        %v2353 = vmul.f32 %v2267, %v2312
        %v2354 = vmul.f32 %v2268, %v2326
        %v2355 = vmul.f32 %v2269, %v2327
        %v2356 = vmul.f32 %v2270, %v2328
        %v2357 = vmul.f32 %v2271, %v2329
        %v2358 = vmul.f32 %v2272, %v2330
        %v2359 = vmul.f32 %v2273, %v2331
        %v2360 = vmul.f32 %v2274, %v2312
        %v2361 = vmul.f32 %v2275, %v2326
        %v2362 = vmul.f32 %v2276, %v2327
        %v2363 = vmul.f32 %v2277, %v2328
        %v2364 = vmul.f32 %v2278, %v2329
        %v2365 = vmul.f32 %v2279, %v2330
        %v2366 = vmul.f32 %v2280, %v2331
        %2395 = vrot.lane.b32.xlu0 %v2339, 70
        %v2396 = vpop.permute.xlu0 %2395
        %2397 = vrot.lane.b32.xlu0 %v2340, 70
        %v2398 = vpop.permute.xlu0 %2397
        %2399 = vrot.lane.b32.xlu0 %v2341, 70
        %v2400 = vpop.permute.xlu0 %2399
        %2401 = vrot.lane.b32.xlu0 %v2342, 70
        %v2402 = vpop.permute.xlu0 %2401
        %2403 = vrot.lane.b32.xlu0 %v2343, 70
        %v2404 = vpop.permute.xlu0 %2403
        %2405 = vrot.lane.b32.xlu0 %v2344, 70
        %v2406 = vpop.permute.xlu0 %2405
        %2407 = vrot.lane.b32.xlu0 %v2345, 70
        %v2408 = vpop.permute.xlu0 %2407
        %2409 = vrot.lane.b32.xlu0 %v2346, 70
        %v2410 = vpop.permute.xlu0 %2409
        %2411 = vrot.lane.b32.xlu0 %v2347, 70
        %v2412 = vpop.permute.xlu0 %2411
        %2413 = vrot.lane.b32.xlu0 %v2348, 70
        %v2414 = vpop.permute.xlu0 %2413
        %2415 = vrot.lane.b32.xlu0 %v2349, 70
        %v2416 = vpop.permute.xlu0 %2415
        %2417 = vrot.lane.b32.xlu0 %v2350, 70
        %v2418 = vpop.permute.xlu0 %2417
        %2419 = vrot.lane.b32.xlu0 %v2351, 70
        %v2420 = vpop.permute.xlu0 %2419
        %2421 = vrot.lane.b32.xlu0 %v2352, 70
        %v2422 = vpop.permute.xlu0 %2421
        %2423 = vrot.lane.b32.xlu0 %v2353, 70
        %v2424 = vpop.permute.xlu0 %2423
        %2425 = vrot.lane.b32.xlu0 %v2354, 70
        %v2426 = vpop.permute.xlu0 %2425
        %2427 = vrot.lane.b32.xlu0 %v2355, 70
        %v2428 = vpop.permute.xlu0 %2427
        %2429 = vrot.lane.b32.xlu0 %v2356, 70
        %v2430 = vpop.permute.xlu0 %2429
        %2431 = vrot.lane.b32.xlu0 %v2357, 70
        %v2432 = vpop.permute.xlu0 %2431
        %2433 = vrot.lane.b32.xlu0 %v2358, 70
        %v2434 = vpop.permute.xlu0 %2433
        %2435 = vrot.lane.b32.xlu0 %v2359, 70
        %v2436 = vpop.permute.xlu0 %2435
        %2437 = vrot.lane.b32.xlu0 %v2360, 70
        %v2438 = vpop.permute.xlu0 %2437
        %2439 = vrot.lane.b32.xlu0 %v2361, 70
        %v2440 = vpop.permute.xlu0 %2439
        %2441 = vrot.lane.b32.xlu0 %v2362, 70
        %v2442 = vpop.permute.xlu0 %2441
        %2443 = vrot.lane.b32.xlu0 %v2363, 70
        %v2444 = vpop.permute.xlu0 %2443
        %2445 = vrot.lane.b32.xlu0 %v2364, 70
        %v2446 = vpop.permute.xlu0 %2445
        %2447 = vrot.lane.b32.xlu0 %v2365, 70
        %v2448 = vpop.permute.xlu0 %2447
        %2449 = vrot.lane.b32.xlu0 %v2366, 70
        %v2450 = vpop.permute.xlu0 %2449
        %vm2451 = vcmask 572416
        %v2452 = vsel %vm2451, %v2396, %v2398
        %v2453 = vsel %vm2451, %v2398, %v2400
        %v2454 = vsel %vm2451, %v2400, %v2402
        %v2455 = vsel %vm2451, %v2402, %v2404
        %v2456 = vsel %vm2451, %v2404, %v2406
        %v2457 = vsel %vm2451, %v2406, %v2408
        %v2458 = vsel %vm2451, %v2410, %v2412
        %v2459 = vsel %vm2451, %v2412, %v2414
        %v2460 = vsel %vm2451, %v2414, %v2416
        %v2461 = vsel %vm2451, %v2416, %v2418
        %v2462 = vsel %vm2451, %v2418, %v2420
        %v2463 = vsel %vm2451, %v2420, %v2422
        %v2464 = vsel %vm2451, %v2424, %v2426
        %v2465 = vsel %vm2451, %v2426, %v2428
        %v2466 = vsel %vm2451, %v2428, %v2430
        %v2467 = vsel %vm2451, %v2430, %v2432
        %v2468 = vsel %vm2451, %v2432, %v2434
        %v2469 = vsel %vm2451, %v2434, %v2436
        %v2470 = vsel %vm2451, %v2438, %v2440
        %v2471 = vsel %vm2451, %v2440, %v2442
        %v2472 = vsel %vm2451, %v2442, %v2444
        %v2473 = vsel %vm2451, %v2444, %v2446
        %v2474 = vsel %vm2451, %v2446, %v2448
        %v2475 = vsel %vm2451, %v2448, %v2450
        %2504 = vst [vmem:[#allocation4 + $0x700] sm:$0xff] %v2452
        %2505 = vst [vmem:[#allocation4 + $0x708] sm:$0xff] %v2453
        %2506 = vst [vmem:[#allocation4 + $0x710] sm:$0xff] %v2454
        %2507 = vst [vmem:[#allocation4 + $0x718] sm:$0xff] %v2455
        %2508 = vst [vmem:[#allocation4 + $0x720] sm:$0xff] %v2456
        %2509 = vst [vmem:[#allocation4 + $0x728] sm:$0xff] %v2457
        %2510 = vst.msk [vmem:[#allocation4 + $0x730] sm:$0xff] %vm534, %v2408
        %2511 = vst [vmem:[#allocation4 + $0x738] sm:$0xff] %v2458
        %2512 = vst [vmem:[#allocation4 + $0x740] sm:$0xff] %v2459
        %2513 = vst [vmem:[#allocation4 + $0x748] sm:$0xff] %v2460
        %2514 = vst [vmem:[#allocation4 + $0x750] sm:$0xff] %v2461
        %2515 = vst [vmem:[#allocation4 + $0x758] sm:$0xff] %v2462
        %2516 = vst [vmem:[#allocation4 + $0x760] sm:$0xff] %v2463
        %2517 = vst.msk [vmem:[#allocation4 + $0x768] sm:$0xff] %vm534, %v2422
        %2518 = vst [vmem:[#allocation4 + $0x770] sm:$0xff] %v2464
        %2519 = vst [vmem:[#allocation4 + $0x778] sm:$0xff] %v2465
        %2520 = vst [vmem:[#allocation4 + $0x780] sm:$0xff] %v2466
        %2521 = vst [vmem:[#allocation4 + $0x788] sm:$0xff] %v2467
        %2522 = vst [vmem:[#allocation4 + $0x790] sm:$0xff] %v2468
        %2523 = vst [vmem:[#allocation4 + $0x798] sm:$0xff] %v2469
        %2524 = vst.msk [vmem:[#allocation4 + $0x7a0] sm:$0xff] %vm534, %v2436
        %2525 = vst [vmem:[#allocation4 + $0x7a8] sm:$0xff] %v2470
        %2526 = vst [vmem:[#allocation4 + $0x7b0] sm:$0xff] %v2471
        %2527 = vst [vmem:[#allocation4 + $0x7b8] sm:$0xff] %v2472
        %2528 = vst [vmem:[#allocation4 + $0x7c0] sm:$0xff] %v2473
        %2529 = vst [vmem:[#allocation4 + $0x7c8] sm:$0xff] %v2474
        %2530 = vst [vmem:[#allocation4 + $0x7d0] sm:$0xff] %v2475
        %2531 = vst.msk [vmem:[#allocation4 + $0x7d8] sm:$0xff] %vm534, %v2450
        %v2532 = vld [vmem:[#allocation8] sm:$0xff]
        %v2533 = vld [vmem:[#allocation8 + $0x8] sm:$0xff]
        %v2534 = vld [vmem:[#allocation8 + $0x10] sm:$0xff]
        %v2535 = vld [vmem:[#allocation8 + $0x18] sm:$0xff]
        %v2536 = vld [vmem:[#allocation8 + $0x20] sm:$0xff]
        %v2537 = vld [vmem:[#allocation8 + $0x28] sm:$0xff]
        %v2538 = vld [vmem:[#allocation8 + $0x30] sm:$0xff]
        %v2539 = vld [vmem:[#allocation8 + $0x38] sm:$0xff]
        %v2540 = vld [vmem:[#allocation8 + $0x40] sm:$0xff]
        %v2541 = vld [vmem:[#allocation8 + $0x48] sm:$0xff]
        %v2542 = vld [vmem:[#allocation8 + $0x50] sm:$0xff]
        %v2543 = vld [vmem:[#allocation8 + $0x58] sm:$0xff]
        %v2544 = vld [vmem:[#allocation4] sm:$0xff]
        %v2545 = vld [vmem:[#allocation4 + $0x8] sm:$0xff]
        %v2546 = vld [vmem:[#allocation4 + $0x10] sm:$0xff]
        %v2547 = vld [vmem:[#allocation4 + $0x18] sm:$0xff]
        %v2548 = vld [vmem:[#allocation4 + $0x20] sm:$0xff]
        %v2549 = vld [vmem:[#allocation4 + $0x28] sm:$0xff]
        %v2550 = vld [vmem:[#allocation4 + $0x30] sm:$0xff]
        %v2551 = vld [vmem:[#allocation4 + $0x38] sm:$0xff]
        %v2552 = vld [vmem:[#allocation4 + $0x40] sm:$0xff]
        %v2553 = vld [vmem:[#allocation4 + $0x48] sm:$0xff]
        %v2554 = vld [vmem:[#allocation4 + $0x50] sm:$0xff]
        %v2555 = vld [vmem:[#allocation4 + $0x58] sm:$0xff]
        %v2556 = vld [vmem:[#allocation4 + $0x60] sm:$0xff]
        %v2557 = vld [vmem:[#allocation4 + $0x68] sm:$0xff]
        %v2558 = vld [vmem:[#allocation4 + $0x70] sm:$0xff]
        %v2559 = vld [vmem:[#allocation4 + $0x78] sm:$0xff]
        %v2560 = vld [vmem:[#allocation4 + $0x80] sm:$0xff]
        %v2561 = vld [vmem:[#allocation4 + $0x88] sm:$0xff]
        %v2562 = vld [vmem:[#allocation4 + $0x90] sm:$0xff]
        %v2563 = vld [vmem:[#allocation4 + $0x98] sm:$0xff]
        %v2564 = vld [vmem:[#allocation4 + $0xa0] sm:$0xff]
        %v2565 = vld [vmem:[#allocation4 + $0xa8] sm:$0xff]
        %v2566 = vld [vmem:[#allocation4 + $0xb0] sm:$0xff]
        %v2567 = vld [vmem:[#allocation4 + $0xb8] sm:$0xff]
        %v2568 = vld [vmem:[#allocation4 + $0xc0] sm:$0xff]
        %v2569 = vld [vmem:[#allocation4 + $0xc8] sm:$0xff]
        %v2570 = vld [vmem:[#allocation4 + $0xd0] sm:$0xff]
        %v2571 = vld [vmem:[#allocation4 + $0xd8] sm:$0xff]
        %v2572 = vld [vmem:[#allocation4 + $0xe0] sm:$0xff]
        %v2573 = vld [vmem:[#allocation4 + $0xe8] sm:$0xff]
        %v2574 = vld [vmem:[#allocation4 + $0xf0] sm:$0xff]
        %v2575 = vld [vmem:[#allocation4 + $0xf8] sm:$0xff]
        %v2576 = vld [vmem:[#allocation4 + $0x100] sm:$0xff]
        %v2577 = vld [vmem:[#allocation4 + $0x108] sm:$0xff]
        %v2578 = vld [vmem:[#allocation4 + $0x110] sm:$0xff]
        %v2579 = vld [vmem:[#allocation4 + $0x118] sm:$0xff]
        %v2580 = vld [vmem:[#allocation4 + $0x120] sm:$0xff]
        %v2581 = vld [vmem:[#allocation4 + $0x128] sm:$0xff]
        %v2582 = vld [vmem:[#allocation4 + $0x130] sm:$0xff]
        %v2583 = vld [vmem:[#allocation4 + $0x138] sm:$0xff]
        %v2584 = vld [vmem:[#allocation4 + $0x140] sm:$0xff]
        %v2585 = vld [vmem:[#allocation4 + $0x148] sm:$0xff]
        %v2586 = vld [vmem:[#allocation4 + $0x150] sm:$0xff]
        %v2587 = vld [vmem:[#allocation4 + $0x158] sm:$0xff]
        %v2588 = vld [vmem:[#allocation4 + $0x160] sm:$0xff]
        %v2589 = vld [vmem:[#allocation4 + $0x168] sm:$0xff]
        %v2590 = vld [vmem:[#allocation4 + $0x170] sm:$0xff]
        %v2591 = vld [vmem:[#allocation4 + $0x178] sm:$0xff]
        %v2592 = vld [vmem:[#allocation4 + $0x180] sm:$0xff]
        %v2593 = vld [vmem:[#allocation4 + $0x188] sm:$0xff]
        %v2594 = vld [vmem:[#allocation4 + $0x190] sm:$0xff]
        %v2595 = vld [vmem:[#allocation4 + $0x198] sm:$0xff]
        %v2596 = vld [vmem:[#allocation4 + $0x1a0] sm:$0xff]
        %v2597 = vld [vmem:[#allocation4 + $0x1a8] sm:$0xff]
        %v2598 = vld [vmem:[#allocation4 + $0x1b0] sm:$0xff]
        %v2599 = vld [vmem:[#allocation4 + $0x1b8] sm:$0xff]
        %v2600 = vld [vmem:[#allocation4 + $0x1c0] sm:$0xff]
        %v2601 = vld [vmem:[#allocation4 + $0x1c8] sm:$0xff]
        %v2602 = vld [vmem:[#allocation4 + $0x1d0] sm:$0xff]
        %v2603 = vld [vmem:[#allocation4 + $0x1d8] sm:$0xff]
        %v2604 = vld [vmem:[#allocation4 + $0x1e0] sm:$0xff]
        %v2605 = vld [vmem:[#allocation4 + $0x1e8] sm:$0xff]
        %v2606 = vld [vmem:[#allocation4 + $0x1f0] sm:$0xff]
        %v2607 = vld [vmem:[#allocation4 + $0x1f8] sm:$0xff]
        %v2608 = vld [vmem:[#allocation4 + $0x200] sm:$0xff]
        %v2609 = vld [vmem:[#allocation4 + $0x208] sm:$0xff]
        %v2610 = vld [vmem:[#allocation4 + $0x210] sm:$0xff]
        %v2611 = vld [vmem:[#allocation4 + $0x218] sm:$0xff]
        %v2612 = vld [vmem:[#allocation4 + $0x220] sm:$0xff]
        %v2613 = vld [vmem:[#allocation4 + $0x228] sm:$0xff]
        %v2614 = vld [vmem:[#allocation4 + $0x230] sm:$0xff]
        %v2615 = vld [vmem:[#allocation4 + $0x238] sm:$0xff]
        %v2616 = vld [vmem:[#allocation4 + $0x240] sm:$0xff]
        %v2617 = vld [vmem:[#allocation4 + $0x248] sm:$0xff]
        %v2618 = vld [vmem:[#allocation4 + $0x250] sm:$0xff]
        %v2619 = vld [vmem:[#allocation4 + $0x258] sm:$0xff]
        %v2620 = vld [vmem:[#allocation4 + $0x260] sm:$0xff]
        %v2621 = vld [vmem:[#allocation4 + $0x268] sm:$0xff]
        %v2622 = vld [vmem:[#allocation4 + $0x270] sm:$0xff]
        %v2623 = vld [vmem:[#allocation4 + $0x278] sm:$0xff]
        %v2624 = vld [vmem:[#allocation4 + $0x280] sm:$0xff]
        %v2625 = vld [vmem:[#allocation4 + $0x288] sm:$0xff]
        %v2626 = vld [vmem:[#allocation4 + $0x290] sm:$0xff]
        %v2627 = vld [vmem:[#allocation4 + $0x298] sm:$0xff]
        %v2628 = vld [vmem:[#allocation4 + $0x2a0] sm:$0xff]
        %v2629 = vld [vmem:[#allocation4 + $0x2a8] sm:$0xff]
        %v2630 = vld [vmem:[#allocation4 + $0x2b0] sm:$0xff]
        %v2631 = vld [vmem:[#allocation4 + $0x2b8] sm:$0xff]
        %v2632 = vld [vmem:[#allocation4 + $0x2c0] sm:$0xff]
        %v2633 = vld [vmem:[#allocation4 + $0x2c8] sm:$0xff]
        %v2634 = vld [vmem:[#allocation4 + $0x2d0] sm:$0xff]
        %v2635 = vld [vmem:[#allocation4 + $0x2d8] sm:$0xff]
        %v2636 = vld [vmem:[#allocation4 + $0x2e0] sm:$0xff]
        %v2637 = vld [vmem:[#allocation4 + $0x2e8] sm:$0xff]
        %v2638 = vld [vmem:[#allocation4 + $0x2f0] sm:$0xff]
        %v2639 = vld [vmem:[#allocation4 + $0x2f8] sm:$0xff]
        %v2640 = vld [vmem:[#allocation4 + $0x300] sm:$0xff]
        %v2641 = vld [vmem:[#allocation4 + $0x308] sm:$0xff]
        %v2642 = vld [vmem:[#allocation4 + $0x310] sm:$0xff]
        %v2643 = vld [vmem:[#allocation4 + $0x318] sm:$0xff]
        %v2644 = vld [vmem:[#allocation4 + $0x320] sm:$0xff]
        %v2645 = vld [vmem:[#allocation4 + $0x328] sm:$0xff]
        %v2646 = vld [vmem:[#allocation4 + $0x330] sm:$0xff]
        %v2647 = vld [vmem:[#allocation4 + $0x338] sm:$0xff]
        %v2648 = vld [vmem:[#allocation4 + $0x340] sm:$0xff]
        %v2649 = vld [vmem:[#allocation4 + $0x348] sm:$0xff]
        %v2650 = vld [vmem:[#allocation4 + $0x350] sm:$0xff]
        %v2651 = vld [vmem:[#allocation4 + $0x358] sm:$0xff]
        %v2652 = vld [vmem:[#allocation4 + $0x360] sm:$0xff]
        %v2653 = vld [vmem:[#allocation4 + $0x368] sm:$0xff]
        %v2654 = vld [vmem:[#allocation4 + $0x370] sm:$0xff]
        %v2655 = vld [vmem:[#allocation4 + $0x378] sm:$0xff]
        %v2656 = vld [vmem:[#allocation4 + $0x380] sm:$0xff]
        %v2657 = vld [vmem:[#allocation4 + $0x388] sm:$0xff]
        %v2658 = vld [vmem:[#allocation4 + $0x390] sm:$0xff]
        %v2659 = vld [vmem:[#allocation4 + $0x398] sm:$0xff]
        %v2660 = vld [vmem:[#allocation4 + $0x3a0] sm:$0xff]
        %v2661 = vld [vmem:[#allocation4 + $0x3a8] sm:$0xff]
        %v2662 = vld [vmem:[#allocation4 + $0x3b0] sm:$0xff]
        %v2663 = vld [vmem:[#allocation4 + $0x3b8] sm:$0xff]
        %v2664 = vld [vmem:[#allocation4 + $0x3c0] sm:$0xff]
        %v2665 = vld [vmem:[#allocation4 + $0x3c8] sm:$0xff]
        %v2666 = vld [vmem:[#allocation4 + $0x3d0] sm:$0xff]
        %v2667 = vld [vmem:[#allocation4 + $0x3d8] sm:$0xff]
        %v2668 = vld [vmem:[#allocation4 + $0x3e0] sm:$0xff]
        %v2669 = vld [vmem:[#allocation4 + $0x3e8] sm:$0xff]
        %v2670 = vld [vmem:[#allocation4 + $0x3f0] sm:$0xff]
        %v2671 = vld [vmem:[#allocation4 + $0x3f8] sm:$0xff]
        %v2672 = vld [vmem:[#allocation4 + $0x400] sm:$0xff]
        %v2673 = vld [vmem:[#allocation4 + $0x408] sm:$0xff]
        %v2674 = vld [vmem:[#allocation4 + $0x410] sm:$0xff]
        %v2675 = vld [vmem:[#allocation4 + $0x418] sm:$0xff]
        %v2676 = vld [vmem:[#allocation4 + $0x420] sm:$0xff]
        %v2677 = vld [vmem:[#allocation4 + $0x428] sm:$0xff]
        %v2678 = vld [vmem:[#allocation4 + $0x430] sm:$0xff]
        %v2679 = vld [vmem:[#allocation4 + $0x438] sm:$0xff]
        %v2680 = vld [vmem:[#allocation4 + $0x440] sm:$0xff]
        %v2681 = vld [vmem:[#allocation4 + $0x448] sm:$0xff]
        %v2682 = vld [vmem:[#allocation4 + $0x450] sm:$0xff]
        %v2683 = vld [vmem:[#allocation4 + $0x458] sm:$0xff]
        %v2684 = vld [vmem:[#allocation4 + $0x460] sm:$0xff]
        %v2685 = vld [vmem:[#allocation4 + $0x468] sm:$0xff]
        %v2686 = vld [vmem:[#allocation4 + $0x470] sm:$0xff]
        %v2687 = vld [vmem:[#allocation4 + $0x478] sm:$0xff]
        %v2688 = vld [vmem:[#allocation4 + $0x480] sm:$0xff]
        %v2689 = vld [vmem:[#allocation4 + $0x488] sm:$0xff]
        %v2690 = vld [vmem:[#allocation4 + $0x490] sm:$0xff]
        %v2691 = vld [vmem:[#allocation4 + $0x498] sm:$0xff]
        %v2692 = vld [vmem:[#allocation4 + $0x4a0] sm:$0xff]
        %v2693 = vld [vmem:[#allocation4 + $0x4a8] sm:$0xff]
        %v2694 = vld [vmem:[#allocation4 + $0x4b0] sm:$0xff]
        %v2695 = vld [vmem:[#allocation4 + $0x4b8] sm:$0xff]
        %v2696 = vld [vmem:[#allocation4 + $0x4c0] sm:$0xff]
        %v2697 = vld [vmem:[#allocation4 + $0x4c8] sm:$0xff]
        %v2698 = vld [vmem:[#allocation4 + $0x4d0] sm:$0xff]
        %v2699 = vld [vmem:[#allocation4 + $0x4d8] sm:$0xff]
        %v2700 = vld [vmem:[#allocation4 + $0x4e0] sm:$0xff]
        %v2701 = vld [vmem:[#allocation4 + $0x4e8] sm:$0xff]
        %v2702 = vld [vmem:[#allocation4 + $0x4f0] sm:$0xff]
        %v2703 = vld [vmem:[#allocation4 + $0x4f8] sm:$0xff]
        %v2704 = vld [vmem:[#allocation4 + $0x500] sm:$0xff]
        %v2705 = vld [vmem:[#allocation4 + $0x508] sm:$0xff]
        %v2706 = vld [vmem:[#allocation4 + $0x510] sm:$0xff]
        %v2707 = vld [vmem:[#allocation4 + $0x518] sm:$0xff]
        %v2708 = vld [vmem:[#allocation4 + $0x520] sm:$0xff]
        %v2709 = vld [vmem:[#allocation4 + $0x528] sm:$0xff]
        %v2710 = vld [vmem:[#allocation4 + $0x530] sm:$0xff]
        %v2711 = vld [vmem:[#allocation4 + $0x538] sm:$0xff]
        %v2712 = vld [vmem:[#allocation4 + $0x540] sm:$0xff]
        %v2713 = vld [vmem:[#allocation4 + $0x548] sm:$0xff]
        %v2714 = vld [vmem:[#allocation4 + $0x550] sm:$0xff]
        %v2715 = vld [vmem:[#allocation4 + $0x558] sm:$0xff]
        %v2716 = vld [vmem:[#allocation4 + $0x560] sm:$0xff]
        %v2717 = vld [vmem:[#allocation4 + $0x568] sm:$0xff]
        %v2718 = vld [vmem:[#allocation4 + $0x570] sm:$0xff]
        %v2719 = vld [vmem:[#allocation4 + $0x578] sm:$0xff]
        %v2720 = vld [vmem:[#allocation4 + $0x580] sm:$0xff]
        %v2721 = vld [vmem:[#allocation4 + $0x588] sm:$0xff]
        %v2722 = vld [vmem:[#allocation4 + $0x590] sm:$0xff]
        %v2723 = vld [vmem:[#allocation4 + $0x598] sm:$0xff]
        %v2724 = vld [vmem:[#allocation4 + $0x5a0] sm:$0xff]
        %v2725 = vld [vmem:[#allocation4 + $0x5a8] sm:$0xff]
        %v2726 = vld [vmem:[#allocation4 + $0x5b0] sm:$0xff]
        %v2727 = vld [vmem:[#allocation4 + $0x5b8] sm:$0xff]
        %v2728 = vld [vmem:[#allocation4 + $0x5c0] sm:$0xff]
        %v2729 = vld [vmem:[#allocation4 + $0x5c8] sm:$0xff]
        %v2730 = vld [vmem:[#allocation4 + $0x5d0] sm:$0xff]
        %v2731 = vld [vmem:[#allocation4 + $0x5d8] sm:$0xff]
        %v2732 = vld [vmem:[#allocation4 + $0x5e0] sm:$0xff]
        %v2733 = vld [vmem:[#allocation4 + $0x5e8] sm:$0xff]
        %v2734 = vld [vmem:[#allocation4 + $0x5f0] sm:$0xff]
        %v2735 = vld [vmem:[#allocation4 + $0x5f8] sm:$0xff]
        %v2736 = vld [vmem:[#allocation4 + $0x600] sm:$0xff]
        %v2737 = vld [vmem:[#allocation4 + $0x608] sm:$0xff]
        %v2738 = vld [vmem:[#allocation4 + $0x610] sm:$0xff]
        %v2739 = vld [vmem:[#allocation4 + $0x618] sm:$0xff]
        %v2740 = vld [vmem:[#allocation4 + $0x620] sm:$0xff]
        %v2741 = vld [vmem:[#allocation4 + $0x628] sm:$0xff]
        %v2742 = vld [vmem:[#allocation4 + $0x630] sm:$0xff]
        %v2743 = vld [vmem:[#allocation4 + $0x638] sm:$0xff]
        %v2744 = vld [vmem:[#allocation4 + $0x640] sm:$0xff]
        %v2745 = vld [vmem:[#allocation4 + $0x648] sm:$0xff]
        %v2746 = vld [vmem:[#allocation4 + $0x650] sm:$0xff]
        %v2747 = vld [vmem:[#allocation4 + $0x658] sm:$0xff]
        %v2748 = vld [vmem:[#allocation4 + $0x660] sm:$0xff]
        %v2749 = vld [vmem:[#allocation4 + $0x668] sm:$0xff]
        %v2750 = vld [vmem:[#allocation4 + $0x670] sm:$0xff]
        %v2751 = vld [vmem:[#allocation4 + $0x678] sm:$0xff]
        %v2752 = vld [vmem:[#allocation4 + $0x680] sm:$0xff]
        %v2753 = vld [vmem:[#allocation4 + $0x688] sm:$0xff]
        %v2754 = vld [vmem:[#allocation4 + $0x690] sm:$0xff]
        %v2755 = vld [vmem:[#allocation4 + $0x698] sm:$0xff]
        %v2756 = vld [vmem:[#allocation4 + $0x6a0] sm:$0xff]
        %v2757 = vld [vmem:[#allocation4 + $0x6a8] sm:$0xff]
        %v2758 = vld [vmem:[#allocation4 + $0x6b0] sm:$0xff]
        %v2759 = vld [vmem:[#allocation4 + $0x6b8] sm:$0xff]
        %v2760 = vld [vmem:[#allocation4 + $0x6c0] sm:$0xff]
        %v2761 = vld [vmem:[#allocation4 + $0x6c8] sm:$0xff]
        %v2762 = vld [vmem:[#allocation4 + $0x6d0] sm:$0xff]
        %v2763 = vld [vmem:[#allocation4 + $0x6d8] sm:$0xff]
        %v2764 = vld [vmem:[#allocation4 + $0x6e0] sm:$0xff]
        %v2765 = vld [vmem:[#allocation4 + $0x6e8] sm:$0xff]
        %v2766 = vld [vmem:[#allocation4 + $0x6f0] sm:$0xff]
        %v2767 = vld [vmem:[#allocation4 + $0x6f8] sm:$0xff]
        %v2768 = vld [vmem:[#allocation4 + $0x700] sm:$0xff]
        %v2769 = vld [vmem:[#allocation4 + $0x708] sm:$0xff]
        %v2770 = vld [vmem:[#allocation4 + $0x710] sm:$0xff]
        %v2771 = vld [vmem:[#allocation4 + $0x718] sm:$0xff]
        %v2772 = vld [vmem:[#allocation4 + $0x720] sm:$0xff]
        %v2773 = vld [vmem:[#allocation4 + $0x728] sm:$0xff]
        %v2774 = vld [vmem:[#allocation4 + $0x730] sm:$0xff]
        %v2775 = vld [vmem:[#allocation4 + $0x738] sm:$0xff]
        %v2776 = vld [vmem:[#allocation4 + $0x740] sm:$0xff]
        %v2777 = vld [vmem:[#allocation4 + $0x748] sm:$0xff]
        %v2778 = vld [vmem:[#allocation4 + $0x750] sm:$0xff]
        %v2779 = vld [vmem:[#allocation4 + $0x758] sm:$0xff]
        %v2780 = vld [vmem:[#allocation4 + $0x760] sm:$0xff]
        %v2781 = vld [vmem:[#allocation4 + $0x768] sm:$0xff]
        %v2782 = vld [vmem:[#allocation4 + $0x770] sm:$0xff]
        %v2783 = vld [vmem:[#allocation4 + $0x778] sm:$0xff]
        %v2784 = vld [vmem:[#allocation4 + $0x780] sm:$0xff]
        %v2785 = vld [vmem:[#allocation4 + $0x788] sm:$0xff]
        %v2786 = vld [vmem:[#allocation4 + $0x790] sm:$0xff]
        %v2787 = vld [vmem:[#allocation4 + $0x798] sm:$0xff]
        %v2788 = vld [vmem:[#allocation4 + $0x7a0] sm:$0xff]
        %v2789 = vld [vmem:[#allocation4 + $0x7a8] sm:$0xff]
        %v2790 = vld [vmem:[#allocation4 + $0x7b0] sm:$0xff]
        %v2791 = vld [vmem:[#allocation4 + $0x7b8] sm:$0xff]
        %v2792 = vld [vmem:[#allocation4 + $0x7c0] sm:$0xff]
        %v2793 = vld [vmem:[#allocation4 + $0x7c8] sm:$0xff]
        %v2794 = vld [vmem:[#allocation4 + $0x7d0] sm:$0xff]
        %v2795 = vld [vmem:[#allocation4 + $0x7d8] sm:$0xff]
        %v2796 = vld [vmem:[%s2] sm:$0xff]
        %v2797 = vld [vmem:[%s2 + $0x8] sm:$0xff]
        %v2798 = vld [vmem:[%s2 + $0x10] sm:$0xff]
        %v2799 = vld [vmem:[%s2 + $0x18] sm:$0xff]
        %2801 = vset.pattern.permute.xlu0 0
        %2802 = vperm.xlu0 %2801, %v2796
        %v2803 = vpop.permute.xlu0 %2802
        %2806 = vset.pattern.permute.xlu0 0
        %2807 = vperm.xlu0 %2806, %v2797
        %v2808 = vpop.permute.xlu0 %2807
        %2811 = vset.pattern.permute.xlu0 0
        %2812 = vperm.xlu0 %2811, %v2798
        %v2813 = vpop.permute.xlu0 %2812
        %2816 = vset.pattern.permute.xlu0 0
        %2817 = vperm.xlu0 %2816, %v2799
        %v2818 = vpop.permute.xlu0 %2817
        %vm2820 = vcmask 261120
        %v2822 = vsel %vm2820, %v2534, 0
        %v2825 = vsel %vm2820, %v2537, 0
        %v2828 = vsel %vm2820, %v2540, 0
        %v2831 = vsel %vm2820, %v2543, 0
        %2833 = vmatprep.subr.mxu0 %v2650
        %2834 = vmatpush1.msra.mxu0 %v2649
        %2835 = vmatprep.subr.mxu0 %v2643
        %2836 = vmatpush1.msra.mxu0 %v2642
        %2837 = vmatprep.subr.mxu0 %v2636
        %2838 = vmatpush1.msra.mxu0 %v2635
        %2839 = vmatprep.subr.mxu0 %v2629
        %2840 = vmatpush1.msra.mxu0 %v2628
        %2841 = vmatprep.subr.mxu0 %v2622
        %2842 = vmatpush1.msra.mxu0 %v2621
        %2843 = vmatprep.subr.mxu0 %v2615
        %2844 = vmatpush1.msra.mxu0 %v2614
        %2845 = vmatprep.subr.mxu0 %v2608
        %2846 = vmatpush1.msra.mxu0 %v2607
        %2847 = vmatprep.subr.mxu0 %v2601
        %2848 = vmatpush1.msra.mxu0 %v2600
        %2849 = vmatprep.subr.mxu0 %v2594
        %2850 = vmatpush1.msra.mxu0 %v2593
        %2851 = vmatprep.subr.mxu0 %v2587
        %2852 = vmatpush1.msra.mxu0 %v2586
        %2853 = vmatprep.subr.mxu0 %v2580
        %2854 = vmatpush1.msra.mxu0 %v2579
        %2855 = vmatprep.subr.mxu0 %v2573
        %2856 = vmatpush1.msra.mxu0 %v2572
        %2857 = vmatprep.subr.mxu0 %v2566
        %2858 = vmatpush1.msra.mxu0 %v2565
        %2859 = vmatprep.subr.mxu0 %v2559
        %2860 = vmatpush1.msra.mxu0 %v2558
        %2861 = vmatprep.subr.mxu0 %v2552
        %2862 = vmatpush1.msra.mxu0 %v2551
        %2863 = vmatprep.subr.mxu0 %v2545
        %2864 = vmatpush1.msra.mxu0 %v2544
        %2865 = vmatprep.subr.mxu0 %v2762
        %2866 = vmatpush2.msra.mxu0 %v2761
        %2867 = vmatprep.subr.mxu0 %v2755
        %2868 = vmatpush2.msra.mxu0 %v2754
        %2869 = vmatprep.subr.mxu0 %v2748
        %2870 = vmatpush2.msra.mxu0 %v2747
        %2871 = vmatprep.subr.mxu0 %v2741
        %2872 = vmatpush2.msra.mxu0 %v2740
        %2873 = vmatprep.subr.mxu0 %v2734
        %2874 = vmatpush2.msra.mxu0 %v2733
        %2875 = vmatprep.subr.mxu0 %v2727
        %2876 = vmatpush2.msra.mxu0 %v2726
        %2877 = vmatprep.subr.mxu0 %v2720
        %2878 = vmatpush2.msra.mxu0 %v2719
        %2879 = vmatprep.subr.mxu0 %v2713
        %2880 = vmatpush2.msra.mxu0 %v2712
        %2881 = vmatprep.subr.mxu0 %v2706
        %2882 = vmatpush2.msra.mxu0 %v2705
        %2883 = vmatprep.subr.mxu0 %v2699
        %2884 = vmatpush2.msra.mxu0 %v2698
        %2885 = vmatprep.subr.mxu0 %v2692
        %2886 = vmatpush2.msra.mxu0 %v2691
        %2887 = vmatprep.subr.mxu0 %v2685
        %2888 = vmatpush2.msra.mxu0 %v2684
        %2889 = vmatprep.subr.mxu0 %v2678
        %2890 = vmatpush2.msra.mxu0 %v2677
        %2891 = vmatprep.subr.mxu0 %v2671
        %2892 = vmatpush2.msra.mxu0 %v2670
        %2893 = vmatprep.subr.mxu0 %v2664
        %2894 = vmatpush2.msra.mxu0 %v2663
        %2895 = vmatprep.subr.mxu0 %v2657
        %2896 = vmatpush2.msra.mxu0 %v2656
        %2897 = vmatprep.mubr.f32.mxu0 %v2533
        %2898 = vmatmul.mubr.f32.gmra.mxu0 %v2532
        %v2899 = vpop.f32.mrf.mxu0
        %v2900 = vadd.f32 %v2803, %v2899
        %v2901 = vpop.f32.mrf.mxu0
        %v2902 = vadd.f32 %v2803, %v2901
        %2903 = vmatprep.mubr.f32.mxu0 %v2536
        %2904 = vmatmul.mubr.f32.gmra.mxu0 %v2535
        %v2905 = vpop.f32.mrf.mxu0
        %v2906 = vadd.f32 %v2808, %v2905
        %v2907 = vpop.f32.mrf.mxu0
        %v2908 = vadd.f32 %v2808, %v2907
        %2909 = vmatprep.mubr.f32.mxu0 %v2539
        %2910 = vmatmul.mubr.f32.gmra.mxu0 %v2538
        %v2911 = vpop.f32.mrf.mxu0
        %v2912 = vadd.f32 %v2813, %v2911
        %v2913 = vpop.f32.mrf.mxu0
        %v2914 = vadd.f32 %v2813, %v2913
        %2915 = vmatprep.mubr.f32.mxu0 %v2542
        %2916 = vmatmul.mubr.f32.gmra.mxu0 %v2541
        %v2917 = vpop.f32.mrf.mxu0
        %v2918 = vadd.f32 %v2818, %v2917
        %v2919 = vpop.f32.mrf.mxu0
        %v2920 = vadd.f32 %v2818, %v2919
        %2921 = vdwg.mxu0
        %2922 = vmatprep.subr.mxu0 0.0
        %2923 = vmatpush1.msra.mxu0 0.0
        %2924 = vmatprep.subr.mxu0 0.0
        %2925 = vmatpush1.msra.mxu0 0.0
        %2926 = vmatprep.subr.mxu0 0.0
        %2927 = vmatpush1.msra.mxu0 0.0
        %2928 = vmatprep.subr.mxu0 0.0
        %2929 = vmatpush1.msra.mxu0 0.0
        %2930 = vmatprep.subr.mxu0 0.0
        %2931 = vmatpush1.msra.mxu0 0.0
        %2932 = vmatprep.subr.mxu0 0.0
        %2933 = vmatpush1.msra.mxu0 0.0
        %2934 = vmatprep.subr.mxu0 0.0
        %2935 = vmatpush1.msra.mxu0 0.0
        %2936 = vmatprep.subr.mxu0 0.0
        %2937 = vmatpush1.msra.mxu0 0.0
        %2938 = vmatprep.subr.mxu0 0.0
        %2939 = vmatpush1.msra.mxu0 0.0
        %2940 = vmatprep.subr.mxu0 0.0
        %2941 = vmatpush1.msra.mxu0 0.0
        %2942 = vmatprep.subr.mxu0 0.0
        %2943 = vmatpush1.msra.mxu0 0.0
        %2944 = vmatprep.subr.mxu0 0.0
        %2945 = vmatpush1.msra.mxu0 0.0
        %2946 = vmatprep.subr.mxu0 %v2790
        %2947 = vmatpush1.msra.mxu0 %v2789
        %2948 = vmatprep.subr.mxu0 %v2783
        %2949 = vmatpush1.msra.mxu0 %v2782
        %2950 = vmatprep.subr.mxu0 %v2776
        %2951 = vmatpush1.msra.mxu0 %v2775
        %2952 = vmatprep.subr.mxu0 %v2769
        %2953 = vmatpush1.msra.mxu0 %v2768
        %2954 = vmatprep.subr.mxu0 0.0
        %2955 = vmatpush2.msra.mxu0 0.0
        %2956 = vmatprep.subr.mxu0 0.0
        %2957 = vmatpush2.msra.mxu0 0.0
        %2958 = vmatprep.subr.mxu0 0.0
        %2959 = vmatpush2.msra.mxu0 0.0
        %2960 = vmatprep.subr.mxu0 0.0
        %2961 = vmatpush2.msra.mxu0 0.0
        %2962 = vmatprep.subr.mxu0 0.0
        %2963 = vmatpush2.msra.mxu0 0.0
        %2964 = vmatprep.subr.mxu0 0.0
        %2965 = vmatpush2.msra.mxu0 0.0
        %2966 = vmatprep.subr.mxu0 0.0
        %2967 = vmatpush2.msra.mxu0 0.0
        %2968 = vmatprep.subr.mxu0 0.0
        %2969 = vmatpush2.msra.mxu0 0.0
        %2970 = vmatprep.subr.mxu0 0.0
        %2971 = vmatpush2.msra.mxu0 0.0
        %2972 = vmatprep.subr.mxu0 0.0
        %2973 = vmatpush2.msra.mxu0 0.0
        %2974 = vmatprep.subr.mxu0 0.0
        %2975 = vmatpush2.msra.mxu0 0.0
        %2976 = vmatprep.subr.mxu0 0.0
        %2977 = vmatpush2.msra.mxu0 0.0
        %2978 = vmatprep.subr.mxu0 0.0
        %2979 = vmatpush2.msra.mxu0 0.0
        %2980 = vmatprep.subr.mxu0 0.0
        %2981 = vmatpush2.msra.mxu0 0.0
        %2982 = vmatprep.subr.mxu0 0.0
        %2983 = vmatpush2.msra.mxu0 0.0
        %2984 = vmatprep.subr.mxu0 0.0
        %2985 = vmatpush2.msra.mxu0 0.0
        %2986 = vmatprep.mubr.f32.mxu0 0.0
        %2987 = vmatmul.mubr.f32.gmra.mxu0 %v2822
        %v2988 = vpop.f32.mrf.mxu0
        %v2989 = vadd.f32 %v2900, %v2988
        %v2990 = vpop.f32.mrf.mxu0
        %v2991 = vadd.f32 %v2902, %v2990
        %2992 = vmatprep.mubr.f32.mxu0 0.0
        %2993 = vmatmul.mubr.f32.gmra.mxu0 %v2825
        %v2994 = vpop.f32.mrf.mxu0
        %v2995 = vadd.f32 %v2906, %v2994
        %v2996 = vpop.f32.mrf.mxu0
        %v2997 = vadd.f32 %v2908, %v2996
        %2998 = vmatprep.mubr.f32.mxu0 0.0
        %2999 = vmatmul.mubr.f32.gmra.mxu0 %v2828
        %v3000 = vpop.f32.mrf.mxu0
        %v3001 = vadd.f32 %v2912, %v3000
        %v3002 = vpop.f32.mrf.mxu0
        %v3003 = vadd.f32 %v2914, %v3002
        %3004 = vmatprep.mubr.f32.mxu0 0.0
        %3005 = vmatmul.mubr.f32.gmra.mxu0 %v2831
        %v3006 = vpop.f32.mrf.mxu0
        %v3007 = vadd.f32 %v2918, %v3006
        %v3008 = vpop.f32.mrf.mxu0
        %v3009 = vadd.f32 %v2920, %v3008
        %3010 = vdwg.mxu0
        %3011 = vmatprep.subr.mxu0 %v2652
        %3012 = vmatpush1.msra.mxu0 %v2651
        %3013 = vmatprep.subr.mxu0 %v2645
        %3014 = vmatpush1.msra.mxu0 %v2644
        %3015 = vmatprep.subr.mxu0 %v2638
        %3016 = vmatpush1.msra.mxu0 %v2637
        %3017 = vmatprep.subr.mxu0 %v2631
        %3018 = vmatpush1.msra.mxu0 %v2630
        %3019 = vmatprep.subr.mxu0 %v2624
        %3020 = vmatpush1.msra.mxu0 %v2623
        %3021 = vmatprep.subr.mxu0 %v2617
        %3022 = vmatpush1.msra.mxu0 %v2616
        %3023 = vmatprep.subr.mxu0 %v2610
        %3024 = vmatpush1.msra.mxu0 %v2609
        %3025 = vmatprep.subr.mxu0 %v2603
        %3026 = vmatpush1.msra.mxu0 %v2602
        %3027 = vmatprep.subr.mxu0 %v2596
        %3028 = vmatpush1.msra.mxu0 %v2595
        %3029 = vmatprep.subr.mxu0 %v2589
        %3030 = vmatpush1.msra.mxu0 %v2588
        %3031 = vmatprep.subr.mxu0 %v2582
        %3032 = vmatpush1.msra.mxu0 %v2581
        %3033 = vmatprep.subr.mxu0 %v2575
        %3034 = vmatpush1.msra.mxu0 %v2574
        %3035 = vmatprep.subr.mxu0 %v2568
        %3036 = vmatpush1.msra.mxu0 %v2567
        %3037 = vmatprep.subr.mxu0 %v2561
        %3038 = vmatpush1.msra.mxu0 %v2560
        %3039 = vmatprep.subr.mxu0 %v2554
        %3040 = vmatpush1.msra.mxu0 %v2553
        %3041 = vmatprep.subr.mxu0 %v2547
        %3042 = vmatpush1.msra.mxu0 %v2546
        %3043 = vmatprep.subr.mxu0 %v2764
        %3044 = vmatpush2.msra.mxu0 %v2763
        %3045 = vmatprep.subr.mxu0 %v2757
        %3046 = vmatpush2.msra.mxu0 %v2756
        %3047 = vmatprep.subr.mxu0 %v2750
        %3048 = vmatpush2.msra.mxu0 %v2749
        %3049 = vmatprep.subr.mxu0 %v2743
        %3050 = vmatpush2.msra.mxu0 %v2742
        %3051 = vmatprep.subr.mxu0 %v2736
        %3052 = vmatpush2.msra.mxu0 %v2735
        %3053 = vmatprep.subr.mxu0 %v2729
        %3054 = vmatpush2.msra.mxu0 %v2728
        %3055 = vmatprep.subr.mxu0 %v2722
        %3056 = vmatpush2.msra.mxu0 %v2721
        %3057 = vmatprep.subr.mxu0 %v2715
        %3058 = vmatpush2.msra.mxu0 %v2714
        %3059 = vmatprep.subr.mxu0 %v2708
        %3060 = vmatpush2.msra.mxu0 %v2707
        %3061 = vmatprep.subr.mxu0 %v2701
        %3062 = vmatpush2.msra.mxu0 %v2700
        %3063 = vmatprep.subr.mxu0 %v2694
        %3064 = vmatpush2.msra.mxu0 %v2693
        %3065 = vmatprep.subr.mxu0 %v2687
        %3066 = vmatpush2.msra.mxu0 %v2686
        %3067 = vmatprep.subr.mxu0 %v2680
        %3068 = vmatpush2.msra.mxu0 %v2679
        %3069 = vmatprep.subr.mxu0 %v2673
        %3070 = vmatpush2.msra.mxu0 %v2672
        %3071 = vmatprep.subr.mxu0 %v2666
        %3072 = vmatpush2.msra.mxu0 %v2665
        %3073 = vmatprep.subr.mxu0 %v2659
        %3074 = vmatpush2.msra.mxu0 %v2658
        %3075 = vmatprep.mubr.f32.mxu0 %v2533
        %3076 = vmatmul.mubr.f32.gmra.mxu0 %v2532
        %v3077 = vpop.f32.mrf.mxu0
        %v3078 = vadd.f32 %v2803, %v3077
        %v3079 = vpop.f32.mrf.mxu0
        %v3080 = vadd.f32 %v2803, %v3079
        %3081 = vmatprep.mubr.f32.mxu0 %v2536
        %3082 = vmatmul.mubr.f32.gmra.mxu0 %v2535
        %v3083 = vpop.f32.mrf.mxu0
        %v3084 = vadd.f32 %v2808, %v3083
        %v3085 = vpop.f32.mrf.mxu0
        %v3086 = vadd.f32 %v2808, %v3085
        %3087 = vmatprep.mubr.f32.mxu0 %v2539
        %3088 = vmatmul.mubr.f32.gmra.mxu0 %v2538
        %v3089 = vpop.f32.mrf.mxu0
        %v3090 = vadd.f32 %v2813, %v3089
        %v3091 = vpop.f32.mrf.mxu0
        %v3092 = vadd.f32 %v2813, %v3091
        %3093 = vmatprep.mubr.f32.mxu0 %v2542
        %3094 = vmatmul.mubr.f32.gmra.mxu0 %v2541
        %v3095 = vpop.f32.mrf.mxu0
        %v3096 = vadd.f32 %v2818, %v3095
        %v3097 = vpop.f32.mrf.mxu0
        %v3098 = vadd.f32 %v2818, %v3097
        %3099 = vdwg.mxu0
        %3100 = vmatprep.subr.mxu0 0.0
        %3101 = vmatpush1.msra.mxu0 0.0
        %3102 = vmatprep.subr.mxu0 0.0
        %3103 = vmatpush1.msra.mxu0 0.0
        %3104 = vmatprep.subr.mxu0 0.0
        %3105 = vmatpush1.msra.mxu0 0.0
        %3106 = vmatprep.subr.mxu0 0.0
        %3107 = vmatpush1.msra.mxu0 0.0
        %3108 = vmatprep.subr.mxu0 0.0
        %3109 = vmatpush1.msra.mxu0 0.0
        %3110 = vmatprep.subr.mxu0 0.0
        %3111 = vmatpush1.msra.mxu0 0.0
        %3112 = vmatprep.subr.mxu0 0.0
        %3113 = vmatpush1.msra.mxu0 0.0
        %3114 = vmatprep.subr.mxu0 0.0
        %3115 = vmatpush1.msra.mxu0 0.0
        %3116 = vmatprep.subr.mxu0 0.0
        %3117 = vmatpush1.msra.mxu0 0.0
        %3118 = vmatprep.subr.mxu0 0.0
        %3119 = vmatpush1.msra.mxu0 0.0
        %3120 = vmatprep.subr.mxu0 0.0
        %3121 = vmatpush1.msra.mxu0 0.0
        %3122 = vmatprep.subr.mxu0 0.0
        %3123 = vmatpush1.msra.mxu0 0.0
        %3124 = vmatprep.subr.mxu0 %v2792
        %3125 = vmatpush1.msra.mxu0 %v2791
        %3126 = vmatprep.subr.mxu0 %v2785
        %3127 = vmatpush1.msra.mxu0 %v2784
        %3128 = vmatprep.subr.mxu0 %v2778
        %3129 = vmatpush1.msra.mxu0 %v2777
        %3130 = vmatprep.subr.mxu0 %v2771
        %3131 = vmatpush1.msra.mxu0 %v2770
        %3132 = vmatprep.subr.mxu0 0.0
        %3133 = vmatpush2.msra.mxu0 0.0
        %3134 = vmatprep.subr.mxu0 0.0
        %3135 = vmatpush2.msra.mxu0 0.0
        %3136 = vmatprep.subr.mxu0 0.0
        %3137 = vmatpush2.msra.mxu0 0.0
        %3138 = vmatprep.subr.mxu0 0.0
        %3139 = vmatpush2.msra.mxu0 0.0
        %3140 = vmatprep.subr.mxu0 0.0
        %3141 = vmatpush2.msra.mxu0 0.0
        %3142 = vmatprep.subr.mxu0 0.0
        %3143 = vmatpush2.msra.mxu0 0.0
        %3144 = vmatprep.subr.mxu0 0.0
        %3145 = vmatpush2.msra.mxu0 0.0
        %3146 = vmatprep.subr.mxu0 0.0
        %3147 = vmatpush2.msra.mxu0 0.0
        %3148 = vmatprep.subr.mxu0 0.0
        %3149 = vmatpush2.msra.mxu0 0.0
        %3150 = vmatprep.subr.mxu0 0.0
        %3151 = vmatpush2.msra.mxu0 0.0
        %3152 = vmatprep.subr.mxu0 0.0
        %3153 = vmatpush2.msra.mxu0 0.0
        %3154 = vmatprep.subr.mxu0 0.0
        %3155 = vmatpush2.msra.mxu0 0.0
        %3156 = vmatprep.subr.mxu0 0.0
        %3157 = vmatpush2.msra.mxu0 0.0
        %3158 = vmatprep.subr.mxu0 0.0
        %3159 = vmatpush2.msra.mxu0 0.0
        %3160 = vmatprep.subr.mxu0 0.0
        %3161 = vmatpush2.msra.mxu0 0.0
        %3162 = vmatprep.subr.mxu0 0.0
        %3163 = vmatpush2.msra.mxu0 0.0
        %3164 = vmatprep.mubr.f32.mxu0 0.0
        %3165 = vmatmul.mubr.f32.gmra.mxu0 %v2822
        %v3166 = vpop.f32.mrf.mxu0
        %v3167 = vadd.f32 %v3078, %v3166
        %v3168 = vpop.f32.mrf.mxu0
        %v3169 = vadd.f32 %v3080, %v3168
        %3170 = vmatprep.mubr.f32.mxu0 0.0
        %3171 = vmatmul.mubr.f32.gmra.mxu0 %v2825
        %v3172 = vpop.f32.mrf.mxu0
        %v3173 = vadd.f32 %v3084, %v3172
        %v3174 = vpop.f32.mrf.mxu0
        %v3175 = vadd.f32 %v3086, %v3174
        %3176 = vmatprep.mubr.f32.mxu0 0.0
        %3177 = vmatmul.mubr.f32.gmra.mxu0 %v2828
        %v3178 = vpop.f32.mrf.mxu0
        %v3179 = vadd.f32 %v3090, %v3178
        %v3180 = vpop.f32.mrf.mxu0
        %v3181 = vadd.f32 %v3092, %v3180
        %3182 = vmatprep.mubr.f32.mxu0 0.0
        %3183 = vmatmul.mubr.f32.gmra.mxu0 %v2831
        %v3184 = vpop.f32.mrf.mxu0
        %v3185 = vadd.f32 %v3096, %v3184
        %v3186 = vpop.f32.mrf.mxu0
        %v3187 = vadd.f32 %v3098, %v3186
        %3188 = vdwg.mxu0
        %3189 = vmatprep.subr.mxu0 %v2654
        %3190 = vmatpush1.msra.mxu0 %v2653
        %3191 = vmatprep.subr.mxu0 %v2647
        %3192 = vmatpush1.msra.mxu0 %v2646
        %3193 = vmatprep.subr.mxu0 %v2640
        %3194 = vmatpush1.msra.mxu0 %v2639
        %3195 = vmatprep.subr.mxu0 %v2633
        %3196 = vmatpush1.msra.mxu0 %v2632
        %3197 = vmatprep.subr.mxu0 %v2626
        %3198 = vmatpush1.msra.mxu0 %v2625
        %3199 = vmatprep.subr.mxu0 %v2619
        %3200 = vmatpush1.msra.mxu0 %v2618
        %3201 = vmatprep.subr.mxu0 %v2612
        %3202 = vmatpush1.msra.mxu0 %v2611
        %3203 = vmatprep.subr.mxu0 %v2605
        %3204 = vmatpush1.msra.mxu0 %v2604
        %3205 = vmatprep.subr.mxu0 %v2598
        %3206 = vmatpush1.msra.mxu0 %v2597
        %3207 = vmatprep.subr.mxu0 %v2591
        %3208 = vmatpush1.msra.mxu0 %v2590
        %3209 = vmatprep.subr.mxu0 %v2584
        %3210 = vmatpush1.msra.mxu0 %v2583
        %3211 = vmatprep.subr.mxu0 %v2577
        %3212 = vmatpush1.msra.mxu0 %v2576
        %3213 = vmatprep.subr.mxu0 %v2570
        %3214 = vmatpush1.msra.mxu0 %v2569
        %3215 = vmatprep.subr.mxu0 %v2563
        %3216 = vmatpush1.msra.mxu0 %v2562
        %3217 = vmatprep.subr.mxu0 %v2556
        %3218 = vmatpush1.msra.mxu0 %v2555
        %3219 = vmatprep.subr.mxu0 %v2549
        %3220 = vmatpush1.msra.mxu0 %v2548
        %3221 = vmatprep.subr.mxu0 %v2766
        %3222 = vmatpush2.msra.mxu0 %v2765
        %3223 = vmatprep.subr.mxu0 %v2759
        %3224 = vmatpush2.msra.mxu0 %v2758
        %3225 = vmatprep.subr.mxu0 %v2752
        %3226 = vmatpush2.msra.mxu0 %v2751
        %3227 = vmatprep.subr.mxu0 %v2745
        %3228 = vmatpush2.msra.mxu0 %v2744
        %3229 = vmatprep.subr.mxu0 %v2738
        %3230 = vmatpush2.msra.mxu0 %v2737
        %3231 = vmatprep.subr.mxu0 %v2731
        %3232 = vmatpush2.msra.mxu0 %v2730
        %3233 = vmatprep.subr.mxu0 %v2724
        %3234 = vmatpush2.msra.mxu0 %v2723
        %3235 = vmatprep.subr.mxu0 %v2717
        %3236 = vmatpush2.msra.mxu0 %v2716
        %3237 = vmatprep.subr.mxu0 %v2710
        %3238 = vmatpush2.msra.mxu0 %v2709
        %3239 = vmatprep.subr.mxu0 %v2703
        %3240 = vmatpush2.msra.mxu0 %v2702
        %3241 = vmatprep.subr.mxu0 %v2696
        %3242 = vmatpush2.msra.mxu0 %v2695
        %3243 = vmatprep.subr.mxu0 %v2689
        %3244 = vmatpush2.msra.mxu0 %v2688
        %3245 = vmatprep.subr.mxu0 %v2682
        %3246 = vmatpush2.msra.mxu0 %v2681
        %3247 = vmatprep.subr.mxu0 %v2675
        %3248 = vmatpush2.msra.mxu0 %v2674
        %3249 = vmatprep.subr.mxu0 %v2668
        %3250 = vmatpush2.msra.mxu0 %v2667
        %3251 = vmatprep.subr.mxu0 %v2661
        %3252 = vmatpush2.msra.mxu0 %v2660
        %3253 = vmatprep.mubr.f32.mxu0 %v2533
        %3254 = vmatmul.mubr.f32.gmra.mxu0 %v2532
        %v3255 = vpop.f32.mrf.mxu0
        %v3256 = vadd.f32 %v2803, %v3255
        %v3257 = vpop.f32.mrf.mxu0
        %v3258 = vadd.f32 %v2803, %v3257
        %3259 = vmatprep.mubr.f32.mxu0 %v2536
        %3260 = vmatmul.mubr.f32.gmra.mxu0 %v2535
        %v3261 = vpop.f32.mrf.mxu0
        %v3262 = vadd.f32 %v2808, %v3261
        %v3263 = vpop.f32.mrf.mxu0
        %v3264 = vadd.f32 %v2808, %v3263
        %3265 = vmatprep.mubr.f32.mxu0 %v2539
        %3266 = vmatmul.mubr.f32.gmra.mxu0 %v2538
        %v3267 = vpop.f32.mrf.mxu0
        %v3268 = vadd.f32 %v2813, %v3267
        %v3269 = vpop.f32.mrf.mxu0
        %v3270 = vadd.f32 %v2813, %v3269
        %3271 = vmatprep.mubr.f32.mxu0 %v2542
        %3272 = vmatmul.mubr.f32.gmra.mxu0 %v2541
        %v3273 = vpop.f32.mrf.mxu0
        %v3274 = vadd.f32 %v2818, %v3273
        %v3275 = vpop.f32.mrf.mxu0
        %v3276 = vadd.f32 %v2818, %v3275
        %3277 = vdwg.mxu0
        %3278 = vmatprep.subr.mxu0 0.0
        %3279 = vmatpush1.msra.mxu0 0.0
        %3280 = vmatprep.subr.mxu0 0.0
        %3281 = vmatpush1.msra.mxu0 0.0
        %3282 = vmatprep.subr.mxu0 0.0
        %3283 = vmatpush1.msra.mxu0 0.0
        %3284 = vmatprep.subr.mxu0 0.0
        %3285 = vmatpush1.msra.mxu0 0.0
        %3286 = vmatprep.subr.mxu0 0.0
        %3287 = vmatpush1.msra.mxu0 0.0
        %3288 = vmatprep.subr.mxu0 0.0
        %3289 = vmatpush1.msra.mxu0 0.0
        %3290 = vmatprep.subr.mxu0 0.0
        %3291 = vmatpush1.msra.mxu0 0.0
        %3292 = vmatprep.subr.mxu0 0.0
        %3293 = vmatpush1.msra.mxu0 0.0
        %3294 = vmatprep.subr.mxu0 0.0
        %3295 = vmatpush1.msra.mxu0 0.0
        %3296 = vmatprep.subr.mxu0 0.0
        %3297 = vmatpush1.msra.mxu0 0.0
        %3298 = vmatprep.subr.mxu0 0.0
        %3299 = vmatpush1.msra.mxu0 0.0
        %3300 = vmatprep.subr.mxu0 0.0
        %3301 = vmatpush1.msra.mxu0 0.0
        %3302 = vmatprep.subr.mxu0 %v2794
        %3303 = vmatpush1.msra.mxu0 %v2793
        %3304 = vmatprep.subr.mxu0 %v2787
        %3305 = vmatpush1.msra.mxu0 %v2786
        %3306 = vmatprep.subr.mxu0 %v2780
        %3307 = vmatpush1.msra.mxu0 %v2779
        %3308 = vmatprep.subr.mxu0 %v2773
        %3309 = vmatpush1.msra.mxu0 %v2772
        %3310 = vmatprep.subr.mxu0 0.0
        %3311 = vmatpush2.msra.mxu0 0.0
        %3312 = vmatprep.subr.mxu0 0.0
        %3313 = vmatpush2.msra.mxu0 0.0
        %3314 = vmatprep.subr.mxu0 0.0
        %3315 = vmatpush2.msra.mxu0 0.0
        %3316 = vmatprep.subr.mxu0 0.0
        %3317 = vmatpush2.msra.mxu0 0.0
        %3318 = vmatprep.subr.mxu0 0.0
        %3319 = vmatpush2.msra.mxu0 0.0
        %3320 = vmatprep.subr.mxu0 0.0
        %3321 = vmatpush2.msra.mxu0 0.0
        %3322 = vmatprep.subr.mxu0 0.0
        %3323 = vmatpush2.msra.mxu0 0.0
        %3324 = vmatprep.subr.mxu0 0.0
        %3325 = vmatpush2.msra.mxu0 0.0
        %3326 = vmatprep.subr.mxu0 0.0
        %3327 = vmatpush2.msra.mxu0 0.0
        %3328 = vmatprep.subr.mxu0 0.0
        %3329 = vmatpush2.msra.mxu0 0.0
        %3330 = vmatprep.subr.mxu0 0.0
        %3331 = vmatpush2.msra.mxu0 0.0
        %3332 = vmatprep.subr.mxu0 0.0
        %3333 = vmatpush2.msra.mxu0 0.0
        %3334 = vmatprep.subr.mxu0 0.0
        %3335 = vmatpush2.msra.mxu0 0.0
        %3336 = vmatprep.subr.mxu0 0.0
        %3337 = vmatpush2.msra.mxu0 0.0
        %3338 = vmatprep.subr.mxu0 0.0
        %3339 = vmatpush2.msra.mxu0 0.0
        %3340 = vmatprep.subr.mxu0 0.0
        %3341 = vmatpush2.msra.mxu0 0.0
        %3342 = vmatprep.mubr.f32.mxu0 0.0
        %3343 = vmatmul.mubr.f32.gmra.mxu0 %v2822
        %v3344 = vpop.f32.mrf.mxu0
        %v3345 = vadd.f32 %v3256, %v3344
        %v3346 = vpop.f32.mrf.mxu0
        %v3347 = vadd.f32 %v3258, %v3346
        %3348 = vmatprep.mubr.f32.mxu0 0.0
        %3349 = vmatmul.mubr.f32.gmra.mxu0 %v2825
        %v3350 = vpop.f32.mrf.mxu0
        %v3351 = vadd.f32 %v3262, %v3350
        %v3352 = vpop.f32.mrf.mxu0
        %v3353 = vadd.f32 %v3264, %v3352
        %3354 = vmatprep.mubr.f32.mxu0 0.0
        %3355 = vmatmul.mubr.f32.gmra.mxu0 %v2828
        %v3356 = vpop.f32.mrf.mxu0
        %v3357 = vadd.f32 %v3268, %v3356
        %v3358 = vpop.f32.mrf.mxu0
        %v3359 = vadd.f32 %v3270, %v3358
        %3360 = vmatprep.mubr.f32.mxu0 0.0
        %3361 = vmatmul.mubr.f32.gmra.mxu0 %v2831
        %v3362 = vpop.f32.mrf.mxu0
        %v3363 = vadd.f32 %v3274, %v3362
        %v3364 = vpop.f32.mrf.mxu0
        %v3365 = vadd.f32 %v3276, %v3364
        %3366 = vdwg.mxu0
        %3367 = vmatprep.subr.mxu0 0.0
        %3368 = vmatpush1.msra.mxu0 %v2655
        %3369 = vmatprep.subr.mxu0 0.0
        %3370 = vmatpush1.msra.mxu0 %v2648
        %3371 = vmatprep.subr.mxu0 0.0
        %3372 = vmatpush1.msra.mxu0 %v2641
        %3373 = vmatprep.subr.mxu0 0.0
        %3374 = vmatpush1.msra.mxu0 %v2634
        %3375 = vmatprep.subr.mxu0 0.0
        %3376 = vmatpush1.msra.mxu0 %v2627
        %3377 = vmatprep.subr.mxu0 0.0
        %3378 = vmatpush1.msra.mxu0 %v2620
        %3379 = vmatprep.subr.mxu0 0.0
        %3380 = vmatpush1.msra.mxu0 %v2613
        %3381 = vmatprep.subr.mxu0 0.0
        %3382 = vmatpush1.msra.mxu0 %v2606
        %3383 = vmatprep.subr.mxu0 0.0
        %3384 = vmatpush1.msra.mxu0 %v2599
        %3385 = vmatprep.subr.mxu0 0.0
        %3386 = vmatpush1.msra.mxu0 %v2592
        %3387 = vmatprep.subr.mxu0 0.0
        %3388 = vmatpush1.msra.mxu0 %v2585
        %3389 = vmatprep.subr.mxu0 0.0
        %3390 = vmatpush1.msra.mxu0 %v2578
        %3391 = vmatprep.subr.mxu0 0.0
        %3392 = vmatpush1.msra.mxu0 %v2571
        %3393 = vmatprep.subr.mxu0 0.0
        %3394 = vmatpush1.msra.mxu0 %v2564
        %3395 = vmatprep.subr.mxu0 0.0
        %3396 = vmatpush1.msra.mxu0 %v2557
        %3397 = vmatprep.subr.mxu0 0.0
        %3398 = vmatpush1.msra.mxu0 %v2550
        %3399 = vmatprep.subr.mxu0 0.0
        %3400 = vmatpush2.msra.mxu0 %v2767
        %3401 = vmatprep.subr.mxu0 0.0
        %3402 = vmatpush2.msra.mxu0 %v2760
        %3403 = vmatprep.subr.mxu0 0.0
        %3404 = vmatpush2.msra.mxu0 %v2753
        %3405 = vmatprep.subr.mxu0 0.0
        %3406 = vmatpush2.msra.mxu0 %v2746
        %3407 = vmatprep.subr.mxu0 0.0
        %3408 = vmatpush2.msra.mxu0 %v2739
        %3409 = vmatprep.subr.mxu0 0.0
        %3410 = vmatpush2.msra.mxu0 %v2732
        %3411 = vmatprep.subr.mxu0 0.0
        %3412 = vmatpush2.msra.mxu0 %v2725
        %3413 = vmatprep.subr.mxu0 0.0
        %3414 = vmatpush2.msra.mxu0 %v2718
        %3415 = vmatprep.subr.mxu0 0.0
        %3416 = vmatpush2.msra.mxu0 %v2711
        %3417 = vmatprep.subr.mxu0 0.0
        %3418 = vmatpush2.msra.mxu0 %v2704
        %3419 = vmatprep.subr.mxu0 0.0
        %3420 = vmatpush2.msra.mxu0 %v2697
        %3421 = vmatprep.subr.mxu0 0.0
        %3422 = vmatpush2.msra.mxu0 %v2690
        %3423 = vmatprep.subr.mxu0 0.0
        %3424 = vmatpush2.msra.mxu0 %v2683
        %3425 = vmatprep.subr.mxu0 0.0
        %3426 = vmatpush2.msra.mxu0 %v2676
        %3427 = vmatprep.subr.mxu0 0.0
        %3428 = vmatpush2.msra.mxu0 %v2669
        %3429 = vmatprep.subr.mxu0 0.0
        %3430 = vmatpush2.msra.mxu0 %v2662
        %3431 = vmatprep.mubr.f32.mxu0 %v2533
        %3432 = vmatmul.mubr.f32.gmra.mxu0 %v2532
        %v3433 = vpop.f32.mrf.mxu0
        %v3434 = vadd.f32 %v2803, %v3433
        %v3435 = vpop.f32.mrf.mxu0
        %3436 = vmatprep.mubr.f32.mxu0 %v2536
        %3437 = vmatmul.mubr.f32.gmra.mxu0 %v2535
        %v3438 = vpop.f32.mrf.mxu0
        %v3439 = vadd.f32 %v2808, %v3438
        %v3440 = vpop.f32.mrf.mxu0
        %3441 = vmatprep.mubr.f32.mxu0 %v2539
        %3442 = vmatmul.mubr.f32.gmra.mxu0 %v2538
        %v3443 = vpop.f32.mrf.mxu0
        %v3444 = vadd.f32 %v2813, %v3443
        %v3445 = vpop.f32.mrf.mxu0
        %3446 = vmatprep.mubr.f32.mxu0 %v2542
        %3447 = vmatmul.mubr.f32.gmra.mxu0 %v2541
        %v3448 = vpop.f32.mrf.mxu0
        %v3449 = vadd.f32 %v2818, %v3448
        %v3450 = vpop.f32.mrf.mxu0
        %3451 = vdwg.mxu0
        %3452 = vmatprep.subr.mxu0 0.0
        %3453 = vmatpush1.msra.mxu0 0.0
        %3454 = vmatprep.subr.mxu0 0.0
        %3455 = vmatpush1.msra.mxu0 0.0
        %3456 = vmatprep.subr.mxu0 0.0
        %3457 = vmatpush1.msra.mxu0 0.0
        %3458 = vmatprep.subr.mxu0 0.0
        %3459 = vmatpush1.msra.mxu0 0.0
        %3460 = vmatprep.subr.mxu0 0.0
        %3461 = vmatpush1.msra.mxu0 0.0
        %3462 = vmatprep.subr.mxu0 0.0
        %3463 = vmatpush1.msra.mxu0 0.0
        %3464 = vmatprep.subr.mxu0 0.0
        %3465 = vmatpush1.msra.mxu0 0.0
        %3466 = vmatprep.subr.mxu0 0.0
        %3467 = vmatpush1.msra.mxu0 0.0
        %3468 = vmatprep.subr.mxu0 0.0
        %3469 = vmatpush1.msra.mxu0 0.0
        %3470 = vmatprep.subr.mxu0 0.0
        %3471 = vmatpush1.msra.mxu0 0.0
        %3472 = vmatprep.subr.mxu0 0.0
        %3473 = vmatpush1.msra.mxu0 0.0
        %3474 = vmatprep.subr.mxu0 0.0
        %3475 = vmatpush1.msra.mxu0 0.0
        %3476 = vmatprep.subr.mxu0 0.0
        %3477 = vmatpush1.msra.mxu0 %v2795
        %3478 = vmatprep.subr.mxu0 0.0
        %3479 = vmatpush1.msra.mxu0 %v2788
        %3480 = vmatprep.subr.mxu0 0.0
        %3481 = vmatpush1.msra.mxu0 %v2781
        %3482 = vmatprep.subr.mxu0 0.0
        %3483 = vmatpush1.msra.mxu0 %v2774
        %3484 = vmatprep.subr.mxu0 0.0
        %3485 = vmatpush2.msra.mxu0 0.0
        %3486 = vmatprep.subr.mxu0 0.0
        %3487 = vmatpush2.msra.mxu0 0.0
        %3488 = vmatprep.subr.mxu0 0.0
        %3489 = vmatpush2.msra.mxu0 0.0
        %3490 = vmatprep.subr.mxu0 0.0
        %3491 = vmatpush2.msra.mxu0 0.0
        %3492 = vmatprep.subr.mxu0 0.0
        %3493 = vmatpush2.msra.mxu0 0.0
        %3494 = vmatprep.subr.mxu0 0.0
        %3495 = vmatpush2.msra.mxu0 0.0
        %3496 = vmatprep.subr.mxu0 0.0
        %3497 = vmatpush2.msra.mxu0 0.0
        %3498 = vmatprep.subr.mxu0 0.0
        %3499 = vmatpush2.msra.mxu0 0.0
        %3500 = vmatprep.subr.mxu0 0.0
        %3501 = vmatpush2.msra.mxu0 0.0
        %3502 = vmatprep.subr.mxu0 0.0
        %3503 = vmatpush2.msra.mxu0 0.0
        %3504 = vmatprep.subr.mxu0 0.0
        %3505 = vmatpush2.msra.mxu0 0.0
        %3506 = vmatprep.subr.mxu0 0.0
        %3507 = vmatpush2.msra.mxu0 0.0
        %3508 = vmatprep.subr.mxu0 0.0
        %3509 = vmatpush2.msra.mxu0 0.0
        %3510 = vmatprep.subr.mxu0 0.0
        %3511 = vmatpush2.msra.mxu0 0.0
        %3512 = vmatprep.subr.mxu0 0.0
        %3513 = vmatpush2.msra.mxu0 0.0
        %3514 = vmatprep.subr.mxu0 0.0
        %3515 = vmatpush2.msra.mxu0 0.0
        %3516 = vmatprep.mubr.f32.mxu0 0.0
        %3517 = vmatmul.mubr.f32.gmra.mxu0 %v2822
        %v3518 = vpop.f32.mrf.mxu0
        %v3519 = vadd.f32 %v3434, %v3518
        %v3520 = vpop.f32.mrf.mxu0
        %3521 = vmatprep.mubr.f32.mxu0 0.0
        %3522 = vmatmul.mubr.f32.gmra.mxu0 %v2825
        %v3523 = vpop.f32.mrf.mxu0
        %v3524 = vadd.f32 %v3439, %v3523
        %v3525 = vpop.f32.mrf.mxu0
        %3526 = vmatprep.mubr.f32.mxu0 0.0
        %3527 = vmatmul.mubr.f32.gmra.mxu0 %v2828
        %v3528 = vpop.f32.mrf.mxu0
        %v3529 = vadd.f32 %v3444, %v3528
        %v3530 = vpop.f32.mrf.mxu0
        %3531 = vmatprep.mubr.f32.mxu0 0.0
        %3532 = vmatmul.mubr.f32.gmra.mxu0 %v2831
        %v3533 = vpop.f32.mrf.mxu0
        %v3534 = vadd.f32 %v3449, %v3533
        %v3535 = vpop.f32.mrf.mxu0
        %3536 = vdwg.mxu0
        %v3537 = vmax.f32 %v2989, 0.0
        %v3538 = vmax.f32 %v2991, 0.0
        %v3539 = vmax.f32 %v3167, 0.0
        %v3540 = vmax.f32 %v3169, 0.0
        %v3541 = vmax.f32 %v3345, 0.0
        %v3542 = vmax.f32 %v3347, 0.0
        %v3543 = vmax.f32 %v3519, 0.0
        %v3544 = vmax.f32 %v2995, 0.0
        %v3545 = vmax.f32 %v2997, 0.0
        %v3546 = vmax.f32 %v3173, 0.0
        %v3547 = vmax.f32 %v3175, 0.0
        %v3548 = vmax.f32 %v3351, 0.0
        %v3549 = vmax.f32 %v3353, 0.0
        %v3550 = vmax.f32 %v3524, 0.0
        %v3551 = vmax.f32 %v3001, 0.0
        %v3552 = vmax.f32 %v3003, 0.0
        %v3553 = vmax.f32 %v3179, 0.0
        %v3554 = vmax.f32 %v3181, 0.0
        %v3555 = vmax.f32 %v3357, 0.0
        %v3556 = vmax.f32 %v3359, 0.0
        %v3557 = vmax.f32 %v3529, 0.0
        %v3558 = vmax.f32 %v3007, 0.0
        %v3559 = vmax.f32 %v3009, 0.0
        %v3560 = vmax.f32 %v3185, 0.0
        %v3561 = vmax.f32 %v3187, 0.0
        %v3562 = vmax.f32 %v3363, 0.0
        %v3563 = vmax.f32 %v3365, 0.0
        %v3564 = vmax.f32 %v3534, 0.0
        %3565 = vst.msk [vmem:[#allocation3] sm:$0xff] %vm231, 0.0
        %3566 = vst.msk [vmem:[#allocation3 + $0x38] sm:$0xff] %vm231, 0.0
        %3567 = vst.msk [vmem:[#allocation3 + $0x70] sm:$0xff] %vm231, 0.0
        %3568 = vst.msk [vmem:[#allocation3 + $0xa8] sm:$0xff] %vm231, 0.0
        %3569 = vst.msk [vmem:[#allocation3 + $0x30] sm:$0xff] %vm236, 0.0
        %3570 = vst.msk [vmem:[#allocation3 + $0x68] sm:$0xff] %vm236, 0.0
        %3571 = vst.msk [vmem:[#allocation3 + $0xa0] sm:$0xff] %vm236, 0.0
        %3572 = vst.msk [vmem:[#allocation3 + $0xd8] sm:$0xff] %vm236, 0.0
        %3601 = vrot.lane.b32.xlu0 %v3537, 29
        %v3602 = vpop.permute.xlu0 %3601
        %3603 = vrot.lane.b32.xlu0 %v3538, 29
        %v3604 = vpop.permute.xlu0 %3603
        %3605 = vrot.lane.b32.xlu0 %v3539, 29
        %v3606 = vpop.permute.xlu0 %3605
        %3607 = vrot.lane.b32.xlu0 %v3540, 29
        %v3608 = vpop.permute.xlu0 %3607
        %3609 = vrot.lane.b32.xlu0 %v3541, 29
        %v3610 = vpop.permute.xlu0 %3609
        %3611 = vrot.lane.b32.xlu0 %v3542, 29
        %v3612 = vpop.permute.xlu0 %3611
        %3613 = vrot.lane.b32.xlu0 %v3543, 29
        %v3614 = vpop.permute.xlu0 %3613
        %3615 = vrot.lane.b32.xlu0 %v3544, 29
        %v3616 = vpop.permute.xlu0 %3615
        %3617 = vrot.lane.b32.xlu0 %v3545, 29
        %v3618 = vpop.permute.xlu0 %3617
        %3619 = vrot.lane.b32.xlu0 %v3546, 29
        %v3620 = vpop.permute.xlu0 %3619
        %3621 = vrot.lane.b32.xlu0 %v3547, 29
        %v3622 = vpop.permute.xlu0 %3621
        %3623 = vrot.lane.b32.xlu0 %v3548, 29
        %v3624 = vpop.permute.xlu0 %3623
        %3625 = vrot.lane.b32.xlu0 %v3549, 29
        %v3626 = vpop.permute.xlu0 %3625
        %3627 = vrot.lane.b32.xlu0 %v3550, 29
        %v3628 = vpop.permute.xlu0 %3627
        %3629 = vrot.lane.b32.xlu0 %v3551, 29
        %v3630 = vpop.permute.xlu0 %3629
        %3631 = vrot.lane.b32.xlu0 %v3552, 29
        %v3632 = vpop.permute.xlu0 %3631
        %3633 = vrot.lane.b32.xlu0 %v3553, 29
        %v3634 = vpop.permute.xlu0 %3633
        %3635 = vrot.lane.b32.xlu0 %v3554, 29
        %v3636 = vpop.permute.xlu0 %3635
        %3637 = vrot.lane.b32.xlu0 %v3555, 29
        %v3638 = vpop.permute.xlu0 %3637
        %3639 = vrot.lane.b32.xlu0 %v3556, 29
        %v3640 = vpop.permute.xlu0 %3639
        %3641 = vrot.lane.b32.xlu0 %v3557, 29
        %v3642 = vpop.permute.xlu0 %3641
        %3643 = vrot.lane.b32.xlu0 %v3558, 29
        %v3644 = vpop.permute.xlu0 %3643
        %3645 = vrot.lane.b32.xlu0 %v3559, 29
        %v3646 = vpop.permute.xlu0 %3645
        %3647 = vrot.lane.b32.xlu0 %v3560, 29
        %v3648 = vpop.permute.xlu0 %3647
        %3649 = vrot.lane.b32.xlu0 %v3561, 29
        %v3650 = vpop.permute.xlu0 %3649
        %3651 = vrot.lane.b32.xlu0 %v3562, 29
        %v3652 = vpop.permute.xlu0 %3651
        %3653 = vrot.lane.b32.xlu0 %v3563, 29
        %v3654 = vpop.permute.xlu0 %3653
        %3655 = vrot.lane.b32.xlu0 %v3564, 29
        %v3656 = vpop.permute.xlu0 %3655
        %v3657 = vsel %vm231, %v3602, %v3604
        %v3658 = vsel %vm231, %v3604, %v3606
        %v3659 = vsel %vm231, %v3606, %v3608
        %v3660 = vsel %vm231, %v3608, %v3610
        %v3661 = vsel %vm231, %v3610, %v3612
        %v3662 = vsel %vm231, %v3612, %v3614
        %v3663 = vsel %vm231, %v3616, %v3618
        %v3664 = vsel %vm231, %v3618, %v3620
        %v3665 = vsel %vm231, %v3620, %v3622
        %v3666 = vsel %vm231, %v3622, %v3624
        %v3667 = vsel %vm231, %v3624, %v3626
        %v3668 = vsel %vm231, %v3626, %v3628
        %v3669 = vsel %vm231, %v3630, %v3632
        %v3670 = vsel %vm231, %v3632, %v3634
        %v3671 = vsel %vm231, %v3634, %v3636
        %v3672 = vsel %vm231, %v3636, %v3638
        %v3673 = vsel %vm231, %v3638, %v3640
        %v3674 = vsel %vm231, %v3640, %v3642
        %v3675 = vsel %vm231, %v3644, %v3646
        %v3676 = vsel %vm231, %v3646, %v3648
        %v3677 = vsel %vm231, %v3648, %v3650
        %v3678 = vsel %vm231, %v3650, %v3652
        %v3679 = vsel %vm231, %v3652, %v3654
        %v3680 = vsel %vm231, %v3654, %v3656
        %3709 = vst.msk [vmem:[#allocation3] sm:$0xff] %vm405, %v3602
        %3710 = vst [vmem:[#allocation3 + $0x8] sm:$0xff] %v3657
        %3711 = vst [vmem:[#allocation3 + $0x10] sm:$0xff] %v3658
        %3712 = vst [vmem:[#allocation3 + $0x18] sm:$0xff] %v3659
        %3713 = vst [vmem:[#allocation3 + $0x20] sm:$0xff] %v3660
        %3714 = vst [vmem:[#allocation3 + $0x28] sm:$0xff] %v3661
        %3715 = vst.msk [vmem:[#allocation3 + $0x30] sm:$0xff] %vm412, %v3662
        %3716 = vst.msk [vmem:[#allocation3 + $0x38] sm:$0xff] %vm405, %v3616
        %3717 = vst [vmem:[#allocation3 + $0x40] sm:$0xff] %v3663
        %3718 = vst [vmem:[#allocation3 + $0x48] sm:$0xff] %v3664
        %3719 = vst [vmem:[#allocation3 + $0x50] sm:$0xff] %v3665
        %3720 = vst [vmem:[#allocation3 + $0x58] sm:$0xff] %v3666
        %3721 = vst [vmem:[#allocation3 + $0x60] sm:$0xff] %v3667
        %3722 = vst.msk [vmem:[#allocation3 + $0x68] sm:$0xff] %vm412, %v3668
        %3723 = vst.msk [vmem:[#allocation3 + $0x70] sm:$0xff] %vm405, %v3630
        %3724 = vst [vmem:[#allocation3 + $0x78] sm:$0xff] %v3669
        %3725 = vst [vmem:[#allocation3 + $0x80] sm:$0xff] %v3670
        %3726 = vst [vmem:[#allocation3 + $0x88] sm:$0xff] %v3671
        %3727 = vst [vmem:[#allocation3 + $0x90] sm:$0xff] %v3672
        %3728 = vst [vmem:[#allocation3 + $0x98] sm:$0xff] %v3673
        %3729 = vst.msk [vmem:[#allocation3 + $0xa0] sm:$0xff] %vm412, %v3674
        %3730 = vst.msk [vmem:[#allocation3 + $0xa8] sm:$0xff] %vm405, %v3644
        %3731 = vst [vmem:[#allocation3 + $0xb0] sm:$0xff] %v3675
        %3732 = vst [vmem:[#allocation3 + $0xb8] sm:$0xff] %v3676
        %3733 = vst [vmem:[#allocation3 + $0xc0] sm:$0xff] %v3677
        %3734 = vst [vmem:[#allocation3 + $0xc8] sm:$0xff] %v3678
        %3735 = vst [vmem:[#allocation3 + $0xd0] sm:$0xff] %v3679
        %3736 = vst.msk [vmem:[#allocation3 + $0xd8] sm:$0xff] %vm412, %v3680
        %v3737 = vld [vmem:[%s202] sm:$0xff]
        %v3738 = vld [vmem:[%s202 + $0x8] sm:$0xff]
        %v3739 = vld [vmem:[%s202 + $0x10] sm:$0xff]
        %v3740 = vld [vmem:[%s202 + $0x18] sm:$0xff]
        %v3741 = vld [vmem:[%s202 + $0x20] sm:$0xff]
        %v3742 = vld [vmem:[%s202 + $0x28] sm:$0xff]
        %v3743 = vld [vmem:[%s202 + $0x30] sm:$0xff]
        %v3744 = vld [vmem:[%s202 + $0x38] sm:$0xff]
        %v3745 = vld [vmem:[%s202 + $0x40] sm:$0xff]
        %v3746 = vld [vmem:[%s202 + $0x48] sm:$0xff]
        %v3747 = vld [vmem:[%s202 + $0x50] sm:$0xff]
        %v3748 = vld [vmem:[%s202 + $0x58] sm:$0xff]
        %v3749 = vld [vmem:[%s202 + $0x60] sm:$0xff]
        %v3750 = vld [vmem:[%s202 + $0x68] sm:$0xff]
        %v3751 = vld [vmem:[%s202 + $0x70] sm:$0xff]
        %v3752 = vld [vmem:[%s202 + $0x78] sm:$0xff]
        %v3753 = vld [vmem:[%s202 + $0x80] sm:$0xff]
        %v3754 = vld [vmem:[%s202 + $0x88] sm:$0xff]
        %v3755 = vld [vmem:[%s202 + $0x90] sm:$0xff]
        %v3756 = vld [vmem:[%s202 + $0x98] sm:$0xff]
        %v3757 = vld [vmem:[%s202 + $0xa0] sm:$0xff]
        %v3758 = vld [vmem:[%s202 + $0xa8] sm:$0xff]
        %v3759 = vld [vmem:[%s202 + $0xb0] sm:$0xff]
        %v3760 = vld [vmem:[%s202 + $0xb8] sm:$0xff]
        %v3761 = vld [vmem:[%s202 + $0xc0] sm:$0xff]
        %v3762 = vld [vmem:[%s202 + $0xc8] sm:$0xff]
        %v3763 = vld [vmem:[%s202 + $0xd0] sm:$0xff]
        %v3764 = vld [vmem:[%s202 + $0xd8] sm:$0xff]
        %v3765 = vld [vmem:[#allocation3] sm:$0xff]
        %v3766 = vld [vmem:[#allocation3 + $0x8] sm:$0xff]
        %v3767 = vld [vmem:[#allocation3 + $0x10] sm:$0xff]
        %v3768 = vld [vmem:[#allocation3 + $0x18] sm:$0xff]
        %v3769 = vld [vmem:[#allocation3 + $0x20] sm:$0xff]
        %v3770 = vld [vmem:[#allocation3 + $0x28] sm:$0xff]
        %v3771 = vld [vmem:[#allocation3 + $0x30] sm:$0xff]
        %v3772 = vld [vmem:[#allocation3 + $0x38] sm:$0xff]
        %v3773 = vld [vmem:[#allocation3 + $0x40] sm:$0xff]
        %v3774 = vld [vmem:[#allocation3 + $0x48] sm:$0xff]
        %v3775 = vld [vmem:[#allocation3 + $0x50] sm:$0xff]
        %v3776 = vld [vmem:[#allocation3 + $0x58] sm:$0xff]
        %v3777 = vld [vmem:[#allocation3 + $0x60] sm:$0xff]
        %v3778 = vld [vmem:[#allocation3 + $0x68] sm:$0xff]
        %v3779 = vld [vmem:[#allocation3 + $0x70] sm:$0xff]
        %v3780 = vld [vmem:[#allocation3 + $0x78] sm:$0xff]
        %v3781 = vld [vmem:[#allocation3 + $0x80] sm:$0xff]
        %v3782 = vld [vmem:[#allocation3 + $0x88] sm:$0xff]
        %v3783 = vld [vmem:[#allocation3 + $0x90] sm:$0xff]
        %v3784 = vld [vmem:[#allocation3 + $0x98] sm:$0xff]
        %v3785 = vld [vmem:[#allocation3 + $0xa0] sm:$0xff]
        %v3786 = vld [vmem:[#allocation3 + $0xa8] sm:$0xff]
        %v3787 = vld [vmem:[#allocation3 + $0xb0] sm:$0xff]
        %v3788 = vld [vmem:[#allocation3 + $0xb8] sm:$0xff]
        %v3789 = vld [vmem:[#allocation3 + $0xc0] sm:$0xff]
        %v3790 = vld [vmem:[#allocation3 + $0xc8] sm:$0xff]
        %v3791 = vld [vmem:[#allocation3 + $0xd0] sm:$0xff]
        %v3792 = vld [vmem:[#allocation3 + $0xd8] sm:$0xff]
        %v3793 = vld [vmem:[%s3] sm:$0x7f]
        %v3795 = vlaneseq
        %v3796 = vshrl.u32 %v3795, 7
        %v3797 = vsub.s32 0, %v3796
        %v3798 = vrot.slane %v3793, %v3797
        %v3799 = vlaneseq
        %v3800 = vshrl.u32 %v3799, 7
        %v3801 = vsub.s32 1, %v3800
        %v3802 = vrot.slane %v3793, %v3801
        %v3803 = vlaneseq
        %v3804 = vshrl.u32 %v3803, 7
        %v3805 = vsub.s32 2, %v3804
        %v3806 = vrot.slane %v3793, %v3805
        %v3807 = vlaneseq
        %v3808 = vshrl.u32 %v3807, 7
        %v3809 = vsub.s32 3, %v3808
        %v3810 = vrot.slane %v3793, %v3809
        %v3811 = vlaneseq
        %v3812 = vshrl.u32 %v3811, 7
        %v3813 = vsub.s32 4, %v3812
        %v3814 = vrot.slane %v3793, %v3813
        %v3815 = vlaneseq
        %v3816 = vshrl.u32 %v3815, 7
        %v3817 = vsub.s32 5, %v3816
        %v3818 = vrot.slane %v3793, %v3817
        %v3819 = vlaneseq
        %v3820 = vshrl.u32 %v3819, 7
        %v3821 = vsub.s32 6, %v3820
        %v3822 = vrot.slane %v3793, %v3821
        %v3830 = vmul.f32 %v3765, %v3798
        %v3831 = vmul.f32 %v3766, %v3802
        %v3832 = vmul.f32 %v3767, %v3806
        %v3833 = vmul.f32 %v3768, %v3810
        %v3834 = vmul.f32 %v3769, %v3814
        %v3835 = vmul.f32 %v3770, %v3818
        %v3836 = vmul.f32 %v3771, %v3822
        %v3837 = vmul.f32 %v3772, %v3798
        %v3838 = vmul.f32 %v3773, %v3802
        %v3839 = vmul.f32 %v3774, %v3806
        %v3840 = vmul.f32 %v3775, %v3810
        %v3841 = vmul.f32 %v3776, %v3814
        %v3842 = vmul.f32 %v3777, %v3818
        %v3843 = vmul.f32 %v3778, %v3822
        %v3844 = vmul.f32 %v3779, %v3798
        %v3845 = vmul.f32 %v3780, %v3802
        %v3846 = vmul.f32 %v3781, %v3806
        %v3847 = vmul.f32 %v3782, %v3810
        %v3848 = vmul.f32 %v3783, %v3814
        %v3849 = vmul.f32 %v3784, %v3818
        %v3850 = vmul.f32 %v3785, %v3822
        %v3851 = vmul.f32 %v3786, %v3798
        %v3852 = vmul.f32 %v3787, %v3802
        %v3853 = vmul.f32 %v3788, %v3806
        %v3854 = vmul.f32 %v3789, %v3810
        %v3855 = vmul.f32 %v3790, %v3814
        %v3856 = vmul.f32 %v3791, %v3818
        %v3857 = vmul.f32 %v3792, %v3822
        %3858 = vst [vmem:[#allocation4] sm:$0xff] %v3830
        %3859 = vst [vmem:[#allocation4 + $0x8] sm:$0xff] %v3831
        %3860 = vst [vmem:[#allocation4 + $0x10] sm:$0xff] %v3832
        %3861 = vst [vmem:[#allocation4 + $0x18] sm:$0xff] %v3833
        %3862 = vst [vmem:[#allocation4 + $0x20] sm:$0xff] %v3834
        %3863 = vst [vmem:[#allocation4 + $0x28] sm:$0xff] %v3835
        %3864 = vst.msk [vmem:[#allocation4 + $0x30] sm:$0xff] %vm534, %v3836
        %3865 = vst [vmem:[#allocation4 + $0x38] sm:$0xff] %v3837
        %3866 = vst [vmem:[#allocation4 + $0x40] sm:$0xff] %v3838
        %3867 = vst [vmem:[#allocation4 + $0x48] sm:$0xff] %v3839
        %3868 = vst [vmem:[#allocation4 + $0x50] sm:$0xff] %v3840
        %3869 = vst [vmem:[#allocation4 + $0x58] sm:$0xff] %v3841
        %3870 = vst [vmem:[#allocation4 + $0x60] sm:$0xff] %v3842
        %3871 = vst.msk [vmem:[#allocation4 + $0x68] sm:$0xff] %vm534, %v3843
        %3872 = vst [vmem:[#allocation4 + $0x70] sm:$0xff] %v3844
        %3873 = vst [vmem:[#allocation4 + $0x78] sm:$0xff] %v3845
        %3874 = vst [vmem:[#allocation4 + $0x80] sm:$0xff] %v3846
        %3875 = vst [vmem:[#allocation4 + $0x88] sm:$0xff] %v3847
        %3876 = vst [vmem:[#allocation4 + $0x90] sm:$0xff] %v3848
        %3877 = vst [vmem:[#allocation4 + $0x98] sm:$0xff] %v3849
        %3878 = vst.msk [vmem:[#allocation4 + $0xa0] sm:$0xff] %vm534, %v3850
        %3879 = vst [vmem:[#allocation4 + $0xa8] sm:$0xff] %v3851
        %3880 = vst [vmem:[#allocation4 + $0xb0] sm:$0xff] %v3852
        %3881 = vst [vmem:[#allocation4 + $0xb8] sm:$0xff] %v3853
        %3882 = vst [vmem:[#allocation4 + $0xc0] sm:$0xff] %v3854
        %3883 = vst [vmem:[#allocation4 + $0xc8] sm:$0xff] %v3855
        %3884 = vst [vmem:[#allocation4 + $0xd0] sm:$0xff] %v3856
        %3885 = vst.msk [vmem:[#allocation4 + $0xd8] sm:$0xff] %vm534, %v3857
        %v3886 = vld [vmem:[#allocation3] sm:$0xff]
        %v3887 = vld [vmem:[#allocation3 + $0x8] sm:$0xff]
        %v3888 = vld [vmem:[#allocation3 + $0x10] sm:$0xff]
        %v3889 = vld [vmem:[#allocation3 + $0x18] sm:$0xff]
        %v3890 = vld [vmem:[#allocation3 + $0x20] sm:$0xff]
        %v3891 = vld [vmem:[#allocation3 + $0x28] sm:$0xff]
        %v3892 = vld [vmem:[#allocation3 + $0x30] sm:$0xff]
        %v3893 = vld [vmem:[#allocation3 + $0x38] sm:$0xff]
        %v3894 = vld [vmem:[#allocation3 + $0x40] sm:$0xff]
        %v3895 = vld [vmem:[#allocation3 + $0x48] sm:$0xff]
        %v3896 = vld [vmem:[#allocation3 + $0x50] sm:$0xff]
        %v3897 = vld [vmem:[#allocation3 + $0x58] sm:$0xff]
        %v3898 = vld [vmem:[#allocation3 + $0x60] sm:$0xff]
        %v3899 = vld [vmem:[#allocation3 + $0x68] sm:$0xff]
        %v3900 = vld [vmem:[#allocation3 + $0x70] sm:$0xff]
        %v3901 = vld [vmem:[#allocation3 + $0x78] sm:$0xff]
        %v3902 = vld [vmem:[#allocation3 + $0x80] sm:$0xff]
        %v3903 = vld [vmem:[#allocation3 + $0x88] sm:$0xff]
        %v3904 = vld [vmem:[#allocation3 + $0x90] sm:$0xff]
        %v3905 = vld [vmem:[#allocation3 + $0x98] sm:$0xff]
        %v3906 = vld [vmem:[#allocation3 + $0xa0] sm:$0xff]
        %v3907 = vld [vmem:[#allocation3 + $0xa8] sm:$0xff]
        %v3908 = vld [vmem:[#allocation3 + $0xb0] sm:$0xff]
        %v3909 = vld [vmem:[#allocation3 + $0xb8] sm:$0xff]
        %v3910 = vld [vmem:[#allocation3 + $0xc0] sm:$0xff]
        %v3911 = vld [vmem:[#allocation3 + $0xc8] sm:$0xff]
        %v3912 = vld [vmem:[#allocation3 + $0xd0] sm:$0xff]
        %v3913 = vld [vmem:[#allocation3 + $0xd8] sm:$0xff]
        %3942 = vrot.lane.b32.xlu0 %v3886, 127
        %v3943 = vpop.permute.xlu0 %3942
        %3944 = vrot.lane.b32.xlu0 %v3887, 127
        %v3945 = vpop.permute.xlu0 %3944
        %3946 = vrot.lane.b32.xlu0 %v3888, 127
        %v3947 = vpop.permute.xlu0 %3946
        %3948 = vrot.lane.b32.xlu0 %v3889, 127
        %v3949 = vpop.permute.xlu0 %3948
        %3950 = vrot.lane.b32.xlu0 %v3890, 127
        %v3951 = vpop.permute.xlu0 %3950
        %3952 = vrot.lane.b32.xlu0 %v3891, 127
        %v3953 = vpop.permute.xlu0 %3952
        %3954 = vrot.lane.b32.xlu0 %v3892, 127
        %v3955 = vpop.permute.xlu0 %3954
        %3956 = vrot.lane.b32.xlu0 %v3893, 127
        %v3957 = vpop.permute.xlu0 %3956
        %3958 = vrot.lane.b32.xlu0 %v3894, 127
        %v3959 = vpop.permute.xlu0 %3958
        %3960 = vrot.lane.b32.xlu0 %v3895, 127
        %v3961 = vpop.permute.xlu0 %3960
        %3962 = vrot.lane.b32.xlu0 %v3896, 127
        %v3963 = vpop.permute.xlu0 %3962
        %3964 = vrot.lane.b32.xlu0 %v3897, 127
        %v3965 = vpop.permute.xlu0 %3964
        %3966 = vrot.lane.b32.xlu0 %v3898, 127
        %v3967 = vpop.permute.xlu0 %3966
        %3968 = vrot.lane.b32.xlu0 %v3899, 127
        %v3969 = vpop.permute.xlu0 %3968
        %3970 = vrot.lane.b32.xlu0 %v3900, 127
        %v3971 = vpop.permute.xlu0 %3970
        %3972 = vrot.lane.b32.xlu0 %v3901, 127
        %v3973 = vpop.permute.xlu0 %3972
        %3974 = vrot.lane.b32.xlu0 %v3902, 127
        %v3975 = vpop.permute.xlu0 %3974
        %3976 = vrot.lane.b32.xlu0 %v3903, 127
        %v3977 = vpop.permute.xlu0 %3976
        %3978 = vrot.lane.b32.xlu0 %v3904, 127
        %v3979 = vpop.permute.xlu0 %3978
        %3980 = vrot.lane.b32.xlu0 %v3905, 127
        %v3981 = vpop.permute.xlu0 %3980
        %3982 = vrot.lane.b32.xlu0 %v3906, 127
        %v3983 = vpop.permute.xlu0 %3982
        %3984 = vrot.lane.b32.xlu0 %v3907, 127
        %v3985 = vpop.permute.xlu0 %3984
        %3986 = vrot.lane.b32.xlu0 %v3908, 127
        %v3987 = vpop.permute.xlu0 %3986
        %3988 = vrot.lane.b32.xlu0 %v3909, 127
        %v3989 = vpop.permute.xlu0 %3988
        %3990 = vrot.lane.b32.xlu0 %v3910, 127
        %v3991 = vpop.permute.xlu0 %3990
        %3992 = vrot.lane.b32.xlu0 %v3911, 127
        %v3993 = vpop.permute.xlu0 %3992
        %3994 = vrot.lane.b32.xlu0 %v3912, 127
        %v3995 = vpop.permute.xlu0 %3994
        %3996 = vrot.lane.b32.xlu0 %v3913, 127
        %v3997 = vpop.permute.xlu0 %3996
        %v3998 = vsel %vm669, %v3943, %v3945
        %v3999 = vsel %vm669, %v3945, %v3947
        %v4000 = vsel %vm669, %v3947, %v3949
        %v4001 = vsel %vm669, %v3949, %v3951
        %v4002 = vsel %vm669, %v3951, %v3953
        %v4003 = vsel %vm669, %v3953, %v3955
        %v4004 = vsel %vm669, %v3957, %v3959
        %v4005 = vsel %vm669, %v3959, %v3961
        %v4006 = vsel %vm669, %v3961, %v3963
        %v4007 = vsel %vm669, %v3963, %v3965
        %v4008 = vsel %vm669, %v3965, %v3967
        %v4009 = vsel %vm669, %v3967, %v3969
        %v4010 = vsel %vm669, %v3971, %v3973
        %v4011 = vsel %vm669, %v3973, %v3975
        %v4012 = vsel %vm669, %v3975, %v3977
        %v4013 = vsel %vm669, %v3977, %v3979
        %v4014 = vsel %vm669, %v3979, %v3981
        %v4015 = vsel %vm669, %v3981, %v3983
        %v4016 = vsel %vm669, %v3985, %v3987
        %v4017 = vsel %vm669, %v3987, %v3989
        %v4018 = vsel %vm669, %v3989, %v3991
        %v4019 = vsel %vm669, %v3991, %v3993
        %v4020 = vsel %vm669, %v3993, %v3995
        %v4021 = vsel %vm669, %v3995, %v3997
        %4050 = vst [vmem:[#allocation4 + $0xe0] sm:$0xff] %v3998
        %4051 = vst [vmem:[#allocation4 + $0xe8] sm:$0xff] %v3999
        %4052 = vst [vmem:[#allocation4 + $0xf0] sm:$0xff] %v4000
        %4053 = vst [vmem:[#allocation4 + $0xf8] sm:$0xff] %v4001
        %4054 = vst [vmem:[#allocation4 + $0x100] sm:$0xff] %v4002
        %4055 = vst [vmem:[#allocation4 + $0x108] sm:$0xff] %v4003
        %4056 = vst.msk [vmem:[#allocation4 + $0x110] sm:$0xff] %vm534, %v3955
        %4057 = vst [vmem:[#allocation4 + $0x118] sm:$0xff] %v4004
        %4058 = vst [vmem:[#allocation4 + $0x120] sm:$0xff] %v4005
        %4059 = vst [vmem:[#allocation4 + $0x128] sm:$0xff] %v4006
        %4060 = vst [vmem:[#allocation4 + $0x130] sm:$0xff] %v4007
        %4061 = vst [vmem:[#allocation4 + $0x138] sm:$0xff] %v4008
        %4062 = vst [vmem:[#allocation4 + $0x140] sm:$0xff] %v4009
        %4063 = vst.msk [vmem:[#allocation4 + $0x148] sm:$0xff] %vm534, %v3969
        %4064 = vst [vmem:[#allocation4 + $0x150] sm:$0xff] %v4010
        %4065 = vst [vmem:[#allocation4 + $0x158] sm:$0xff] %v4011
        %4066 = vst [vmem:[#allocation4 + $0x160] sm:$0xff] %v4012
        %4067 = vst [vmem:[#allocation4 + $0x168] sm:$0xff] %v4013
        %4068 = vst [vmem:[#allocation4 + $0x170] sm:$0xff] %v4014
        %4069 = vst [vmem:[#allocation4 + $0x178] sm:$0xff] %v4015
        %4070 = vst.msk [vmem:[#allocation4 + $0x180] sm:$0xff] %vm534, %v3983
        %4071 = vst [vmem:[#allocation4 + $0x188] sm:$0xff] %v4016
        %4072 = vst [vmem:[#allocation4 + $0x190] sm:$0xff] %v4017
        %4073 = vst [vmem:[#allocation4 + $0x198] sm:$0xff] %v4018
        %4074 = vst [vmem:[#allocation4 + $0x1a0] sm:$0xff] %v4019
        %4075 = vst [vmem:[#allocation4 + $0x1a8] sm:$0xff] %v4020
        %4076 = vst [vmem:[#allocation4 + $0x1b0] sm:$0xff] %v4021
        %4077 = vst.msk [vmem:[#allocation4 + $0x1b8] sm:$0xff] %vm534, %v3997
        %v4078 = vld [vmem:[#allocation3] sm:$0xff]
        %v4079 = vld [vmem:[#allocation3 + $0x8] sm:$0xff]
        %v4080 = vld [vmem:[#allocation3 + $0x10] sm:$0xff]
        %v4081 = vld [vmem:[#allocation3 + $0x18] sm:$0xff]
        %v4082 = vld [vmem:[#allocation3 + $0x20] sm:$0xff]
        %v4083 = vld [vmem:[#allocation3 + $0x28] sm:$0xff]
        %v4084 = vld [vmem:[#allocation3 + $0x30] sm:$0xff]
        %v4085 = vld [vmem:[#allocation3 + $0x38] sm:$0xff]
        %v4086 = vld [vmem:[#allocation3 + $0x40] sm:$0xff]
        %v4087 = vld [vmem:[#allocation3 + $0x48] sm:$0xff]
        %v4088 = vld [vmem:[#allocation3 + $0x50] sm:$0xff]
        %v4089 = vld [vmem:[#allocation3 + $0x58] sm:$0xff]
        %v4090 = vld [vmem:[#allocation3 + $0x60] sm:$0xff]
        %v4091 = vld [vmem:[#allocation3 + $0x68] sm:$0xff]
        %v4092 = vld [vmem:[#allocation3 + $0x70] sm:$0xff]
        %v4093 = vld [vmem:[#allocation3 + $0x78] sm:$0xff]
        %v4094 = vld [vmem:[#allocation3 + $0x80] sm:$0xff]
        %v4095 = vld [vmem:[#allocation3 + $0x88] sm:$0xff]
        %v4096 = vld [vmem:[#allocation3 + $0x90] sm:$0xff]
        %v4097 = vld [vmem:[#allocation3 + $0x98] sm:$0xff]
        %v4098 = vld [vmem:[#allocation3 + $0xa0] sm:$0xff]
        %v4099 = vld [vmem:[#allocation3 + $0xa8] sm:$0xff]
        %v4100 = vld [vmem:[#allocation3 + $0xb0] sm:$0xff]
        %v4101 = vld [vmem:[#allocation3 + $0xb8] sm:$0xff]
        %v4102 = vld [vmem:[#allocation3 + $0xc0] sm:$0xff]
        %v4103 = vld [vmem:[#allocation3 + $0xc8] sm:$0xff]
        %v4104 = vld [vmem:[#allocation3 + $0xd0] sm:$0xff]
        %v4105 = vld [vmem:[#allocation3 + $0xd8] sm:$0xff]
        %v4106 = vld [vmem:[%s778] sm:$0x7f]
        %v4108 = vlaneseq
        %v4109 = vshrl.u32 %v4108, 7
        %v4110 = vsub.s32 0, %v4109
        %v4111 = vrot.slane %v4106, %v4110
        %v4112 = vlaneseq
        %v4113 = vshrl.u32 %v4112, 7
        %v4114 = vsub.s32 1, %v4113
        %v4115 = vrot.slane %v4106, %v4114
        %v4116 = vlaneseq
        %v4117 = vshrl.u32 %v4116, 7
        %v4118 = vsub.s32 2, %v4117
        %v4119 = vrot.slane %v4106, %v4118
        %v4120 = vlaneseq
        %v4121 = vshrl.u32 %v4120, 7
        %v4122 = vsub.s32 3, %v4121
        %v4123 = vrot.slane %v4106, %v4122
        %v4124 = vlaneseq
        %v4125 = vshrl.u32 %v4124, 7
        %v4126 = vsub.s32 4, %v4125
        %v4127 = vrot.slane %v4106, %v4126
        %v4128 = vlaneseq
        %v4129 = vshrl.u32 %v4128, 7
        %v4130 = vsub.s32 5, %v4129
        %v4131 = vrot.slane %v4106, %v4130
        %v4132 = vlaneseq
        %v4133 = vshrl.u32 %v4132, 7
        %v4134 = vsub.s32 6, %v4133
        %v4135 = vrot.slane %v4106, %v4134
        %4136 = vrot.lane.b32.xlu0 %v4111, 2
        %v4137 = vpop.permute.xlu0 %4136
        %4138 = vrot.lane.b32.xlu0 %v4115, 2
        %v4139 = vpop.permute.xlu0 %4138
        %4140 = vrot.lane.b32.xlu0 %v4119, 2
        %v4141 = vpop.permute.xlu0 %4140
        %4142 = vrot.lane.b32.xlu0 %v4123, 2
        %v4143 = vpop.permute.xlu0 %4142
        %4144 = vrot.lane.b32.xlu0 %v4127, 2
        %v4145 = vpop.permute.xlu0 %4144
        %4146 = vrot.lane.b32.xlu0 %v4131, 2
        %v4147 = vpop.permute.xlu0 %4146
        %4148 = vrot.lane.b32.xlu0 %v4135, 2
        %v4149 = vpop.permute.xlu0 %4148
        %v4150 = vsel %vm823, %v4137, %v4139
        %v4151 = vsel %vm823, %v4139, %v4141
        %v4152 = vsel %vm823, %v4141, %v4143
        %v4153 = vsel %vm823, %v4143, %v4145
        %v4154 = vsel %vm823, %v4145, %v4147
        %v4155 = vsel %vm823, %v4147, %v4149
        %v4163 = vmul.f32 %v4078, %v4137
        %v4164 = vmul.f32 %v4079, %v4150
        %v4165 = vmul.f32 %v4080, %v4151
        %v4166 = vmul.f32 %v4081, %v4152
        %v4167 = vmul.f32 %v4082, %v4153
        %v4168 = vmul.f32 %v4083, %v4154
        %v4169 = vmul.f32 %v4084, %v4155
        %v4170 = vmul.f32 %v4085, %v4137
        %v4171 = vmul.f32 %v4086, %v4150
        %v4172 = vmul.f32 %v4087, %v4151
        %v4173 = vmul.f32 %v4088, %v4152
        %v4174 = vmul.f32 %v4089, %v4153
        %v4175 = vmul.f32 %v4090, %v4154
        %v4176 = vmul.f32 %v4091, %v4155
        %v4177 = vmul.f32 %v4092, %v4137
        %v4178 = vmul.f32 %v4093, %v4150
        %v4179 = vmul.f32 %v4094, %v4151
        %v4180 = vmul.f32 %v4095, %v4152
        %v4181 = vmul.f32 %v4096, %v4153
        %v4182 = vmul.f32 %v4097, %v4154
        %v4183 = vmul.f32 %v4098, %v4155
        %v4184 = vmul.f32 %v4099, %v4137
        %v4185 = vmul.f32 %v4100, %v4150
        %v4186 = vmul.f32 %v4101, %v4151
        %v4187 = vmul.f32 %v4102, %v4152
        %v4188 = vmul.f32 %v4103, %v4153
        %v4189 = vmul.f32 %v4104, %v4154
        %v4190 = vmul.f32 %v4105, %v4155
        %4219 = vrot.lane.b32.xlu0 %v4163, 126
        %v4220 = vpop.permute.xlu0 %4219
        %4221 = vrot.lane.b32.xlu0 %v4164, 126
        %v4222 = vpop.permute.xlu0 %4221
        %4223 = vrot.lane.b32.xlu0 %v4165, 126
        %v4224 = vpop.permute.xlu0 %4223
        %4225 = vrot.lane.b32.xlu0 %v4166, 126
        %v4226 = vpop.permute.xlu0 %4225
        %4227 = vrot.lane.b32.xlu0 %v4167, 126
        %v4228 = vpop.permute.xlu0 %4227
        %4229 = vrot.lane.b32.xlu0 %v4168, 126
        %v4230 = vpop.permute.xlu0 %4229
        %4231 = vrot.lane.b32.xlu0 %v4169, 126
        %v4232 = vpop.permute.xlu0 %4231
        %4233 = vrot.lane.b32.xlu0 %v4170, 126
        %v4234 = vpop.permute.xlu0 %4233
        %4235 = vrot.lane.b32.xlu0 %v4171, 126
        %v4236 = vpop.permute.xlu0 %4235
        %4237 = vrot.lane.b32.xlu0 %v4172, 126
        %v4238 = vpop.permute.xlu0 %4237
        %4239 = vrot.lane.b32.xlu0 %v4173, 126
        %v4240 = vpop.permute.xlu0 %4239
        %4241 = vrot.lane.b32.xlu0 %v4174, 126
        %v4242 = vpop.permute.xlu0 %4241
        %4243 = vrot.lane.b32.xlu0 %v4175, 126
        %v4244 = vpop.permute.xlu0 %4243
        %4245 = vrot.lane.b32.xlu0 %v4176, 126
        %v4246 = vpop.permute.xlu0 %4245
        %4247 = vrot.lane.b32.xlu0 %v4177, 126
        %v4248 = vpop.permute.xlu0 %4247
        %4249 = vrot.lane.b32.xlu0 %v4178, 126
        %v4250 = vpop.permute.xlu0 %4249
        %4251 = vrot.lane.b32.xlu0 %v4179, 126
        %v4252 = vpop.permute.xlu0 %4251
        %4253 = vrot.lane.b32.xlu0 %v4180, 126
        %v4254 = vpop.permute.xlu0 %4253
        %4255 = vrot.lane.b32.xlu0 %v4181, 126
        %v4256 = vpop.permute.xlu0 %4255
        %4257 = vrot.lane.b32.xlu0 %v4182, 126
        %v4258 = vpop.permute.xlu0 %4257
        %4259 = vrot.lane.b32.xlu0 %v4183, 126
        %v4260 = vpop.permute.xlu0 %4259
        %4261 = vrot.lane.b32.xlu0 %v4184, 126
        %v4262 = vpop.permute.xlu0 %4261
        %4263 = vrot.lane.b32.xlu0 %v4185, 126
        %v4264 = vpop.permute.xlu0 %4263
        %4265 = vrot.lane.b32.xlu0 %v4186, 126
        %v4266 = vpop.permute.xlu0 %4265
        %4267 = vrot.lane.b32.xlu0 %v4187, 126
        %v4268 = vpop.permute.xlu0 %4267
        %4269 = vrot.lane.b32.xlu0 %v4188, 126
        %v4270 = vpop.permute.xlu0 %4269
        %4271 = vrot.lane.b32.xlu0 %v4189, 126
        %v4272 = vpop.permute.xlu0 %4271
        %4273 = vrot.lane.b32.xlu0 %v4190, 126
        %v4274 = vpop.permute.xlu0 %4273
        %v4275 = vsel %vm949, %v4220, %v4222
        %v4276 = vsel %vm949, %v4222, %v4224
        %v4277 = vsel %vm949, %v4224, %v4226
        %v4278 = vsel %vm949, %v4226, %v4228
        %v4279 = vsel %vm949, %v4228, %v4230
        %v4280 = vsel %vm949, %v4230, %v4232
        %v4281 = vsel %vm949, %v4234, %v4236
        %v4282 = vsel %vm949, %v4236, %v4238
        %v4283 = vsel %vm949, %v4238, %v4240
        %v4284 = vsel %vm949, %v4240, %v4242
        %v4285 = vsel %vm949, %v4242, %v4244
        %v4286 = vsel %vm949, %v4244, %v4246
        %v4287 = vsel %vm949, %v4248, %v4250
        %v4288 = vsel %vm949, %v4250, %v4252
        %v4289 = vsel %vm949, %v4252, %v4254
        %v4290 = vsel %vm949, %v4254, %v4256
        %v4291 = vsel %vm949, %v4256, %v4258
        %v4292 = vsel %vm949, %v4258, %v4260
        %v4293 = vsel %vm949, %v4262, %v4264
        %v4294 = vsel %vm949, %v4264, %v4266
        %v4295 = vsel %vm949, %v4266, %v4268
        %v4296 = vsel %vm949, %v4268, %v4270
        %v4297 = vsel %vm949, %v4270, %v4272
        %v4298 = vsel %vm949, %v4272, %v4274
        %4327 = vst [vmem:[#allocation4 + $0x1c0] sm:$0xff] %v4275
        %4328 = vst [vmem:[#allocation4 + $0x1c8] sm:$0xff] %v4276
        %4329 = vst [vmem:[#allocation4 + $0x1d0] sm:$0xff] %v4277
        %4330 = vst [vmem:[#allocation4 + $0x1d8] sm:$0xff] %v4278
        %4331 = vst [vmem:[#allocation4 + $0x1e0] sm:$0xff] %v4279
        %4332 = vst [vmem:[#allocation4 + $0x1e8] sm:$0xff] %v4280
        %4333 = vst.msk [vmem:[#allocation4 + $0x1f0] sm:$0xff] %vm534, %v4232
        %4334 = vst [vmem:[#allocation4 + $0x1f8] sm:$0xff] %v4281
        %4335 = vst [vmem:[#allocation4 + $0x200] sm:$0xff] %v4282
        %4336 = vst [vmem:[#allocation4 + $0x208] sm:$0xff] %v4283
        %4337 = vst [vmem:[#allocation4 + $0x210] sm:$0xff] %v4284
        %4338 = vst [vmem:[#allocation4 + $0x218] sm:$0xff] %v4285
        %4339 = vst [vmem:[#allocation4 + $0x220] sm:$0xff] %v4286
        %4340 = vst.msk [vmem:[#allocation4 + $0x228] sm:$0xff] %vm534, %v4246
        %4341 = vst [vmem:[#allocation4 + $0x230] sm:$0xff] %v4287
        %4342 = vst [vmem:[#allocation4 + $0x238] sm:$0xff] %v4288
        %4343 = vst [vmem:[#allocation4 + $0x240] sm:$0xff] %v4289
        %4344 = vst [vmem:[#allocation4 + $0x248] sm:$0xff] %v4290
        %4345 = vst [vmem:[#allocation4 + $0x250] sm:$0xff] %v4291
        %4346 = vst [vmem:[#allocation4 + $0x258] sm:$0xff] %v4292
        %4347 = vst.msk [vmem:[#allocation4 + $0x260] sm:$0xff] %vm534, %v4260
        %4348 = vst [vmem:[#allocation4 + $0x268] sm:$0xff] %v4293
        %4349 = vst [vmem:[#allocation4 + $0x270] sm:$0xff] %v4294
        %4350 = vst [vmem:[#allocation4 + $0x278] sm:$0xff] %v4295
        %4351 = vst [vmem:[#allocation4 + $0x280] sm:$0xff] %v4296
        %4352 = vst [vmem:[#allocation4 + $0x288] sm:$0xff] %v4297
        %4353 = vst [vmem:[#allocation4 + $0x290] sm:$0xff] %v4298
        %4354 = vst.msk [vmem:[#allocation4 + $0x298] sm:$0xff] %vm534, %v4274
        %v4355 = vld [vmem:[#allocation3] sm:$0xff]
        %v4356 = vld [vmem:[#allocation3 + $0x8] sm:$0xff]
        %v4357 = vld [vmem:[#allocation3 + $0x10] sm:$0xff]
        %v4358 = vld [vmem:[#allocation3 + $0x18] sm:$0xff]
        %v4359 = vld [vmem:[#allocation3 + $0x20] sm:$0xff]
        %v4360 = vld [vmem:[#allocation3 + $0x28] sm:$0xff]
        %v4361 = vld [vmem:[#allocation3 + $0x30] sm:$0xff]
        %v4362 = vld [vmem:[#allocation3 + $0x38] sm:$0xff]
        %v4363 = vld [vmem:[#allocation3 + $0x40] sm:$0xff]
        %v4364 = vld [vmem:[#allocation3 + $0x48] sm:$0xff]
        %v4365 = vld [vmem:[#allocation3 + $0x50] sm:$0xff]
        %v4366 = vld [vmem:[#allocation3 + $0x58] sm:$0xff]
        %v4367 = vld [vmem:[#allocation3 + $0x60] sm:$0xff]
        %v4368 = vld [vmem:[#allocation3 + $0x68] sm:$0xff]
        %v4369 = vld [vmem:[#allocation3 + $0x70] sm:$0xff]
        %v4370 = vld [vmem:[#allocation3 + $0x78] sm:$0xff]
        %v4371 = vld [vmem:[#allocation3 + $0x80] sm:$0xff]
        %v4372 = vld [vmem:[#allocation3 + $0x88] sm:$0xff]
        %v4373 = vld [vmem:[#allocation3 + $0x90] sm:$0xff]
        %v4374 = vld [vmem:[#allocation3 + $0x98] sm:$0xff]
        %v4375 = vld [vmem:[#allocation3 + $0xa0] sm:$0xff]
        %v4376 = vld [vmem:[#allocation3 + $0xa8] sm:$0xff]
        %v4377 = vld [vmem:[#allocation3 + $0xb0] sm:$0xff]
        %v4378 = vld [vmem:[#allocation3 + $0xb8] sm:$0xff]
        %v4379 = vld [vmem:[#allocation3 + $0xc0] sm:$0xff]
        %v4380 = vld [vmem:[#allocation3 + $0xc8] sm:$0xff]
        %v4381 = vld [vmem:[#allocation3 + $0xd0] sm:$0xff]
        %v4382 = vld [vmem:[#allocation3 + $0xd8] sm:$0xff]
        %v4383 = vld [vmem:[%s3] sm:$0x7f]
        %v4385 = vlaneseq
        %v4386 = vshrl.u32 %v4385, 7
        %v4387 = vsub.s32 0, %v4386
        %v4388 = vrot.slane %v4383, %v4387
        %v4389 = vlaneseq
        %v4390 = vshrl.u32 %v4389, 7
        %v4391 = vsub.s32 1, %v4390
        %v4392 = vrot.slane %v4383, %v4391
        %v4393 = vlaneseq
        %v4394 = vshrl.u32 %v4393, 7
        %v4395 = vsub.s32 2, %v4394
        %v4396 = vrot.slane %v4383, %v4395
        %v4397 = vlaneseq
        %v4398 = vshrl.u32 %v4397, 7
        %v4399 = vsub.s32 3, %v4398
        %v4400 = vrot.slane %v4383, %v4399
        %v4401 = vlaneseq
        %v4402 = vshrl.u32 %v4401, 7
        %v4403 = vsub.s32 4, %v4402
        %v4404 = vrot.slane %v4383, %v4403
        %v4405 = vlaneseq
        %v4406 = vshrl.u32 %v4405, 7
        %v4407 = vsub.s32 5, %v4406
        %v4408 = vrot.slane %v4383, %v4407
        %v4409 = vlaneseq
        %v4410 = vshrl.u32 %v4409, 7
        %v4411 = vsub.s32 6, %v4410
        %v4412 = vrot.slane %v4383, %v4411
        %4413 = vrot.lane.b32.xlu0 %v4388, 28
        %v4414 = vpop.permute.xlu0 %4413
        %4415 = vrot.lane.b32.xlu0 %v4392, 28
        %v4416 = vpop.permute.xlu0 %4415
        %4417 = vrot.lane.b32.xlu0 %v4396, 28
        %v4418 = vpop.permute.xlu0 %4417
        %4419 = vrot.lane.b32.xlu0 %v4400, 28
        %v4420 = vpop.permute.xlu0 %4419
        %4421 = vrot.lane.b32.xlu0 %v4404, 28
        %v4422 = vpop.permute.xlu0 %4421
        %4423 = vrot.lane.b32.xlu0 %v4408, 28
        %v4424 = vpop.permute.xlu0 %4423
        %4425 = vrot.lane.b32.xlu0 %v4412, 28
        %v4426 = vpop.permute.xlu0 %4425
        %v4427 = vsel %vm1102, %v4414, %v4416
        %v4428 = vsel %vm1102, %v4416, %v4418
        %v4429 = vsel %vm1102, %v4418, %v4420
        %v4430 = vsel %vm1102, %v4420, %v4422
        %v4431 = vsel %vm1102, %v4422, %v4424
        %v4432 = vsel %vm1102, %v4424, %v4426
        %v4440 = vmul.f32 %v4355, %v4414
        %v4441 = vmul.f32 %v4356, %v4427
        %v4442 = vmul.f32 %v4357, %v4428
        %v4443 = vmul.f32 %v4358, %v4429
        %v4444 = vmul.f32 %v4359, %v4430
        %v4445 = vmul.f32 %v4360, %v4431
        %v4446 = vmul.f32 %v4361, %v4432
        %v4447 = vmul.f32 %v4362, %v4414
        %v4448 = vmul.f32 %v4363, %v4427
        %v4449 = vmul.f32 %v4364, %v4428
        %v4450 = vmul.f32 %v4365, %v4429
        %v4451 = vmul.f32 %v4366, %v4430
        %v4452 = vmul.f32 %v4367, %v4431
        %v4453 = vmul.f32 %v4368, %v4432
        %v4454 = vmul.f32 %v4369, %v4414
        %v4455 = vmul.f32 %v4370, %v4427
        %v4456 = vmul.f32 %v4371, %v4428
        %v4457 = vmul.f32 %v4372, %v4429
        %v4458 = vmul.f32 %v4373, %v4430
        %v4459 = vmul.f32 %v4374, %v4431
        %v4460 = vmul.f32 %v4375, %v4432
        %v4461 = vmul.f32 %v4376, %v4414
        %v4462 = vmul.f32 %v4377, %v4427
        %v4463 = vmul.f32 %v4378, %v4428
        %v4464 = vmul.f32 %v4379, %v4429
        %v4465 = vmul.f32 %v4380, %v4430
        %v4466 = vmul.f32 %v4381, %v4431
        %v4467 = vmul.f32 %v4382, %v4432
        %4496 = vrot.lane.b32.xlu0 %v4440, 100
        %v4497 = vpop.permute.xlu0 %4496
        %4498 = vrot.lane.b32.xlu0 %v4441, 100
        %v4499 = vpop.permute.xlu0 %4498
        %4500 = vrot.lane.b32.xlu0 %v4442, 100
        %v4501 = vpop.permute.xlu0 %4500
        %4502 = vrot.lane.b32.xlu0 %v4443, 100
        %v4503 = vpop.permute.xlu0 %4502
        %4504 = vrot.lane.b32.xlu0 %v4444, 100
        %v4505 = vpop.permute.xlu0 %4504
        %4506 = vrot.lane.b32.xlu0 %v4445, 100
        %v4507 = vpop.permute.xlu0 %4506
        %4508 = vrot.lane.b32.xlu0 %v4446, 100
        %v4509 = vpop.permute.xlu0 %4508
        %4510 = vrot.lane.b32.xlu0 %v4447, 100
        %v4511 = vpop.permute.xlu0 %4510
        %4512 = vrot.lane.b32.xlu0 %v4448, 100
        %v4513 = vpop.permute.xlu0 %4512
        %4514 = vrot.lane.b32.xlu0 %v4449, 100
        %v4515 = vpop.permute.xlu0 %4514
        %4516 = vrot.lane.b32.xlu0 %v4450, 100
        %v4517 = vpop.permute.xlu0 %4516
        %4518 = vrot.lane.b32.xlu0 %v4451, 100
        %v4519 = vpop.permute.xlu0 %4518
        %4520 = vrot.lane.b32.xlu0 %v4452, 100
        %v4521 = vpop.permute.xlu0 %4520
        %4522 = vrot.lane.b32.xlu0 %v4453, 100
        %v4523 = vpop.permute.xlu0 %4522
        %4524 = vrot.lane.b32.xlu0 %v4454, 100
        %v4525 = vpop.permute.xlu0 %4524
        %4526 = vrot.lane.b32.xlu0 %v4455, 100
        %v4527 = vpop.permute.xlu0 %4526
        %4528 = vrot.lane.b32.xlu0 %v4456, 100
        %v4529 = vpop.permute.xlu0 %4528
        %4530 = vrot.lane.b32.xlu0 %v4457, 100
        %v4531 = vpop.permute.xlu0 %4530
        %4532 = vrot.lane.b32.xlu0 %v4458, 100
        %v4533 = vpop.permute.xlu0 %4532
        %4534 = vrot.lane.b32.xlu0 %v4459, 100
        %v4535 = vpop.permute.xlu0 %4534
        %4536 = vrot.lane.b32.xlu0 %v4460, 100
        %v4537 = vpop.permute.xlu0 %4536
        %4538 = vrot.lane.b32.xlu0 %v4461, 100
        %v4539 = vpop.permute.xlu0 %4538
        %4540 = vrot.lane.b32.xlu0 %v4462, 100
        %v4541 = vpop.permute.xlu0 %4540
        %4542 = vrot.lane.b32.xlu0 %v4463, 100
        %v4543 = vpop.permute.xlu0 %4542
        %4544 = vrot.lane.b32.xlu0 %v4464, 100
        %v4545 = vpop.permute.xlu0 %4544
        %4546 = vrot.lane.b32.xlu0 %v4465, 100
        %v4547 = vpop.permute.xlu0 %4546
        %4548 = vrot.lane.b32.xlu0 %v4466, 100
        %v4549 = vpop.permute.xlu0 %4548
        %4550 = vrot.lane.b32.xlu0 %v4467, 100
        %v4551 = vpop.permute.xlu0 %4550
        %v4552 = vsel %vm1228, %v4497, %v4499
        %v4553 = vsel %vm1228, %v4499, %v4501
        %v4554 = vsel %vm1228, %v4501, %v4503
        %v4555 = vsel %vm1228, %v4503, %v4505
        %v4556 = vsel %vm1228, %v4505, %v4507
        %v4557 = vsel %vm1228, %v4507, %v4509
        %v4558 = vsel %vm1228, %v4511, %v4513
        %v4559 = vsel %vm1228, %v4513, %v4515
        %v4560 = vsel %vm1228, %v4515, %v4517
        %v4561 = vsel %vm1228, %v4517, %v4519
        %v4562 = vsel %vm1228, %v4519, %v4521
        %v4563 = vsel %vm1228, %v4521, %v4523
        %v4564 = vsel %vm1228, %v4525, %v4527
        %v4565 = vsel %vm1228, %v4527, %v4529
        %v4566 = vsel %vm1228, %v4529, %v4531
        %v4567 = vsel %vm1228, %v4531, %v4533
        %v4568 = vsel %vm1228, %v4533, %v4535
        %v4569 = vsel %vm1228, %v4535, %v4537
        %v4570 = vsel %vm1228, %v4539, %v4541
        %v4571 = vsel %vm1228, %v4541, %v4543
        %v4572 = vsel %vm1228, %v4543, %v4545
        %v4573 = vsel %vm1228, %v4545, %v4547
        %v4574 = vsel %vm1228, %v4547, %v4549
        %v4575 = vsel %vm1228, %v4549, %v4551
        %4604 = vst [vmem:[#allocation4 + $0x2a0] sm:$0xff] %v4552
        %4605 = vst [vmem:[#allocation4 + $0x2a8] sm:$0xff] %v4553
        %4606 = vst [vmem:[#allocation4 + $0x2b0] sm:$0xff] %v4554
        %4607 = vst [vmem:[#allocation4 + $0x2b8] sm:$0xff] %v4555
        %4608 = vst [vmem:[#allocation4 + $0x2c0] sm:$0xff] %v4556
        %4609 = vst [vmem:[#allocation4 + $0x2c8] sm:$0xff] %v4557
        %4610 = vst.msk [vmem:[#allocation4 + $0x2d0] sm:$0xff] %vm534, %v4509
        %4611 = vst [vmem:[#allocation4 + $0x2d8] sm:$0xff] %v4558
        %4612 = vst [vmem:[#allocation4 + $0x2e0] sm:$0xff] %v4559
        %4613 = vst [vmem:[#allocation4 + $0x2e8] sm:$0xff] %v4560
        %4614 = vst [vmem:[#allocation4 + $0x2f0] sm:$0xff] %v4561
        %4615 = vst [vmem:[#allocation4 + $0x2f8] sm:$0xff] %v4562
        %4616 = vst [vmem:[#allocation4 + $0x300] sm:$0xff] %v4563
        %4617 = vst.msk [vmem:[#allocation4 + $0x308] sm:$0xff] %vm534, %v4523
        %4618 = vst [vmem:[#allocation4 + $0x310] sm:$0xff] %v4564
        %4619 = vst [vmem:[#allocation4 + $0x318] sm:$0xff] %v4565
        %4620 = vst [vmem:[#allocation4 + $0x320] sm:$0xff] %v4566
        %4621 = vst [vmem:[#allocation4 + $0x328] sm:$0xff] %v4567
        %4622 = vst [vmem:[#allocation4 + $0x330] sm:$0xff] %v4568
        %4623 = vst [vmem:[#allocation4 + $0x338] sm:$0xff] %v4569
        %4624 = vst.msk [vmem:[#allocation4 + $0x340] sm:$0xff] %vm534, %v4537
        %4625 = vst [vmem:[#allocation4 + $0x348] sm:$0xff] %v4570
        %4626 = vst [vmem:[#allocation4 + $0x350] sm:$0xff] %v4571
        %4627 = vst [vmem:[#allocation4 + $0x358] sm:$0xff] %v4572
        %4628 = vst [vmem:[#allocation4 + $0x360] sm:$0xff] %v4573
        %4629 = vst [vmem:[#allocation4 + $0x368] sm:$0xff] %v4574
        %4630 = vst [vmem:[#allocation4 + $0x370] sm:$0xff] %v4575
        %4631 = vst.msk [vmem:[#allocation4 + $0x378] sm:$0xff] %vm534, %v4551
        %v4632 = vld [vmem:[#allocation3] sm:$0xff]
        %v4633 = vld [vmem:[#allocation3 + $0x8] sm:$0xff]
        %v4634 = vld [vmem:[#allocation3 + $0x10] sm:$0xff]
        %v4635 = vld [vmem:[#allocation3 + $0x18] sm:$0xff]
        %v4636 = vld [vmem:[#allocation3 + $0x20] sm:$0xff]
        %v4637 = vld [vmem:[#allocation3 + $0x28] sm:$0xff]
        %v4638 = vld [vmem:[#allocation3 + $0x30] sm:$0xff]
        %v4639 = vld [vmem:[#allocation3 + $0x38] sm:$0xff]
        %v4640 = vld [vmem:[#allocation3 + $0x40] sm:$0xff]
        %v4641 = vld [vmem:[#allocation3 + $0x48] sm:$0xff]
        %v4642 = vld [vmem:[#allocation3 + $0x50] sm:$0xff]
        %v4643 = vld [vmem:[#allocation3 + $0x58] sm:$0xff]
        %v4644 = vld [vmem:[#allocation3 + $0x60] sm:$0xff]
        %v4645 = vld [vmem:[#allocation3 + $0x68] sm:$0xff]
        %v4646 = vld [vmem:[#allocation3 + $0x70] sm:$0xff]
        %v4647 = vld [vmem:[#allocation3 + $0x78] sm:$0xff]
        %v4648 = vld [vmem:[#allocation3 + $0x80] sm:$0xff]
        %v4649 = vld [vmem:[#allocation3 + $0x88] sm:$0xff]
        %v4650 = vld [vmem:[#allocation3 + $0x90] sm:$0xff]
        %v4651 = vld [vmem:[#allocation3 + $0x98] sm:$0xff]
        %v4652 = vld [vmem:[#allocation3 + $0xa0] sm:$0xff]
        %v4653 = vld [vmem:[#allocation3 + $0xa8] sm:$0xff]
        %v4654 = vld [vmem:[#allocation3 + $0xb0] sm:$0xff]
        %v4655 = vld [vmem:[#allocation3 + $0xb8] sm:$0xff]
        %v4656 = vld [vmem:[#allocation3 + $0xc0] sm:$0xff]
        %v4657 = vld [vmem:[#allocation3 + $0xc8] sm:$0xff]
        %v4658 = vld [vmem:[#allocation3 + $0xd0] sm:$0xff]
        %v4659 = vld [vmem:[#allocation3 + $0xd8] sm:$0xff]
        %4688 = vrot.lane.b32.xlu0 %v4632, 99
        %v4689 = vpop.permute.xlu0 %4688
        %4690 = vrot.lane.b32.xlu0 %v4633, 99
        %v4691 = vpop.permute.xlu0 %4690
        %4692 = vrot.lane.b32.xlu0 %v4634, 99
        %v4693 = vpop.permute.xlu0 %4692
        %4694 = vrot.lane.b32.xlu0 %v4635, 99
        %v4695 = vpop.permute.xlu0 %4694
        %4696 = vrot.lane.b32.xlu0 %v4636, 99
        %v4697 = vpop.permute.xlu0 %4696
        %4698 = vrot.lane.b32.xlu0 %v4637, 99
        %v4699 = vpop.permute.xlu0 %4698
        %4700 = vrot.lane.b32.xlu0 %v4638, 99
        %v4701 = vpop.permute.xlu0 %4700
        %4702 = vrot.lane.b32.xlu0 %v4639, 99
        %v4703 = vpop.permute.xlu0 %4702
        %4704 = vrot.lane.b32.xlu0 %v4640, 99
        %v4705 = vpop.permute.xlu0 %4704
        %4706 = vrot.lane.b32.xlu0 %v4641, 99
        %v4707 = vpop.permute.xlu0 %4706
        %4708 = vrot.lane.b32.xlu0 %v4642, 99
        %v4709 = vpop.permute.xlu0 %4708
        %4710 = vrot.lane.b32.xlu0 %v4643, 99
        %v4711 = vpop.permute.xlu0 %4710
        %4712 = vrot.lane.b32.xlu0 %v4644, 99
        %v4713 = vpop.permute.xlu0 %4712
        %4714 = vrot.lane.b32.xlu0 %v4645, 99
        %v4715 = vpop.permute.xlu0 %4714
        %4716 = vrot.lane.b32.xlu0 %v4646, 99
        %v4717 = vpop.permute.xlu0 %4716
        %4718 = vrot.lane.b32.xlu0 %v4647, 99
        %v4719 = vpop.permute.xlu0 %4718
        %4720 = vrot.lane.b32.xlu0 %v4648, 99
        %v4721 = vpop.permute.xlu0 %4720
        %4722 = vrot.lane.b32.xlu0 %v4649, 99
        %v4723 = vpop.permute.xlu0 %4722
        %4724 = vrot.lane.b32.xlu0 %v4650, 99
        %v4725 = vpop.permute.xlu0 %4724
        %4726 = vrot.lane.b32.xlu0 %v4651, 99
        %v4727 = vpop.permute.xlu0 %4726
        %4728 = vrot.lane.b32.xlu0 %v4652, 99
        %v4729 = vpop.permute.xlu0 %4728
        %4730 = vrot.lane.b32.xlu0 %v4653, 99
        %v4731 = vpop.permute.xlu0 %4730
        %4732 = vrot.lane.b32.xlu0 %v4654, 99
        %v4733 = vpop.permute.xlu0 %4732
        %4734 = vrot.lane.b32.xlu0 %v4655, 99
        %v4735 = vpop.permute.xlu0 %4734
        %4736 = vrot.lane.b32.xlu0 %v4656, 99
        %v4737 = vpop.permute.xlu0 %4736
        %4738 = vrot.lane.b32.xlu0 %v4657, 99
        %v4739 = vpop.permute.xlu0 %4738
        %4740 = vrot.lane.b32.xlu0 %v4658, 99
        %v4741 = vpop.permute.xlu0 %4740
        %4742 = vrot.lane.b32.xlu0 %v4659, 99
        %v4743 = vpop.permute.xlu0 %4742
        %v4744 = vsel %vm1421, %v4689, %v4691
        %v4745 = vsel %vm1421, %v4691, %v4693
        %v4746 = vsel %vm1421, %v4693, %v4695
        %v4747 = vsel %vm1421, %v4695, %v4697
        %v4748 = vsel %vm1421, %v4697, %v4699
        %v4749 = vsel %vm1421, %v4699, %v4701
        %v4750 = vsel %vm1421, %v4703, %v4705
        %v4751 = vsel %vm1421, %v4705, %v4707
        %v4752 = vsel %vm1421, %v4707, %v4709
        %v4753 = vsel %vm1421, %v4709, %v4711
        %v4754 = vsel %vm1421, %v4711, %v4713
        %v4755 = vsel %vm1421, %v4713, %v4715
        %v4756 = vsel %vm1421, %v4717, %v4719
        %v4757 = vsel %vm1421, %v4719, %v4721
        %v4758 = vsel %vm1421, %v4721, %v4723
        %v4759 = vsel %vm1421, %v4723, %v4725
        %v4760 = vsel %vm1421, %v4725, %v4727
        %v4761 = vsel %vm1421, %v4727, %v4729
        %v4762 = vsel %vm1421, %v4731, %v4733
        %v4763 = vsel %vm1421, %v4733, %v4735
        %v4764 = vsel %vm1421, %v4735, %v4737
        %v4765 = vsel %vm1421, %v4737, %v4739
        %v4766 = vsel %vm1421, %v4739, %v4741
        %v4767 = vsel %vm1421, %v4741, %v4743
        %4796 = vst [vmem:[#allocation4 + $0x380] sm:$0xff] %v4744
        %4797 = vst [vmem:[#allocation4 + $0x388] sm:$0xff] %v4745
        %4798 = vst [vmem:[#allocation4 + $0x390] sm:$0xff] %v4746
        %4799 = vst [vmem:[#allocation4 + $0x398] sm:$0xff] %v4747
        %4800 = vst [vmem:[#allocation4 + $0x3a0] sm:$0xff] %v4748
        %4801 = vst [vmem:[#allocation4 + $0x3a8] sm:$0xff] %v4749
        %4802 = vst.msk [vmem:[#allocation4 + $0x3b0] sm:$0xff] %vm534, %v4701
        %4803 = vst [vmem:[#allocation4 + $0x3b8] sm:$0xff] %v4750
        %4804 = vst [vmem:[#allocation4 + $0x3c0] sm:$0xff] %v4751
        %4805 = vst [vmem:[#allocation4 + $0x3c8] sm:$0xff] %v4752
        %4806 = vst [vmem:[#allocation4 + $0x3d0] sm:$0xff] %v4753
        %4807 = vst [vmem:[#allocation4 + $0x3d8] sm:$0xff] %v4754
        %4808 = vst [vmem:[#allocation4 + $0x3e0] sm:$0xff] %v4755
        %4809 = vst.msk [vmem:[#allocation4 + $0x3e8] sm:$0xff] %vm534, %v4715
        %4810 = vst [vmem:[#allocation4 + $0x3f0] sm:$0xff] %v4756
        %4811 = vst [vmem:[#allocation4 + $0x3f8] sm:$0xff] %v4757
        %4812 = vst [vmem:[#allocation4 + $0x400] sm:$0xff] %v4758
        %4813 = vst [vmem:[#allocation4 + $0x408] sm:$0xff] %v4759
        %4814 = vst [vmem:[#allocation4 + $0x410] sm:$0xff] %v4760
        %4815 = vst [vmem:[#allocation4 + $0x418] sm:$0xff] %v4761
        %4816 = vst.msk [vmem:[#allocation4 + $0x420] sm:$0xff] %vm534, %v4729
        %4817 = vst [vmem:[#allocation4 + $0x428] sm:$0xff] %v4762
        %4818 = vst [vmem:[#allocation4 + $0x430] sm:$0xff] %v4763
        %4819 = vst [vmem:[#allocation4 + $0x438] sm:$0xff] %v4764
        %4820 = vst [vmem:[#allocation4 + $0x440] sm:$0xff] %v4765
        %4821 = vst [vmem:[#allocation4 + $0x448] sm:$0xff] %v4766
        %4822 = vst [vmem:[#allocation4 + $0x450] sm:$0xff] %v4767
        %4823 = vst.msk [vmem:[#allocation4 + $0x458] sm:$0xff] %vm534, %v4743
        %v4824 = vld [vmem:[#allocation3] sm:$0xff]
        %v4825 = vld [vmem:[#allocation3 + $0x8] sm:$0xff]
        %v4826 = vld [vmem:[#allocation3 + $0x10] sm:$0xff]
        %v4827 = vld [vmem:[#allocation3 + $0x18] sm:$0xff]
        %v4828 = vld [vmem:[#allocation3 + $0x20] sm:$0xff]
        %v4829 = vld [vmem:[#allocation3 + $0x28] sm:$0xff]
        %v4830 = vld [vmem:[#allocation3 + $0x30] sm:$0xff]
        %v4831 = vld [vmem:[#allocation3 + $0x38] sm:$0xff]
        %v4832 = vld [vmem:[#allocation3 + $0x40] sm:$0xff]
        %v4833 = vld [vmem:[#allocation3 + $0x48] sm:$0xff]
        %v4834 = vld [vmem:[#allocation3 + $0x50] sm:$0xff]
        %v4835 = vld [vmem:[#allocation3 + $0x58] sm:$0xff]
        %v4836 = vld [vmem:[#allocation3 + $0x60] sm:$0xff]
        %v4837 = vld [vmem:[#allocation3 + $0x68] sm:$0xff]
        %v4838 = vld [vmem:[#allocation3 + $0x70] sm:$0xff]
        %v4839 = vld [vmem:[#allocation3 + $0x78] sm:$0xff]
        %v4840 = vld [vmem:[#allocation3 + $0x80] sm:$0xff]
        %v4841 = vld [vmem:[#allocation3 + $0x88] sm:$0xff]
        %v4842 = vld [vmem:[#allocation3 + $0x90] sm:$0xff]
        %v4843 = vld [vmem:[#allocation3 + $0x98] sm:$0xff]
        %v4844 = vld [vmem:[#allocation3 + $0xa0] sm:$0xff]
        %v4845 = vld [vmem:[#allocation3 + $0xa8] sm:$0xff]
        %v4846 = vld [vmem:[#allocation3 + $0xb0] sm:$0xff]
        %v4847 = vld [vmem:[#allocation3 + $0xb8] sm:$0xff]
        %v4848 = vld [vmem:[#allocation3 + $0xc0] sm:$0xff]
        %v4849 = vld [vmem:[#allocation3 + $0xc8] sm:$0xff]
        %v4850 = vld [vmem:[#allocation3 + $0xd0] sm:$0xff]
        %v4851 = vld [vmem:[#allocation3 + $0xd8] sm:$0xff]
        %v4852 = vld [vmem:[%s778] sm:$0x7f]
        %v4854 = vlaneseq
        %v4855 = vshrl.u32 %v4854, 7
        %v4856 = vsub.s32 0, %v4855
        %v4857 = vrot.slane %v4852, %v4856
        %v4858 = vlaneseq
        %v4859 = vshrl.u32 %v4858, 7
        %v4860 = vsub.s32 1, %v4859
        %v4861 = vrot.slane %v4852, %v4860
        %v4862 = vlaneseq
        %v4863 = vshrl.u32 %v4862, 7
        %v4864 = vsub.s32 2, %v4863
        %v4865 = vrot.slane %v4852, %v4864
        %v4866 = vlaneseq
        %v4867 = vshrl.u32 %v4866, 7
        %v4868 = vsub.s32 3, %v4867
        %v4869 = vrot.slane %v4852, %v4868
        %v4870 = vlaneseq
        %v4871 = vshrl.u32 %v4870, 7
        %v4872 = vsub.s32 4, %v4871
        %v4873 = vrot.slane %v4852, %v4872
        %v4874 = vlaneseq
        %v4875 = vshrl.u32 %v4874, 7
        %v4876 = vsub.s32 5, %v4875
        %v4877 = vrot.slane %v4852, %v4876
        %v4878 = vlaneseq
        %v4879 = vshrl.u32 %v4878, 7
        %v4880 = vsub.s32 6, %v4879
        %v4881 = vrot.slane %v4852, %v4880
        %4882 = vrot.lane.b32.xlu0 %v4857, 30
        %v4883 = vpop.permute.xlu0 %4882
        %4884 = vrot.lane.b32.xlu0 %v4861, 30
        %v4885 = vpop.permute.xlu0 %4884
        %4886 = vrot.lane.b32.xlu0 %v4865, 30
        %v4887 = vpop.permute.xlu0 %4886
        %4888 = vrot.lane.b32.xlu0 %v4869, 30
        %v4889 = vpop.permute.xlu0 %4888
        %4890 = vrot.lane.b32.xlu0 %v4873, 30
        %v4891 = vpop.permute.xlu0 %4890
        %4892 = vrot.lane.b32.xlu0 %v4877, 30
        %v4893 = vpop.permute.xlu0 %4892
        %4894 = vrot.lane.b32.xlu0 %v4881, 30
        %v4895 = vpop.permute.xlu0 %4894
        %v4896 = vsel %vm1574, %v4883, %v4885
        %v4897 = vsel %vm1574, %v4885, %v4887
        %v4898 = vsel %vm1574, %v4887, %v4889
        %v4899 = vsel %vm1574, %v4889, %v4891
        %v4900 = vsel %vm1574, %v4891, %v4893
        %v4901 = vsel %vm1574, %v4893, %v4895
        %v4909 = vmul.f32 %v4824, %v4883
        %v4910 = vmul.f32 %v4825, %v4896
        %v4911 = vmul.f32 %v4826, %v4897
        %v4912 = vmul.f32 %v4827, %v4898
        %v4913 = vmul.f32 %v4828, %v4899
        %v4914 = vmul.f32 %v4829, %v4900
        %v4915 = vmul.f32 %v4830, %v4901
        %v4916 = vmul.f32 %v4831, %v4883
        %v4917 = vmul.f32 %v4832, %v4896
        %v4918 = vmul.f32 %v4833, %v4897
        %v4919 = vmul.f32 %v4834, %v4898
        %v4920 = vmul.f32 %v4835, %v4899
        %v4921 = vmul.f32 %v4836, %v4900
        %v4922 = vmul.f32 %v4837, %v4901
        %v4923 = vmul.f32 %v4838, %v4883
        %v4924 = vmul.f32 %v4839, %v4896
        %v4925 = vmul.f32 %v4840, %v4897
        %v4926 = vmul.f32 %v4841, %v4898
        %v4927 = vmul.f32 %v4842, %v4899
        %v4928 = vmul.f32 %v4843, %v4900
        %v4929 = vmul.f32 %v4844, %v4901
        %v4930 = vmul.f32 %v4845, %v4883
        %v4931 = vmul.f32 %v4846, %v4896
        %v4932 = vmul.f32 %v4847, %v4897
        %v4933 = vmul.f32 %v4848, %v4898
        %v4934 = vmul.f32 %v4849, %v4899
        %v4935 = vmul.f32 %v4850, %v4900
        %v4936 = vmul.f32 %v4851, %v4901
        %4965 = vrot.lane.b32.xlu0 %v4909, 98
        %v4966 = vpop.permute.xlu0 %4965
        %4967 = vrot.lane.b32.xlu0 %v4910, 98
        %v4968 = vpop.permute.xlu0 %4967
        %4969 = vrot.lane.b32.xlu0 %v4911, 98
        %v4970 = vpop.permute.xlu0 %4969
        %4971 = vrot.lane.b32.xlu0 %v4912, 98
        %v4972 = vpop.permute.xlu0 %4971
        %4973 = vrot.lane.b32.xlu0 %v4913, 98
        %v4974 = vpop.permute.xlu0 %4973
        %4975 = vrot.lane.b32.xlu0 %v4914, 98
        %v4976 = vpop.permute.xlu0 %4975
        %4977 = vrot.lane.b32.xlu0 %v4915, 98
        %v4978 = vpop.permute.xlu0 %4977
        %4979 = vrot.lane.b32.xlu0 %v4916, 98
        %v4980 = vpop.permute.xlu0 %4979
        %4981 = vrot.lane.b32.xlu0 %v4917, 98
        %v4982 = vpop.permute.xlu0 %4981
        %4983 = vrot.lane.b32.xlu0 %v4918, 98
        %v4984 = vpop.permute.xlu0 %4983
        %4985 = vrot.lane.b32.xlu0 %v4919, 98
        %v4986 = vpop.permute.xlu0 %4985
        %4987 = vrot.lane.b32.xlu0 %v4920, 98
        %v4988 = vpop.permute.xlu0 %4987
        %4989 = vrot.lane.b32.xlu0 %v4921, 98
        %v4990 = vpop.permute.xlu0 %4989
        %4991 = vrot.lane.b32.xlu0 %v4922, 98
        %v4992 = vpop.permute.xlu0 %4991
        %4993 = vrot.lane.b32.xlu0 %v4923, 98
        %v4994 = vpop.permute.xlu0 %4993
        %4995 = vrot.lane.b32.xlu0 %v4924, 98
        %v4996 = vpop.permute.xlu0 %4995
        %4997 = vrot.lane.b32.xlu0 %v4925, 98
        %v4998 = vpop.permute.xlu0 %4997
        %4999 = vrot.lane.b32.xlu0 %v4926, 98
        %v5000 = vpop.permute.xlu0 %4999
        %5001 = vrot.lane.b32.xlu0 %v4927, 98
        %v5002 = vpop.permute.xlu0 %5001
        %5003 = vrot.lane.b32.xlu0 %v4928, 98
        %v5004 = vpop.permute.xlu0 %5003
        %5005 = vrot.lane.b32.xlu0 %v4929, 98
        %v5006 = vpop.permute.xlu0 %5005
        %5007 = vrot.lane.b32.xlu0 %v4930, 98
        %v5008 = vpop.permute.xlu0 %5007
        %5009 = vrot.lane.b32.xlu0 %v4931, 98
        %v5010 = vpop.permute.xlu0 %5009
        %5011 = vrot.lane.b32.xlu0 %v4932, 98
        %v5012 = vpop.permute.xlu0 %5011
        %5013 = vrot.lane.b32.xlu0 %v4933, 98
        %v5014 = vpop.permute.xlu0 %5013
        %5015 = vrot.lane.b32.xlu0 %v4934, 98
        %v5016 = vpop.permute.xlu0 %5015
        %5017 = vrot.lane.b32.xlu0 %v4935, 98
        %v5018 = vpop.permute.xlu0 %5017
        %5019 = vrot.lane.b32.xlu0 %v4936, 98
        %v5020 = vpop.permute.xlu0 %5019
        %v5021 = vsel %vm1700, %v4966, %v4968
        %v5022 = vsel %vm1700, %v4968, %v4970
        %v5023 = vsel %vm1700, %v4970, %v4972
        %v5024 = vsel %vm1700, %v4972, %v4974
        %v5025 = vsel %vm1700, %v4974, %v4976
        %v5026 = vsel %vm1700, %v4976, %v4978
        %v5027 = vsel %vm1700, %v4980, %v4982
        %v5028 = vsel %vm1700, %v4982, %v4984
        %v5029 = vsel %vm1700, %v4984, %v4986
        %v5030 = vsel %vm1700, %v4986, %v4988
        %v5031 = vsel %vm1700, %v4988, %v4990
        %v5032 = vsel %vm1700, %v4990, %v4992
        %v5033 = vsel %vm1700, %v4994, %v4996
        %v5034 = vsel %vm1700, %v4996, %v4998
        %v5035 = vsel %vm1700, %v4998, %v5000
        %v5036 = vsel %vm1700, %v5000, %v5002
        %v5037 = vsel %vm1700, %v5002, %v5004
        %v5038 = vsel %vm1700, %v5004, %v5006
        %v5039 = vsel %vm1700, %v5008, %v5010
        %v5040 = vsel %vm1700, %v5010, %v5012
        %v5041 = vsel %vm1700, %v5012, %v5014
        %v5042 = vsel %vm1700, %v5014, %v5016
        %v5043 = vsel %vm1700, %v5016, %v5018
        %v5044 = vsel %vm1700, %v5018, %v5020
        %5073 = vst [vmem:[#allocation4 + $0x460] sm:$0xff] %v5021
        %5074 = vst [vmem:[#allocation4 + $0x468] sm:$0xff] %v5022
        %5075 = vst [vmem:[#allocation4 + $0x470] sm:$0xff] %v5023
        %5076 = vst [vmem:[#allocation4 + $0x478] sm:$0xff] %v5024
        %5077 = vst [vmem:[#allocation4 + $0x480] sm:$0xff] %v5025
        %5078 = vst [vmem:[#allocation4 + $0x488] sm:$0xff] %v5026
        %5079 = vst.msk [vmem:[#allocation4 + $0x490] sm:$0xff] %vm534, %v4978
        %5080 = vst [vmem:[#allocation4 + $0x498] sm:$0xff] %v5027
        %5081 = vst [vmem:[#allocation4 + $0x4a0] sm:$0xff] %v5028
        %5082 = vst [vmem:[#allocation4 + $0x4a8] sm:$0xff] %v5029
        %5083 = vst [vmem:[#allocation4 + $0x4b0] sm:$0xff] %v5030
        %5084 = vst [vmem:[#allocation4 + $0x4b8] sm:$0xff] %v5031
        %5085 = vst [vmem:[#allocation4 + $0x4c0] sm:$0xff] %v5032
        %5086 = vst.msk [vmem:[#allocation4 + $0x4c8] sm:$0xff] %vm534, %v4992
        %5087 = vst [vmem:[#allocation4 + $0x4d0] sm:$0xff] %v5033
        %5088 = vst [vmem:[#allocation4 + $0x4d8] sm:$0xff] %v5034
        %5089 = vst [vmem:[#allocation4 + $0x4e0] sm:$0xff] %v5035
        %5090 = vst [vmem:[#allocation4 + $0x4e8] sm:$0xff] %v5036
        %5091 = vst [vmem:[#allocation4 + $0x4f0] sm:$0xff] %v5037
        %5092 = vst [vmem:[#allocation4 + $0x4f8] sm:$0xff] %v5038
        %5093 = vst.msk [vmem:[#allocation4 + $0x500] sm:$0xff] %vm534, %v5006
        %5094 = vst [vmem:[#allocation4 + $0x508] sm:$0xff] %v5039
        %5095 = vst [vmem:[#allocation4 + $0x510] sm:$0xff] %v5040
        %5096 = vst [vmem:[#allocation4 + $0x518] sm:$0xff] %v5041
        %5097 = vst [vmem:[#allocation4 + $0x520] sm:$0xff] %v5042
        %5098 = vst [vmem:[#allocation4 + $0x528] sm:$0xff] %v5043
        %5099 = vst [vmem:[#allocation4 + $0x530] sm:$0xff] %v5044
        %5100 = vst.msk [vmem:[#allocation4 + $0x538] sm:$0xff] %vm534, %v5020
        %v5101 = vld [vmem:[#allocation3] sm:$0xff]
        %v5102 = vld [vmem:[#allocation3 + $0x8] sm:$0xff]
        %v5103 = vld [vmem:[#allocation3 + $0x10] sm:$0xff]
        %v5104 = vld [vmem:[#allocation3 + $0x18] sm:$0xff]
        %v5105 = vld [vmem:[#allocation3 + $0x20] sm:$0xff]
        %v5106 = vld [vmem:[#allocation3 + $0x28] sm:$0xff]
        %v5107 = vld [vmem:[#allocation3 + $0x30] sm:$0xff]
        %v5108 = vld [vmem:[#allocation3 + $0x38] sm:$0xff]
        %v5109 = vld [vmem:[#allocation3 + $0x40] sm:$0xff]
        %v5110 = vld [vmem:[#allocation3 + $0x48] sm:$0xff]
        %v5111 = vld [vmem:[#allocation3 + $0x50] sm:$0xff]
        %v5112 = vld [vmem:[#allocation3 + $0x58] sm:$0xff]
        %v5113 = vld [vmem:[#allocation3 + $0x60] sm:$0xff]
        %v5114 = vld [vmem:[#allocation3 + $0x68] sm:$0xff]
        %v5115 = vld [vmem:[#allocation3 + $0x70] sm:$0xff]
        %v5116 = vld [vmem:[#allocation3 + $0x78] sm:$0xff]
        %v5117 = vld [vmem:[#allocation3 + $0x80] sm:$0xff]
        %v5118 = vld [vmem:[#allocation3 + $0x88] sm:$0xff]
        %v5119 = vld [vmem:[#allocation3 + $0x90] sm:$0xff]
        %v5120 = vld [vmem:[#allocation3 + $0x98] sm:$0xff]
        %v5121 = vld [vmem:[#allocation3 + $0xa0] sm:$0xff]
        %v5122 = vld [vmem:[#allocation3 + $0xa8] sm:$0xff]
        %v5123 = vld [vmem:[#allocation3 + $0xb0] sm:$0xff]
        %v5124 = vld [vmem:[#allocation3 + $0xb8] sm:$0xff]
        %v5125 = vld [vmem:[#allocation3 + $0xc0] sm:$0xff]
        %v5126 = vld [vmem:[#allocation3 + $0xc8] sm:$0xff]
        %v5127 = vld [vmem:[#allocation3 + $0xd0] sm:$0xff]
        %v5128 = vld [vmem:[#allocation3 + $0xd8] sm:$0xff]
        %v5129 = vld [vmem:[%s3] sm:$0x7f]
        %v5131 = vlaneseq
        %v5132 = vshrl.u32 %v5131, 7
        %v5133 = vsub.s32 0, %v5132
        %v5134 = vrot.slane %v5129, %v5133
        %v5135 = vlaneseq
        %v5136 = vshrl.u32 %v5135, 7
        %v5137 = vsub.s32 1, %v5136
        %v5138 = vrot.slane %v5129, %v5137
        %v5139 = vlaneseq
        %v5140 = vshrl.u32 %v5139, 7
        %v5141 = vsub.s32 2, %v5140
        %v5142 = vrot.slane %v5129, %v5141
        %v5143 = vlaneseq
        %v5144 = vshrl.u32 %v5143, 7
        %v5145 = vsub.s32 3, %v5144
        %v5146 = vrot.slane %v5129, %v5145
        %v5147 = vlaneseq
        %v5148 = vshrl.u32 %v5147, 7
        %v5149 = vsub.s32 4, %v5148
        %v5150 = vrot.slane %v5129, %v5149
        %v5151 = vlaneseq
        %v5152 = vshrl.u32 %v5151, 7
        %v5153 = vsub.s32 5, %v5152
        %v5154 = vrot.slane %v5129, %v5153
        %v5155 = vlaneseq
        %v5156 = vshrl.u32 %v5155, 7
        %v5157 = vsub.s32 6, %v5156
        %v5158 = vrot.slane %v5129, %v5157
        %5159 = vrot.lane.b32.xlu0 %v5134, 56
        %v5160 = vpop.permute.xlu0 %5159
        %5161 = vrot.lane.b32.xlu0 %v5138, 56
        %v5162 = vpop.permute.xlu0 %5161
        %5163 = vrot.lane.b32.xlu0 %v5142, 56
        %v5164 = vpop.permute.xlu0 %5163
        %5165 = vrot.lane.b32.xlu0 %v5146, 56
        %v5166 = vpop.permute.xlu0 %5165
        %5167 = vrot.lane.b32.xlu0 %v5150, 56
        %v5168 = vpop.permute.xlu0 %5167
        %5169 = vrot.lane.b32.xlu0 %v5154, 56
        %v5170 = vpop.permute.xlu0 %5169
        %5171 = vrot.lane.b32.xlu0 %v5158, 56
        %v5172 = vpop.permute.xlu0 %5171
        %v5173 = vsel %vm1853, %v5160, %v5162
        %v5174 = vsel %vm1853, %v5162, %v5164
        %v5175 = vsel %vm1853, %v5164, %v5166
        %v5176 = vsel %vm1853, %v5166, %v5168
        %v5177 = vsel %vm1853, %v5168, %v5170
        %v5178 = vsel %vm1853, %v5170, %v5172
        %v5186 = vmul.f32 %v5101, %v5160
        %v5187 = vmul.f32 %v5102, %v5173
        %v5188 = vmul.f32 %v5103, %v5174
        %v5189 = vmul.f32 %v5104, %v5175
        %v5190 = vmul.f32 %v5105, %v5176
        %v5191 = vmul.f32 %v5106, %v5177
        %v5192 = vmul.f32 %v5107, %v5178
        %v5193 = vmul.f32 %v5108, %v5160
        %v5194 = vmul.f32 %v5109, %v5173
        %v5195 = vmul.f32 %v5110, %v5174
        %v5196 = vmul.f32 %v5111, %v5175
        %v5197 = vmul.f32 %v5112, %v5176
        %v5198 = vmul.f32 %v5113, %v5177
        %v5199 = vmul.f32 %v5114, %v5178
        %v5200 = vmul.f32 %v5115, %v5160
        %v5201 = vmul.f32 %v5116, %v5173
        %v5202 = vmul.f32 %v5117, %v5174
        %v5203 = vmul.f32 %v5118, %v5175
        %v5204 = vmul.f32 %v5119, %v5176
        %v5205 = vmul.f32 %v5120, %v5177
        %v5206 = vmul.f32 %v5121, %v5178
        %v5207 = vmul.f32 %v5122, %v5160
        %v5208 = vmul.f32 %v5123, %v5173
        %v5209 = vmul.f32 %v5124, %v5174
        %v5210 = vmul.f32 %v5125, %v5175
        %v5211 = vmul.f32 %v5126, %v5176
        %v5212 = vmul.f32 %v5127, %v5177
        %v5213 = vmul.f32 %v5128, %v5178
        %5242 = vrot.lane.b32.xlu0 %v5186, 72
        %v5243 = vpop.permute.xlu0 %5242
        %5244 = vrot.lane.b32.xlu0 %v5187, 72
        %v5245 = vpop.permute.xlu0 %5244
        %5246 = vrot.lane.b32.xlu0 %v5188, 72
        %v5247 = vpop.permute.xlu0 %5246
        %5248 = vrot.lane.b32.xlu0 %v5189, 72
        %v5249 = vpop.permute.xlu0 %5248
        %5250 = vrot.lane.b32.xlu0 %v5190, 72
        %v5251 = vpop.permute.xlu0 %5250
        %5252 = vrot.lane.b32.xlu0 %v5191, 72
        %v5253 = vpop.permute.xlu0 %5252
        %5254 = vrot.lane.b32.xlu0 %v5192, 72
        %v5255 = vpop.permute.xlu0 %5254
        %5256 = vrot.lane.b32.xlu0 %v5193, 72
        %v5257 = vpop.permute.xlu0 %5256
        %5258 = vrot.lane.b32.xlu0 %v5194, 72
        %v5259 = vpop.permute.xlu0 %5258
        %5260 = vrot.lane.b32.xlu0 %v5195, 72
        %v5261 = vpop.permute.xlu0 %5260
        %5262 = vrot.lane.b32.xlu0 %v5196, 72
        %v5263 = vpop.permute.xlu0 %5262
        %5264 = vrot.lane.b32.xlu0 %v5197, 72
        %v5265 = vpop.permute.xlu0 %5264
        %5266 = vrot.lane.b32.xlu0 %v5198, 72
        %v5267 = vpop.permute.xlu0 %5266
        %5268 = vrot.lane.b32.xlu0 %v5199, 72
        %v5269 = vpop.permute.xlu0 %5268
        %5270 = vrot.lane.b32.xlu0 %v5200, 72
        %v5271 = vpop.permute.xlu0 %5270
        %5272 = vrot.lane.b32.xlu0 %v5201, 72
        %v5273 = vpop.permute.xlu0 %5272
        %5274 = vrot.lane.b32.xlu0 %v5202, 72
        %v5275 = vpop.permute.xlu0 %5274
        %5276 = vrot.lane.b32.xlu0 %v5203, 72
        %v5277 = vpop.permute.xlu0 %5276
        %5278 = vrot.lane.b32.xlu0 %v5204, 72
        %v5279 = vpop.permute.xlu0 %5278
        %5280 = vrot.lane.b32.xlu0 %v5205, 72
        %v5281 = vpop.permute.xlu0 %5280
        %5282 = vrot.lane.b32.xlu0 %v5206, 72
        %v5283 = vpop.permute.xlu0 %5282
        %5284 = vrot.lane.b32.xlu0 %v5207, 72
        %v5285 = vpop.permute.xlu0 %5284
        %5286 = vrot.lane.b32.xlu0 %v5208, 72
        %v5287 = vpop.permute.xlu0 %5286
        %5288 = vrot.lane.b32.xlu0 %v5209, 72
        %v5289 = vpop.permute.xlu0 %5288
        %5290 = vrot.lane.b32.xlu0 %v5210, 72
        %v5291 = vpop.permute.xlu0 %5290
        %5292 = vrot.lane.b32.xlu0 %v5211, 72
        %v5293 = vpop.permute.xlu0 %5292
        %5294 = vrot.lane.b32.xlu0 %v5212, 72
        %v5295 = vpop.permute.xlu0 %5294
        %5296 = vrot.lane.b32.xlu0 %v5213, 72
        %v5297 = vpop.permute.xlu0 %5296
        %v5298 = vsel %vm1979, %v5243, %v5245
        %v5299 = vsel %vm1979, %v5245, %v5247
        %v5300 = vsel %vm1979, %v5247, %v5249
        %v5301 = vsel %vm1979, %v5249, %v5251
        %v5302 = vsel %vm1979, %v5251, %v5253
        %v5303 = vsel %vm1979, %v5253, %v5255
        %v5304 = vsel %vm1979, %v5257, %v5259
        %v5305 = vsel %vm1979, %v5259, %v5261
        %v5306 = vsel %vm1979, %v5261, %v5263
        %v5307 = vsel %vm1979, %v5263, %v5265
        %v5308 = vsel %vm1979, %v5265, %v5267
        %v5309 = vsel %vm1979, %v5267, %v5269
        %v5310 = vsel %vm1979, %v5271, %v5273
        %v5311 = vsel %vm1979, %v5273, %v5275
        %v5312 = vsel %vm1979, %v5275, %v5277
        %v5313 = vsel %vm1979, %v5277, %v5279
        %v5314 = vsel %vm1979, %v5279, %v5281
        %v5315 = vsel %vm1979, %v5281, %v5283
        %v5316 = vsel %vm1979, %v5285, %v5287
        %v5317 = vsel %vm1979, %v5287, %v5289
        %v5318 = vsel %vm1979, %v5289, %v5291
        %v5319 = vsel %vm1979, %v5291, %v5293
        %v5320 = vsel %vm1979, %v5293, %v5295
        %v5321 = vsel %vm1979, %v5295, %v5297
        %5350 = vst [vmem:[#allocation4 + $0x540] sm:$0xff] %v5298
        %5351 = vst [vmem:[#allocation4 + $0x548] sm:$0xff] %v5299
        %5352 = vst [vmem:[#allocation4 + $0x550] sm:$0xff] %v5300
        %5353 = vst [vmem:[#allocation4 + $0x558] sm:$0xff] %v5301
        %5354 = vst [vmem:[#allocation4 + $0x560] sm:$0xff] %v5302
        %5355 = vst [vmem:[#allocation4 + $0x568] sm:$0xff] %v5303
        %5356 = vst.msk [vmem:[#allocation4 + $0x570] sm:$0xff] %vm534, %v5255
        %5357 = vst [vmem:[#allocation4 + $0x578] sm:$0xff] %v5304
        %5358 = vst [vmem:[#allocation4 + $0x580] sm:$0xff] %v5305
        %5359 = vst [vmem:[#allocation4 + $0x588] sm:$0xff] %v5306
        %5360 = vst [vmem:[#allocation4 + $0x590] sm:$0xff] %v5307
        %5361 = vst [vmem:[#allocation4 + $0x598] sm:$0xff] %v5308
        %5362 = vst [vmem:[#allocation4 + $0x5a0] sm:$0xff] %v5309
        %5363 = vst.msk [vmem:[#allocation4 + $0x5a8] sm:$0xff] %vm534, %v5269
        %5364 = vst [vmem:[#allocation4 + $0x5b0] sm:$0xff] %v5310
        %5365 = vst [vmem:[#allocation4 + $0x5b8] sm:$0xff] %v5311
        %5366 = vst [vmem:[#allocation4 + $0x5c0] sm:$0xff] %v5312
        %5367 = vst [vmem:[#allocation4 + $0x5c8] sm:$0xff] %v5313
        %5368 = vst [vmem:[#allocation4 + $0x5d0] sm:$0xff] %v5314
        %5369 = vst [vmem:[#allocation4 + $0x5d8] sm:$0xff] %v5315
        %5370 = vst.msk [vmem:[#allocation4 + $0x5e0] sm:$0xff] %vm534, %v5283
        %5371 = vst [vmem:[#allocation4 + $0x5e8] sm:$0xff] %v5316
        %5372 = vst [vmem:[#allocation4 + $0x5f0] sm:$0xff] %v5317
        %5373 = vst [vmem:[#allocation4 + $0x5f8] sm:$0xff] %v5318
        %5374 = vst [vmem:[#allocation4 + $0x600] sm:$0xff] %v5319
        %5375 = vst [vmem:[#allocation4 + $0x608] sm:$0xff] %v5320
        %5376 = vst [vmem:[#allocation4 + $0x610] sm:$0xff] %v5321
        %5377 = vst.msk [vmem:[#allocation4 + $0x618] sm:$0xff] %vm534, %v5297
        %v5378 = vld [vmem:[#allocation3] sm:$0xff]
        %v5379 = vld [vmem:[#allocation3 + $0x8] sm:$0xff]
        %v5380 = vld [vmem:[#allocation3 + $0x10] sm:$0xff]
        %v5381 = vld [vmem:[#allocation3 + $0x18] sm:$0xff]
        %v5382 = vld [vmem:[#allocation3 + $0x20] sm:$0xff]
        %v5383 = vld [vmem:[#allocation3 + $0x28] sm:$0xff]
        %v5384 = vld [vmem:[#allocation3 + $0x30] sm:$0xff]
        %v5385 = vld [vmem:[#allocation3 + $0x38] sm:$0xff]
        %v5386 = vld [vmem:[#allocation3 + $0x40] sm:$0xff]
        %v5387 = vld [vmem:[#allocation3 + $0x48] sm:$0xff]
        %v5388 = vld [vmem:[#allocation3 + $0x50] sm:$0xff]
        %v5389 = vld [vmem:[#allocation3 + $0x58] sm:$0xff]
        %v5390 = vld [vmem:[#allocation3 + $0x60] sm:$0xff]
        %v5391 = vld [vmem:[#allocation3 + $0x68] sm:$0xff]
        %v5392 = vld [vmem:[#allocation3 + $0x70] sm:$0xff]
        %v5393 = vld [vmem:[#allocation3 + $0x78] sm:$0xff]
        %v5394 = vld [vmem:[#allocation3 + $0x80] sm:$0xff]
        %v5395 = vld [vmem:[#allocation3 + $0x88] sm:$0xff]
        %v5396 = vld [vmem:[#allocation3 + $0x90] sm:$0xff]
        %v5397 = vld [vmem:[#allocation3 + $0x98] sm:$0xff]
        %v5398 = vld [vmem:[#allocation3 + $0xa0] sm:$0xff]
        %v5399 = vld [vmem:[#allocation3 + $0xa8] sm:$0xff]
        %v5400 = vld [vmem:[#allocation3 + $0xb0] sm:$0xff]
        %v5401 = vld [vmem:[#allocation3 + $0xb8] sm:$0xff]
        %v5402 = vld [vmem:[#allocation3 + $0xc0] sm:$0xff]
        %v5403 = vld [vmem:[#allocation3 + $0xc8] sm:$0xff]
        %v5404 = vld [vmem:[#allocation3 + $0xd0] sm:$0xff]
        %v5405 = vld [vmem:[#allocation3 + $0xd8] sm:$0xff]
        %5434 = vrot.lane.b32.xlu0 %v5378, 71
        %v5435 = vpop.permute.xlu0 %5434
        %5436 = vrot.lane.b32.xlu0 %v5379, 71
        %v5437 = vpop.permute.xlu0 %5436
        %5438 = vrot.lane.b32.xlu0 %v5380, 71
        %v5439 = vpop.permute.xlu0 %5438
        %5440 = vrot.lane.b32.xlu0 %v5381, 71
        %v5441 = vpop.permute.xlu0 %5440
        %5442 = vrot.lane.b32.xlu0 %v5382, 71
        %v5443 = vpop.permute.xlu0 %5442
        %5444 = vrot.lane.b32.xlu0 %v5383, 71
        %v5445 = vpop.permute.xlu0 %5444
        %5446 = vrot.lane.b32.xlu0 %v5384, 71
        %v5447 = vpop.permute.xlu0 %5446
        %5448 = vrot.lane.b32.xlu0 %v5385, 71
        %v5449 = vpop.permute.xlu0 %5448
        %5450 = vrot.lane.b32.xlu0 %v5386, 71
        %v5451 = vpop.permute.xlu0 %5450
        %5452 = vrot.lane.b32.xlu0 %v5387, 71
        %v5453 = vpop.permute.xlu0 %5452
        %5454 = vrot.lane.b32.xlu0 %v5388, 71
        %v5455 = vpop.permute.xlu0 %5454
        %5456 = vrot.lane.b32.xlu0 %v5389, 71
        %v5457 = vpop.permute.xlu0 %5456
        %5458 = vrot.lane.b32.xlu0 %v5390, 71
        %v5459 = vpop.permute.xlu0 %5458
        %5460 = vrot.lane.b32.xlu0 %v5391, 71
        %v5461 = vpop.permute.xlu0 %5460
        %5462 = vrot.lane.b32.xlu0 %v5392, 71
        %v5463 = vpop.permute.xlu0 %5462
        %5464 = vrot.lane.b32.xlu0 %v5393, 71
        %v5465 = vpop.permute.xlu0 %5464
        %5466 = vrot.lane.b32.xlu0 %v5394, 71
        %v5467 = vpop.permute.xlu0 %5466
        %5468 = vrot.lane.b32.xlu0 %v5395, 71
        %v5469 = vpop.permute.xlu0 %5468
        %5470 = vrot.lane.b32.xlu0 %v5396, 71
        %v5471 = vpop.permute.xlu0 %5470
        %5472 = vrot.lane.b32.xlu0 %v5397, 71
        %v5473 = vpop.permute.xlu0 %5472
        %5474 = vrot.lane.b32.xlu0 %v5398, 71
        %v5475 = vpop.permute.xlu0 %5474
        %5476 = vrot.lane.b32.xlu0 %v5399, 71
        %v5477 = vpop.permute.xlu0 %5476
        %5478 = vrot.lane.b32.xlu0 %v5400, 71
        %v5479 = vpop.permute.xlu0 %5478
        %5480 = vrot.lane.b32.xlu0 %v5401, 71
        %v5481 = vpop.permute.xlu0 %5480
        %5482 = vrot.lane.b32.xlu0 %v5402, 71
        %v5483 = vpop.permute.xlu0 %5482
        %5484 = vrot.lane.b32.xlu0 %v5403, 71
        %v5485 = vpop.permute.xlu0 %5484
        %5486 = vrot.lane.b32.xlu0 %v5404, 71
        %v5487 = vpop.permute.xlu0 %5486
        %5488 = vrot.lane.b32.xlu0 %v5405, 71
        %v5489 = vpop.permute.xlu0 %5488
        %v5490 = vsel %vm2172, %v5435, %v5437
        %v5491 = vsel %vm2172, %v5437, %v5439
        %v5492 = vsel %vm2172, %v5439, %v5441
        %v5493 = vsel %vm2172, %v5441, %v5443
        %v5494 = vsel %vm2172, %v5443, %v5445
        %v5495 = vsel %vm2172, %v5445, %v5447
        %v5496 = vsel %vm2172, %v5449, %v5451
        %v5497 = vsel %vm2172, %v5451, %v5453
        %v5498 = vsel %vm2172, %v5453, %v5455
        %v5499 = vsel %vm2172, %v5455, %v5457
        %v5500 = vsel %vm2172, %v5457, %v5459
        %v5501 = vsel %vm2172, %v5459, %v5461
        %v5502 = vsel %vm2172, %v5463, %v5465
        %v5503 = vsel %vm2172, %v5465, %v5467
        %v5504 = vsel %vm2172, %v5467, %v5469
        %v5505 = vsel %vm2172, %v5469, %v5471
        %v5506 = vsel %vm2172, %v5471, %v5473
        %v5507 = vsel %vm2172, %v5473, %v5475
        %v5508 = vsel %vm2172, %v5477, %v5479
        %v5509 = vsel %vm2172, %v5479, %v5481
        %v5510 = vsel %vm2172, %v5481, %v5483
        %v5511 = vsel %vm2172, %v5483, %v5485
        %v5512 = vsel %vm2172, %v5485, %v5487
        %v5513 = vsel %vm2172, %v5487, %v5489
        %5542 = vst [vmem:[#allocation4 + $0x620] sm:$0xff] %v5490
        %5543 = vst [vmem:[#allocation4 + $0x628] sm:$0xff] %v5491
        %5544 = vst [vmem:[#allocation4 + $0x630] sm:$0xff] %v5492
        %5545 = vst [vmem:[#allocation4 + $0x638] sm:$0xff] %v5493
        %5546 = vst [vmem:[#allocation4 + $0x640] sm:$0xff] %v5494
        %5547 = vst [vmem:[#allocation4 + $0x648] sm:$0xff] %v5495
        %5548 = vst.msk [vmem:[#allocation4 + $0x650] sm:$0xff] %vm534, %v5447
        %5549 = vst [vmem:[#allocation4 + $0x658] sm:$0xff] %v5496
        %5550 = vst [vmem:[#allocation4 + $0x660] sm:$0xff] %v5497
        %5551 = vst [vmem:[#allocation4 + $0x668] sm:$0xff] %v5498
        %5552 = vst [vmem:[#allocation4 + $0x670] sm:$0xff] %v5499
        %5553 = vst [vmem:[#allocation4 + $0x678] sm:$0xff] %v5500
        %5554 = vst [vmem:[#allocation4 + $0x680] sm:$0xff] %v5501
        %5555 = vst.msk [vmem:[#allocation4 + $0x688] sm:$0xff] %vm534, %v5461
        %5556 = vst [vmem:[#allocation4 + $0x690] sm:$0xff] %v5502
        %5557 = vst [vmem:[#allocation4 + $0x698] sm:$0xff] %v5503
        %5558 = vst [vmem:[#allocation4 + $0x6a0] sm:$0xff] %v5504
        %5559 = vst [vmem:[#allocation4 + $0x6a8] sm:$0xff] %v5505
        %5560 = vst [vmem:[#allocation4 + $0x6b0] sm:$0xff] %v5506
        %5561 = vst [vmem:[#allocation4 + $0x6b8] sm:$0xff] %v5507
        %5562 = vst.msk [vmem:[#allocation4 + $0x6c0] sm:$0xff] %vm534, %v5475
        %5563 = vst [vmem:[#allocation4 + $0x6c8] sm:$0xff] %v5508
        %5564 = vst [vmem:[#allocation4 + $0x6d0] sm:$0xff] %v5509
        %5565 = vst [vmem:[#allocation4 + $0x6d8] sm:$0xff] %v5510
        %5566 = vst [vmem:[#allocation4 + $0x6e0] sm:$0xff] %v5511
        %5567 = vst [vmem:[#allocation4 + $0x6e8] sm:$0xff] %v5512
        %5568 = vst [vmem:[#allocation4 + $0x6f0] sm:$0xff] %v5513
        %5569 = vst.msk [vmem:[#allocation4 + $0x6f8] sm:$0xff] %vm534, %v5489
        %v5570 = vld [vmem:[#allocation3] sm:$0xff]
        %v5571 = vld [vmem:[#allocation3 + $0x8] sm:$0xff]
        %v5572 = vld [vmem:[#allocation3 + $0x10] sm:$0xff]
        %v5573 = vld [vmem:[#allocation3 + $0x18] sm:$0xff]
        %v5574 = vld [vmem:[#allocation3 + $0x20] sm:$0xff]
        %v5575 = vld [vmem:[#allocation3 + $0x28] sm:$0xff]
        %v5576 = vld [vmem:[#allocation3 + $0x30] sm:$0xff]
        %v5577 = vld [vmem:[#allocation3 + $0x38] sm:$0xff]
        %v5578 = vld [vmem:[#allocation3 + $0x40] sm:$0xff]
        %v5579 = vld [vmem:[#allocation3 + $0x48] sm:$0xff]
        %v5580 = vld [vmem:[#allocation3 + $0x50] sm:$0xff]
        %v5581 = vld [vmem:[#allocation3 + $0x58] sm:$0xff]
        %v5582 = vld [vmem:[#allocation3 + $0x60] sm:$0xff]
        %v5583 = vld [vmem:[#allocation3 + $0x68] sm:$0xff]
        %v5584 = vld [vmem:[#allocation3 + $0x70] sm:$0xff]
        %v5585 = vld [vmem:[#allocation3 + $0x78] sm:$0xff]
        %v5586 = vld [vmem:[#allocation3 + $0x80] sm:$0xff]
        %v5587 = vld [vmem:[#allocation3 + $0x88] sm:$0xff]
        %v5588 = vld [vmem:[#allocation3 + $0x90] sm:$0xff]
        %v5589 = vld [vmem:[#allocation3 + $0x98] sm:$0xff]
        %v5590 = vld [vmem:[#allocation3 + $0xa0] sm:$0xff]
        %v5591 = vld [vmem:[#allocation3 + $0xa8] sm:$0xff]
        %v5592 = vld [vmem:[#allocation3 + $0xb0] sm:$0xff]
        %v5593 = vld [vmem:[#allocation3 + $0xb8] sm:$0xff]
        %v5594 = vld [vmem:[#allocation3 + $0xc0] sm:$0xff]
        %v5595 = vld [vmem:[#allocation3 + $0xc8] sm:$0xff]
        %v5596 = vld [vmem:[#allocation3 + $0xd0] sm:$0xff]
        %v5597 = vld [vmem:[#allocation3 + $0xd8] sm:$0xff]
        %v5598 = vld [vmem:[%s778] sm:$0x7f]
        %v5600 = vlaneseq
        %v5601 = vshrl.u32 %v5600, 7
        %v5602 = vsub.s32 0, %v5601
        %v5603 = vrot.slane %v5598, %v5602
        %v5604 = vlaneseq
        %v5605 = vshrl.u32 %v5604, 7
        %v5606 = vsub.s32 1, %v5605
        %v5607 = vrot.slane %v5598, %v5606
        %v5608 = vlaneseq
        %v5609 = vshrl.u32 %v5608, 7
        %v5610 = vsub.s32 2, %v5609
        %v5611 = vrot.slane %v5598, %v5610
        %v5612 = vlaneseq
        %v5613 = vshrl.u32 %v5612, 7
        %v5614 = vsub.s32 3, %v5613
        %v5615 = vrot.slane %v5598, %v5614
        %v5616 = vlaneseq
        %v5617 = vshrl.u32 %v5616, 7
        %v5618 = vsub.s32 4, %v5617
        %v5619 = vrot.slane %v5598, %v5618
        %v5620 = vlaneseq
        %v5621 = vshrl.u32 %v5620, 7
        %v5622 = vsub.s32 5, %v5621
        %v5623 = vrot.slane %v5598, %v5622
        %v5624 = vlaneseq
        %v5625 = vshrl.u32 %v5624, 7
        %v5626 = vsub.s32 6, %v5625
        %v5627 = vrot.slane %v5598, %v5626
        %5628 = vrot.lane.b32.xlu0 %v5603, 58
        %v5629 = vpop.permute.xlu0 %5628
        %5630 = vrot.lane.b32.xlu0 %v5607, 58
        %v5631 = vpop.permute.xlu0 %5630
        %5632 = vrot.lane.b32.xlu0 %v5611, 58
        %v5633 = vpop.permute.xlu0 %5632
        %5634 = vrot.lane.b32.xlu0 %v5615, 58
        %v5635 = vpop.permute.xlu0 %5634
        %5636 = vrot.lane.b32.xlu0 %v5619, 58
        %v5637 = vpop.permute.xlu0 %5636
        %5638 = vrot.lane.b32.xlu0 %v5623, 58
        %v5639 = vpop.permute.xlu0 %5638
        %5640 = vrot.lane.b32.xlu0 %v5627, 58
        %v5641 = vpop.permute.xlu0 %5640
        %v5642 = vsel %vm2325, %v5629, %v5631
        %v5643 = vsel %vm2325, %v5631, %v5633
        %v5644 = vsel %vm2325, %v5633, %v5635
        %v5645 = vsel %vm2325, %v5635, %v5637
        %v5646 = vsel %vm2325, %v5637, %v5639
        %v5647 = vsel %vm2325, %v5639, %v5641
        %v5655 = vmul.f32 %v5570, %v5629
        %v5656 = vmul.f32 %v5571, %v5642
        %v5657 = vmul.f32 %v5572, %v5643
        %v5658 = vmul.f32 %v5573, %v5644
        %v5659 = vmul.f32 %v5574, %v5645
        %v5660 = vmul.f32 %v5575, %v5646
        %v5661 = vmul.f32 %v5576, %v5647
        %v5662 = vmul.f32 %v5577, %v5629
        %v5663 = vmul.f32 %v5578, %v5642
        %v5664 = vmul.f32 %v5579, %v5643
        %v5665 = vmul.f32 %v5580, %v5644
        %v5666 = vmul.f32 %v5581, %v5645
        %v5667 = vmul.f32 %v5582, %v5646
        %v5668 = vmul.f32 %v5583, %v5647
        %v5669 = vmul.f32 %v5584, %v5629
        %v5670 = vmul.f32 %v5585, %v5642
        %v5671 = vmul.f32 %v5586, %v5643
        %v5672 = vmul.f32 %v5587, %v5644
        %v5673 = vmul.f32 %v5588, %v5645
        %v5674 = vmul.f32 %v5589, %v5646
        %v5675 = vmul.f32 %v5590, %v5647
        %v5676 = vmul.f32 %v5591, %v5629
        %v5677 = vmul.f32 %v5592, %v5642
        %v5678 = vmul.f32 %v5593, %v5643
        %v5679 = vmul.f32 %v5594, %v5644
        %v5680 = vmul.f32 %v5595, %v5645
        %v5681 = vmul.f32 %v5596, %v5646
        %v5682 = vmul.f32 %v5597, %v5647
        %5711 = vrot.lane.b32.xlu0 %v5655, 70
        %v5712 = vpop.permute.xlu0 %5711
        %5713 = vrot.lane.b32.xlu0 %v5656, 70
        %v5714 = vpop.permute.xlu0 %5713
        %5715 = vrot.lane.b32.xlu0 %v5657, 70
        %v5716 = vpop.permute.xlu0 %5715
        %5717 = vrot.lane.b32.xlu0 %v5658, 70
        %v5718 = vpop.permute.xlu0 %5717
        %5719 = vrot.lane.b32.xlu0 %v5659, 70
        %v5720 = vpop.permute.xlu0 %5719
        %5721 = vrot.lane.b32.xlu0 %v5660, 70
        %v5722 = vpop.permute.xlu0 %5721
        %5723 = vrot.lane.b32.xlu0 %v5661, 70
        %v5724 = vpop.permute.xlu0 %5723
        %5725 = vrot.lane.b32.xlu0 %v5662, 70
        %v5726 = vpop.permute.xlu0 %5725
        %5727 = vrot.lane.b32.xlu0 %v5663, 70
        %v5728 = vpop.permute.xlu0 %5727
        %5729 = vrot.lane.b32.xlu0 %v5664, 70
        %v5730 = vpop.permute.xlu0 %5729
        %5731 = vrot.lane.b32.xlu0 %v5665, 70
        %v5732 = vpop.permute.xlu0 %5731
        %5733 = vrot.lane.b32.xlu0 %v5666, 70
        %v5734 = vpop.permute.xlu0 %5733
        %5735 = vrot.lane.b32.xlu0 %v5667, 70
        %v5736 = vpop.permute.xlu0 %5735
        %5737 = vrot.lane.b32.xlu0 %v5668, 70
        %v5738 = vpop.permute.xlu0 %5737
        %5739 = vrot.lane.b32.xlu0 %v5669, 70
        %v5740 = vpop.permute.xlu0 %5739
        %5741 = vrot.lane.b32.xlu0 %v5670, 70
        %v5742 = vpop.permute.xlu0 %5741
        %5743 = vrot.lane.b32.xlu0 %v5671, 70
        %v5744 = vpop.permute.xlu0 %5743
        %5745 = vrot.lane.b32.xlu0 %v5672, 70
        %v5746 = vpop.permute.xlu0 %5745
        %5747 = vrot.lane.b32.xlu0 %v5673, 70
        %v5748 = vpop.permute.xlu0 %5747
        %5749 = vrot.lane.b32.xlu0 %v5674, 70
        %v5750 = vpop.permute.xlu0 %5749
        %5751 = vrot.lane.b32.xlu0 %v5675, 70
        %v5752 = vpop.permute.xlu0 %5751
        %5753 = vrot.lane.b32.xlu0 %v5676, 70
        %v5754 = vpop.permute.xlu0 %5753
        %5755 = vrot.lane.b32.xlu0 %v5677, 70
        %v5756 = vpop.permute.xlu0 %5755
        %5757 = vrot.lane.b32.xlu0 %v5678, 70
        %v5758 = vpop.permute.xlu0 %5757
        %5759 = vrot.lane.b32.xlu0 %v5679, 70
        %v5760 = vpop.permute.xlu0 %5759
        %5761 = vrot.lane.b32.xlu0 %v5680, 70
        %v5762 = vpop.permute.xlu0 %5761
        %5763 = vrot.lane.b32.xlu0 %v5681, 70
        %v5764 = vpop.permute.xlu0 %5763
        %5765 = vrot.lane.b32.xlu0 %v5682, 70
        %v5766 = vpop.permute.xlu0 %5765
        %v5767 = vsel %vm2451, %v5712, %v5714
        %v5768 = vsel %vm2451, %v5714, %v5716
        %v5769 = vsel %vm2451, %v5716, %v5718
        %v5770 = vsel %vm2451, %v5718, %v5720
        %v5771 = vsel %vm2451, %v5720, %v5722
        %v5772 = vsel %vm2451, %v5722, %v5724
        %v5773 = vsel %vm2451, %v5726, %v5728
        %v5774 = vsel %vm2451, %v5728, %v5730
        %v5775 = vsel %vm2451, %v5730, %v5732
        %v5776 = vsel %vm2451, %v5732, %v5734
        %v5777 = vsel %vm2451, %v5734, %v5736
        %v5778 = vsel %vm2451, %v5736, %v5738
        %v5779 = vsel %vm2451, %v5740, %v5742
        %v5780 = vsel %vm2451, %v5742, %v5744
        %v5781 = vsel %vm2451, %v5744, %v5746
        %v5782 = vsel %vm2451, %v5746, %v5748
        %v5783 = vsel %vm2451, %v5748, %v5750
        %v5784 = vsel %vm2451, %v5750, %v5752
        %v5785 = vsel %vm2451, %v5754, %v5756
        %v5786 = vsel %vm2451, %v5756, %v5758
        %v5787 = vsel %vm2451, %v5758, %v5760
        %v5788 = vsel %vm2451, %v5760, %v5762
        %v5789 = vsel %vm2451, %v5762, %v5764
        %v5790 = vsel %vm2451, %v5764, %v5766
        %5819 = vst [vmem:[#allocation4 + $0x700] sm:$0xff] %v5767
        %5820 = vst [vmem:[#allocation4 + $0x708] sm:$0xff] %v5768
        %5821 = vst [vmem:[#allocation4 + $0x710] sm:$0xff] %v5769
        %5822 = vst [vmem:[#allocation4 + $0x718] sm:$0xff] %v5770
        %5823 = vst [vmem:[#allocation4 + $0x720] sm:$0xff] %v5771
        %5824 = vst [vmem:[#allocation4 + $0x728] sm:$0xff] %v5772
        %5825 = vst.msk [vmem:[#allocation4 + $0x730] sm:$0xff] %vm534, %v5724
        %5826 = vst [vmem:[#allocation4 + $0x738] sm:$0xff] %v5773
        %5827 = vst [vmem:[#allocation4 + $0x740] sm:$0xff] %v5774
        %5828 = vst [vmem:[#allocation4 + $0x748] sm:$0xff] %v5775
        %5829 = vst [vmem:[#allocation4 + $0x750] sm:$0xff] %v5776
        %5830 = vst [vmem:[#allocation4 + $0x758] sm:$0xff] %v5777
        %5831 = vst [vmem:[#allocation4 + $0x760] sm:$0xff] %v5778
        %5832 = vst.msk [vmem:[#allocation4 + $0x768] sm:$0xff] %vm534, %v5738
        %5833 = vst [vmem:[#allocation4 + $0x770] sm:$0xff] %v5779
        %5834 = vst [vmem:[#allocation4 + $0x778] sm:$0xff] %v5780
        %5835 = vst [vmem:[#allocation4 + $0x780] sm:$0xff] %v5781
        %5836 = vst [vmem:[#allocation4 + $0x788] sm:$0xff] %v5782
        %5837 = vst [vmem:[#allocation4 + $0x790] sm:$0xff] %v5783
        %5838 = vst [vmem:[#allocation4 + $0x798] sm:$0xff] %v5784
        %5839 = vst.msk [vmem:[#allocation4 + $0x7a0] sm:$0xff] %vm534, %v5752
        %5840 = vst [vmem:[#allocation4 + $0x7a8] sm:$0xff] %v5785
        %5841 = vst [vmem:[#allocation4 + $0x7b0] sm:$0xff] %v5786
        %5842 = vst [vmem:[#allocation4 + $0x7b8] sm:$0xff] %v5787
        %5843 = vst [vmem:[#allocation4 + $0x7c0] sm:$0xff] %v5788
        %5844 = vst [vmem:[#allocation4 + $0x7c8] sm:$0xff] %v5789
        %5845 = vst [vmem:[#allocation4 + $0x7d0] sm:$0xff] %v5790
        %5846 = vst.msk [vmem:[#allocation4 + $0x7d8] sm:$0xff] %vm534, %v5766
        %s5847 = scalar_lea.vmem [#allocation8], 96
        %v5848 = vld [vmem:[%s5847] sm:$0xff]
        %v5849 = vld [vmem:[%s5847 + $0x8] sm:$0xff]
        %v5850 = vld [vmem:[%s5847 + $0x10] sm:$0xff]
        %v5851 = vld [vmem:[%s5847 + $0x18] sm:$0xff]
        %v5852 = vld [vmem:[%s5847 + $0x20] sm:$0xff]
        %v5853 = vld [vmem:[%s5847 + $0x28] sm:$0xff]
        %v5854 = vld [vmem:[%s5847 + $0x30] sm:$0xff]
        %v5855 = vld [vmem:[%s5847 + $0x38] sm:$0xff]
        %v5856 = vld [vmem:[%s5847 + $0x40] sm:$0xff]
        %v5857 = vld [vmem:[%s5847 + $0x48] sm:$0xff]
        %v5858 = vld [vmem:[%s5847 + $0x50] sm:$0xff]
        %v5859 = vld [vmem:[%s5847 + $0x58] sm:$0xff]
        %v5860 = vld [vmem:[#allocation4] sm:$0xff]
        %v5861 = vld [vmem:[#allocation4 + $0x8] sm:$0xff]
        %v5862 = vld [vmem:[#allocation4 + $0x10] sm:$0xff]
        %v5863 = vld [vmem:[#allocation4 + $0x18] sm:$0xff]
        %v5864 = vld [vmem:[#allocation4 + $0x20] sm:$0xff]
        %v5865 = vld [vmem:[#allocation4 + $0x28] sm:$0xff]
        %v5866 = vld [vmem:[#allocation4 + $0x30] sm:$0xff]
        %v5867 = vld [vmem:[#allocation4 + $0x38] sm:$0xff]
        %v5868 = vld [vmem:[#allocation4 + $0x40] sm:$0xff]
        %v5869 = vld [vmem:[#allocation4 + $0x48] sm:$0xff]
        %v5870 = vld [vmem:[#allocation4 + $0x50] sm:$0xff]
        %v5871 = vld [vmem:[#allocation4 + $0x58] sm:$0xff]
        %v5872 = vld [vmem:[#allocation4 + $0x60] sm:$0xff]
        %v5873 = vld [vmem:[#allocation4 + $0x68] sm:$0xff]
        %v5874 = vld [vmem:[#allocation4 + $0x70] sm:$0xff]
        %v5875 = vld [vmem:[#allocation4 + $0x78] sm:$0xff]
        %v5876 = vld [vmem:[#allocation4 + $0x80] sm:$0xff]
        %v5877 = vld [vmem:[#allocation4 + $0x88] sm:$0xff]
        %v5878 = vld [vmem:[#allocation4 + $0x90] sm:$0xff]
        %v5879 = vld [vmem:[#allocation4 + $0x98] sm:$0xff]
        %v5880 = vld [vmem:[#allocation4 + $0xa0] sm:$0xff]
        %v5881 = vld [vmem:[#allocation4 + $0xa8] sm:$0xff]
        %v5882 = vld [vmem:[#allocation4 + $0xb0] sm:$0xff]
        %v5883 = vld [vmem:[#allocation4 + $0xb8] sm:$0xff]
        %v5884 = vld [vmem:[#allocation4 + $0xc0] sm:$0xff]
        %v5885 = vld [vmem:[#allocation4 + $0xc8] sm:$0xff]
        %v5886 = vld [vmem:[#allocation4 + $0xd0] sm:$0xff]
        %v5887 = vld [vmem:[#allocation4 + $0xd8] sm:$0xff]
        %v5888 = vld [vmem:[#allocation4 + $0xe0] sm:$0xff]
        %v5889 = vld [vmem:[#allocation4 + $0xe8] sm:$0xff]
        %v5890 = vld [vmem:[#allocation4 + $0xf0] sm:$0xff]
        %v5891 = vld [vmem:[#allocation4 + $0xf8] sm:$0xff]
        %v5892 = vld [vmem:[#allocation4 + $0x100] sm:$0xff]
        %v5893 = vld [vmem:[#allocation4 + $0x108] sm:$0xff]
        %v5894 = vld [vmem:[#allocation4 + $0x110] sm:$0xff]
        %v5895 = vld [vmem:[#allocation4 + $0x118] sm:$0xff]
        %v5896 = vld [vmem:[#allocation4 + $0x120] sm:$0xff]
        %v5897 = vld [vmem:[#allocation4 + $0x128] sm:$0xff]
        %v5898 = vld [vmem:[#allocation4 + $0x130] sm:$0xff]
        %v5899 = vld [vmem:[#allocation4 + $0x138] sm:$0xff]
        %v5900 = vld [vmem:[#allocation4 + $0x140] sm:$0xff]
        %v5901 = vld [vmem:[#allocation4 + $0x148] sm:$0xff]
        %v5902 = vld [vmem:[#allocation4 + $0x150] sm:$0xff]
        %v5903 = vld [vmem:[#allocation4 + $0x158] sm:$0xff]
        %v5904 = vld [vmem:[#allocation4 + $0x160] sm:$0xff]
        %v5905 = vld [vmem:[#allocation4 + $0x168] sm:$0xff]
        %v5906 = vld [vmem:[#allocation4 + $0x170] sm:$0xff]
        %v5907 = vld [vmem:[#allocation4 + $0x178] sm:$0xff]
        %v5908 = vld [vmem:[#allocation4 + $0x180] sm:$0xff]
        %v5909 = vld [vmem:[#allocation4 + $0x188] sm:$0xff]
        %v5910 = vld [vmem:[#allocation4 + $0x190] sm:$0xff]
        %v5911 = vld [vmem:[#allocation4 + $0x198] sm:$0xff]
        %v5912 = vld [vmem:[#allocation4 + $0x1a0] sm:$0xff]
        %v5913 = vld [vmem:[#allocation4 + $0x1a8] sm:$0xff]
        %v5914 = vld [vmem:[#allocation4 + $0x1b0] sm:$0xff]
        %v5915 = vld [vmem:[#allocation4 + $0x1b8] sm:$0xff]
        %v5916 = vld [vmem:[#allocation4 + $0x1c0] sm:$0xff]
        %v5917 = vld [vmem:[#allocation4 + $0x1c8] sm:$0xff]
        %v5918 = vld [vmem:[#allocation4 + $0x1d0] sm:$0xff]
        %v5919 = vld [vmem:[#allocation4 + $0x1d8] sm:$0xff]
        %v5920 = vld [vmem:[#allocation4 + $0x1e0] sm:$0xff]
        %v5921 = vld [vmem:[#allocation4 + $0x1e8] sm:$0xff]
        %v5922 = vld [vmem:[#allocation4 + $0x1f0] sm:$0xff]
        %v5923 = vld [vmem:[#allocation4 + $0x1f8] sm:$0xff]
        %v5924 = vld [vmem:[#allocation4 + $0x200] sm:$0xff]
        %v5925 = vld [vmem:[#allocation4 + $0x208] sm:$0xff]
        %v5926 = vld [vmem:[#allocation4 + $0x210] sm:$0xff]
        %v5927 = vld [vmem:[#allocation4 + $0x218] sm:$0xff]
        %v5928 = vld [vmem:[#allocation4 + $0x220] sm:$0xff]
        %v5929 = vld [vmem:[#allocation4 + $0x228] sm:$0xff]
        %v5930 = vld [vmem:[#allocation4 + $0x230] sm:$0xff]
        %v5931 = vld [vmem:[#allocation4 + $0x238] sm:$0xff]
        %v5932 = vld [vmem:[#allocation4 + $0x240] sm:$0xff]
        %v5933 = vld [vmem:[#allocation4 + $0x248] sm:$0xff]
        %v5934 = vld [vmem:[#allocation4 + $0x250] sm:$0xff]
        %v5935 = vld [vmem:[#allocation4 + $0x258] sm:$0xff]
        %v5936 = vld [vmem:[#allocation4 + $0x260] sm:$0xff]
        %v5937 = vld [vmem:[#allocation4 + $0x268] sm:$0xff]
        %v5938 = vld [vmem:[#allocation4 + $0x270] sm:$0xff]
        %v5939 = vld [vmem:[#allocation4 + $0x278] sm:$0xff]
        %v5940 = vld [vmem:[#allocation4 + $0x280] sm:$0xff]
        %v5941 = vld [vmem:[#allocation4 + $0x288] sm:$0xff]
        %v5942 = vld [vmem:[#allocation4 + $0x290] sm:$0xff]
        %v5943 = vld [vmem:[#allocation4 + $0x298] sm:$0xff]
        %v5944 = vld [vmem:[#allocation4 + $0x2a0] sm:$0xff]
        %v5945 = vld [vmem:[#allocation4 + $0x2a8] sm:$0xff]
        %v5946 = vld [vmem:[#allocation4 + $0x2b0] sm:$0xff]
        %v5947 = vld [vmem:[#allocation4 + $0x2b8] sm:$0xff]
        %v5948 = vld [vmem:[#allocation4 + $0x2c0] sm:$0xff]
        %v5949 = vld [vmem:[#allocation4 + $0x2c8] sm:$0xff]
        %v5950 = vld [vmem:[#allocation4 + $0x2d0] sm:$0xff]
        %v5951 = vld [vmem:[#allocation4 + $0x2d8] sm:$0xff]
        %v5952 = vld [vmem:[#allocation4 + $0x2e0] sm:$0xff]
        %v5953 = vld [vmem:[#allocation4 + $0x2e8] sm:$0xff]
        %v5954 = vld [vmem:[#allocation4 + $0x2f0] sm:$0xff]
        %v5955 = vld [vmem:[#allocation4 + $0x2f8] sm:$0xff]
        %v5956 = vld [vmem:[#allocation4 + $0x300] sm:$0xff]
        %v5957 = vld [vmem:[#allocation4 + $0x308] sm:$0xff]
        %v5958 = vld [vmem:[#allocation4 + $0x310] sm:$0xff]
        %v5959 = vld [vmem:[#allocation4 + $0x318] sm:$0xff]
        %v5960 = vld [vmem:[#allocation4 + $0x320] sm:$0xff]
        %v5961 = vld [vmem:[#allocation4 + $0x328] sm:$0xff]
        %v5962 = vld [vmem:[#allocation4 + $0x330] sm:$0xff]
        %v5963 = vld [vmem:[#allocation4 + $0x338] sm:$0xff]
        %v5964 = vld [vmem:[#allocation4 + $0x340] sm:$0xff]
        %v5965 = vld [vmem:[#allocation4 + $0x348] sm:$0xff]
        %v5966 = vld [vmem:[#allocation4 + $0x350] sm:$0xff]
        %v5967 = vld [vmem:[#allocation4 + $0x358] sm:$0xff]
        %v5968 = vld [vmem:[#allocation4 + $0x360] sm:$0xff]
        %v5969 = vld [vmem:[#allocation4 + $0x368] sm:$0xff]
        %v5970 = vld [vmem:[#allocation4 + $0x370] sm:$0xff]
        %v5971 = vld [vmem:[#allocation4 + $0x378] sm:$0xff]
        %v5972 = vld [vmem:[#allocation4 + $0x380] sm:$0xff]
        %v5973 = vld [vmem:[#allocation4 + $0x388] sm:$0xff]
        %v5974 = vld [vmem:[#allocation4 + $0x390] sm:$0xff]
        %v5975 = vld [vmem:[#allocation4 + $0x398] sm:$0xff]
        %v5976 = vld [vmem:[#allocation4 + $0x3a0] sm:$0xff]
        %v5977 = vld [vmem:[#allocation4 + $0x3a8] sm:$0xff]
        %v5978 = vld [vmem:[#allocation4 + $0x3b0] sm:$0xff]
        %v5979 = vld [vmem:[#allocation4 + $0x3b8] sm:$0xff]
        %v5980 = vld [vmem:[#allocation4 + $0x3c0] sm:$0xff]
        %v5981 = vld [vmem:[#allocation4 + $0x3c8] sm:$0xff]
        %v5982 = vld [vmem:[#allocation4 + $0x3d0] sm:$0xff]
        %v5983 = vld [vmem:[#allocation4 + $0x3d8] sm:$0xff]
        %v5984 = vld [vmem:[#allocation4 + $0x3e0] sm:$0xff]
        %v5985 = vld [vmem:[#allocation4 + $0x3e8] sm:$0xff]
        %v5986 = vld [vmem:[#allocation4 + $0x3f0] sm:$0xff]
        %v5987 = vld [vmem:[#allocation4 + $0x3f8] sm:$0xff]
        %v5988 = vld [vmem:[#allocation4 + $0x400] sm:$0xff]
        %v5989 = vld [vmem:[#allocation4 + $0x408] sm:$0xff]
        %v5990 = vld [vmem:[#allocation4 + $0x410] sm:$0xff]
        %v5991 = vld [vmem:[#allocation4 + $0x418] sm:$0xff]
        %v5992 = vld [vmem:[#allocation4 + $0x420] sm:$0xff]
        %v5993 = vld [vmem:[#allocation4 + $0x428] sm:$0xff]
        %v5994 = vld [vmem:[#allocation4 + $0x430] sm:$0xff]
        %v5995 = vld [vmem:[#allocation4 + $0x438] sm:$0xff]
        %v5996 = vld [vmem:[#allocation4 + $0x440] sm:$0xff]
        %v5997 = vld [vmem:[#allocation4 + $0x448] sm:$0xff]
        %v5998 = vld [vmem:[#allocation4 + $0x450] sm:$0xff]
        %v5999 = vld [vmem:[#allocation4 + $0x458] sm:$0xff]
        %v6000 = vld [vmem:[#allocation4 + $0x460] sm:$0xff]
        %v6001 = vld [vmem:[#allocation4 + $0x468] sm:$0xff]
        %v6002 = vld [vmem:[#allocation4 + $0x470] sm:$0xff]
        %v6003 = vld [vmem:[#allocation4 + $0x478] sm:$0xff]
        %v6004 = vld [vmem:[#allocation4 + $0x480] sm:$0xff]
        %v6005 = vld [vmem:[#allocation4 + $0x488] sm:$0xff]
        %v6006 = vld [vmem:[#allocation4 + $0x490] sm:$0xff]
        %v6007 = vld [vmem:[#allocation4 + $0x498] sm:$0xff]
        %v6008 = vld [vmem:[#allocation4 + $0x4a0] sm:$0xff]
        %v6009 = vld [vmem:[#allocation4 + $0x4a8] sm:$0xff]
        %v6010 = vld [vmem:[#allocation4 + $0x4b0] sm:$0xff]
        %v6011 = vld [vmem:[#allocation4 + $0x4b8] sm:$0xff]
        %v6012 = vld [vmem:[#allocation4 + $0x4c0] sm:$0xff]
        %v6013 = vld [vmem:[#allocation4 + $0x4c8] sm:$0xff]
        %v6014 = vld [vmem:[#allocation4 + $0x4d0] sm:$0xff]
        %v6015 = vld [vmem:[#allocation4 + $0x4d8] sm:$0xff]
        %v6016 = vld [vmem:[#allocation4 + $0x4e0] sm:$0xff]
        %v6017 = vld [vmem:[#allocation4 + $0x4e8] sm:$0xff]
        %v6018 = vld [vmem:[#allocation4 + $0x4f0] sm:$0xff]
        %v6019 = vld [vmem:[#allocation4 + $0x4f8] sm:$0xff]
        %v6020 = vld [vmem:[#allocation4 + $0x500] sm:$0xff]
        %v6021 = vld [vmem:[#allocation4 + $0x508] sm:$0xff]
        %v6022 = vld [vmem:[#allocation4 + $0x510] sm:$0xff]
        %v6023 = vld [vmem:[#allocation4 + $0x518] sm:$0xff]
        %v6024 = vld [vmem:[#allocation4 + $0x520] sm:$0xff]
        %v6025 = vld [vmem:[#allocation4 + $0x528] sm:$0xff]
        %v6026 = vld [vmem:[#allocation4 + $0x530] sm:$0xff]
        %v6027 = vld [vmem:[#allocation4 + $0x538] sm:$0xff]
        %v6028 = vld [vmem:[#allocation4 + $0x540] sm:$0xff]
        %v6029 = vld [vmem:[#allocation4 + $0x548] sm:$0xff]
        %v6030 = vld [vmem:[#allocation4 + $0x550] sm:$0xff]
        %v6031 = vld [vmem:[#allocation4 + $0x558] sm:$0xff]
        %v6032 = vld [vmem:[#allocation4 + $0x560] sm:$0xff]
        %v6033 = vld [vmem:[#allocation4 + $0x568] sm:$0xff]
        %v6034 = vld [vmem:[#allocation4 + $0x570] sm:$0xff]
        %v6035 = vld [vmem:[#allocation4 + $0x578] sm:$0xff]
        %v6036 = vld [vmem:[#allocation4 + $0x580] sm:$0xff]
        %v6037 = vld [vmem:[#allocation4 + $0x588] sm:$0xff]
        %v6038 = vld [vmem:[#allocation4 + $0x590] sm:$0xff]
        %v6039 = vld [vmem:[#allocation4 + $0x598] sm:$0xff]
        %v6040 = vld [vmem:[#allocation4 + $0x5a0] sm:$0xff]
        %v6041 = vld [vmem:[#allocation4 + $0x5a8] sm:$0xff]
        %v6042 = vld [vmem:[#allocation4 + $0x5b0] sm:$0xff]
        %v6043 = vld [vmem:[#allocation4 + $0x5b8] sm:$0xff]
        %v6044 = vld [vmem:[#allocation4 + $0x5c0] sm:$0xff]
        %v6045 = vld [vmem:[#allocation4 + $0x5c8] sm:$0xff]
        %v6046 = vld [vmem:[#allocation4 + $0x5d0] sm:$0xff]
        %v6047 = vld [vmem:[#allocation4 + $0x5d8] sm:$0xff]
        %v6048 = vld [vmem:[#allocation4 + $0x5e0] sm:$0xff]
        %v6049 = vld [vmem:[#allocation4 + $0x5e8] sm:$0xff]
        %v6050 = vld [vmem:[#allocation4 + $0x5f0] sm:$0xff]
        %v6051 = vld [vmem:[#allocation4 + $0x5f8] sm:$0xff]
        %v6052 = vld [vmem:[#allocation4 + $0x600] sm:$0xff]
        %v6053 = vld [vmem:[#allocation4 + $0x608] sm:$0xff]
        %v6054 = vld [vmem:[#allocation4 + $0x610] sm:$0xff]
        %v6055 = vld [vmem:[#allocation4 + $0x618] sm:$0xff]
        %v6056 = vld [vmem:[#allocation4 + $0x620] sm:$0xff]
        %v6057 = vld [vmem:[#allocation4 + $0x628] sm:$0xff]
        %v6058 = vld [vmem:[#allocation4 + $0x630] sm:$0xff]
        %v6059 = vld [vmem:[#allocation4 + $0x638] sm:$0xff]
        %v6060 = vld [vmem:[#allocation4 + $0x640] sm:$0xff]
        %v6061 = vld [vmem:[#allocation4 + $0x648] sm:$0xff]
        %v6062 = vld [vmem:[#allocation4 + $0x650] sm:$0xff]
        %v6063 = vld [vmem:[#allocation4 + $0x658] sm:$0xff]
        %v6064 = vld [vmem:[#allocation4 + $0x660] sm:$0xff]
        %v6065 = vld [vmem:[#allocation4 + $0x668] sm:$0xff]
        %v6066 = vld [vmem:[#allocation4 + $0x670] sm:$0xff]
        %v6067 = vld [vmem:[#allocation4 + $0x678] sm:$0xff]
        %v6068 = vld [vmem:[#allocation4 + $0x680] sm:$0xff]
        %v6069 = vld [vmem:[#allocation4 + $0x688] sm:$0xff]
        %v6070 = vld [vmem:[#allocation4 + $0x690] sm:$0xff]
        %v6071 = vld [vmem:[#allocation4 + $0x698] sm:$0xff]
        %v6072 = vld [vmem:[#allocation4 + $0x6a0] sm:$0xff]
        %v6073 = vld [vmem:[#allocation4 + $0x6a8] sm:$0xff]
        %v6074 = vld [vmem:[#allocation4 + $0x6b0] sm:$0xff]
        %v6075 = vld [vmem:[#allocation4 + $0x6b8] sm:$0xff]
        %v6076 = vld [vmem:[#allocation4 + $0x6c0] sm:$0xff]
        %v6077 = vld [vmem:[#allocation4 + $0x6c8] sm:$0xff]
        %v6078 = vld [vmem:[#allocation4 + $0x6d0] sm:$0xff]
        %v6079 = vld [vmem:[#allocation4 + $0x6d8] sm:$0xff]
        %v6080 = vld [vmem:[#allocation4 + $0x6e0] sm:$0xff]
        %v6081 = vld [vmem:[#allocation4 + $0x6e8] sm:$0xff]
        %v6082 = vld [vmem:[#allocation4 + $0x6f0] sm:$0xff]
        %v6083 = vld [vmem:[#allocation4 + $0x6f8] sm:$0xff]
        %v6084 = vld [vmem:[#allocation4 + $0x700] sm:$0xff]
        %v6085 = vld [vmem:[#allocation4 + $0x708] sm:$0xff]
        %v6086 = vld [vmem:[#allocation4 + $0x710] sm:$0xff]
        %v6087 = vld [vmem:[#allocation4 + $0x718] sm:$0xff]
        %v6088 = vld [vmem:[#allocation4 + $0x720] sm:$0xff]
        %v6089 = vld [vmem:[#allocation4 + $0x728] sm:$0xff]
        %v6090 = vld [vmem:[#allocation4 + $0x730] sm:$0xff]
        %v6091 = vld [vmem:[#allocation4 + $0x738] sm:$0xff]
        %v6092 = vld [vmem:[#allocation4 + $0x740] sm:$0xff]
        %v6093 = vld [vmem:[#allocation4 + $0x748] sm:$0xff]
        %v6094 = vld [vmem:[#allocation4 + $0x750] sm:$0xff]
        %v6095 = vld [vmem:[#allocation4 + $0x758] sm:$0xff]
        %v6096 = vld [vmem:[#allocation4 + $0x760] sm:$0xff]
        %v6097 = vld [vmem:[#allocation4 + $0x768] sm:$0xff]
        %v6098 = vld [vmem:[#allocation4 + $0x770] sm:$0xff]
        %v6099 = vld [vmem:[#allocation4 + $0x778] sm:$0xff]
        %v6100 = vld [vmem:[#allocation4 + $0x780] sm:$0xff]
        %v6101 = vld [vmem:[#allocation4 + $0x788] sm:$0xff]
        %v6102 = vld [vmem:[#allocation4 + $0x790] sm:$0xff]
        %v6103 = vld [vmem:[#allocation4 + $0x798] sm:$0xff]
        %v6104 = vld [vmem:[#allocation4 + $0x7a0] sm:$0xff]
        %v6105 = vld [vmem:[#allocation4 + $0x7a8] sm:$0xff]
        %v6106 = vld [vmem:[#allocation4 + $0x7b0] sm:$0xff]
        %v6107 = vld [vmem:[#allocation4 + $0x7b8] sm:$0xff]
        %v6108 = vld [vmem:[#allocation4 + $0x7c0] sm:$0xff]
        %v6109 = vld [vmem:[#allocation4 + $0x7c8] sm:$0xff]
        %v6110 = vld [vmem:[#allocation4 + $0x7d0] sm:$0xff]
        %v6111 = vld [vmem:[#allocation4 + $0x7d8] sm:$0xff]
        %s6112 = scalar_lea.vmem %s2, 32
        %v6113 = vld [vmem:[%s6112] sm:$0xff]
        %v6114 = vld [vmem:[%s6112 + $0x8] sm:$0xff]
        %v6115 = vld [vmem:[%s6112 + $0x10] sm:$0xff]
        %v6116 = vld [vmem:[%s6112 + $0x18] sm:$0xff]
        %6118 = vset.pattern.permute.xlu0 0
        %6119 = vperm.xlu0 %6118, %v6113
        %v6120 = vpop.permute.xlu0 %6119
        %6123 = vset.pattern.permute.xlu0 0
        %6124 = vperm.xlu0 %6123, %v6114
        %v6125 = vpop.permute.xlu0 %6124
        %6128 = vset.pattern.permute.xlu0 0
        %6129 = vperm.xlu0 %6128, %v6115
        %v6130 = vpop.permute.xlu0 %6129
        %6133 = vset.pattern.permute.xlu0 0
        %6134 = vperm.xlu0 %6133, %v6116
        %v6135 = vpop.permute.xlu0 %6134
        %v6138 = vsel %vm2820, %v5850, 0
        %v6141 = vsel %vm2820, %v5853, 0
        %v6144 = vsel %vm2820, %v5856, 0
        %v6147 = vsel %vm2820, %v5859, 0
        %6149 = vmatprep.subr.mxu0 %v5966
        %6150 = vmatpush1.msra.mxu0 %v5965
        %6151 = vmatprep.subr.mxu0 %v5959
        %6152 = vmatpush1.msra.mxu0 %v5958
        %6153 = vmatprep.subr.mxu0 %v5952
        %6154 = vmatpush1.msra.mxu0 %v5951
        %6155 = vmatprep.subr.mxu0 %v5945
        %6156 = vmatpush1.msra.mxu0 %v5944
        %6157 = vmatprep.subr.mxu0 %v5938
        %6158 = vmatpush1.msra.mxu0 %v5937
        %6159 = vmatprep.subr.mxu0 %v5931
        %6160 = vmatpush1.msra.mxu0 %v5930
        %6161 = vmatprep.subr.mxu0 %v5924
        %6162 = vmatpush1.msra.mxu0 %v5923
        %6163 = vmatprep.subr.mxu0 %v5917
        %6164 = vmatpush1.msra.mxu0 %v5916
        %6165 = vmatprep.subr.mxu0 %v5910
        %6166 = vmatpush1.msra.mxu0 %v5909
        %6167 = vmatprep.subr.mxu0 %v5903
        %6168 = vmatpush1.msra.mxu0 %v5902
        %6169 = vmatprep.subr.mxu0 %v5896
        %6170 = vmatpush1.msra.mxu0 %v5895
        %6171 = vmatprep.subr.mxu0 %v5889
        %6172 = vmatpush1.msra.mxu0 %v5888
        %6173 = vmatprep.subr.mxu0 %v5882
        %6174 = vmatpush1.msra.mxu0 %v5881
        %6175 = vmatprep.subr.mxu0 %v5875
        %6176 = vmatpush1.msra.mxu0 %v5874
        %6177 = vmatprep.subr.mxu0 %v5868
        %6178 = vmatpush1.msra.mxu0 %v5867
        %6179 = vmatprep.subr.mxu0 %v5861
        %6180 = vmatpush1.msra.mxu0 %v5860
        %6181 = vmatprep.subr.mxu0 %v6078
        %6182 = vmatpush2.msra.mxu0 %v6077
        %6183 = vmatprep.subr.mxu0 %v6071
        %6184 = vmatpush2.msra.mxu0 %v6070
        %6185 = vmatprep.subr.mxu0 %v6064
        %6186 = vmatpush2.msra.mxu0 %v6063
        %6187 = vmatprep.subr.mxu0 %v6057
        %6188 = vmatpush2.msra.mxu0 %v6056
        %6189 = vmatprep.subr.mxu0 %v6050
        %6190 = vmatpush2.msra.mxu0 %v6049
        %6191 = vmatprep.subr.mxu0 %v6043
        %6192 = vmatpush2.msra.mxu0 %v6042
        %6193 = vmatprep.subr.mxu0 %v6036
        %6194 = vmatpush2.msra.mxu0 %v6035
        %6195 = vmatprep.subr.mxu0 %v6029
        %6196 = vmatpush2.msra.mxu0 %v6028
        %6197 = vmatprep.subr.mxu0 %v6022
        %6198 = vmatpush2.msra.mxu0 %v6021
        %6199 = vmatprep.subr.mxu0 %v6015
        %6200 = vmatpush2.msra.mxu0 %v6014
        %6201 = vmatprep.subr.mxu0 %v6008
        %6202 = vmatpush2.msra.mxu0 %v6007
        %6203 = vmatprep.subr.mxu0 %v6001
        %6204 = vmatpush2.msra.mxu0 %v6000
        %6205 = vmatprep.subr.mxu0 %v5994
        %6206 = vmatpush2.msra.mxu0 %v5993
        %6207 = vmatprep.subr.mxu0 %v5987
        %6208 = vmatpush2.msra.mxu0 %v5986
        %6209 = vmatprep.subr.mxu0 %v5980
        %6210 = vmatpush2.msra.mxu0 %v5979
        %6211 = vmatprep.subr.mxu0 %v5973
        %6212 = vmatpush2.msra.mxu0 %v5972
        %6213 = vmatprep.mubr.f32.mxu0 %v5849
        %6214 = vmatmul.mubr.f32.gmra.mxu0 %v5848
        %v6215 = vpop.f32.mrf.mxu0
        %v6216 = vadd.f32 %v6120, %v6215
        %v6217 = vpop.f32.mrf.mxu0
        %v6218 = vadd.f32 %v6120, %v6217
        %6219 = vmatprep.mubr.f32.mxu0 %v5852
        %6220 = vmatmul.mubr.f32.gmra.mxu0 %v5851
        %v6221 = vpop.f32.mrf.mxu0
        %v6222 = vadd.f32 %v6125, %v6221
        %v6223 = vpop.f32.mrf.mxu0
        %v6224 = vadd.f32 %v6125, %v6223
        %6225 = vmatprep.mubr.f32.mxu0 %v5855
        %6226 = vmatmul.mubr.f32.gmra.mxu0 %v5854
        %v6227 = vpop.f32.mrf.mxu0
        %v6228 = vadd.f32 %v6130, %v6227
        %v6229 = vpop.f32.mrf.mxu0
        %v6230 = vadd.f32 %v6130, %v6229
        %6231 = vmatprep.mubr.f32.mxu0 %v5858
        %6232 = vmatmul.mubr.f32.gmra.mxu0 %v5857
        %v6233 = vpop.f32.mrf.mxu0
        %v6234 = vadd.f32 %v6135, %v6233
        %v6235 = vpop.f32.mrf.mxu0
        %v6236 = vadd.f32 %v6135, %v6235
        %6237 = vdwg.mxu0
        %6238 = vmatprep.subr.mxu0 0.0
        %6239 = vmatpush1.msra.mxu0 0.0
        %6240 = vmatprep.subr.mxu0 0.0
        %6241 = vmatpush1.msra.mxu0 0.0
        %6242 = vmatprep.subr.mxu0 0.0
        %6243 = vmatpush1.msra.mxu0 0.0
        %6244 = vmatprep.subr.mxu0 0.0
        %6245 = vmatpush1.msra.mxu0 0.0
        %6246 = vmatprep.subr.mxu0 0.0
        %6247 = vmatpush1.msra.mxu0 0.0
        %6248 = vmatprep.subr.mxu0 0.0
        %6249 = vmatpush1.msra.mxu0 0.0
        %6250 = vmatprep.subr.mxu0 0.0
        %6251 = vmatpush1.msra.mxu0 0.0
        %6252 = vmatprep.subr.mxu0 0.0
        %6253 = vmatpush1.msra.mxu0 0.0
        %6254 = vmatprep.subr.mxu0 0.0
        %6255 = vmatpush1.msra.mxu0 0.0
        %6256 = vmatprep.subr.mxu0 0.0
        %6257 = vmatpush1.msra.mxu0 0.0
        %6258 = vmatprep.subr.mxu0 0.0
        %6259 = vmatpush1.msra.mxu0 0.0
        %6260 = vmatprep.subr.mxu0 0.0
        %6261 = vmatpush1.msra.mxu0 0.0
        %6262 = vmatprep.subr.mxu0 %v6106
        %6263 = vmatpush1.msra.mxu0 %v6105
        %6264 = vmatprep.subr.mxu0 %v6099
        %6265 = vmatpush1.msra.mxu0 %v6098
        %6266 = vmatprep.subr.mxu0 %v6092
        %6267 = vmatpush1.msra.mxu0 %v6091
        %6268 = vmatprep.subr.mxu0 %v6085
        %6269 = vmatpush1.msra.mxu0 %v6084
        %6270 = vmatprep.subr.mxu0 0.0
        %6271 = vmatpush2.msra.mxu0 0.0
        %6272 = vmatprep.subr.mxu0 0.0
        %6273 = vmatpush2.msra.mxu0 0.0
        %6274 = vmatprep.subr.mxu0 0.0
        %6275 = vmatpush2.msra.mxu0 0.0
        %6276 = vmatprep.subr.mxu0 0.0
        %6277 = vmatpush2.msra.mxu0 0.0
        %6278 = vmatprep.subr.mxu0 0.0
        %6279 = vmatpush2.msra.mxu0 0.0
        %6280 = vmatprep.subr.mxu0 0.0
        %6281 = vmatpush2.msra.mxu0 0.0
        %6282 = vmatprep.subr.mxu0 0.0
        %6283 = vmatpush2.msra.mxu0 0.0
        %6284 = vmatprep.subr.mxu0 0.0
        %6285 = vmatpush2.msra.mxu0 0.0
        %6286 = vmatprep.subr.mxu0 0.0
        %6287 = vmatpush2.msra.mxu0 0.0
        %6288 = vmatprep.subr.mxu0 0.0
        %6289 = vmatpush2.msra.mxu0 0.0
        %6290 = vmatprep.subr.mxu0 0.0
        %6291 = vmatpush2.msra.mxu0 0.0
        %6292 = vmatprep.subr.mxu0 0.0
        %6293 = vmatpush2.msra.mxu0 0.0
        %6294 = vmatprep.subr.mxu0 0.0
        %6295 = vmatpush2.msra.mxu0 0.0
        %6296 = vmatprep.subr.mxu0 0.0
        %6297 = vmatpush2.msra.mxu0 0.0
        %6298 = vmatprep.subr.mxu0 0.0
        %6299 = vmatpush2.msra.mxu0 0.0
        %6300 = vmatprep.subr.mxu0 0.0
        %6301 = vmatpush2.msra.mxu0 0.0
        %6302 = vmatprep.mubr.f32.mxu0 0.0
        %6303 = vmatmul.mubr.f32.gmra.mxu0 %v6138
        %v6304 = vpop.f32.mrf.mxu0
        %v6305 = vadd.f32 %v6216, %v6304
        %v6306 = vpop.f32.mrf.mxu0
        %v6307 = vadd.f32 %v6218, %v6306
        %6308 = vmatprep.mubr.f32.mxu0 0.0
        %6309 = vmatmul.mubr.f32.gmra.mxu0 %v6141
        %v6310 = vpop.f32.mrf.mxu0
        %v6311 = vadd.f32 %v6222, %v6310
        %v6312 = vpop.f32.mrf.mxu0
        %v6313 = vadd.f32 %v6224, %v6312
        %6314 = vmatprep.mubr.f32.mxu0 0.0
        %6315 = vmatmul.mubr.f32.gmra.mxu0 %v6144
        %v6316 = vpop.f32.mrf.mxu0
        %v6317 = vadd.f32 %v6228, %v6316
        %v6318 = vpop.f32.mrf.mxu0
        %v6319 = vadd.f32 %v6230, %v6318
        %6320 = vmatprep.mubr.f32.mxu0 0.0
        %6321 = vmatmul.mubr.f32.gmra.mxu0 %v6147
        %v6322 = vpop.f32.mrf.mxu0
        %v6323 = vadd.f32 %v6234, %v6322
        %v6324 = vpop.f32.mrf.mxu0
        %v6325 = vadd.f32 %v6236, %v6324
        %6326 = vdwg.mxu0
        %6327 = vmatprep.subr.mxu0 %v5968
        %6328 = vmatpush1.msra.mxu0 %v5967
        %6329 = vmatprep.subr.mxu0 %v5961
        %6330 = vmatpush1.msra.mxu0 %v5960
        %6331 = vmatprep.subr.mxu0 %v5954
        %6332 = vmatpush1.msra.mxu0 %v5953
        %6333 = vmatprep.subr.mxu0 %v5947
        %6334 = vmatpush1.msra.mxu0 %v5946
        %6335 = vmatprep.subr.mxu0 %v5940
        %6336 = vmatpush1.msra.mxu0 %v5939
        %6337 = vmatprep.subr.mxu0 %v5933
        %6338 = vmatpush1.msra.mxu0 %v5932
        %6339 = vmatprep.subr.mxu0 %v5926
        %6340 = vmatpush1.msra.mxu0 %v5925
        %6341 = vmatprep.subr.mxu0 %v5919
        %6342 = vmatpush1.msra.mxu0 %v5918
        %6343 = vmatprep.subr.mxu0 %v5912
        %6344 = vmatpush1.msra.mxu0 %v5911
        %6345 = vmatprep.subr.mxu0 %v5905
        %6346 = vmatpush1.msra.mxu0 %v5904
        %6347 = vmatprep.subr.mxu0 %v5898
        %6348 = vmatpush1.msra.mxu0 %v5897
        %6349 = vmatprep.subr.mxu0 %v5891
        %6350 = vmatpush1.msra.mxu0 %v5890
        %6351 = vmatprep.subr.mxu0 %v5884
        %6352 = vmatpush1.msra.mxu0 %v5883
        %6353 = vmatprep.subr.mxu0 %v5877
        %6354 = vmatpush1.msra.mxu0 %v5876
        %6355 = vmatprep.subr.mxu0 %v5870
        %6356 = vmatpush1.msra.mxu0 %v5869
        %6357 = vmatprep.subr.mxu0 %v5863
        %6358 = vmatpush1.msra.mxu0 %v5862
        %6359 = vmatprep.subr.mxu0 %v6080
        %6360 = vmatpush2.msra.mxu0 %v6079
        %6361 = vmatprep.subr.mxu0 %v6073
        %6362 = vmatpush2.msra.mxu0 %v6072
        %6363 = vmatprep.subr.mxu0 %v6066
        %6364 = vmatpush2.msra.mxu0 %v6065
        %6365 = vmatprep.subr.mxu0 %v6059
        %6366 = vmatpush2.msra.mxu0 %v6058
        %6367 = vmatprep.subr.mxu0 %v6052
        %6368 = vmatpush2.msra.mxu0 %v6051
        %6369 = vmatprep.subr.mxu0 %v6045
        %6370 = vmatpush2.msra.mxu0 %v6044
        %6371 = vmatprep.subr.mxu0 %v6038
        %6372 = vmatpush2.msra.mxu0 %v6037
        %6373 = vmatprep.subr.mxu0 %v6031
        %6374 = vmatpush2.msra.mxu0 %v6030
        %6375 = vmatprep.subr.mxu0 %v6024
        %6376 = vmatpush2.msra.mxu0 %v6023
        %6377 = vmatprep.subr.mxu0 %v6017
        %6378 = vmatpush2.msra.mxu0 %v6016
        %6379 = vmatprep.subr.mxu0 %v6010
        %6380 = vmatpush2.msra.mxu0 %v6009
        %6381 = vmatprep.subr.mxu0 %v6003
        %6382 = vmatpush2.msra.mxu0 %v6002
        %6383 = vmatprep.subr.mxu0 %v5996
        %6384 = vmatpush2.msra.mxu0 %v5995
        %6385 = vmatprep.subr.mxu0 %v5989
        %6386 = vmatpush2.msra.mxu0 %v5988
        %6387 = vmatprep.subr.mxu0 %v5982
        %6388 = vmatpush2.msra.mxu0 %v5981
        %6389 = vmatprep.subr.mxu0 %v5975
        %6390 = vmatpush2.msra.mxu0 %v5974
        %6391 = vmatprep.mubr.f32.mxu0 %v5849
        %6392 = vmatmul.mubr.f32.gmra.mxu0 %v5848
        %v6393 = vpop.f32.mrf.mxu0
        %v6394 = vadd.f32 %v6120, %v6393
        %v6395 = vpop.f32.mrf.mxu0
        %v6396 = vadd.f32 %v6120, %v6395
        %6397 = vmatprep.mubr.f32.mxu0 %v5852
        %6398 = vmatmul.mubr.f32.gmra.mxu0 %v5851
        %v6399 = vpop.f32.mrf.mxu0
        %v6400 = vadd.f32 %v6125, %v6399
        %v6401 = vpop.f32.mrf.mxu0
        %v6402 = vadd.f32 %v6125, %v6401
        %6403 = vmatprep.mubr.f32.mxu0 %v5855
        %6404 = vmatmul.mubr.f32.gmra.mxu0 %v5854
        %v6405 = vpop.f32.mrf.mxu0
        %v6406 = vadd.f32 %v6130, %v6405
        %v6407 = vpop.f32.mrf.mxu0
        %v6408 = vadd.f32 %v6130, %v6407
        %6409 = vmatprep.mubr.f32.mxu0 %v5858
        %6410 = vmatmul.mubr.f32.gmra.mxu0 %v5857
        %v6411 = vpop.f32.mrf.mxu0
        %v6412 = vadd.f32 %v6135, %v6411
        %v6413 = vpop.f32.mrf.mxu0
        %v6414 = vadd.f32 %v6135, %v6413
        %6415 = vdwg.mxu0
        %6416 = vmatprep.subr.mxu0 0.0
        %6417 = vmatpush1.msra.mxu0 0.0
        %6418 = vmatprep.subr.mxu0 0.0
        %6419 = vmatpush1.msra.mxu0 0.0
        %6420 = vmatprep.subr.mxu0 0.0
        %6421 = vmatpush1.msra.mxu0 0.0
        %6422 = vmatprep.subr.mxu0 0.0
        %6423 = vmatpush1.msra.mxu0 0.0
        %6424 = vmatprep.subr.mxu0 0.0
        %6425 = vmatpush1.msra.mxu0 0.0
        %6426 = vmatprep.subr.mxu0 0.0
        %6427 = vmatpush1.msra.mxu0 0.0
        %6428 = vmatprep.subr.mxu0 0.0
        %6429 = vmatpush1.msra.mxu0 0.0
        %6430 = vmatprep.subr.mxu0 0.0
        %6431 = vmatpush1.msra.mxu0 0.0
        %6432 = vmatprep.subr.mxu0 0.0
        %6433 = vmatpush1.msra.mxu0 0.0
        %6434 = vmatprep.subr.mxu0 0.0
        %6435 = vmatpush1.msra.mxu0 0.0
        %6436 = vmatprep.subr.mxu0 0.0
        %6437 = vmatpush1.msra.mxu0 0.0
        %6438 = vmatprep.subr.mxu0 0.0
        %6439 = vmatpush1.msra.mxu0 0.0
        %6440 = vmatprep.subr.mxu0 %v6108
        %6441 = vmatpush1.msra.mxu0 %v6107
        %6442 = vmatprep.subr.mxu0 %v6101
        %6443 = vmatpush1.msra.mxu0 %v6100
        %6444 = vmatprep.subr.mxu0 %v6094
        %6445 = vmatpush1.msra.mxu0 %v6093
        %6446 = vmatprep.subr.mxu0 %v6087
        %6447 = vmatpush1.msra.mxu0 %v6086
        %6448 = vmatprep.subr.mxu0 0.0
        %6449 = vmatpush2.msra.mxu0 0.0
        %6450 = vmatprep.subr.mxu0 0.0
        %6451 = vmatpush2.msra.mxu0 0.0
        %6452 = vmatprep.subr.mxu0 0.0
        %6453 = vmatpush2.msra.mxu0 0.0
        %6454 = vmatprep.subr.mxu0 0.0
        %6455 = vmatpush2.msra.mxu0 0.0
        %6456 = vmatprep.subr.mxu0 0.0
        %6457 = vmatpush2.msra.mxu0 0.0
        %6458 = vmatprep.subr.mxu0 0.0
        %6459 = vmatpush2.msra.mxu0 0.0
        %6460 = vmatprep.subr.mxu0 0.0
        %6461 = vmatpush2.msra.mxu0 0.0
        %6462 = vmatprep.subr.mxu0 0.0
        %6463 = vmatpush2.msra.mxu0 0.0
        %6464 = vmatprep.subr.mxu0 0.0
        %6465 = vmatpush2.msra.mxu0 0.0
        %6466 = vmatprep.subr.mxu0 0.0
        %6467 = vmatpush2.msra.mxu0 0.0
        %6468 = vmatprep.subr.mxu0 0.0
        %6469 = vmatpush2.msra.mxu0 0.0
        %6470 = vmatprep.subr.mxu0 0.0
        %6471 = vmatpush2.msra.mxu0 0.0
        %6472 = vmatprep.subr.mxu0 0.0
        %6473 = vmatpush2.msra.mxu0 0.0
        %6474 = vmatprep.subr.mxu0 0.0
        %6475 = vmatpush2.msra.mxu0 0.0
        %6476 = vmatprep.subr.mxu0 0.0
        %6477 = vmatpush2.msra.mxu0 0.0
        %6478 = vmatprep.subr.mxu0 0.0
        %6479 = vmatpush2.msra.mxu0 0.0
        %6480 = vmatprep.mubr.f32.mxu0 0.0
        %6481 = vmatmul.mubr.f32.gmra.mxu0 %v6138
        %v6482 = vpop.f32.mrf.mxu0
        %v6483 = vadd.f32 %v6394, %v6482
        %v6484 = vpop.f32.mrf.mxu0
        %v6485 = vadd.f32 %v6396, %v6484
        %6486 = vmatprep.mubr.f32.mxu0 0.0
        %6487 = vmatmul.mubr.f32.gmra.mxu0 %v6141
        %v6488 = vpop.f32.mrf.mxu0
        %v6489 = vadd.f32 %v6400, %v6488
        %v6490 = vpop.f32.mrf.mxu0
        %v6491 = vadd.f32 %v6402, %v6490
        %6492 = vmatprep.mubr.f32.mxu0 0.0
        %6493 = vmatmul.mubr.f32.gmra.mxu0 %v6144
        %v6494 = vpop.f32.mrf.mxu0
        %v6495 = vadd.f32 %v6406, %v6494
        %v6496 = vpop.f32.mrf.mxu0
        %v6497 = vadd.f32 %v6408, %v6496
        %6498 = vmatprep.mubr.f32.mxu0 0.0
        %6499 = vmatmul.mubr.f32.gmra.mxu0 %v6147
        %v6500 = vpop.f32.mrf.mxu0
        %v6501 = vadd.f32 %v6412, %v6500
        %v6502 = vpop.f32.mrf.mxu0
        %v6503 = vadd.f32 %v6414, %v6502
        %6504 = vdwg.mxu0
        %6505 = vmatprep.subr.mxu0 %v5970
        %6506 = vmatpush1.msra.mxu0 %v5969
        %6507 = vmatprep.subr.mxu0 %v5963
        %6508 = vmatpush1.msra.mxu0 %v5962
        %6509 = vmatprep.subr.mxu0 %v5956
        %6510 = vmatpush1.msra.mxu0 %v5955
        %6511 = vmatprep.subr.mxu0 %v5949
        %6512 = vmatpush1.msra.mxu0 %v5948
        %6513 = vmatprep.subr.mxu0 %v5942
        %6514 = vmatpush1.msra.mxu0 %v5941
        %6515 = vmatprep.subr.mxu0 %v5935
        %6516 = vmatpush1.msra.mxu0 %v5934
        %6517 = vmatprep.subr.mxu0 %v5928
        %6518 = vmatpush1.msra.mxu0 %v5927
        %6519 = vmatprep.subr.mxu0 %v5921
        %6520 = vmatpush1.msra.mxu0 %v5920
        %6521 = vmatprep.subr.mxu0 %v5914
        %6522 = vmatpush1.msra.mxu0 %v5913
        %6523 = vmatprep.subr.mxu0 %v5907
        %6524 = vmatpush1.msra.mxu0 %v5906
        %6525 = vmatprep.subr.mxu0 %v5900
        %6526 = vmatpush1.msra.mxu0 %v5899
        %6527 = vmatprep.subr.mxu0 %v5893
        %6528 = vmatpush1.msra.mxu0 %v5892
        %6529 = vmatprep.subr.mxu0 %v5886
        %6530 = vmatpush1.msra.mxu0 %v5885
        %6531 = vmatprep.subr.mxu0 %v5879
        %6532 = vmatpush1.msra.mxu0 %v5878
        %6533 = vmatprep.subr.mxu0 %v5872
        %6534 = vmatpush1.msra.mxu0 %v5871
        %6535 = vmatprep.subr.mxu0 %v5865
        %6536 = vmatpush1.msra.mxu0 %v5864
        %6537 = vmatprep.subr.mxu0 %v6082
        %6538 = vmatpush2.msra.mxu0 %v6081
        %6539 = vmatprep.subr.mxu0 %v6075
        %6540 = vmatpush2.msra.mxu0 %v6074
        %6541 = vmatprep.subr.mxu0 %v6068
        %6542 = vmatpush2.msra.mxu0 %v6067
        %6543 = vmatprep.subr.mxu0 %v6061
        %6544 = vmatpush2.msra.mxu0 %v6060
        %6545 = vmatprep.subr.mxu0 %v6054
        %6546 = vmatpush2.msra.mxu0 %v6053
        %6547 = vmatprep.subr.mxu0 %v6047
        %6548 = vmatpush2.msra.mxu0 %v6046
        %6549 = vmatprep.subr.mxu0 %v6040
        %6550 = vmatpush2.msra.mxu0 %v6039
        %6551 = vmatprep.subr.mxu0 %v6033
        %6552 = vmatpush2.msra.mxu0 %v6032
        %6553 = vmatprep.subr.mxu0 %v6026
        %6554 = vmatpush2.msra.mxu0 %v6025
        %6555 = vmatprep.subr.mxu0 %v6019
        %6556 = vmatpush2.msra.mxu0 %v6018
        %6557 = vmatprep.subr.mxu0 %v6012
        %6558 = vmatpush2.msra.mxu0 %v6011
        %6559 = vmatprep.subr.mxu0 %v6005
        %6560 = vmatpush2.msra.mxu0 %v6004
        %6561 = vmatprep.subr.mxu0 %v5998
        %6562 = vmatpush2.msra.mxu0 %v5997
        %6563 = vmatprep.subr.mxu0 %v5991
        %6564 = vmatpush2.msra.mxu0 %v5990
        %6565 = vmatprep.subr.mxu0 %v5984
        %6566 = vmatpush2.msra.mxu0 %v5983
        %6567 = vmatprep.subr.mxu0 %v5977
        %6568 = vmatpush2.msra.mxu0 %v5976
        %6569 = vmatprep.mubr.f32.mxu0 %v5849
        %6570 = vmatmul.mubr.f32.gmra.mxu0 %v5848
        %v6571 = vpop.f32.mrf.mxu0
        %v6572 = vadd.f32 %v6120, %v6571
        %v6573 = vpop.f32.mrf.mxu0
        %v6574 = vadd.f32 %v6120, %v6573
        %6575 = vmatprep.mubr.f32.mxu0 %v5852
        %6576 = vmatmul.mubr.f32.gmra.mxu0 %v5851
        %v6577 = vpop.f32.mrf.mxu0
        %v6578 = vadd.f32 %v6125, %v6577
        %v6579 = vpop.f32.mrf.mxu0
        %v6580 = vadd.f32 %v6125, %v6579
        %6581 = vmatprep.mubr.f32.mxu0 %v5855
        %6582 = vmatmul.mubr.f32.gmra.mxu0 %v5854
        %v6583 = vpop.f32.mrf.mxu0
        %v6584 = vadd.f32 %v6130, %v6583
        %v6585 = vpop.f32.mrf.mxu0
        %v6586 = vadd.f32 %v6130, %v6585
        %6587 = vmatprep.mubr.f32.mxu0 %v5858
        %6588 = vmatmul.mubr.f32.gmra.mxu0 %v5857
        %v6589 = vpop.f32.mrf.mxu0
        %v6590 = vadd.f32 %v6135, %v6589
        %v6591 = vpop.f32.mrf.mxu0
        %v6592 = vadd.f32 %v6135, %v6591
        %6593 = vdwg.mxu0
        %6594 = vmatprep.subr.mxu0 0.0
        %6595 = vmatpush1.msra.mxu0 0.0
        %6596 = vmatprep.subr.mxu0 0.0
        %6597 = vmatpush1.msra.mxu0 0.0
        %6598 = vmatprep.subr.mxu0 0.0
        %6599 = vmatpush1.msra.mxu0 0.0
        %6600 = vmatprep.subr.mxu0 0.0
        %6601 = vmatpush1.msra.mxu0 0.0
        %6602 = vmatprep.subr.mxu0 0.0
        %6603 = vmatpush1.msra.mxu0 0.0
        %6604 = vmatprep.subr.mxu0 0.0
        %6605 = vmatpush1.msra.mxu0 0.0
        %6606 = vmatprep.subr.mxu0 0.0
        %6607 = vmatpush1.msra.mxu0 0.0
        %6608 = vmatprep.subr.mxu0 0.0
        %6609 = vmatpush1.msra.mxu0 0.0
        %6610 = vmatprep.subr.mxu0 0.0
        %6611 = vmatpush1.msra.mxu0 0.0
        %6612 = vmatprep.subr.mxu0 0.0
        %6613 = vmatpush1.msra.mxu0 0.0
        %6614 = vmatprep.subr.mxu0 0.0
        %6615 = vmatpush1.msra.mxu0 0.0
        %6616 = vmatprep.subr.mxu0 0.0
        %6617 = vmatpush1.msra.mxu0 0.0
        %6618 = vmatprep.subr.mxu0 %v6110
        %6619 = vmatpush1.msra.mxu0 %v6109
        %6620 = vmatprep.subr.mxu0 %v6103
        %6621 = vmatpush1.msra.mxu0 %v6102
        %6622 = vmatprep.subr.mxu0 %v6096
        %6623 = vmatpush1.msra.mxu0 %v6095
        %6624 = vmatprep.subr.mxu0 %v6089
        %6625 = vmatpush1.msra.mxu0 %v6088
        %6626 = vmatprep.subr.mxu0 0.0
        %6627 = vmatpush2.msra.mxu0 0.0
        %6628 = vmatprep.subr.mxu0 0.0
        %6629 = vmatpush2.msra.mxu0 0.0
        %6630 = vmatprep.subr.mxu0 0.0
        %6631 = vmatpush2.msra.mxu0 0.0
        %6632 = vmatprep.subr.mxu0 0.0
        %6633 = vmatpush2.msra.mxu0 0.0
        %6634 = vmatprep.subr.mxu0 0.0
        %6635 = vmatpush2.msra.mxu0 0.0
        %6636 = vmatprep.subr.mxu0 0.0
        %6637 = vmatpush2.msra.mxu0 0.0
        %6638 = vmatprep.subr.mxu0 0.0
        %6639 = vmatpush2.msra.mxu0 0.0
        %6640 = vmatprep.subr.mxu0 0.0
        %6641 = vmatpush2.msra.mxu0 0.0
        %6642 = vmatprep.subr.mxu0 0.0
        %6643 = vmatpush2.msra.mxu0 0.0
        %6644 = vmatprep.subr.mxu0 0.0
        %6645 = vmatpush2.msra.mxu0 0.0
        %6646 = vmatprep.subr.mxu0 0.0
        %6647 = vmatpush2.msra.mxu0 0.0
        %6648 = vmatprep.subr.mxu0 0.0
        %6649 = vmatpush2.msra.mxu0 0.0
        %6650 = vmatprep.subr.mxu0 0.0
        %6651 = vmatpush2.msra.mxu0 0.0
        %6652 = vmatprep.subr.mxu0 0.0
        %6653 = vmatpush2.msra.mxu0 0.0
        %6654 = vmatprep.subr.mxu0 0.0
        %6655 = vmatpush2.msra.mxu0 0.0
        %6656 = vmatprep.subr.mxu0 0.0
        %6657 = vmatpush2.msra.mxu0 0.0
        %6658 = vmatprep.mubr.f32.mxu0 0.0
        %6659 = vmatmul.mubr.f32.gmra.mxu0 %v6138
        %v6660 = vpop.f32.mrf.mxu0
        %v6661 = vadd.f32 %v6572, %v6660
        %v6662 = vpop.f32.mrf.mxu0
        %v6663 = vadd.f32 %v6574, %v6662
        %6664 = vmatprep.mubr.f32.mxu0 0.0
        %6665 = vmatmul.mubr.f32.gmra.mxu0 %v6141
        %v6666 = vpop.f32.mrf.mxu0
        %v6667 = vadd.f32 %v6578, %v6666
        %v6668 = vpop.f32.mrf.mxu0
        %v6669 = vadd.f32 %v6580, %v6668
        %6670 = vmatprep.mubr.f32.mxu0 0.0
        %6671 = vmatmul.mubr.f32.gmra.mxu0 %v6144
        %v6672 = vpop.f32.mrf.mxu0
        %v6673 = vadd.f32 %v6584, %v6672
        %v6674 = vpop.f32.mrf.mxu0
        %v6675 = vadd.f32 %v6586, %v6674
        %6676 = vmatprep.mubr.f32.mxu0 0.0
        %6677 = vmatmul.mubr.f32.gmra.mxu0 %v6147
        %v6678 = vpop.f32.mrf.mxu0
        %v6679 = vadd.f32 %v6590, %v6678
        %v6680 = vpop.f32.mrf.mxu0
        %v6681 = vadd.f32 %v6592, %v6680
        %6682 = vdwg.mxu0
        %6683 = vmatprep.subr.mxu0 0.0
        %6684 = vmatpush1.msra.mxu0 %v5971
        %6685 = vmatprep.subr.mxu0 0.0
        %6686 = vmatpush1.msra.mxu0 %v5964
        %6687 = vmatprep.subr.mxu0 0.0
        %6688 = vmatpush1.msra.mxu0 %v5957
        %6689 = vmatprep.subr.mxu0 0.0
        %6690 = vmatpush1.msra.mxu0 %v5950
        %6691 = vmatprep.subr.mxu0 0.0
        %6692 = vmatpush1.msra.mxu0 %v5943
        %6693 = vmatprep.subr.mxu0 0.0
        %6694 = vmatpush1.msra.mxu0 %v5936
        %6695 = vmatprep.subr.mxu0 0.0
        %6696 = vmatpush1.msra.mxu0 %v5929
        %6697 = vmatprep.subr.mxu0 0.0
        %6698 = vmatpush1.msra.mxu0 %v5922
        %6699 = vmatprep.subr.mxu0 0.0
        %6700 = vmatpush1.msra.mxu0 %v5915
        %6701 = vmatprep.subr.mxu0 0.0
        %6702 = vmatpush1.msra.mxu0 %v5908
        %6703 = vmatprep.subr.mxu0 0.0
        %6704 = vmatpush1.msra.mxu0 %v5901
        %6705 = vmatprep.subr.mxu0 0.0
        %6706 = vmatpush1.msra.mxu0 %v5894
        %6707 = vmatprep.subr.mxu0 0.0
        %6708 = vmatpush1.msra.mxu0 %v5887
        %6709 = vmatprep.subr.mxu0 0.0
        %6710 = vmatpush1.msra.mxu0 %v5880
        %6711 = vmatprep.subr.mxu0 0.0
        %6712 = vmatpush1.msra.mxu0 %v5873
        %6713 = vmatprep.subr.mxu0 0.0
        %6714 = vmatpush1.msra.mxu0 %v5866
        %6715 = vmatprep.subr.mxu0 0.0
        %6716 = vmatpush2.msra.mxu0 %v6083
        %6717 = vmatprep.subr.mxu0 0.0
        %6718 = vmatpush2.msra.mxu0 %v6076
        %6719 = vmatprep.subr.mxu0 0.0
        %6720 = vmatpush2.msra.mxu0 %v6069
        %6721 = vmatprep.subr.mxu0 0.0
        %6722 = vmatpush2.msra.mxu0 %v6062
        %6723 = vmatprep.subr.mxu0 0.0
        %6724 = vmatpush2.msra.mxu0 %v6055
        %6725 = vmatprep.subr.mxu0 0.0
        %6726 = vmatpush2.msra.mxu0 %v6048
        %6727 = vmatprep.subr.mxu0 0.0
        %6728 = vmatpush2.msra.mxu0 %v6041
        %6729 = vmatprep.subr.mxu0 0.0
        %6730 = vmatpush2.msra.mxu0 %v6034
        %6731 = vmatprep.subr.mxu0 0.0
        %6732 = vmatpush2.msra.mxu0 %v6027
        %6733 = vmatprep.subr.mxu0 0.0
        %6734 = vmatpush2.msra.mxu0 %v6020
        %6735 = vmatprep.subr.mxu0 0.0
        %6736 = vmatpush2.msra.mxu0 %v6013
        %6737 = vmatprep.subr.mxu0 0.0
        %6738 = vmatpush2.msra.mxu0 %v6006
        %6739 = vmatprep.subr.mxu0 0.0
        %6740 = vmatpush2.msra.mxu0 %v5999
        %6741 = vmatprep.subr.mxu0 0.0
        %6742 = vmatpush2.msra.mxu0 %v5992
        %6743 = vmatprep.subr.mxu0 0.0
        %6744 = vmatpush2.msra.mxu0 %v5985
        %6745 = vmatprep.subr.mxu0 0.0
        %6746 = vmatpush2.msra.mxu0 %v5978
        %6747 = vmatprep.mubr.f32.mxu0 %v5849
        %6748 = vmatmul.mubr.f32.gmra.mxu0 %v5848
        %v6749 = vpop.f32.mrf.mxu0
        %v6750 = vadd.f32 %v6120, %v6749
        %v6751 = vpop.f32.mrf.mxu0
        %6752 = vmatprep.mubr.f32.mxu0 %v5852
        %6753 = vmatmul.mubr.f32.gmra.mxu0 %v5851
        %v6754 = vpop.f32.mrf.mxu0
        %v6755 = vadd.f32 %v6125, %v6754
        %v6756 = vpop.f32.mrf.mxu0
        %6757 = vmatprep.mubr.f32.mxu0 %v5855
        %6758 = vmatmul.mubr.f32.gmra.mxu0 %v5854
        %v6759 = vpop.f32.mrf.mxu0
        %v6760 = vadd.f32 %v6130, %v6759
        %v6761 = vpop.f32.mrf.mxu0
        %6762 = vmatprep.mubr.f32.mxu0 %v5858
        %6763 = vmatmul.mubr.f32.gmra.mxu0 %v5857
        %v6764 = vpop.f32.mrf.mxu0
        %v6765 = vadd.f32 %v6135, %v6764
        %v6766 = vpop.f32.mrf.mxu0
        %6767 = vdwg.mxu0
        %6768 = vmatprep.subr.mxu0 0.0
        %6769 = vmatpush1.msra.mxu0 0.0
        %6770 = vmatprep.subr.mxu0 0.0
        %6771 = vmatpush1.msra.mxu0 0.0
        %6772 = vmatprep.subr.mxu0 0.0
        %6773 = vmatpush1.msra.mxu0 0.0
        %6774 = vmatprep.subr.mxu0 0.0
        %6775 = vmatpush1.msra.mxu0 0.0
        %6776 = vmatprep.subr.mxu0 0.0
        %6777 = vmatpush1.msra.mxu0 0.0
        %6778 = vmatprep.subr.mxu0 0.0
        %6779 = vmatpush1.msra.mxu0 0.0
        %6780 = vmatprep.subr.mxu0 0.0
        %6781 = vmatpush1.msra.mxu0 0.0
        %6782 = vmatprep.subr.mxu0 0.0
        %6783 = vmatpush1.msra.mxu0 0.0
        %6784 = vmatprep.subr.mxu0 0.0
        %6785 = vmatpush1.msra.mxu0 0.0
        %6786 = vmatprep.subr.mxu0 0.0
        %6787 = vmatpush1.msra.mxu0 0.0
        %6788 = vmatprep.subr.mxu0 0.0
        %6789 = vmatpush1.msra.mxu0 0.0
        %6790 = vmatprep.subr.mxu0 0.0
        %6791 = vmatpush1.msra.mxu0 0.0
        %6792 = vmatprep.subr.mxu0 0.0
        %6793 = vmatpush1.msra.mxu0 %v6111
        %6794 = vmatprep.subr.mxu0 0.0
        %6795 = vmatpush1.msra.mxu0 %v6104
        %6796 = vmatprep.subr.mxu0 0.0
        %6797 = vmatpush1.msra.mxu0 %v6097
        %6798 = vmatprep.subr.mxu0 0.0
        %6799 = vmatpush1.msra.mxu0 %v6090
        %6800 = vmatprep.subr.mxu0 0.0
        %6801 = vmatpush2.msra.mxu0 0.0
        %6802 = vmatprep.subr.mxu0 0.0
        %6803 = vmatpush2.msra.mxu0 0.0
        %6804 = vmatprep.subr.mxu0 0.0
        %6805 = vmatpush2.msra.mxu0 0.0
        %6806 = vmatprep.subr.mxu0 0.0
        %6807 = vmatpush2.msra.mxu0 0.0
        %6808 = vmatprep.subr.mxu0 0.0
        %6809 = vmatpush2.msra.mxu0 0.0
        %6810 = vmatprep.subr.mxu0 0.0
        %6811 = vmatpush2.msra.mxu0 0.0
        %6812 = vmatprep.subr.mxu0 0.0
        %6813 = vmatpush2.msra.mxu0 0.0
        %6814 = vmatprep.subr.mxu0 0.0
        %6815 = vmatpush2.msra.mxu0 0.0
        %6816 = vmatprep.subr.mxu0 0.0
        %6817 = vmatpush2.msra.mxu0 0.0
        %6818 = vmatprep.subr.mxu0 0.0
        %6819 = vmatpush2.msra.mxu0 0.0
        %6820 = vmatprep.subr.mxu0 0.0
        %6821 = vmatpush2.msra.mxu0 0.0
        %6822 = vmatprep.subr.mxu0 0.0
        %6823 = vmatpush2.msra.mxu0 0.0
        %6824 = vmatprep.subr.mxu0 0.0
        %6825 = vmatpush2.msra.mxu0 0.0
        %6826 = vmatprep.subr.mxu0 0.0
        %6827 = vmatpush2.msra.mxu0 0.0
        %6828 = vmatprep.subr.mxu0 0.0
        %6829 = vmatpush2.msra.mxu0 0.0
        %6830 = vmatprep.subr.mxu0 0.0
        %6831 = vmatpush2.msra.mxu0 0.0
        %6832 = vmatprep.mubr.f32.mxu0 0.0
        %6833 = vmatmul.mubr.f32.gmra.mxu0 %v6138
        %v6834 = vpop.f32.mrf.mxu0
        %v6835 = vadd.f32 %v6750, %v6834
        %v6836 = vpop.f32.mrf.mxu0
        %6837 = vmatprep.mubr.f32.mxu0 0.0
        %6838 = vmatmul.mubr.f32.gmra.mxu0 %v6141
        %v6839 = vpop.f32.mrf.mxu0
        %v6840 = vadd.f32 %v6755, %v6839
        %v6841 = vpop.f32.mrf.mxu0
        %6842 = vmatprep.mubr.f32.mxu0 0.0
        %6843 = vmatmul.mubr.f32.gmra.mxu0 %v6144
        %v6844 = vpop.f32.mrf.mxu0
        %v6845 = vadd.f32 %v6760, %v6844
        %v6846 = vpop.f32.mrf.mxu0
        %6847 = vmatprep.mubr.f32.mxu0 0.0
        %6848 = vmatmul.mubr.f32.gmra.mxu0 %v6147
        %v6849 = vpop.f32.mrf.mxu0
        %v6850 = vadd.f32 %v6765, %v6849
        %v6851 = vpop.f32.mrf.mxu0
        %6852 = vdwg.mxu0
        %v6853 = vadd.f32 %v3737, %v6305
        %v6854 = vadd.f32 %v3738, %v6307
        %v6855 = vadd.f32 %v3739, %v6483
        %v6856 = vadd.f32 %v3740, %v6485
        %v6857 = vadd.f32 %v3741, %v6661
        %v6858 = vadd.f32 %v3742, %v6663
        %v6859 = vadd.f32 %v3743, %v6835
        %v6860 = vadd.f32 %v3744, %v6311
        %v6861 = vadd.f32 %v3745, %v6313
        %v6862 = vadd.f32 %v3746, %v6489
        %v6863 = vadd.f32 %v3747, %v6491
        %v6864 = vadd.f32 %v3748, %v6667
        %v6865 = vadd.f32 %v3749, %v6669
        %v6866 = vadd.f32 %v3750, %v6840
        %v6867 = vadd.f32 %v3751, %v6317
        %v6868 = vadd.f32 %v3752, %v6319
        %v6869 = vadd.f32 %v3753, %v6495
        %v6870 = vadd.f32 %v3754, %v6497
        %v6871 = vadd.f32 %v3755, %v6673
        %v6872 = vadd.f32 %v3756, %v6675
        %v6873 = vadd.f32 %v3757, %v6845
        %v6874 = vadd.f32 %v3758, %v6323
        %v6875 = vadd.f32 %v3759, %v6325
        %v6876 = vadd.f32 %v3760, %v6501
        %v6877 = vadd.f32 %v3761, %v6503
        %v6878 = vadd.f32 %v3762, %v6679
        %v6879 = vadd.f32 %v3763, %v6681
        %v6880 = vadd.f32 %v3764, %v6850
        %6881 = vst [vmem:[%s230] sm:$0xff] %v6853
        %6882 = vst [vmem:[%s230 + $0x8] sm:$0xff] %v6854
        %6883 = vst [vmem:[%s230 + $0x10] sm:$0xff] %v6855
        %6884 = vst [vmem:[%s230 + $0x18] sm:$0xff] %v6856
        %6885 = vst [vmem:[%s230 + $0x20] sm:$0xff] %v6857
        %6886 = vst [vmem:[%s230 + $0x28] sm:$0xff] %v6858
        %6887 = vst.msk [vmem:[%s230 + $0x30] sm:$0xff] %vm534, %v6859
        %6888 = vst [vmem:[%s230 + $0x38] sm:$0xff] %v6860
        %6889 = vst [vmem:[%s230 + $0x40] sm:$0xff] %v6861
        %6890 = vst [vmem:[%s230 + $0x48] sm:$0xff] %v6862
        %6891 = vst [vmem:[%s230 + $0x50] sm:$0xff] %v6863
        %6892 = vst [vmem:[%s230 + $0x58] sm:$0xff] %v6864
        %6893 = vst [vmem:[%s230 + $0x60] sm:$0xff] %v6865
        %6894 = vst.msk [vmem:[%s230 + $0x68] sm:$0xff] %vm534, %v6866
        %6895 = vst [vmem:[%s230 + $0x70] sm:$0xff] %v6867
        %6896 = vst [vmem:[%s230 + $0x78] sm:$0xff] %v6868
        %6897 = vst [vmem:[%s230 + $0x80] sm:$0xff] %v6869
        %6898 = vst [vmem:[%s230 + $0x88] sm:$0xff] %v6870
        %6899 = vst [vmem:[%s230 + $0x90] sm:$0xff] %v6871
        %6900 = vst [vmem:[%s230 + $0x98] sm:$0xff] %v6872
        %6901 = vst.msk [vmem:[%s230 + $0xa0] sm:$0xff] %vm534, %v6873
        %6902 = vst [vmem:[%s230 + $0xa8] sm:$0xff] %v6874
        %6903 = vst [vmem:[%s230 + $0xb0] sm:$0xff] %v6875
        %6904 = vst [vmem:[%s230 + $0xb8] sm:$0xff] %v6876
        %6905 = vst [vmem:[%s230 + $0xc0] sm:$0xff] %v6877
        %6906 = vst [vmem:[%s230 + $0xc8] sm:$0xff] %v6878
        %6907 = vst [vmem:[%s230 + $0xd0] sm:$0xff] %v6879
        %6908 = vst.msk [vmem:[%s230 + $0xd8] sm:$0xff] %vm534, %v6880
        %s6909 = sand.u32 %s119, 1
        %s6910 = scalar_lea.sflag [#allocation7], %s6909
        %s6911 = sand.u32 %s119, 1
        %s6912 = smul.addr %s6911, 224
        %s6913 = scalar_lea.vmem [#allocation10], %s6912
        // Predicated region
        $region45: #{tpu_custom_call.1} parent=35 // pred_check
          %p6914 = pneg %p129
        $region46: #{tpu_custom_call.1} parent=35 // pred_check_branch
          %6916 = sbr.rel (%p6914) target = $region48
        $region47: #{tpu_custom_call.1} parent=35 // pred_region
          %s6918 = ssub.s32 3584, 3584
          %6919 = vsyncadd %s6910, %s6918
          %s6920 = smul.addr %s22, 28
          %s6921 = smul.addr %s6920, 128
          %s6922 = scalar_lea.hbm %s4, %s6921
          %s6923 = sshll.u32 %s6913, 4
          %s6924 = int_to_ptr.vmem [resolvable:$true] %s6923
          %6929 = dma.vmem_to_hbm [thread:$0]  %s6924, 3584, %s6922, %s6910, 896, 896, 56
        $region48: #{tpu_custom_call.1} parent=35 // pred_fallthru
          _
      $region36: #{tpu_custom_call.1} parent=5 // pred_fallthru
        _
      %p6930 = scmp.le.s32.totalorder 2, %s17
      // Predicated region
      $region49: #{tpu_custom_call.1} parent=5 // pred_check
        %p6931 = pneg %p6930
      $region50: #{tpu_custom_call.1} parent=5 // pred_check_branch
        %6933 = sbr.rel (%p6931) target = $region52
      $region51: #{tpu_custom_call.1} parent=5 // pred_region
        %s6934 = ssub.s32 %s17, 2
        // Predicated region
        $region53: #{tpu_custom_call.1} parent=51 // pred_check
          %p6935 = pneg %p135
        $region54: #{tpu_custom_call.1} parent=51 // pred_check_branch
          %6937 = sbr.rel (%p6935) target = $region56
        $region55: #{tpu_custom_call.1} parent=51 // pred_region
          %s6938 = sand.u32 %s120, 1
          %s6939 = scalar_lea.sflag [#allocation7], %s6938
          %s6940 = sand.u32 %s120, 1
          %s6941 = smul.addr %s6940, 224
          %s6942 = scalar_lea.vmem [#allocation10], %s6941
          %6943 = dma.done %s6939, 3584
        $region56: #{tpu_custom_call.1} parent=51 // pred_fallthru
          _
      $region52: #{tpu_custom_call.1} parent=5 // pred_fallthru
        _
    $region6: #{tpu_custom_call.1} parent=1 // loop_footer
      %s21 = sadd.s32 1, %s17
    $region7: #{tpu_custom_call.1} parent=1 // loop_footer_branch
      %16 = sbr.rel target = $region3
    $region8: #{tpu_custom_call.1} parent=1 // loop_exit
      _
    %6944 = vsyncpa [#allocation6], 1
    %s6945 = scalar_lea.sflag [#allocation6], 1
    %6946 = vsyncpa %s6945, 1
    %6947 = vsyncpa [#allocation9], 1
    %6948 = vsyncpa [#allocation7], 1
    %s6949 = scalar_lea.sflag [#allocation7], 1
    %6950 = vsyncpa %s6949, 1

</llo_original>
